<compile_context>
chip_gen: v7x
topology: tpu7x:2x2x1
jax: 0.10.0
libtpu: 0.0.40
codegen_flags: <defaults>
</compile_context>

<pallas_src>
import functools

import jax
import jax.numpy as jnp
import numpy as np
from jax import lax
from jax.experimental import pallas as pl
from jax.experimental.pallas import tpu as pltpu

LEAKY_SLOPE = 0.2
BN_EPS = 1e-5
MXU_DT = jnp.bfloat16      # matmul operand dtype (accumulation is f32)
CIN_PAD = 8                # conv1 input channels padded 3 -> 8 so K1 = 128


def _leaky(v):
    return jnp.where(v >= 0, v, LEAKY_SLOPE * v)


# ----------------------------------------------------------------------------
# The fused kernel
#
# Phase-packed scratch layouts (all static, all zero-padded):
#   h1 scratch: (N, 20, 20, 64)   h1s[n, ph*5+g, pw*5+gw, c] = h1_pad[n, 4g+ph, 4gw+pw, c]
#   h2 scratch: (N, 10, 10, 128)  h2s[n, p*5+g,  q*5+gw,  c] = h2_pad[n, 2g+p,  2gw+q,  c]
# With these layouts every stride-2 conv tap is a unit-stride 4-row window.
# ----------------------------------------------------------------------------
def _disc_fused_kernel(p1_ref, w1_ref, w2_ref, g2_ref, b2_ref,
                       w3_ref, g3_ref, b3_ref, w4_ref, o_ref,
                       h1_ref, h2_ref, *, batch):
    n = batch

    # ---- conv1: (N*256, 128) @ (128, 64), LeakyReLU ------------------------
    y1 = jnp.dot(p1_ref[...], w1_ref[...], preferred_element_type=jnp.float32)
    y1 = _leaky(y1)
    # patch rows were ordered (n, ph_h, ph_w, idx_h, idx_w) by the wrapper
    y1 = y1.reshape(n, 4, 4, 4, 4, 64)

    h1_ref[...] = jnp.zeros_like(h1_ref)
    for ph in range(4):
        rh = ph * 5 + (1 if ph == 0 else 0)
        for pw in range(4):
            rw = pw * 5 + (1 if pw == 0 else 0)
            h1_ref[:, rh:rh + 4, rw:rw + 4, :] = y1[:, ph, pw]

    # ---- conv2 (64->128, k4 s2 p1) + BatchNorm + LeakyReLU -----------------
    # Output positions processed in 4 parity segments (a, b) = (oh%2, ow%2) so
    # the NEXT layer's stride-2 taps stay unit-stride as well.
    segs = []
    for a in range(2):
        for b in range(2):
            taps = []
            for ki in range(4):
                e = 2 * a + ki
                rh = (e % 4) * 5 + e // 4
                for kj in range(4):
                    f = 2 * b + kj
                    rw = (f % 4) * 5 + f // 4
                    taps.append(h1_ref[:, rh:rh + 4, rw:rw + 4, :])
            op = jnp.concatenate(taps, axis=-1).astype(MXU_DT)   # (N,4,4,1024)
            op = op.reshape(n * 16, 16 * 64)
            segs.append(jnp.dot(op, w2_ref[...],
                                preferred_element_type=jnp.float32))
    acc2 = jnp.concatenate(segs, axis=0)          # (N*64, 128): every output once
    mean2 = jnp.mean(acc2, axis=0, keepdims=True)
    var2 = jnp.mean(jnp.square(acc2 - mean2), axis=0, keepdims=True)
    z2 = _leaky((acc2 - mean2) * lax.rsqrt(var2 + BN_EPS)
                * g2_ref[...] + b2_ref[...])

    h2_ref[...] = jnp.zeros_like(h2_ref)
    for a in range(2):
        rh = ((a + 1) % 2) * 5 + (a + 1) // 2
        for b in range(2):
            rw = ((b + 1) % 2) * 5 + (b + 1) // 2
            s = a * 2 + b
            blk = z2[s * n * 16:(s + 1) * n * 16, :]
            h2_ref[:, rh:rh + 4, rw:rw + 4, :] = blk.reshape(n, 4, 4, 128)

    # ---- conv3 (128->256, k4 s2 p1) + BatchNorm + LeakyReLU ----------------
    taps = []
    for ki in range(4):
        rh = (ki % 2) * 5 + ki // 2
        for kj in range(4):
            rw = (kj % 2) * 5 + kj // 2
            taps.append(h2_ref[:, rh:rh + 4, rw:rw + 4, :])
    op = jnp.concatenate(taps, axis=-1).astype(MXU_DT)           # (N,4,4,2048)
    op = op.reshape(n * 16, 16 * 128)
    acc3 = jnp.dot(op, w3_ref[...], preferred_element_type=jnp.float32)
    mean3 = jnp.mean(acc3, axis=0, keepdims=True)
    var3 = jnp.mean(jnp.square(acc3 - mean3), axis=0, keepdims=True)
    z3 = _leaky((acc3 - mean3) * lax.rsqrt(var3 + BN_EPS)
                * g3_ref[...] + b3_ref[...])

    # ---- conv4 (k4 s1 p0, Cout=1) + sigmoid: per-sample VPU reduction ------
    t = z3.reshape(n, 16, 256) * w4_ref[...]      # w4 (16,256) broadcast over n
    z = jnp.sum(jnp.sum(t, axis=2, keepdims=True), axis=1)       # (n, 1)
    o_ref[...] = jax.nn.sigmoid(z).astype(o_ref.dtype)


# ----------------------------------------------------------------------------
# Host-side glue (tiny, pure JAX): layer-1 im2col, weight repacking
# ----------------------------------------------------------------------------
def _conv1_patches(x_nhwc):
    """(N,32,32,C) -> (N,16,16,128) patches, tap order (ki,kj,c_padded)."""
    n, h, w, c = x_nhwc.shape
    assert c <= CIN_PAD
    x = jnp.pad(x_nhwc, ((0, 0), (0, 0), (0, 0), (0, CIN_PAD - c)))
    xp = jnp.pad(x, ((0, 0), (1, 1), (1, 1), (0, 0)))
    oh, ow = h // 2, w // 2
    taps = []
    for ki in range(4):
        for kj in range(4):
            taps.append(xp[:, ki:ki + 2 * oh - 1:2, kj:kj + 2 * ow - 1:2, :])
    return jnp.concatenate(taps, axis=-1), oh, ow


def _phase_rows_mod4(s_out):
    """Output coordinates ordered by (padded coordinate mod 4), then position."""
    rows = []
    for ph in range(4):
        grp = [q - 1 for q in range(ph, s_out + 2, 4) if 1 <= q <= s_out]
        assert len(grp) == s_out // 4
        rows.extend(grp)
    return np.asarray(rows, dtype=np.int32)


def _w2d(w):
    """(Cout, Cin, kH, kW) -> (kH*kW*Cin, Cout), matching in-kernel tap order."""
    co, ci, kh, kw = w.shape
    return jnp.transpose(w, (2, 3, 1, 0)).reshape(kh * kw * ci, co)


# ----------------------------------------------------------------------------
# Discriminator forward
# ----------------------------------------------------------------------------
def init_params(key, channels):
    ks = jax.random.split(key, 8)
    std = 0.02
    f = jnp.float32
    return {
        "w1": (jax.random.normal(ks[0], (64, channels, 4, 4)) * std).astype(f),
        "w2": (jax.random.normal(ks[1], (128, 64, 4, 4)) * std).astype(f),
        "w3": (jax.random.normal(ks[2], (256, 128, 4, 4)) * std).astype(f),
        "w4": (jax.random.normal(ks[3], (1, 256, 4, 4)) * std).astype(f),
        # BN affine params perturbed from 1/0 so the gamma/beta path is tested.
        "g2": (1.0 + 0.1 * jax.random.normal(ks[4], (128,))).astype(f),
        "b2": (0.1 * jax.random.normal(ks[5], (128,))).astype(f),
        "g3": (1.0 + 0.1 * jax.random.normal(ks[6], (256,))).astype(f),
        "b3": (0.1 * jax.random.normal(ks[7], (256,))).astype(f),
    }


def discriminator_forward(x, params):
    n, c, h, w = x.shape
    assert h == 32 and w == 32, "fused kernel assumes the DCGAN 32x32 geometry"
    # TODO(synk): generalize the phase-packed layout to other resolutions and
    # add M-tiled two-pass BN stats for large batches (v7x megacore).

    x_nhwc = jnp.transpose(x, (0, 2, 3, 1))          # single layout change
    pat, oh, ow = _conv1_patches(x_nhwc)             # (N,16,16,128)
    k1 = 16 * CIN_PAD

    # reorder patch rows/cols so conv1's output rows come out phase-grouped
    perm = _phase_rows_mod4(oh)
    pat = pat[:, perm][:, :, perm]
    pat = pat.reshape(n, 4, oh // 4, 4, ow // 4, k1)
    pat = jnp.transpose(pat, (0, 1, 3, 2, 4, 5)).reshape(n * oh * ow, k1)
    pat = pat.astype(MXU_DT)

    w1 = _w2d(jnp.pad(params["w1"], ((0, 0), (0, CIN_PAD - c), (0, 0), (0, 0))))
    w2 = _w2d(params["w2"])
    w3 = _w2d(params["w3"])
    w4 = jnp.transpose(params["w4"], (0, 2, 3, 1)).reshape(16, 256)

    m1 = n * oh * ow
    kernel = functools.partial(_disc_fused_kernel, batch=n)
    return pl.pallas_call(
        kernel,
        out_shape=jax.ShapeDtypeStruct((n, 1), jnp.float32),
        grid=(1,),
        in_specs=[
            pl.BlockSpec((m1, k1), lambda i: (0, 0)),
            pl.BlockSpec((k1, 64), lambda i: (0, 0)),
            pl.BlockSpec((1024, 128), lambda i: (0, 0)),
            pl.BlockSpec((1, 128), lambda i: (0, 0)),
            pl.BlockSpec((1, 128), lambda i: (0, 0)),
            pl.BlockSpec((2048, 256), lambda i: (0, 0)),
            pl.BlockSpec((1, 256), lambda i: (0, 0)),
            pl.BlockSpec((1, 256), lambda i: (0, 0)),
            pl.BlockSpec((16, 256), lambda i: (0, 0)),
        ],
        out_specs=pl.BlockSpec((n, 1), lambda i: (0, 0)),
        scratch_shapes=[
            pltpu.VMEM((n, 20, 20, 64), jnp.float32),    # phase-packed h1
            pltpu.VMEM((n, 10, 10, 128), jnp.float32),   # phase-packed h2
        ],
        compiler_params=pltpu.CompilerParams(
            dimension_semantics=("arbitrary",),
            vmem_limit_bytes=32 * 1024 * 1024),
        cost_estimate=pl.CostEstimate(
            flops=2 * n * (256 * 128 * 64 + 64 * 1024 * 128 + 16 * 2048 * 256),
            transcendentals=8 * n,
            bytes_accessed=(2 * (m1 * k1 + k1 * 64 + 1024 * 128 + 2048 * 256)
                            + 4 * (2 * 128 + 2 * 256 + 16 * 256 + n))),
    )(pat, w1.astype(MXU_DT), w2.astype(MXU_DT),
      params["g2"].reshape(1, 128).astype(jnp.float32),
      params["b2"].reshape(1, 128).astype(jnp.float32),
      w3.astype(MXU_DT),
      params["g3"].reshape(1, 256).astype(jnp.float32),
      params["b3"].reshape(1, 256).astype(jnp.float32),
      w4.astype(jnp.float32))


# ----------------------------------------------------------------------------
# Pure-JAX f32 reference (for self-check)
# ----------------------------------------------------------------------------
def reference_forward(x, params):
    def conv(v, w, stride, pad):
        return lax.conv_general_dilated(
            v, w, (stride, stride), [(pad, pad), (pad, pad)],
            dimension_numbers=("NCHW", "OIHW", "NCHW"))

    def bn(v, g, b):
        m = jnp.mean(v, axis=(0, 2, 3), keepdims=True)
        var = jnp.mean((v - m) ** 2, axis=(0, 2, 3), keepdims=True)
        return ((v - m) / jnp.sqrt(var + BN_EPS) * g.reshape(1, -1, 1, 1)
                + b.reshape(1, -1, 1, 1))

    h = _leaky(conv(x, params["w1"], 2, 1))
    h = _leaky(bn(conv(h, params["w2"], 2, 1), params["g2"], params["b2"]))
    h = _leaky(bn(conv(h, params["w3"], 2, 1), params["g3"], params["b3"]))
    h = jax.nn.sigmoid(conv(h, params["w4"], 1, 0))
    return h.reshape(-1, 1)


if __name__ == "__main__":
    key = jax.random.PRNGKey(0)
    k_param, k_x = jax.random.split(key)

    batch, channels, spatial = 2, 3, 32   # 32 -> 16 -> 8 -> 4 -> 1
    x = jax.random.normal(k_x, (batch, channels, spatial, spatial), jnp.float32)
    params = init_params(k_param, channels)

    out = jax.block_until_ready(jax.jit(discriminator_forward)(x, params))
    assert out.shape == (batch, 1), out.shape

    ref = jax.block_until_ready(jax.jit(reference_forward)(x, params))
    # Loose tolerance: matmul operands are bf16 (f32 accumulation); the
    # reference is full f32.
    np.testing.assert_allclose(np.asarray(out), np.asarray(ref),
                               rtol=5e-2, atol=5e-2)

    print("KERNEL_OK")
</pallas_src>

<mosaic_0001>
module attributes {stable_mosaic.version = 11 : i64} {
  func.func @_disc_fused_kernel(%arg0: i32, %arg1: memref<512x128xbf16, #tpu.memory_space<vmem>>, %arg2: memref<128x64xbf16, #tpu.memory_space<vmem>>, %arg3: memref<1024x128xbf16, #tpu.memory_space<vmem>>, %arg4: memref<1x128xf32, #tpu.memory_space<vmem>>, %arg5: memref<1x128xf32, #tpu.memory_space<vmem>>, %arg6: memref<2048x256xbf16, #tpu.memory_space<vmem>>, %arg7: memref<1x256xf32, #tpu.memory_space<vmem>>, %arg8: memref<1x256xf32, #tpu.memory_space<vmem>>, %arg9: memref<16x256xf32, #tpu.memory_space<vmem>>, %arg10: memref<2x1xf32, #tpu.memory_space<vmem>>, %arg11: memref<2x20x20x64xf32, #tpu.memory_space<vmem>>, %arg12: memref<2x10x10x128xf32, #tpu.memory_space<vmem>>) attributes {dimension_semantics = [#tpu.dimension_semantics<arbitrary>], iteration_bounds = array<i64: 1>, scalar_prefetch = 0 : i64, scratch_operands = 2 : i64, tpu.core_type = #tpu.core_type<tc>, window_params = [{pipeline_mode = #tpu.pipeline_mode<synchronous>, transform_indices = @transform_0, window_bounds = array<i64: 512, 128>}, {pipeline_mode = #tpu.pipeline_mode<synchronous>, transform_indices = @transform_1, window_bounds = array<i64: 128, 64>}, {pipeline_mode = #tpu.pipeline_mode<synchronous>, transform_indices = @transform_2, window_bounds = array<i64: 1024, 128>}, {pipeline_mode = #tpu.pipeline_mode<synchronous>, transform_indices = @transform_3, window_bounds = array<i64: 1, 128>}, {pipeline_mode = #tpu.pipeline_mode<synchronous>, transform_indices = @transform_4, window_bounds = array<i64: 1, 128>}, {pipeline_mode = #tpu.pipeline_mode<synchronous>, transform_indices = @transform_5, window_bounds = array<i64: 2048, 256>}, {pipeline_mode = #tpu.pipeline_mode<synchronous>, transform_indices = @transform_6, window_bounds = array<i64: 1, 256>}, {pipeline_mode = #tpu.pipeline_mode<synchronous>, transform_indices = @transform_7, window_bounds = array<i64: 1, 256>}, {pipeline_mode = #tpu.pipeline_mode<synchronous>, transform_indices = @transform_8, window_bounds = array<i64: 16, 256>}, {pipeline_mode = #tpu.pipeline_mode<synchronous>, transform_indices = @transform_9, window_bounds = array<i64: 2, 1>}]} {
    %c0 = arith.constant 0 : index
    %c0_0 = arith.constant 0 : index
    %0 = vector.load %arg1[%c0, %c0_0] : memref<512x128xbf16, #tpu.memory_space<vmem>>, vector<512x128xbf16>
    %c0_1 = arith.constant 0 : index
    %c0_2 = arith.constant 0 : index
    %1 = vector.load %arg2[%c0_1, %c0_2] : memref<128x64xbf16, #tpu.memory_space<vmem>>, vector<128x64xbf16>
    %cst = arith.constant dense<0.000000e+00> : vector<512x64xf32>
    %2 = tpu.matmul %0, %1, %cst {dimension_numbers = #tpu.dot_dimension_numbers<[1], [0], [0], [1], [0, 0, 1, 1], [], []>} : vector<512x128xbf16>, vector<128x64xbf16>, vector<512x64xf32> -> vector<512x64xf32>
    %cst_3 = arith.constant 0.000000e+00 : f32
    %3 = vector.broadcast %cst_3 : f32 to vector<512x64xf32>
    %4 = arith.cmpf oge, %2, %3 : vector<512x64xf32>
    %cst_4 = arith.constant 2.000000e-01 : f32
    %5 = vector.broadcast %cst_4 : f32 to vector<512x64xf32>
    %6 = arith.mulf %5, %2 : vector<512x64xf32>
    %7 = arith.select %4, %2, %6 : vector<512x64xi1>, vector<512x64xf32>
    %8 = vector.shape_cast %7 : vector<512x64xf32> to vector<2x4x4x4x4x64xf32>
    %cst_5 = arith.constant 0.000000e+00 : f32
    %9 = vector.broadcast %cst_5 : f32 to vector<2x20x20x64xf32>
    %c0_6 = arith.constant 0 : index
    %c0_7 = arith.constant 0 : index
    %c0_8 = arith.constant 0 : index
    %c0_9 = arith.constant 0 : index
    %10 = vector.load %arg11[%c0_6, %c0_7, %c0_8, %c0_9] : memref<2x20x20x64xf32, #tpu.memory_space<vmem>>, vector<2x20x20x64xf32>
    tpu.vector_store %arg11[%c0_6, %c0_7, %c0_8, %c0_9], %9 {strides = array<i32>} : memref<2x20x20x64xf32, #tpu.memory_space<vmem>>, vector<2x20x20x64xf32>,
    %11 = vector.extract_strided_slice %8 {offsets = [0, 0, 0, 0, 0, 0], sizes = [2, 1, 1, 4, 4, 64], strides = [1, 1, 1, 1, 1, 1]} : vector<2x4x4x4x4x64xf32> to vector<2x1x1x4x4x64xf32>
    %12 = vector.shape_cast %11 : vector<2x1x1x4x4x64xf32> to vector<2x4x4x64xf32>
    %c0_10 = arith.constant 0 : index
    %c1 = arith.constant 1 : index
    %c1_11 = arith.constant 1 : index
    %c0_12 = arith.constant 0 : index
    %13 = vector.load %arg11[%c0_10, %c1, %c1_11, %c0_12] : memref<2x20x20x64xf32, #tpu.memory_space<vmem>>, vector<2x4x4x64xf32>
    tpu.vector_store %arg11[%c0_10, %c1, %c1_11, %c0_12], %12 {strides = array<i32>} : memref<2x20x20x64xf32, #tpu.memory_space<vmem>>, vector<2x4x4x64xf32>,
    %14 = vector.extract_strided_slice %8 {offsets = [0, 0, 1, 0, 0, 0], sizes = [2, 1, 1, 4, 4, 64], strides = [1, 1, 1, 1, 1, 1]} : vector<2x4x4x4x4x64xf32> to vector<2x1x1x4x4x64xf32>
    %15 = vector.shape_cast %14 : vector<2x1x1x4x4x64xf32> to vector<2x4x4x64xf32>
    %c0_13 = arith.constant 0 : index
    %c1_14 = arith.constant 1 : index
    %c5 = arith.constant 5 : index
    %c0_15 = arith.constant 0 : index
    %16 = vector.load %arg11[%c0_13, %c1_14, %c5, %c0_15] : memref<2x20x20x64xf32, #tpu.memory_space<vmem>>, vector<2x4x4x64xf32>
    tpu.vector_store %arg11[%c0_13, %c1_14, %c5, %c0_15], %15 {strides = array<i32>} : memref<2x20x20x64xf32, #tpu.memory_space<vmem>>, vector<2x4x4x64xf32>,
    %17 = vector.extract_strided_slice %8 {offsets = [0, 0, 2, 0, 0, 0], sizes = [2, 1, 1, 4, 4, 64], strides = [1, 1, 1, 1, 1, 1]} : vector<2x4x4x4x4x64xf32> to vector<2x1x1x4x4x64xf32>
    %18 = vector.shape_cast %17 : vector<2x1x1x4x4x64xf32> to vector<2x4x4x64xf32>
    %c0_16 = arith.constant 0 : index
    %c1_17 = arith.constant 1 : index
    %c10 = arith.constant 10 : index
    %c0_18 = arith.constant 0 : index
    %19 = vector.load %arg11[%c0_16, %c1_17, %c10, %c0_18] : memref<2x20x20x64xf32, #tpu.memory_space<vmem>>, vector<2x4x4x64xf32>
    tpu.vector_store %arg11[%c0_16, %c1_17, %c10, %c0_18], %18 {strides = array<i32>} : memref<2x20x20x64xf32, #tpu.memory_space<vmem>>, vector<2x4x4x64xf32>,
    %20 = vector.extract_strided_slice %8 {offsets = [0, 0, 3, 0, 0, 0], sizes = [2, 1, 1, 4, 4, 64], strides = [1, 1, 1, 1, 1, 1]} : vector<2x4x4x4x4x64xf32> to vector<2x1x1x4x4x64xf32>
    %21 = vector.shape_cast %20 : vector<2x1x1x4x4x64xf32> to vector<2x4x4x64xf32>
    %c0_19 = arith.constant 0 : index
    %c1_20 = arith.constant 1 : index
    %c15 = arith.constant 15 : index
    %c0_21 = arith.constant 0 : index
    %22 = vector.load %arg11[%c0_19, %c1_20, %c15, %c0_21] : memref<2x20x20x64xf32, #tpu.memory_space<vmem>>, vector<2x4x4x64xf32>
    tpu.vector_store %arg11[%c0_19, %c1_20, %c15, %c0_21], %21 {strides = array<i32>} : memref<2x20x20x64xf32, #tpu.memory_space<vmem>>, vector<2x4x4x64xf32>,
    %23 = vector.extract_strided_slice %8 {offsets = [0, 1, 0, 0, 0, 0], sizes = [2, 1, 1, 4, 4, 64], strides = [1, 1, 1, 1, 1, 1]} : vector<2x4x4x4x4x64xf32> to vector<2x1x1x4x4x64xf32>
    %24 = vector.shape_cast %23 : vector<2x1x1x4x4x64xf32> to vector<2x4x4x64xf32>
    %c0_22 = arith.constant 0 : index
    %c5_23 = arith.constant 5 : index
    %c1_24 = arith.constant 1 : index
    %c0_25 = arith.constant 0 : index
    %25 = vector.load %arg11[%c0_22, %c5_23, %c1_24, %c0_25] : memref<2x20x20x64xf32, #tpu.memory_space<vmem>>, vector<2x4x4x64xf32>
    tpu.vector_store %arg11[%c0_22, %c5_23, %c1_24, %c0_25], %24 {strides = array<i32>} : memref<2x20x20x64xf32, #tpu.memory_space<vmem>>, vector<2x4x4x64xf32>,
    %26 = vector.extract_strided_slice %8 {offsets = [0, 1, 1, 0, 0, 0], sizes = [2, 1, 1, 4, 4, 64], strides = [1, 1, 1, 1, 1, 1]} : vector<2x4x4x4x4x64xf32> to vector<2x1x1x4x4x64xf32>
    %27 = vector.shape_cast %26 : vector<2x1x1x4x4x64xf32> to vector<2x4x4x64xf32>
    %c0_26 = arith.constant 0 : index
    %c5_27 = arith.constant 5 : index
    %c5_28 = arith.constant 5 : index
    %c0_29 = arith.constant 0 : index
    %28 = vector.load %arg11[%c0_26, %c5_27, %c5_28, %c0_29] : memref<2x20x20x64xf32, #tpu.memory_space<vmem>>, vector<2x4x4x64xf32>
    tpu.vector_store %arg11[%c0_26, %c5_27, %c5_28, %c0_29], %27 {strides = array<i32>} : memref<2x20x20x64xf32, #tpu.memory_space<vmem>>, vector<2x4x4x64xf32>,
    %29 = vector.extract_strided_slice %8 {offsets = [0, 1, 2, 0, 0, 0], sizes = [2, 1, 1, 4, 4, 64], strides = [1, 1, 1, 1, 1, 1]} : vector<2x4x4x4x4x64xf32> to vector<2x1x1x4x4x64xf32>
    %30 = vector.shape_cast %29 : vector<2x1x1x4x4x64xf32> to vector<2x4x4x64xf32>
    %c0_30 = arith.constant 0 : index
    %c5_31 = arith.constant 5 : index
    %c10_32 = arith.constant 10 : index
    %c0_33 = arith.constant 0 : index
    %31 = vector.load %arg11[%c0_30, %c5_31, %c10_32, %c0_33] : memref<2x20x20x64xf32, #tpu.memory_space<vmem>>, vector<2x4x4x64xf32>
    tpu.vector_store %arg11[%c0_30, %c5_31, %c10_32, %c0_33], %30 {strides = array<i32>} : memref<2x20x20x64xf32, #tpu.memory_space<vmem>>, vector<2x4x4x64xf32>,
    %32 = vector.extract_strided_slice %8 {offsets = [0, 1, 3, 0, 0, 0], sizes = [2, 1, 1, 4, 4, 64], strides = [1, 1, 1, 1, 1, 1]} : vector<2x4x4x4x4x64xf32> to vector<2x1x1x4x4x64xf32>
    %33 = vector.shape_cast %32 : vector<2x1x1x4x4x64xf32> to vector<2x4x4x64xf32>
    %c0_34 = arith.constant 0 : index
    %c5_35 = arith.constant 5 : index
    %c15_36 = arith.constant 15 : index
    %c0_37 = arith.constant 0 : index
    %34 = vector.load %arg11[%c0_34, %c5_35, %c15_36, %c0_37] : memref<2x20x20x64xf32, #tpu.memory_space<vmem>>, vector<2x4x4x64xf32>
    tpu.vector_store %arg11[%c0_34, %c5_35, %c15_36, %c0_37], %33 {strides = array<i32>} : memref<2x20x20x64xf32, #tpu.memory_space<vmem>>, vector<2x4x4x64xf32>,
    %35 = vector.extract_strided_slice %8 {offsets = [0, 2, 0, 0, 0, 0], sizes = [2, 1, 1, 4, 4, 64], strides = [1, 1, 1, 1, 1, 1]} : vector<2x4x4x4x4x64xf32> to vector<2x1x1x4x4x64xf32>
    %36 = vector.shape_cast %35 : vector<2x1x1x4x4x64xf32> to vector<2x4x4x64xf32>
    %c0_38 = arith.constant 0 : index
    %c10_39 = arith.constant 10 : index
    %c1_40 = arith.constant 1 : index
    %c0_41 = arith.constant 0 : index
    %37 = vector.load %arg11[%c0_38, %c10_39, %c1_40, %c0_41] : memref<2x20x20x64xf32, #tpu.memory_space<vmem>>, vector<2x4x4x64xf32>
    tpu.vector_store %arg11[%c0_38, %c10_39, %c1_40, %c0_41], %36 {strides = array<i32>} : memref<2x20x20x64xf32, #tpu.memory_space<vmem>>, vector<2x4x4x64xf32>,
    %38 = vector.extract_strided_slice %8 {offsets = [0, 2, 1, 0, 0, 0], sizes = [2, 1, 1, 4, 4, 64], strides = [1, 1, 1, 1, 1, 1]} : vector<2x4x4x4x4x64xf32> to vector<2x1x1x4x4x64xf32>
    %39 = vector.shape_cast %38 : vector<2x1x1x4x4x64xf32> to vector<2x4x4x64xf32>
    %c0_42 = arith.constant 0 : index
    %c10_43 = arith.constant 10 : index
    %c5_44 = arith.constant 5 : index
    %c0_45 = arith.constant 0 : index
    %40 = vector.load %arg11[%c0_42, %c10_43, %c5_44, %c0_45] : memref<2x20x20x64xf32, #tpu.memory_space<vmem>>, vector<2x4x4x64xf32>
    tpu.vector_store %arg11[%c0_42, %c10_43, %c5_44, %c0_45], %39 {strides = array<i32>} : memref<2x20x20x64xf32, #tpu.memory_space<vmem>>, vector<2x4x4x64xf32>,
    %41 = vector.extract_strided_slice %8 {offsets = [0, 2, 2, 0, 0, 0], sizes = [2, 1, 1, 4, 4, 64], strides = [1, 1, 1, 1, 1, 1]} : vector<2x4x4x4x4x64xf32> to vector<2x1x1x4x4x64xf32>
    %42 = vector.shape_cast %41 : vector<2x1x1x4x4x64xf32> to vector<2x4x4x64xf32>
    %c0_46 = arith.constant 0 : index
    %c10_47 = arith.constant 10 : index
    %c10_48 = arith.constant 10 : index
    %c0_49 = arith.constant 0 : index
    %43 = vector.load %arg11[%c0_46, %c10_47, %c10_48, %c0_49] : memref<2x20x20x64xf32, #tpu.memory_space<vmem>>, vector<2x4x4x64xf32>
    tpu.vector_store %arg11[%c0_46, %c10_47, %c10_48, %c0_49], %42 {strides = array<i32>} : memref<2x20x20x64xf32, #tpu.memory_space<vmem>>, vector<2x4x4x64xf32>,
    %44 = vector.extract_strided_slice %8 {offsets = [0, 2, 3, 0, 0, 0], sizes = [2, 1, 1, 4, 4, 64], strides = [1, 1, 1, 1, 1, 1]} : vector<2x4x4x4x4x64xf32> to vector<2x1x1x4x4x64xf32>
    %45 = vector.shape_cast %44 : vector<2x1x1x4x4x64xf32> to vector<2x4x4x64xf32>
    %c0_50 = arith.constant 0 : index
    %c10_51 = arith.constant 10 : index
    %c15_52 = arith.constant 15 : index
    %c0_53 = arith.constant 0 : index
    %46 = vector.load %arg11[%c0_50, %c10_51, %c15_52, %c0_53] : memref<2x20x20x64xf32, #tpu.memory_space<vmem>>, vector<2x4x4x64xf32>
    tpu.vector_store %arg11[%c0_50, %c10_51, %c15_52, %c0_53], %45 {strides = array<i32>} : memref<2x20x20x64xf32, #tpu.memory_space<vmem>>, vector<2x4x4x64xf32>,
    %47 = vector.extract_strided_slice %8 {offsets = [0, 3, 0, 0, 0, 0], sizes = [2, 1, 1, 4, 4, 64], strides = [1, 1, 1, 1, 1, 1]} : vector<2x4x4x4x4x64xf32> to vector<2x1x1x4x4x64xf32>
    %48 = vector.shape_cast %47 : vector<2x1x1x4x4x64xf32> to vector<2x4x4x64xf32>
    %c0_54 = arith.constant 0 : index
    %c15_55 = arith.constant 15 : index
    %c1_56 = arith.constant 1 : index
    %c0_57 = arith.constant 0 : index
    %49 = vector.load %arg11[%c0_54, %c15_55, %c1_56, %c0_57] : memref<2x20x20x64xf32, #tpu.memory_space<vmem>>, vector<2x4x4x64xf32>
    tpu.vector_store %arg11[%c0_54, %c15_55, %c1_56, %c0_57], %48 {strides = array<i32>} : memref<2x20x20x64xf32, #tpu.memory_space<vmem>>, vector<2x4x4x64xf32>,
    %50 = vector.extract_strided_slice %8 {offsets = [0, 3, 1, 0, 0, 0], sizes = [2, 1, 1, 4, 4, 64], strides = [1, 1, 1, 1, 1, 1]} : vector<2x4x4x4x4x64xf32> to vector<2x1x1x4x4x64xf32>
    %51 = vector.shape_cast %50 : vector<2x1x1x4x4x64xf32> to vector<2x4x4x64xf32>
    %c0_58 = arith.constant 0 : index
    %c15_59 = arith.constant 15 : index
    %c5_60 = arith.constant 5 : index
    %c0_61 = arith.constant 0 : index
    %52 = vector.load %arg11[%c0_58, %c15_59, %c5_60, %c0_61] : memref<2x20x20x64xf32, #tpu.memory_space<vmem>>, vector<2x4x4x64xf32>
    tpu.vector_store %arg11[%c0_58, %c15_59, %c5_60, %c0_61], %51 {strides = array<i32>} : memref<2x20x20x64xf32, #tpu.memory_space<vmem>>, vector<2x4x4x64xf32>,
    %53 = vector.extract_strided_slice %8 {offsets = [0, 3, 2, 0, 0, 0], sizes = [2, 1, 1, 4, 4, 64], strides = [1, 1, 1, 1, 1, 1]} : vector<2x4x4x4x4x64xf32> to vector<2x1x1x4x4x64xf32>
    %54 = vector.shape_cast %53 : vector<2x1x1x4x4x64xf32> to vector<2x4x4x64xf32>
    %c0_62 = arith.constant 0 : index
    %c15_63 = arith.constant 15 : index
    %c10_64 = arith.constant 10 : index
    %c0_65 = arith.constant 0 : index
    %55 = vector.load %arg11[%c0_62, %c15_63, %c10_64, %c0_65] : memref<2x20x20x64xf32, #tpu.memory_space<vmem>>, vector<2x4x4x64xf32>
    tpu.vector_store %arg11[%c0_62, %c15_63, %c10_64, %c0_65], %54 {strides = array<i32>} : memref<2x20x20x64xf32, #tpu.memory_space<vmem>>, vector<2x4x4x64xf32>,
    %56 = vector.extract_strided_slice %8 {offsets = [0, 3, 3, 0, 0, 0], sizes = [2, 1, 1, 4, 4, 64], strides = [1, 1, 1, 1, 1, 1]} : vector<2x4x4x4x4x64xf32> to vector<2x1x1x4x4x64xf32>
    %57 = vector.shape_cast %56 : vector<2x1x1x4x4x64xf32> to vector<2x4x4x64xf32>
    %c0_66 = arith.constant 0 : index
    %c15_67 = arith.constant 15 : index
    %c15_68 = arith.constant 15 : index
    %c0_69 = arith.constant 0 : index
    %58 = vector.load %arg11[%c0_66, %c15_67, %c15_68, %c0_69] : memref<2x20x20x64xf32, #tpu.memory_space<vmem>>, vector<2x4x4x64xf32>
    tpu.vector_store %arg11[%c0_66, %c15_67, %c15_68, %c0_69], %57 {strides = array<i32>} : memref<2x20x20x64xf32, #tpu.memory_space<vmem>>, vector<2x4x4x64xf32>,
    %c0_70 = arith.constant 0 : index
    %c0_71 = arith.constant 0 : index
    %c0_72 = arith.constant 0 : index
    %c0_73 = arith.constant 0 : index
    %59 = vector.load %arg11[%c0_70, %c0_71, %c0_72, %c0_73] : memref<2x20x20x64xf32, #tpu.memory_space<vmem>>, vector<2x4x4x64xf32>
    %c0_74 = arith.constant 0 : index
    %c0_75 = arith.constant 0 : index
    %c5_76 = arith.constant 5 : index
    %c0_77 = arith.constant 0 : index
    %60 = vector.load %arg11[%c0_74, %c0_75, %c5_76, %c0_77] : memref<2x20x20x64xf32, #tpu.memory_space<vmem>>, vector<2x4x4x64xf32>
    %c0_78 = arith.constant 0 : index
    %c0_79 = arith.constant 0 : index
    %c10_80 = arith.constant 10 : index
    %c0_81 = arith.constant 0 : index
    %61 = vector.load %arg11[%c0_78, %c0_79, %c10_80, %c0_81] : memref<2x20x20x64xf32, #tpu.memory_space<vmem>>, vector<2x4x4x64xf32>
    %c0_82 = arith.constant 0 : index
    %c0_83 = arith.constant 0 : index
    %c15_84 = arith.constant 15 : index
    %c0_85 = arith.constant 0 : index
    %62 = vector.load %arg11[%c0_82, %c0_83, %c15_84, %c0_85] : memref<2x20x20x64xf32, #tpu.memory_space<vmem>>, vector<2x4x4x64xf32>
    %c0_86 = arith.constant 0 : index
    %c5_87 = arith.constant 5 : index
    %c0_88 = arith.constant 0 : index
    %c0_89 = arith.constant 0 : index
    %63 = vector.load %arg11[%c0_86, %c5_87, %c0_88, %c0_89] : memref<2x20x20x64xf32, #tpu.memory_space<vmem>>, vector<2x4x4x64xf32>
    %c0_90 = arith.constant 0 : index
    %c5_91 = arith.constant 5 : index
    %c5_92 = arith.constant 5 : index
    %c0_93 = arith.constant 0 : index
    %64 = vector.load %arg11[%c0_90, %c5_91, %c5_92, %c0_93] : memref<2x20x20x64xf32, #tpu.memory_space<vmem>>, vector<2x4x4x64xf32>
    %c0_94 = arith.constant 0 : index
    %c5_95 = arith.constant 5 : index
    %c10_96 = arith.constant 10 : index
    %c0_97 = arith.constant 0 : index
    %65 = vector.load %arg11[%c0_94, %c5_95, %c10_96, %c0_97] : memref<2x20x20x64xf32, #tpu.memory_space<vmem>>, vector<2x4x4x64xf32>
    %c0_98 = arith.constant 0 : index
    %c5_99 = arith.constant 5 : index
    %c15_100 = arith.constant 15 : index
    %c0_101 = arith.constant 0 : index
    %66 = vector.load %arg11[%c0_98, %c5_99, %c15_100, %c0_101] : memref<2x20x20x64xf32, #tpu.memory_space<vmem>>, vector<2x4x4x64xf32>
    %c0_102 = arith.constant 0 : index
    %c10_103 = arith.constant 10 : index
    %c0_104 = arith.constant 0 : index
    %c0_105 = arith.constant 0 : index
    %67 = vector.load %arg11[%c0_102, %c10_103, %c0_104, %c0_105] : memref<2x20x20x64xf32, #tpu.memory_space<vmem>>, vector<2x4x4x64xf32>
    %c0_106 = arith.constant 0 : index
    %c10_107 = arith.constant 10 : index
    %c5_108 = arith.constant 5 : index
    %c0_109 = arith.constant 0 : index
    %68 = vector.load %arg11[%c0_106, %c10_107, %c5_108, %c0_109] : memref<2x20x20x64xf32, #tpu.memory_space<vmem>>, vector<2x4x4x64xf32>
    %c0_110 = arith.constant 0 : index
    %c10_111 = arith.constant 10 : index
    %c10_112 = arith.constant 10 : index
    %c0_113 = arith.constant 0 : index
    %69 = vector.load %arg11[%c0_110, %c10_111, %c10_112, %c0_113] : memref<2x20x20x64xf32, #tpu.memory_space<vmem>>, vector<2x4x4x64xf32>
    %c0_114 = arith.constant 0 : index
    %c10_115 = arith.constant 10 : index
    %c15_116 = arith.constant 15 : index
    %c0_117 = arith.constant 0 : index
    %70 = vector.load %arg11[%c0_114, %c10_115, %c15_116, %c0_117] : memref<2x20x20x64xf32, #tpu.memory_space<vmem>>, vector<2x4x4x64xf32>
    %c0_118 = arith.constant 0 : index
    %c15_119 = arith.constant 15 : index
    %c0_120 = arith.constant 0 : index
    %c0_121 = arith.constant 0 : index
    %71 = vector.load %arg11[%c0_118, %c15_119, %c0_120, %c0_121] : memref<2x20x20x64xf32, #tpu.memory_space<vmem>>, vector<2x4x4x64xf32>
    %c0_122 = arith.constant 0 : index
    %c15_123 = arith.constant 15 : index
    %c5_124 = arith.constant 5 : index
    %c0_125 = arith.constant 0 : index
    %72 = vector.load %arg11[%c0_122, %c15_123, %c5_124, %c0_125] : memref<2x20x20x64xf32, #tpu.memory_space<vmem>>, vector<2x4x4x64xf32>
    %c0_126 = arith.constant 0 : index
    %c15_127 = arith.constant 15 : index
    %c10_128 = arith.constant 10 : index
    %c0_129 = arith.constant 0 : index
    %73 = vector.load %arg11[%c0_126, %c15_127, %c10_128, %c0_129] : memref<2x20x20x64xf32, #tpu.memory_space<vmem>>, vector<2x4x4x64xf32>
    %c0_130 = arith.constant 0 : index
    %c15_131 = arith.constant 15 : index
    %c15_132 = arith.constant 15 : index
    %c0_133 = arith.constant 0 : index
    %74 = vector.load %arg11[%c0_130, %c15_131, %c15_132, %c0_133] : memref<2x20x20x64xf32, #tpu.memory_space<vmem>>, vector<2x4x4x64xf32>
    %75 = tpu.concatenate %59, %60, %61, %62, %63, %64, %65, %66, %67, %68, %69, %70, %71, %72, %73, %74 in 3 : vector<2x4x4x64xf32>, vector<2x4x4x64xf32>, vector<2x4x4x64xf32>, vector<2x4x4x64xf32>, vector<2x4x4x64xf32>, vector<2x4x4x64xf32>, vector<2x4x4x64xf32>, vector<2x4x4x64xf32>, vector<2x4x4x64xf32>, vector<2x4x4x64xf32>, vector<2x4x4x64xf32>, vector<2x4x4x64xf32>, vector<2x4x4x64xf32>, vector<2x4x4x64xf32>, vector<2x4x4x64xf32>, vector<2x4x4x64xf32> -> vector<2x4x4x1024xf32>
    %76 = arith.truncf %75 : vector<2x4x4x1024xf32> to vector<2x4x4x1024xbf16>
    %77 = vector.shape_cast %76 : vector<2x4x4x1024xbf16> to vector<32x1024xbf16>
    %c0_134 = arith.constant 0 : index
    %c0_135 = arith.constant 0 : index
    %78 = vector.load %arg3[%c0_134, %c0_135] : memref<1024x128xbf16, #tpu.memory_space<vmem>>, vector<1024x128xbf16>
    %cst_136 = arith.constant dense<0.000000e+00> : vector<32x128xf32>
    %79 = tpu.matmul %77, %78, %cst_136 {dimension_numbers = #tpu.dot_dimension_numbers<[1], [0], [0], [1], [0, 0, 1, 1], [], []>} : vector<32x1024xbf16>, vector<1024x128xbf16>, vector<32x128xf32> -> vector<32x128xf32>
    %c0_137 = arith.constant 0 : index
    %c0_138 = arith.constant 0 : index
    %c10_139 = arith.constant 10 : index
    %c0_140 = arith.constant 0 : index
    %80 = vector.load %arg11[%c0_137, %c0_138, %c10_139, %c0_140] : memref<2x20x20x64xf32, #tpu.memory_space<vmem>>, vector<2x4x4x64xf32>
    %c0_141 = arith.constant 0 : index
    %c0_142 = arith.constant 0 : index
    %c15_143 = arith.constant 15 : index
    %c0_144 = arith.constant 0 : index
    %81 = vector.load %arg11[%c0_141, %c0_142, %c15_143, %c0_144] : memref<2x20x20x64xf32, #tpu.memory_space<vmem>>, vector<2x4x4x64xf32>
    %c0_145 = arith.constant 0 : index
    %c0_146 = arith.constant 0 : index
    %c1_147 = arith.constant 1 : index
    %c0_148 = arith.constant 0 : index
    %82 = vector.load %arg11[%c0_145, %c0_146, %c1_147, %c0_148] : memref<2x20x20x64xf32, #tpu.memory_space<vmem>>, vector<2x4x4x64xf32>
    %c0_149 = arith.constant 0 : index
    %c0_150 = arith.constant 0 : index
    %c6 = arith.constant 6 : index
    %c0_151 = arith.constant 0 : index
    %83 = vector.load %arg11[%c0_149, %c0_150, %c6, %c0_151] : memref<2x20x20x64xf32, #tpu.memory_space<vmem>>, vector<2x4x4x64xf32>
    %c0_152 = arith.constant 0 : index
    %c5_153 = arith.constant 5 : index
    %c10_154 = arith.constant 10 : index
    %c0_155 = arith.constant 0 : index
    %84 = vector.load %arg11[%c0_152, %c5_153, %c10_154, %c0_155] : memref<2x20x20x64xf32, #tpu.memory_space<vmem>>, vector<2x4x4x64xf32>
    %c0_156 = arith.constant 0 : index
    %c5_157 = arith.constant 5 : index
    %c15_158 = arith.constant 15 : index
    %c0_159 = arith.constant 0 : index
    %85 = vector.load %arg11[%c0_156, %c5_157, %c15_158, %c0_159] : memref<2x20x20x64xf32, #tpu.memory_space<vmem>>, vector<2x4x4x64xf32>
    %c0_160 = arith.constant 0 : index
    %c5_161 = arith.constant 5 : index
    %c1_162 = arith.constant 1 : index
    %c0_163 = arith.constant 0 : index
    %86 = vector.load %arg11[%c0_160, %c5_161, %c1_162, %c0_163] : memref<2x20x20x64xf32, #tpu.memory_space<vmem>>, vector<2x4x4x64xf32>
    %c0_164 = arith.constant 0 : index
    %c5_165 = arith.constant 5 : index
    %c6_166 = arith.constant 6 : index
    %c0_167 = arith.constant 0 : index
    %87 = vector.load %arg11[%c0_164, %c5_165, %c6_166, %c0_167] : memref<2x20x20x64xf32, #tpu.memory_space<vmem>>, vector<2x4x4x64xf32>
    %c0_168 = arith.constant 0 : index
    %c10_169 = arith.constant 10 : index
    %c10_170 = arith.constant 10 : index
    %c0_171 = arith.constant 0 : index
    %88 = vector.load %arg11[%c0_168, %c10_169, %c10_170, %c0_171] : memref<2x20x20x64xf32, #tpu.memory_space<vmem>>, vector<2x4x4x64xf32>
    %c0_172 = arith.constant 0 : index
    %c10_173 = arith.constant 10 : index
    %c15_174 = arith.constant 15 : index
    %c0_175 = arith.constant 0 : index
    %89 = vector.load %arg11[%c0_172, %c10_173, %c15_174, %c0_175] : memref<2x20x20x64xf32, #tpu.memory_space<vmem>>, vector<2x4x4x64xf32>
    %c0_176 = arith.constant 0 : index
    %c10_177 = arith.constant 10 : index
    %c1_178 = arith.constant 1 : index
    %c0_179 = arith.constant 0 : index
    %90 = vector.load %arg11[%c0_176, %c10_177, %c1_178, %c0_179] : memref<2x20x20x64xf32, #tpu.memory_space<vmem>>, vector<2x4x4x64xf32>
    %c0_180 = arith.constant 0 : index
    %c10_181 = arith.constant 10 : index
    %c6_182 = arith.constant 6 : index
    %c0_183 = arith.constant 0 : index
    %91 = vector.load %arg11[%c0_180, %c10_181, %c6_182, %c0_183] : memref<2x20x20x64xf32, #tpu.memory_space<vmem>>, vector<2x4x4x64xf32>
    %c0_184 = arith.constant 0 : index
    %c15_185 = arith.constant 15 : index
    %c10_186 = arith.constant 10 : index
    %c0_187 = arith.constant 0 : index
    %92 = vector.load %arg11[%c0_184, %c15_185, %c10_186, %c0_187] : memref<2x20x20x64xf32, #tpu.memory_space<vmem>>, vector<2x4x4x64xf32>
    %c0_188 = arith.constant 0 : index
    %c15_189 = arith.constant 15 : index
    %c15_190 = arith.constant 15 : index
    %c0_191 = arith.constant 0 : index
    %93 = vector.load %arg11[%c0_188, %c15_189, %c15_190, %c0_191] : memref<2x20x20x64xf32, #tpu.memory_space<vmem>>, vector<2x4x4x64xf32>
    %c0_192 = arith.constant 0 : index
    %c15_193 = arith.constant 15 : index
    %c1_194 = arith.constant 1 : index
    %c0_195 = arith.constant 0 : index
    %94 = vector.load %arg11[%c0_192, %c15_193, %c1_194, %c0_195] : memref<2x20x20x64xf32, #tpu.memory_space<vmem>>, vector<2x4x4x64xf32>
    %c0_196 = arith.constant 0 : index
    %c15_197 = arith.constant 15 : index
    %c6_198 = arith.constant 6 : index
    %c0_199 = arith.constant 0 : index
    %95 = vector.load %arg11[%c0_196, %c15_197, %c6_198, %c0_199] : memref<2x20x20x64xf32, #tpu.memory_space<vmem>>, vector<2x4x4x64xf32>
    %96 = tpu.concatenate %80, %81, %82, %83, %84, %85, %86, %87, %88, %89, %90, %91, %92, %93, %94, %95 in 3 : vector<2x4x4x64xf32>, vector<2x4x4x64xf32>, vector<2x4x4x64xf32>, vector<2x4x4x64xf32>, vector<2x4x4x64xf32>, vector<2x4x4x64xf32>, vector<2x4x4x64xf32>, vector<2x4x4x64xf32>, vector<2x4x4x64xf32>, vector<2x4x4x64xf32>, vector<2x4x4x64xf32>, vector<2x4x4x64xf32>, vector<2x4x4x64xf32>, vector<2x4x4x64xf32>, vector<2x4x4x64xf32>, vector<2x4x4x64xf32> -> vector<2x4x4x1024xf32>
    %97 = arith.truncf %96 : vector<2x4x4x1024xf32> to vector<2x4x4x1024xbf16>
    %98 = vector.shape_cast %97 : vector<2x4x4x1024xbf16> to vector<32x1024xbf16>
    %c0_200 = arith.constant 0 : index
    %c0_201 = arith.constant 0 : index
    %99 = vector.load %arg3[%c0_200, %c0_201] : memref<1024x128xbf16, #tpu.memory_space<vmem>>, vector<1024x128xbf16>
    %cst_202 = arith.constant dense<0.000000e+00> : vector<32x128xf32>
    %100 = tpu.matmul %98, %99, %cst_202 {dimension_numbers = #tpu.dot_dimension_numbers<[1], [0], [0], [1], [0, 0, 1, 1], [], []>} : vector<32x1024xbf16>, vector<1024x128xbf16>, vector<32x128xf32> -> vector<32x128xf32>
    %c0_203 = arith.constant 0 : index
    %c10_204 = arith.constant 10 : index
    %c0_205 = arith.constant 0 : index
    %c0_206 = arith.constant 0 : index
    %101 = vector.load %arg11[%c0_203, %c10_204, %c0_205, %c0_206] : memref<2x20x20x64xf32, #tpu.memory_space<vmem>>, vector<2x4x4x64xf32>
    %c0_207 = arith.constant 0 : index
    %c10_208 = arith.constant 10 : index
    %c5_209 = arith.constant 5 : index
    %c0_210 = arith.constant 0 : index
    %102 = vector.load %arg11[%c0_207, %c10_208, %c5_209, %c0_210] : memref<2x20x20x64xf32, #tpu.memory_space<vmem>>, vector<2x4x4x64xf32>
    %c0_211 = arith.constant 0 : index
    %c10_212 = arith.constant 10 : index
    %c10_213 = arith.constant 10 : index
    %c0_214 = arith.constant 0 : index
    %103 = vector.load %arg11[%c0_211, %c10_212, %c10_213, %c0_214] : memref<2x20x20x64xf32, #tpu.memory_space<vmem>>, vector<2x4x4x64xf32>
    %c0_215 = arith.constant 0 : index
    %c10_216 = arith.constant 10 : index
    %c15_217 = arith.constant 15 : index
    %c0_218 = arith.constant 0 : index
    %104 = vector.load %arg11[%c0_215, %c10_216, %c15_217, %c0_218] : memref<2x20x20x64xf32, #tpu.memory_space<vmem>>, vector<2x4x4x64xf32>
    %c0_219 = arith.constant 0 : index
    %c15_220 = arith.constant 15 : index
    %c0_221 = arith.constant 0 : index
    %c0_222 = arith.constant 0 : index
    %105 = vector.load %arg11[%c0_219, %c15_220, %c0_221, %c0_222] : memref<2x20x20x64xf32, #tpu.memory_space<vmem>>, vector<2x4x4x64xf32>
    %c0_223 = arith.constant 0 : index
    %c15_224 = arith.constant 15 : index
    %c5_225 = arith.constant 5 : index
    %c0_226 = arith.constant 0 : index
    %106 = vector.load %arg11[%c0_223, %c15_224, %c5_225, %c0_226] : memref<2x20x20x64xf32, #tpu.memory_space<vmem>>, vector<2x4x4x64xf32>
    %c0_227 = arith.constant 0 : index
    %c15_228 = arith.constant 15 : index
    %c10_229 = arith.constant 10 : index
    %c0_230 = arith.constant 0 : index
    %107 = vector.load %arg11[%c0_227, %c15_228, %c10_229, %c0_230] : memref<2x20x20x64xf32, #tpu.memory_space<vmem>>, vector<2x4x4x64xf32>
    %c0_231 = arith.constant 0 : index
    %c15_232 = arith.constant 15 : index
    %c15_233 = arith.constant 15 : index
    %c0_234 = arith.constant 0 : index
    %108 = vector.load %arg11[%c0_231, %c15_232, %c15_233, %c0_234] : memref<2x20x20x64xf32, #tpu.memory_space<vmem>>, vector<2x4x4x64xf32>
    %c0_235 = arith.constant 0 : index
    %c1_236 = arith.constant 1 : index
    %c0_237 = arith.constant 0 : index
    %c0_238 = arith.constant 0 : index
    %109 = vector.load %arg11[%c0_235, %c1_236, %c0_237, %c0_238] : memref<2x20x20x64xf32, #tpu.memory_space<vmem>>, vector<2x4x4x64xf32>
    %c0_239 = arith.constant 0 : index
    %c1_240 = arith.constant 1 : index
    %c5_241 = arith.constant 5 : index
    %c0_242 = arith.constant 0 : index
    %110 = vector.load %arg11[%c0_239, %c1_240, %c5_241, %c0_242] : memref<2x20x20x64xf32, #tpu.memory_space<vmem>>, vector<2x4x4x64xf32>
    %c0_243 = arith.constant 0 : index
    %c1_244 = arith.constant 1 : index
    %c10_245 = arith.constant 10 : index
    %c0_246 = arith.constant 0 : index
    %111 = vector.load %arg11[%c0_243, %c1_244, %c10_245, %c0_246] : memref<2x20x20x64xf32, #tpu.memory_space<vmem>>, vector<2x4x4x64xf32>
    %c0_247 = arith.constant 0 : index
    %c1_248 = arith.constant 1 : index
    %c15_249 = arith.constant 15 : index
    %c0_250 = arith.constant 0 : index
    %112 = vector.load %arg11[%c0_247, %c1_248, %c15_249, %c0_250] : memref<2x20x20x64xf32, #tpu.memory_space<vmem>>, vector<2x4x4x64xf32>
    %c0_251 = arith.constant 0 : index
    %c6_252 = arith.constant 6 : index
    %c0_253 = arith.constant 0 : index
    %c0_254 = arith.constant 0 : index
    %113 = vector.load %arg11[%c0_251, %c6_252, %c0_253, %c0_254] : memref<2x20x20x64xf32, #tpu.memory_space<vmem>>, vector<2x4x4x64xf32>
    %c0_255 = arith.constant 0 : index
    %c6_256 = arith.constant 6 : index
    %c5_257 = arith.constant 5 : index
    %c0_258 = arith.constant 0 : index
    %114 = vector.load %arg11[%c0_255, %c6_256, %c5_257, %c0_258] : memref<2x20x20x64xf32, #tpu.memory_space<vmem>>, vector<2x4x4x64xf32>
    %c0_259 = arith.constant 0 : index
    %c6_260 = arith.constant 6 : index
    %c10_261 = arith.constant 10 : index
    %c0_262 = arith.constant 0 : index
    %115 = vector.load %arg11[%c0_259, %c6_260, %c10_261, %c0_262] : memref<2x20x20x64xf32, #tpu.memory_space<vmem>>, vector<2x4x4x64xf32>
    %c0_263 = arith.constant 0 : index
    %c6_264 = arith.constant 6 : index
    %c15_265 = arith.constant 15 : index
    %c0_266 = arith.constant 0 : index
    %116 = vector.load %arg11[%c0_263, %c6_264, %c15_265, %c0_266] : memref<2x20x20x64xf32, #tpu.memory_space<vmem>>, vector<2x4x4x64xf32>
    %117 = tpu.concatenate %101, %102, %103, %104, %105, %106, %107, %108, %109, %110, %111, %112, %113, %114, %115, %116 in 3 : vector<2x4x4x64xf32>, vector<2x4x4x64xf32>, vector<2x4x4x64xf32>, vector<2x4x4x64xf32>, vector<2x4x4x64xf32>, vector<2x4x4x64xf32>, vector<2x4x4x64xf32>, vector<2x4x4x64xf32>, vector<2x4x4x64xf32>, vector<2x4x4x64xf32>, vector<2x4x4x64xf32>, vector<2x4x4x64xf32>, vector<2x4x4x64xf32>, vector<2x4x4x64xf32>, vector<2x4x4x64xf32>, vector<2x4x4x64xf32> -> vector<2x4x4x1024xf32>
    %118 = arith.truncf %117 : vector<2x4x4x1024xf32> to vector<2x4x4x1024xbf16>
    %119 = vector.shape_cast %118 : vector<2x4x4x1024xbf16> to vector<32x1024xbf16>
    %c0_267 = arith.constant 0 : index
    %c0_268 = arith.constant 0 : index
    %120 = vector.load %arg3[%c0_267, %c0_268] : memref<1024x128xbf16, #tpu.memory_space<vmem>>, vector<1024x128xbf16>
    %cst_269 = arith.constant dense<0.000000e+00> : vector<32x128xf32>
    %121 = tpu.matmul %119, %120, %cst_269 {dimension_numbers = #tpu.dot_dimension_numbers<[1], [0], [0], [1], [0, 0, 1, 1], [], []>} : vector<32x1024xbf16>, vector<1024x128xbf16>, vector<32x128xf32> -> vector<32x128xf32>
    %c0_270 = arith.constant 0 : index
    %c10_271 = arith.constant 10 : index
    %c10_272 = arith.constant 10 : index
    %c0_273 = arith.constant 0 : index
    %122 = vector.load %arg11[%c0_270, %c10_271, %c10_272, %c0_273] : memref<2x20x20x64xf32, #tpu.memory_space<vmem>>, vector<2x4x4x64xf32>
    %c0_274 = arith.constant 0 : index
    %c10_275 = arith.constant 10 : index
    %c15_276 = arith.constant 15 : index
    %c0_277 = arith.constant 0 : index
    %123 = vector.load %arg11[%c0_274, %c10_275, %c15_276, %c0_277] : memref<2x20x20x64xf32, #tpu.memory_space<vmem>>, vector<2x4x4x64xf32>
    %c0_278 = arith.constant 0 : index
    %c10_279 = arith.constant 10 : index
    %c1_280 = arith.constant 1 : index
    %c0_281 = arith.constant 0 : index
    %124 = vector.load %arg11[%c0_278, %c10_279, %c1_280, %c0_281] : memref<2x20x20x64xf32, #tpu.memory_space<vmem>>, vector<2x4x4x64xf32>
    %c0_282 = arith.constant 0 : index
    %c10_283 = arith.constant 10 : index
    %c6_284 = arith.constant 6 : index
    %c0_285 = arith.constant 0 : index
    %125 = vector.load %arg11[%c0_282, %c10_283, %c6_284, %c0_285] : memref<2x20x20x64xf32, #tpu.memory_space<vmem>>, vector<2x4x4x64xf32>
    %c0_286 = arith.constant 0 : index
    %c15_287 = arith.constant 15 : index
    %c10_288 = arith.constant 10 : index
    %c0_289 = arith.constant 0 : index
    %126 = vector.load %arg11[%c0_286, %c15_287, %c10_288, %c0_289] : memref<2x20x20x64xf32, #tpu.memory_space<vmem>>, vector<2x4x4x64xf32>
    %c0_290 = arith.constant 0 : index
    %c15_291 = arith.constant 15 : index
    %c15_292 = arith.constant 15 : index
    %c0_293 = arith.constant 0 : index
    %127 = vector.load %arg11[%c0_290, %c15_291, %c15_292, %c0_293] : memref<2x20x20x64xf32, #tpu.memory_space<vmem>>, vector<2x4x4x64xf32>
    %c0_294 = arith.constant 0 : index
    %c15_295 = arith.constant 15 : index
    %c1_296 = arith.constant 1 : index
    %c0_297 = arith.constant 0 : index
    %128 = vector.load %arg11[%c0_294, %c15_295, %c1_296, %c0_297] : memref<2x20x20x64xf32, #tpu.memory_space<vmem>>, vector<2x4x4x64xf32>
    %c0_298 = arith.constant 0 : index
    %c15_299 = arith.constant 15 : index
    %c6_300 = arith.constant 6 : index
    %c0_301 = arith.constant 0 : index
    %129 = vector.load %arg11[%c0_298, %c15_299, %c6_300, %c0_301] : memref<2x20x20x64xf32, #tpu.memory_space<vmem>>, vector<2x4x4x64xf32>
    %c0_302 = arith.constant 0 : index
    %c1_303 = arith.constant 1 : index
    %c10_304 = arith.constant 10 : index
    %c0_305 = arith.constant 0 : index
    %130 = vector.load %arg11[%c0_302, %c1_303, %c10_304, %c0_305] : memref<2x20x20x64xf32, #tpu.memory_space<vmem>>, vector<2x4x4x64xf32>
    %c0_306 = arith.constant 0 : index
    %c1_307 = arith.constant 1 : index
    %c15_308 = arith.constant 15 : index
    %c0_309 = arith.constant 0 : index
    %131 = vector.load %arg11[%c0_306, %c1_307, %c15_308, %c0_309] : memref<2x20x20x64xf32, #tpu.memory_space<vmem>>, vector<2x4x4x64xf32>
    %c0_310 = arith.constant 0 : index
    %c1_311 = arith.constant 1 : index
    %c1_312 = arith.constant 1 : index
    %c0_313 = arith.constant 0 : index
    %132 = vector.load %arg11[%c0_310, %c1_311, %c1_312, %c0_313] : memref<2x20x20x64xf32, #tpu.memory_space<vmem>>, vector<2x4x4x64xf32>
    %c0_314 = arith.constant 0 : index
    %c1_315 = arith.constant 1 : index
    %c6_316 = arith.constant 6 : index
    %c0_317 = arith.constant 0 : index
    %133 = vector.load %arg11[%c0_314, %c1_315, %c6_316, %c0_317] : memref<2x20x20x64xf32, #tpu.memory_space<vmem>>, vector<2x4x4x64xf32>
    %c0_318 = arith.constant 0 : index
    %c6_319 = arith.constant 6 : index
    %c10_320 = arith.constant 10 : index
    %c0_321 = arith.constant 0 : index
    %134 = vector.load %arg11[%c0_318, %c6_319, %c10_320, %c0_321] : memref<2x20x20x64xf32, #tpu.memory_space<vmem>>, vector<2x4x4x64xf32>
    %c0_322 = arith.constant 0 : index
    %c6_323 = arith.constant 6 : index
    %c15_324 = arith.constant 15 : index
    %c0_325 = arith.constant 0 : index
    %135 = vector.load %arg11[%c0_322, %c6_323, %c15_324, %c0_325] : memref<2x20x20x64xf32, #tpu.memory_space<vmem>>, vector<2x4x4x64xf32>
    %c0_326 = arith.constant 0 : index
    %c6_327 = arith.constant 6 : index
    %c1_328 = arith.constant 1 : index
    %c0_329 = arith.constant 0 : index
    %136 = vector.load %arg11[%c0_326, %c6_327, %c1_328, %c0_329] : memref<2x20x20x64xf32, #tpu.memory_space<vmem>>, vector<2x4x4x64xf32>
    %c0_330 = arith.constant 0 : index
    %c6_331 = arith.constant 6 : index
    %c6_332 = arith.constant 6 : index
    %c0_333 = arith.constant 0 : index
    %137 = vector.load %arg11[%c0_330, %c6_331, %c6_332, %c0_333] : memref<2x20x20x64xf32, #tpu.memory_space<vmem>>, vector<2x4x4x64xf32>
    %138 = tpu.concatenate %122, %123, %124, %125, %126, %127, %128, %129, %130, %131, %132, %133, %134, %135, %136, %137 in 3 : vector<2x4x4x64xf32>, vector<2x4x4x64xf32>, vector<2x4x4x64xf32>, vector<2x4x4x64xf32>, vector<2x4x4x64xf32>, vector<2x4x4x64xf32>, vector<2x4x4x64xf32>, vector<2x4x4x64xf32>, vector<2x4x4x64xf32>, vector<2x4x4x64xf32>, vector<2x4x4x64xf32>, vector<2x4x4x64xf32>, vector<2x4x4x64xf32>, vector<2x4x4x64xf32>, vector<2x4x4x64xf32>, vector<2x4x4x64xf32> -> vector<2x4x4x1024xf32>
    %139 = arith.truncf %138 : vector<2x4x4x1024xf32> to vector<2x4x4x1024xbf16>
    %140 = vector.shape_cast %139 : vector<2x4x4x1024xbf16> to vector<32x1024xbf16>
    %c0_334 = arith.constant 0 : index
    %c0_335 = arith.constant 0 : index
    %141 = vector.load %arg3[%c0_334, %c0_335] : memref<1024x128xbf16, #tpu.memory_space<vmem>>, vector<1024x128xbf16>
    %cst_336 = arith.constant dense<0.000000e+00> : vector<32x128xf32>
    %142 = tpu.matmul %140, %141, %cst_336 {dimension_numbers = #tpu.dot_dimension_numbers<[1], [0], [0], [1], [0, 0, 1, 1], [], []>} : vector<32x1024xbf16>, vector<1024x128xbf16>, vector<32x128xf32> -> vector<32x128xf32>
    %143 = tpu.concatenate %79, %100, %121, %142 in 0 : vector<32x128xf32>, vector<32x128xf32>, vector<32x128xf32>, vector<32x128xf32> -> vector<128x128xf32>
    %cst_337 = arith.constant dense<0.000000e+00> : vector<128xf32>
    %144 = vector.multi_reduction <add>, %143, %cst_337 [0] : vector<128x128xf32> to vector<128xf32>
    %145 = vector.shape_cast %144 : vector<128xf32> to vector<1x128xf32>
    %cst_338 = arith.constant 1.280000e+02 : f32
    %146 = vector.broadcast %cst_338 : f32 to vector<1x128xf32>
    %147 = arith.divf %145, %146 : vector<1x128xf32>
    %148 = vector.broadcast %147 : vector<1x128xf32> to vector<128x128xf32>
    %149 = arith.subf %143, %148 : vector<128x128xf32>
    %150 = arith.mulf %149, %149 : vector<128x128xf32>
    %cst_339 = arith.constant dense<0.000000e+00> : vector<128xf32>
    %151 = vector.multi_reduction <add>, %150, %cst_339 [0] : vector<128x128xf32> to vector<128xf32>
    %152 = vector.shape_cast %151 : vector<128xf32> to vector<1x128xf32>
    %cst_340 = arith.constant 1.280000e+02 : f32
    %153 = vector.broadcast %cst_340 : f32 to vector<1x128xf32>
    %154 = arith.divf %152, %153 : vector<1x128xf32>
    %155 = vector.broadcast %147 : vector<1x128xf32> to vector<128x128xf32>
    %156 = arith.subf %143, %155 : vector<128x128xf32>
    %cst_341 = arith.constant 9.99999974E-6 : f32
    %157 = vector.broadcast %cst_341 : f32 to vector<1x128xf32>
    %158 = arith.addf %154, %157 : vector<1x128xf32>
    %159 = math.rsqrt %158 : vector<1x128xf32>
    %160 = vector.broadcast %159 : vector<1x128xf32> to vector<128x128xf32>
    %161 = arith.mulf %156, %160 : vector<128x128xf32>
    %c0_342 = arith.constant 0 : index
    %c0_343 = arith.constant 0 : index
    %162 = vector.load %arg4[%c0_342, %c0_343] : memref<1x128xf32, #tpu.memory_space<vmem>>, vector<1x128xf32>
    %163 = vector.broadcast %162 : vector<1x128xf32> to vector<128x128xf32>
    %164 = arith.mulf %161, %163 : vector<128x128xf32>
    %c0_344 = arith.constant 0 : index
    %c0_345 = arith.constant 0 : index
    %165 = vector.load %arg5[%c0_344, %c0_345] : memref<1x128xf32, #tpu.memory_space<vmem>>, vector<1x128xf32>
    %166 = vector.broadcast %165 : vector<1x128xf32> to vector<128x128xf32>
    %167 = arith.addf %164, %166 : vector<128x128xf32>
    %cst_346 = arith.constant 0.000000e+00 : f32
    %168 = vector.broadcast %cst_346 : f32 to vector<128x128xf32>
    %169 = arith.cmpf oge, %167, %168 : vector<128x128xf32>
    %cst_347 = arith.constant 2.000000e-01 : f32
    %170 = vector.broadcast %cst_347 : f32 to vector<128x128xf32>
    %171 = arith.mulf %170, %167 : vector<128x128xf32>
    %172 = arith.select %169, %167, %171 : vector<128x128xi1>, vector<128x128xf32>
    %cst_348 = arith.constant 0.000000e+00 : f32
    %173 = vector.broadcast %cst_348 : f32 to vector<2x10x10x128xf32>
    %c0_349 = arith.constant 0 : index
    %c0_350 = arith.constant 0 : index
    %c0_351 = arith.constant 0 : index
    %c0_352 = arith.constant 0 : index
    %174 = vector.load %arg12[%c0_349, %c0_350, %c0_351, %c0_352] : memref<2x10x10x128xf32, #tpu.memory_space<vmem>>, vector<2x10x10x128xf32>
    tpu.vector_store %arg12[%c0_349, %c0_350, %c0_351, %c0_352], %173 {strides = array<i32>} : memref<2x10x10x128xf32, #tpu.memory_space<vmem>>, vector<2x10x10x128xf32>,
    %175 = vector.extract_strided_slice %172 {offsets = [0, 0], sizes = [32, 128], strides = [1, 1]} : vector<128x128xf32> to vector<32x128xf32>
    %176 = vector.shape_cast %175 : vector<32x128xf32> to vector<2x4x4x128xf32>
    %c0_353 = arith.constant 0 : index
    %c5_354 = arith.constant 5 : index
    %c5_355 = arith.constant 5 : index
    %c0_356 = arith.constant 0 : index
    %177 = vector.load %arg12[%c0_353, %c5_354, %c5_355, %c0_356] : memref<2x10x10x128xf32, #tpu.memory_space<vmem>>, vector<2x4x4x128xf32>
    tpu.vector_store %arg12[%c0_353, %c5_354, %c5_355, %c0_356], %176 {strides = array<i32>} : memref<2x10x10x128xf32, #tpu.memory_space<vmem>>, vector<2x4x4x128xf32>,
    %178 = vector.extract_strided_slice %172 {offsets = [32, 0], sizes = [32, 128], strides = [1, 1]} : vector<128x128xf32> to vector<32x128xf32>
    %179 = vector.shape_cast %178 : vector<32x128xf32> to vector<2x4x4x128xf32>
    %c0_357 = arith.constant 0 : index
    %c5_358 = arith.constant 5 : index
    %c1_359 = arith.constant 1 : index
    %c0_360 = arith.constant 0 : index
    %180 = vector.load %arg12[%c0_357, %c5_358, %c1_359, %c0_360] : memref<2x10x10x128xf32, #tpu.memory_space<vmem>>, vector<2x4x4x128xf32>
    tpu.vector_store %arg12[%c0_357, %c5_358, %c1_359, %c0_360], %179 {strides = array<i32>} : memref<2x10x10x128xf32, #tpu.memory_space<vmem>>, vector<2x4x4x128xf32>,
    %181 = vector.extract_strided_slice %172 {offsets = [64, 0], sizes = [32, 128], strides = [1, 1]} : vector<128x128xf32> to vector<32x128xf32>
    %182 = vector.shape_cast %181 : vector<32x128xf32> to vector<2x4x4x128xf32>
    %c0_361 = arith.constant 0 : index
    %c1_362 = arith.constant 1 : index
    %c5_363 = arith.constant 5 : index
    %c0_364 = arith.constant 0 : index
    %183 = vector.load %arg12[%c0_361, %c1_362, %c5_363, %c0_364] : memref<2x10x10x128xf32, #tpu.memory_space<vmem>>, vector<2x4x4x128xf32>
    tpu.vector_store %arg12[%c0_361, %c1_362, %c5_363, %c0_364], %182 {strides = array<i32>} : memref<2x10x10x128xf32, #tpu.memory_space<vmem>>, vector<2x4x4x128xf32>,
    %184 = vector.extract_strided_slice %172 {offsets = [96, 0], sizes = [32, 128], strides = [1, 1]} : vector<128x128xf32> to vector<32x128xf32>
    %185 = vector.shape_cast %184 : vector<32x128xf32> to vector<2x4x4x128xf32>
    %c0_365 = arith.constant 0 : index
    %c1_366 = arith.constant 1 : index
    %c1_367 = arith.constant 1 : index
    %c0_368 = arith.constant 0 : index
    %186 = vector.load %arg12[%c0_365, %c1_366, %c1_367, %c0_368] : memref<2x10x10x128xf32, #tpu.memory_space<vmem>>, vector<2x4x4x128xf32>
    tpu.vector_store %arg12[%c0_365, %c1_366, %c1_367, %c0_368], %185 {strides = array<i32>} : memref<2x10x10x128xf32, #tpu.memory_space<vmem>>, vector<2x4x4x128xf32>,
    %c0_369 = arith.constant 0 : index
    %c0_370 = arith.constant 0 : index
    %c0_371 = arith.constant 0 : index
    %c0_372 = arith.constant 0 : index
    %187 = vector.load %arg12[%c0_369, %c0_370, %c0_371, %c0_372] : memref<2x10x10x128xf32, #tpu.memory_space<vmem>>, vector<2x4x4x128xf32>
    %c0_373 = arith.constant 0 : index
    %c0_374 = arith.constant 0 : index
    %c5_375 = arith.constant 5 : index
    %c0_376 = arith.constant 0 : index
    %188 = vector.load %arg12[%c0_373, %c0_374, %c5_375, %c0_376] : memref<2x10x10x128xf32, #tpu.memory_space<vmem>>, vector<2x4x4x128xf32>
    %c0_377 = arith.constant 0 : index
    %c0_378 = arith.constant 0 : index
    %c1_379 = arith.constant 1 : index
    %c0_380 = arith.constant 0 : index
    %189 = vector.load %arg12[%c0_377, %c0_378, %c1_379, %c0_380] : memref<2x10x10x128xf32, #tpu.memory_space<vmem>>, vector<2x4x4x128xf32>
    %c0_381 = arith.constant 0 : index
    %c0_382 = arith.constant 0 : index
    %c6_383 = arith.constant 6 : index
    %c0_384 = arith.constant 0 : index
    %190 = vector.load %arg12[%c0_381, %c0_382, %c6_383, %c0_384] : memref<2x10x10x128xf32, #tpu.memory_space<vmem>>, vector<2x4x4x128xf32>
    %c0_385 = arith.constant 0 : index
    %c5_386 = arith.constant 5 : index
    %c0_387 = arith.constant 0 : index
    %c0_388 = arith.constant 0 : index
    %191 = vector.load %arg12[%c0_385, %c5_386, %c0_387, %c0_388] : memref<2x10x10x128xf32, #tpu.memory_space<vmem>>, vector<2x4x4x128xf32>
    %c0_389 = arith.constant 0 : index
    %c5_390 = arith.constant 5 : index
    %c5_391 = arith.constant 5 : index
    %c0_392 = arith.constant 0 : index
    %192 = vector.load %arg12[%c0_389, %c5_390, %c5_391, %c0_392] : memref<2x10x10x128xf32, #tpu.memory_space<vmem>>, vector<2x4x4x128xf32>
    %c0_393 = arith.constant 0 : index
    %c5_394 = arith.constant 5 : index
    %c1_395 = arith.constant 1 : index
    %c0_396 = arith.constant 0 : index
    %193 = vector.load %arg12[%c0_393, %c5_394, %c1_395, %c0_396] : memref<2x10x10x128xf32, #tpu.memory_space<vmem>>, vector<2x4x4x128xf32>
    %c0_397 = arith.constant 0 : index
    %c5_398 = arith.constant 5 : index
    %c6_399 = arith.constant 6 : index
    %c0_400 = arith.constant 0 : index
    %194 = vector.load %arg12[%c0_397, %c5_398, %c6_399, %c0_400] : memref<2x10x10x128xf32, #tpu.memory_space<vmem>>, vector<2x4x4x128xf32>
    %c0_401 = arith.constant 0 : index
    %c1_402 = arith.constant 1 : index
    %c0_403 = arith.constant 0 : index
    %c0_404 = arith.constant 0 : index
    %195 = vector.load %arg12[%c0_401, %c1_402, %c0_403, %c0_404] : memref<2x10x10x128xf32, #tpu.memory_space<vmem>>, vector<2x4x4x128xf32>
    %c0_405 = arith.constant 0 : index
    %c1_406 = arith.constant 1 : index
    %c5_407 = arith.constant 5 : index
    %c0_408 = arith.constant 0 : index
    %196 = vector.load %arg12[%c0_405, %c1_406, %c5_407, %c0_408] : memref<2x10x10x128xf32, #tpu.memory_space<vmem>>, vector<2x4x4x128xf32>
    %c0_409 = arith.constant 0 : index
    %c1_410 = arith.constant 1 : index
    %c1_411 = arith.constant 1 : index
    %c0_412 = arith.constant 0 : index
    %197 = vector.load %arg12[%c0_409, %c1_410, %c1_411, %c0_412] : memref<2x10x10x128xf32, #tpu.memory_space<vmem>>, vector<2x4x4x128xf32>
    %c0_413 = arith.constant 0 : index
    %c1_414 = arith.constant 1 : index
    %c6_415 = arith.constant 6 : index
    %c0_416 = arith.constant 0 : index
    %198 = vector.load %arg12[%c0_413, %c1_414, %c6_415, %c0_416] : memref<2x10x10x128xf32, #tpu.memory_space<vmem>>, vector<2x4x4x128xf32>
    %c0_417 = arith.constant 0 : index
    %c6_418 = arith.constant 6 : index
    %c0_419 = arith.constant 0 : index
    %c0_420 = arith.constant 0 : index
    %199 = vector.load %arg12[%c0_417, %c6_418, %c0_419, %c0_420] : memref<2x10x10x128xf32, #tpu.memory_space<vmem>>, vector<2x4x4x128xf32>
    %c0_421 = arith.constant 0 : index
    %c6_422 = arith.constant 6 : index
    %c5_423 = arith.constant 5 : index
    %c0_424 = arith.constant 0 : index
    %200 = vector.load %arg12[%c0_421, %c6_422, %c5_423, %c0_424] : memref<2x10x10x128xf32, #tpu.memory_space<vmem>>, vector<2x4x4x128xf32>
    %c0_425 = arith.constant 0 : index
    %c6_426 = arith.constant 6 : index
    %c1_427 = arith.constant 1 : index
    %c0_428 = arith.constant 0 : index
    %201 = vector.load %arg12[%c0_425, %c6_426, %c1_427, %c0_428] : memref<2x10x10x128xf32, #tpu.memory_space<vmem>>, vector<2x4x4x128xf32>
    %c0_429 = arith.constant 0 : index
    %c6_430 = arith.constant 6 : index
    %c6_431 = arith.constant 6 : index
    %c0_432 = arith.constant 0 : index
    %202 = vector.load %arg12[%c0_429, %c6_430, %c6_431, %c0_432] : memref<2x10x10x128xf32, #tpu.memory_space<vmem>>, vector<2x4x4x128xf32>
    %203 = tpu.concatenate %187, %188, %189, %190, %191, %192, %193, %194, %195, %196, %197, %198, %199, %200, %201, %202 in 3 : vector<2x4x4x128xf32>, vector<2x4x4x128xf32>, vector<2x4x4x128xf32>, vector<2x4x4x128xf32>, vector<2x4x4x128xf32>, vector<2x4x4x128xf32>, vector<2x4x4x128xf32>, vector<2x4x4x128xf32>, vector<2x4x4x128xf32>, vector<2x4x4x128xf32>, vector<2x4x4x128xf32>, vector<2x4x4x128xf32>, vector<2x4x4x128xf32>, vector<2x4x4x128xf32>, vector<2x4x4x128xf32>, vector<2x4x4x128xf32> -> vector<2x4x4x2048xf32>
    %204 = arith.truncf %203 : vector<2x4x4x2048xf32> to vector<2x4x4x2048xbf16>
    %205 = vector.shape_cast %204 : vector<2x4x4x2048xbf16> to vector<32x2048xbf16>
    %c0_433 = arith.constant 0 : index
    %c0_434 = arith.constant 0 : index
    %206 = vector.load %arg6[%c0_433, %c0_434] : memref<2048x256xbf16, #tpu.memory_space<vmem>>, vector<2048x256xbf16>
    %cst_435 = arith.constant dense<0.000000e+00> : vector<32x256xf32>
    %207 = tpu.matmul %205, %206, %cst_435 {dimension_numbers = #tpu.dot_dimension_numbers<[1], [0], [0], [1], [0, 0, 1, 1], [], []>} : vector<32x2048xbf16>, vector<2048x256xbf16>, vector<32x256xf32> -> vector<32x256xf32>
    %cst_436 = arith.constant dense<0.000000e+00> : vector<256xf32>
    %208 = vector.multi_reduction <add>, %207, %cst_436 [0] : vector<32x256xf32> to vector<256xf32>
    %209 = vector.shape_cast %208 : vector<256xf32> to vector<1x256xf32>
    %cst_437 = arith.constant 3.200000e+01 : f32
    %210 = vector.broadcast %cst_437 : f32 to vector<1x256xf32>
    %211 = arith.divf %209, %210 : vector<1x256xf32>
    %212 = vector.broadcast %211 : vector<1x256xf32> to vector<32x256xf32>
    %213 = arith.subf %207, %212 : vector<32x256xf32>
    %214 = arith.mulf %213, %213 : vector<32x256xf32>
    %cst_438 = arith.constant dense<0.000000e+00> : vector<256xf32>
    %215 = vector.multi_reduction <add>, %214, %cst_438 [0] : vector<32x256xf32> to vector<256xf32>
    %216 = vector.shape_cast %215 : vector<256xf32> to vector<1x256xf32>
    %cst_439 = arith.constant 3.200000e+01 : f32
    %217 = vector.broadcast %cst_439 : f32 to vector<1x256xf32>
    %218 = arith.divf %216, %217 : vector<1x256xf32>
    %219 = vector.broadcast %211 : vector<1x256xf32> to vector<32x256xf32>
    %220 = arith.subf %207, %219 : vector<32x256xf32>
    %cst_440 = arith.constant 9.99999974E-6 : f32
    %221 = vector.broadcast %cst_440 : f32 to vector<1x256xf32>
    %222 = arith.addf %218, %221 : vector<1x256xf32>
    %223 = math.rsqrt %222 : vector<1x256xf32>
    %224 = vector.broadcast %223 : vector<1x256xf32> to vector<32x256xf32>
    %225 = arith.mulf %220, %224 : vector<32x256xf32>
    %c0_441 = arith.constant 0 : index
    %c0_442 = arith.constant 0 : index
    %226 = vector.load %arg7[%c0_441, %c0_442] : memref<1x256xf32, #tpu.memory_space<vmem>>, vector<1x256xf32>
    %227 = vector.broadcast %226 : vector<1x256xf32> to vector<32x256xf32>
    %228 = arith.mulf %225, %227 : vector<32x256xf32>
    %c0_443 = arith.constant 0 : index
    %c0_444 = arith.constant 0 : index
    %229 = vector.load %arg8[%c0_443, %c0_444] : memref<1x256xf32, #tpu.memory_space<vmem>>, vector<1x256xf32>
    %230 = vector.broadcast %229 : vector<1x256xf32> to vector<32x256xf32>
    %231 = arith.addf %228, %230 : vector<32x256xf32>
    %cst_445 = arith.constant 0.000000e+00 : f32
    %232 = vector.broadcast %cst_445 : f32 to vector<32x256xf32>
    %233 = arith.cmpf oge, %231, %232 : vector<32x256xf32>
    %cst_446 = arith.constant 2.000000e-01 : f32
    %234 = vector.broadcast %cst_446 : f32 to vector<32x256xf32>
    %235 = arith.mulf %234, %231 : vector<32x256xf32>
    %236 = arith.select %233, %231, %235 : vector<32x256xi1>, vector<32x256xf32>
    %237 = vector.shape_cast %236 : vector<32x256xf32> to vector<2x16x256xf32>
    %c0_447 = arith.constant 0 : index
    %c0_448 = arith.constant 0 : index
    %238 = vector.load %arg9[%c0_447, %c0_448] : memref<16x256xf32, #tpu.memory_space<vmem>>, vector<16x256xf32>
    %239 = vector.shape_cast %238 : vector<16x256xf32> to vector<1x16x256xf32>
    %240 = vector.broadcast %239 : vector<1x16x256xf32> to vector<2x16x256xf32>
    %241 = arith.mulf %237, %240 : vector<2x16x256xf32>
    %cst_449 = arith.constant dense<0.000000e+00> : vector<2x16xf32>
    %242 = vector.multi_reduction <add>, %241, %cst_449 [2] : vector<2x16x256xf32> to vector<2x16xf32>
    %243 = vector.shape_cast %242 : vector<2x16xf32> to vector<2x16x1xf32>
    %cst_450 = arith.constant dense<0.000000e+00> : vector<2x1xf32>
    %244 = vector.multi_reduction <add>, %243, %cst_450 [1] : vector<2x16x1xf32> to vector<2x1xf32>
    %245 = arith.negf %244 : vector<2x1xf32>
    %246 = math.exp %245 : vector<2x1xf32>
    %cst_451 = arith.constant 1.000000e+00 : f32
    %247 = vector.broadcast %cst_451 : f32 to vector<2x1xf32>
    %248 = arith.addf %247, %246 : vector<2x1xf32>
    %249 = arith.divf %247, %248 : vector<2x1xf32>
    %c0_452 = arith.constant 0 : index
    %c0_453 = arith.constant 0 : index
    %250 = vector.load %arg10[%c0_452, %c0_453] : memref<2x1xf32, #tpu.memory_space<vmem>>, vector<2x1xf32>
    tpu.vector_store %arg10[%c0_452, %c0_453], %249 {strides = array<i32>} : memref<2x1xf32, #tpu.memory_space<vmem>>, vector<2x1xf32>,
    return
  }
  func.func @transform_0(%arg0: i32) -> (i32, i32) {
    %c0_i32 = arith.constant 0 : i32
    %c0_i32_0 = arith.constant 0 : i32
    %c0_i32_1 = arith.constant 0 : i32
    return %c0_i32, %c0_i32_0 : i32, i32
  }
  func.func @transform_1(%arg0: i32) -> (i32, i32) {
    %c0_i32 = arith.constant 0 : i32
    %c0_i32_0 = arith.constant 0 : i32
    %c0_i32_1 = arith.constant 0 : i32
    return %c0_i32, %c0_i32_0 : i32, i32
  }
  func.func @transform_2(%arg0: i32) -> (i32, i32) {
    %c0_i32 = arith.constant 0 : i32
    %c0_i32_0 = arith.constant 0 : i32
    %c0_i32_1 = arith.constant 0 : i32
    return %c0_i32, %c0_i32_0 : i32, i32
  }
  func.func @transform_3(%arg0: i32) -> (i32, i32) {
    %c0_i32 = arith.constant 0 : i32
    %c0_i32_0 = arith.constant 0 : i32
    %c0_i32_1 = arith.constant 0 : i32
    return %c0_i32, %c0_i32_0 : i32, i32
  }
  func.func @transform_4(%arg0: i32) -> (i32, i32) {
    %c0_i32 = arith.constant 0 : i32
    %c0_i32_0 = arith.constant 0 : i32
    %c0_i32_1 = arith.constant 0 : i32
    return %c0_i32, %c0_i32_0 : i32, i32
  }
  func.func @transform_5(%arg0: i32) -> (i32, i32) {
    %c0_i32 = arith.constant 0 : i32
    %c0_i32_0 = arith.constant 0 : i32
    %c0_i32_1 = arith.constant 0 : i32
    return %c0_i32, %c0_i32_0 : i32, i32
  }
  func.func @transform_6(%arg0: i32) -> (i32, i32) {
    %c0_i32 = arith.constant 0 : i32
    %c0_i32_0 = arith.constant 0 : i32
    %c0_i32_1 = arith.constant 0 : i32
    return %c0_i32, %c0_i32_0 : i32, i32
  }
  func.func @transform_7(%arg0: i32) -> (i32, i32) {
    %c0_i32 = arith.constant 0 : i32
    %c0_i32_0 = arith.constant 0 : i32
    %c0_i32_1 = arith.constant 0 : i32
    return %c0_i32, %c0_i32_0 : i32, i32
  }
  func.func @transform_8(%arg0: i32) -> (i32, i32) {
    %c0_i32 = arith.constant 0 : i32
    %c0_i32_0 = arith.constant 0 : i32
    %c0_i32_1 = arith.constant 0 : i32
    return %c0_i32, %c0_i32_0 : i32, i32
  }
  func.func @transform_9(%arg0: i32) -> (i32, i32) {
    %c0_i32 = arith.constant 0 : i32
    %c0_i32_0 = arith.constant 0 : i32
    %c0_i32_1 = arith.constant 0 : i32
    return %c0_i32, %c0_i32_0 : i32, i32
  }
}

</mosaic_0001>

<llo_original>
// kernel: discriminator_forward.1
$region0: #{discriminator_forward.1}
  #allocation0 [shape = 'u32[]', space=smem, size = 0x4, offset = 0x4, fixed_abs, tag = 'smem constant byte address 0x4 - core index']
  #allocation1 [shape = 'u32[144,128]{1,0:T(1,128)}', space=vmem, size = 0x12000, scoped, tag = 'internal scratch']
  #allocation2 [shape = 'f32[2,20,20,64]{3,2,1,0:T(8,128)}', space=vmem, size = 0x78000, scoped, tag = 'scratch operand']
  #allocation3 [shape = 'f32[2,10,10,128]{3,2,1,0:T(8,128)}', space=vmem, size = 0x28000, scoped, tag = 'scratch operand']
  %s0 = inlined_call_operand.vmem [shape: bf16[512,128], index: 0, kind: input, shape index: {}]
  %s1 = inlined_call_operand.vmem [shape: bf16[128,64], index: 1, kind: input, shape index: {}]
  %s2 = inlined_call_operand.vmem [shape: bf16[1024,128], index: 2, kind: input, shape index: {}]
  %s3 = inlined_call_operand.vmem [shape: f32[1,128], index: 3, kind: input, shape index: {}]
  %s4 = inlined_call_operand.vmem [shape: f32[1,128], index: 4, kind: input, shape index: {}]
  %s5 = inlined_call_operand.vmem [shape: bf16[2048,256], index: 5, kind: input, shape index: {}]
  %s6 = inlined_call_operand.vmem [shape: f32[1,256], index: 6, kind: input, shape index: {}]
  %s7 = inlined_call_operand.vmem [shape: f32[1,256], index: 7, kind: input, shape index: {}]
  %s8 = inlined_call_operand.vmem [shape: f32[16,256], index: 8, kind: input, shape index: {}]
  %s9 = inlined_call_operand.vmem [shape: f32[2,1], index: 9, kind: output, shape index: {}]
  %s10 = sld [smem:[#allocation0]]
  $region46: #{discriminator_forward.1} parent=0
    _
  %s12 = ssub.s32 1, %s10
  %s13 = scalar_select 0, %s12, %s10
  // Predicated region
  $region2: #{discriminator_forward.1} parent=0 // pred_check
    _
  $region3: #{discriminator_forward.1} parent=0 // pred_check_branch
    %15 = sbr.rel (0) target = $region5
  $region4: #{discriminator_forward.1} parent=0 // pred_region
    _
  $region5: #{discriminator_forward.1} parent=0 // pred_fallthru
    _
  // Predicated region
  $region6: #{discriminator_forward.1} parent=0 // pred_check
    _
  $region7: #{discriminator_forward.1} parent=0 // pred_check_branch
    %17 = sbr.rel (0) target = $region9
  $region8: #{discriminator_forward.1} parent=0 // pred_region
    _
  $region9: #{discriminator_forward.1} parent=0 // pred_fallthru
    _
  // Predicated region
  $region10: #{discriminator_forward.1} parent=0 // pred_check
    _
  $region11: #{discriminator_forward.1} parent=0 // pred_check_branch
    %19 = sbr.rel (0) target = $region13
  $region12: #{discriminator_forward.1} parent=0 // pred_region
    _
  $region13: #{discriminator_forward.1} parent=0 // pred_fallthru
    _
  // Predicated region
  $region14: #{discriminator_forward.1} parent=0 // pred_check
    _
  $region15: #{discriminator_forward.1} parent=0 // pred_check_branch
    %21 = sbr.rel (0) target = $region17
  $region16: #{discriminator_forward.1} parent=0 // pred_region
    _
  $region17: #{discriminator_forward.1} parent=0 // pred_fallthru
    _
  // Predicated region
  $region18: #{discriminator_forward.1} parent=0 // pred_check
    _
  $region19: #{discriminator_forward.1} parent=0 // pred_check_branch
    %23 = sbr.rel (0) target = $region21
  $region20: #{discriminator_forward.1} parent=0 // pred_region
    _
  $region21: #{discriminator_forward.1} parent=0 // pred_fallthru
    _
  // Predicated region
  $region22: #{discriminator_forward.1} parent=0 // pred_check
    _
  $region23: #{discriminator_forward.1} parent=0 // pred_check_branch
    %25 = sbr.rel (0) target = $region25
  $region24: #{discriminator_forward.1} parent=0 // pred_region
    _
  $region25: #{discriminator_forward.1} parent=0 // pred_fallthru
    _
  // Predicated region
  $region26: #{discriminator_forward.1} parent=0 // pred_check
    _
  $region27: #{discriminator_forward.1} parent=0 // pred_check_branch
    %27 = sbr.rel (0) target = $region29
  $region28: #{discriminator_forward.1} parent=0 // pred_region
    _
  $region29: #{discriminator_forward.1} parent=0 // pred_fallthru
    _
  // Predicated region
  $region30: #{discriminator_forward.1} parent=0 // pred_check
    _
  $region31: #{discriminator_forward.1} parent=0 // pred_check_branch
    %29 = sbr.rel (0) target = $region33
  $region32: #{discriminator_forward.1} parent=0 // pred_region
    _
  $region33: #{discriminator_forward.1} parent=0 // pred_fallthru
    _
  // Predicated region
  $region34: #{discriminator_forward.1} parent=0 // pred_check
    _
  $region35: #{discriminator_forward.1} parent=0 // pred_check_branch
    %31 = sbr.rel (0) target = $region37
  $region36: #{discriminator_forward.1} parent=0 // pred_region
    _
  $region37: #{discriminator_forward.1} parent=0 // pred_fallthru
    _
  %v33 = vld [vmem:[%s0] sm:$0xf]
  %v34 = vld [vmem:[%s0 + $0x4] sm:$0xf]
  %v35 = vld [vmem:[%s0 + $0x8] sm:$0xf]
  %v36 = vld [vmem:[%s0 + $0xc] sm:$0xf]
  %v37 = vld [vmem:[%s0 + $0x10] sm:$0xf]
  %v38 = vld [vmem:[%s0 + $0x14] sm:$0xf]
  %v39 = vld [vmem:[%s0 + $0x18] sm:$0xf]
  %v40 = vld [vmem:[%s0 + $0x1c] sm:$0xf]
  %v41 = vld [vmem:[%s0 + $0x20] sm:$0xf]
  %v42 = vld [vmem:[%s0 + $0x24] sm:$0xf]
  %v43 = vld [vmem:[%s0 + $0x28] sm:$0xf]
  %v44 = vld [vmem:[%s0 + $0x2c] sm:$0xf]
  %v45 = vld [vmem:[%s0 + $0x30] sm:$0xf]
  %v46 = vld [vmem:[%s0 + $0x34] sm:$0xf]
  %v47 = vld [vmem:[%s0 + $0x38] sm:$0xf]
  %v48 = vld [vmem:[%s0 + $0x3c] sm:$0xf]
  %v49 = vld [vmem:[%s0 + $0x40] sm:$0xf]
  %v50 = vld [vmem:[%s0 + $0x44] sm:$0xf]
  %v51 = vld [vmem:[%s0 + $0x48] sm:$0xf]
  %v52 = vld [vmem:[%s0 + $0x4c] sm:$0xf]
  %v53 = vld [vmem:[%s0 + $0x50] sm:$0xf]
  %v54 = vld [vmem:[%s0 + $0x54] sm:$0xf]
  %v55 = vld [vmem:[%s0 + $0x58] sm:$0xf]
  %v56 = vld [vmem:[%s0 + $0x5c] sm:$0xf]
  %v57 = vld [vmem:[%s0 + $0x60] sm:$0xf]
  %v58 = vld [vmem:[%s0 + $0x64] sm:$0xf]
  %v59 = vld [vmem:[%s0 + $0x68] sm:$0xf]
  %v60 = vld [vmem:[%s0 + $0x6c] sm:$0xf]
  %v61 = vld [vmem:[%s0 + $0x70] sm:$0xf]
  %v62 = vld [vmem:[%s0 + $0x74] sm:$0xf]
  %v63 = vld [vmem:[%s0 + $0x78] sm:$0xf]
  %v64 = vld [vmem:[%s0 + $0x7c] sm:$0xf]
  %v65 = vld [vmem:[%s0 + $0x80] sm:$0xf]
  %v66 = vld [vmem:[%s0 + $0x84] sm:$0xf]
  %v67 = vld [vmem:[%s0 + $0x88] sm:$0xf]
  %v68 = vld [vmem:[%s0 + $0x8c] sm:$0xf]
  %v69 = vld [vmem:[%s0 + $0x90] sm:$0xf]
  %v70 = vld [vmem:[%s0 + $0x94] sm:$0xf]
  %v71 = vld [vmem:[%s0 + $0x98] sm:$0xf]
  %v72 = vld [vmem:[%s0 + $0x9c] sm:$0xf]
  %v73 = vld [vmem:[%s0 + $0xa0] sm:$0xf]
  %v74 = vld [vmem:[%s0 + $0xa4] sm:$0xf]
  %v75 = vld [vmem:[%s0 + $0xa8] sm:$0xf]
  %v76 = vld [vmem:[%s0 + $0xac] sm:$0xf]
  %v77 = vld [vmem:[%s0 + $0xb0] sm:$0xf]
  %v78 = vld [vmem:[%s0 + $0xb4] sm:$0xf]
  %v79 = vld [vmem:[%s0 + $0xb8] sm:$0xf]
  %v80 = vld [vmem:[%s0 + $0xbc] sm:$0xf]
  %v81 = vld [vmem:[%s0 + $0xc0] sm:$0xf]
  %v82 = vld [vmem:[%s0 + $0xc4] sm:$0xf]
  %v83 = vld [vmem:[%s0 + $0xc8] sm:$0xf]
  %v84 = vld [vmem:[%s0 + $0xcc] sm:$0xf]
  %v85 = vld [vmem:[%s0 + $0xd0] sm:$0xf]
  %v86 = vld [vmem:[%s0 + $0xd4] sm:$0xf]
  %v87 = vld [vmem:[%s0 + $0xd8] sm:$0xf]
  %v88 = vld [vmem:[%s0 + $0xdc] sm:$0xf]
  %v89 = vld [vmem:[%s0 + $0xe0] sm:$0xf]
  %v90 = vld [vmem:[%s0 + $0xe4] sm:$0xf]
  %v91 = vld [vmem:[%s0 + $0xe8] sm:$0xf]
  %v92 = vld [vmem:[%s0 + $0xec] sm:$0xf]
  %v93 = vld [vmem:[%s0 + $0xf0] sm:$0xf]
  %v94 = vld [vmem:[%s0 + $0xf4] sm:$0xf]
  %v95 = vld [vmem:[%s0 + $0xf8] sm:$0xf]
  %v96 = vld [vmem:[%s0 + $0xfc] sm:$0xf]
  %v97 = vld [vmem:[%s1] sm:$0xf]
  %v98 = vld [vmem:[%s1 + $0x4] sm:$0xf]
  %v99 = vld [vmem:[%s1 + $0x8] sm:$0xf]
  %v100 = vld [vmem:[%s1 + $0xc] sm:$0xf]
  %v101 = vld [vmem:[%s1 + $0x10] sm:$0xf]
  %v102 = vld [vmem:[%s1 + $0x14] sm:$0xf]
  %v103 = vld [vmem:[%s1 + $0x18] sm:$0xf]
  %v104 = vld [vmem:[%s1 + $0x1c] sm:$0xf]
  %v105 = vld [vmem:[%s1 + $0x20] sm:$0xf]
  %v106 = vld [vmem:[%s1 + $0x24] sm:$0xf]
  %v107 = vld [vmem:[%s1 + $0x28] sm:$0xf]
  %v108 = vld [vmem:[%s1 + $0x2c] sm:$0xf]
  %v109 = vld [vmem:[%s1 + $0x30] sm:$0xf]
  %v110 = vld [vmem:[%s1 + $0x34] sm:$0xf]
  %v111 = vld [vmem:[%s1 + $0x38] sm:$0xf]
  %v112 = vld [vmem:[%s1 + $0x3c] sm:$0xf]
  %v177 = vunpack.c.l.b16 %v33
  %v178 = vunpack.c.l.b16 %v34
  %v179 = vunpack.c.l.b16 %v35
  %v180 = vunpack.c.l.b16 %v36
  %v181 = vunpack.c.l.b16 %v37
  %v182 = vunpack.c.l.b16 %v38
  %v183 = vunpack.c.l.b16 %v39
  %v184 = vunpack.c.l.b16 %v40
  %v185 = vunpack.c.l.b16 %v41
  %v186 = vunpack.c.l.b16 %v42
  %v187 = vunpack.c.l.b16 %v43
  %v188 = vunpack.c.l.b16 %v44
  %v189 = vunpack.c.l.b16 %v45
  %v190 = vunpack.c.l.b16 %v46
  %v191 = vunpack.c.l.b16 %v47
  %v192 = vunpack.c.l.b16 %v48
  %v193 = vunpack.c.l.b16 %v49
  %v194 = vunpack.c.l.b16 %v50
  %v195 = vunpack.c.l.b16 %v51
  %v196 = vunpack.c.l.b16 %v52
  %v197 = vunpack.c.l.b16 %v53
  %v198 = vunpack.c.l.b16 %v54
  %v199 = vunpack.c.l.b16 %v55
  %v200 = vunpack.c.l.b16 %v56
  %v201 = vunpack.c.l.b16 %v57
  %v202 = vunpack.c.l.b16 %v58
  %v203 = vunpack.c.l.b16 %v59
  %v204 = vunpack.c.l.b16 %v60
  %v205 = vunpack.c.l.b16 %v61
  %v206 = vunpack.c.l.b16 %v62
  %v207 = vunpack.c.l.b16 %v63
  %v208 = vunpack.c.l.b16 %v64
  %v209 = vunpack.c.l.b16 %v65
  %v210 = vunpack.c.l.b16 %v66
  %v211 = vunpack.c.l.b16 %v67
  %v212 = vunpack.c.l.b16 %v68
  %v213 = vunpack.c.l.b16 %v69
  %v214 = vunpack.c.l.b16 %v70
  %v215 = vunpack.c.l.b16 %v71
  %v216 = vunpack.c.l.b16 %v72
  %v217 = vunpack.c.l.b16 %v73
  %v218 = vunpack.c.l.b16 %v74
  %v219 = vunpack.c.l.b16 %v75
  %v220 = vunpack.c.l.b16 %v76
  %v221 = vunpack.c.l.b16 %v77
  %v222 = vunpack.c.l.b16 %v78
  %v223 = vunpack.c.l.b16 %v79
  %v224 = vunpack.c.l.b16 %v80
  %v225 = vunpack.c.l.b16 %v81
  %v226 = vunpack.c.l.b16 %v82
  %v227 = vunpack.c.l.b16 %v83
  %v228 = vunpack.c.l.b16 %v84
  %v229 = vunpack.c.l.b16 %v85
  %v230 = vunpack.c.l.b16 %v86
  %v231 = vunpack.c.l.b16 %v87
  %v232 = vunpack.c.l.b16 %v88
  %v233 = vunpack.c.l.b16 %v89
  %v234 = vunpack.c.l.b16 %v90
  %v235 = vunpack.c.l.b16 %v91
  %v236 = vunpack.c.l.b16 %v92
  %v237 = vunpack.c.l.b16 %v93
  %v238 = vunpack.c.l.b16 %v94
  %v239 = vunpack.c.l.b16 %v95
  %v240 = vunpack.c.l.b16 %v96
  %v241 = vpack.c.b16 %v178, %v177
  %v242 = vpack.c.b16 %v180, %v179
  %v243 = vpack.c.b16 %v182, %v181
  %v244 = vpack.c.b16 %v184, %v183
  %v245 = vpack.c.b16 %v186, %v185
  %v246 = vpack.c.b16 %v188, %v187
  %v247 = vpack.c.b16 %v190, %v189
  %v248 = vpack.c.b16 %v192, %v191
  %v249 = vpack.c.b16 %v194, %v193
  %v250 = vpack.c.b16 %v196, %v195
  %v251 = vpack.c.b16 %v198, %v197
  %v252 = vpack.c.b16 %v200, %v199
  %v253 = vpack.c.b16 %v202, %v201
  %v254 = vpack.c.b16 %v204, %v203
  %v255 = vpack.c.b16 %v206, %v205
  %v256 = vpack.c.b16 %v208, %v207
  %v257 = vpack.c.b16 %v210, %v209
  %v258 = vpack.c.b16 %v212, %v211
  %v259 = vpack.c.b16 %v214, %v213
  %v260 = vpack.c.b16 %v216, %v215
  %v261 = vpack.c.b16 %v218, %v217
  %v262 = vpack.c.b16 %v220, %v219
  %v263 = vpack.c.b16 %v222, %v221
  %v264 = vpack.c.b16 %v224, %v223
  %v265 = vpack.c.b16 %v226, %v225
  %v266 = vpack.c.b16 %v228, %v227
  %v267 = vpack.c.b16 %v230, %v229
  %v268 = vpack.c.b16 %v232, %v231
  %v269 = vpack.c.b16 %v234, %v233
  %v270 = vpack.c.b16 %v236, %v235
  %v271 = vpack.c.b16 %v238, %v237
  %v272 = vpack.c.b16 %v240, %v239
  %v321 = vunpack.c.l.b16 %v97
  %v322 = vunpack.c.l.b16 %v98
  %v323 = vunpack.c.l.b16 %v99
  %v324 = vunpack.c.l.b16 %v100
  %v325 = vunpack.c.l.b16 %v101
  %v326 = vunpack.c.l.b16 %v102
  %v327 = vunpack.c.l.b16 %v103
  %v328 = vunpack.c.l.b16 %v104
  %v329 = vunpack.c.l.b16 %v105
  %v330 = vunpack.c.l.b16 %v106
  %v331 = vunpack.c.l.b16 %v107
  %v332 = vunpack.c.l.b16 %v108
  %v333 = vunpack.c.l.b16 %v109
  %v334 = vunpack.c.l.b16 %v110
  %v335 = vunpack.c.l.b16 %v111
  %v336 = vunpack.c.l.b16 %v112
  %v337 = vpack.c.b16 %v322, %v321
  %v338 = vpack.c.b16 %v324, %v323
  %v339 = vpack.c.b16 %v326, %v325
  %v340 = vpack.c.b16 %v328, %v327
  %v341 = vpack.c.b16 %v330, %v329
  %v342 = vpack.c.b16 %v332, %v331
  %v343 = vpack.c.b16 %v334, %v333
  %v344 = vpack.c.b16 %v336, %v335
  %353 = vmatprep.subr.bf16.mxu0 0
  %354 = vmatpush1.bf16.msra.mxu0 %v337
  %355 = vmatprep.subr.bf16.mxu0 0
  %356 = vmatpush1.bf16.msra.mxu0 %v338
  %357 = vmatprep.subr.bf16.mxu0 0
  %358 = vmatpush1.bf16.msra.mxu0 %v339
  %359 = vmatprep.subr.bf16.mxu0 0
  %360 = vmatpush1.bf16.msra.mxu0 %v340
  %361 = vmatprep.subr.bf16.mxu0 0
  %362 = vmatpush1.bf16.msra.mxu0 %v341
  %363 = vmatprep.subr.bf16.mxu0 0
  %364 = vmatpush1.bf16.msra.mxu0 %v342
  %365 = vmatprep.subr.bf16.mxu0 0
  %366 = vmatpush1.bf16.msra.mxu0 %v343
  %367 = vmatprep.subr.bf16.mxu0 0
  %368 = vmatpush1.bf16.msra.mxu0 %v344
  %369 = vmatprep.subr.bf16.mxu0 0
  %370 = vmatpush1.bf16.msra.mxu0 0
  %371 = vmatprep.subr.bf16.mxu0 0
  %372 = vmatpush1.bf16.msra.mxu0 0
  %373 = vmatprep.subr.bf16.mxu0 0
  %374 = vmatpush1.bf16.msra.mxu0 0
  %375 = vmatprep.subr.bf16.mxu0 0
  %376 = vmatpush1.bf16.msra.mxu0 0
  %377 = vmatprep.subr.bf16.mxu0 0
  %378 = vmatpush1.bf16.msra.mxu0 0
  %379 = vmatprep.subr.bf16.mxu0 0
  %380 = vmatpush1.bf16.msra.mxu0 0
  %381 = vmatprep.subr.bf16.mxu0 0
  %382 = vmatpush1.bf16.msra.mxu0 0
  %383 = vmatprep.subr.bf16.mxu0 0
  %384 = vmatpush1.bf16.msra.mxu0 0
  %385 = vmatprep.mubr.bf16.mxu0 0
  %386 = vmatmul.mubr.bf16.gmra.mrb[0].mxu0 %v241
  %v387 = vpop.f32.mrb[0].mxu0
  %v388 = vadd.f32 0.0, %v387
  %v389 = vpop.f32.mrb[0].mxu0
  %v390 = vpop.f32.mrb[0].mxu0
  %v391 = vadd.f32 0.0, %v390
  %v392 = vpop.f32.mrb[0].mxu0
  %393 = vmatprep.mubr.bf16.mxu0 0
  %394 = vmatmul.mubr.bf16.gmra.mrb[0].mxu0 %v242
  %v395 = vpop.f32.mrb[0].mxu0
  %v396 = vadd.f32 0.0, %v395
  %v397 = vpop.f32.mrb[0].mxu0
  %v398 = vpop.f32.mrb[0].mxu0
  %v399 = vadd.f32 0.0, %v398
  %v400 = vpop.f32.mrb[0].mxu0
  %401 = vmatprep.mubr.bf16.mxu0 0
  %402 = vmatmul.mubr.bf16.gmra.mrb[0].mxu0 %v243
  %v403 = vpop.f32.mrb[0].mxu0
  %v404 = vadd.f32 0.0, %v403
  %v405 = vpop.f32.mrb[0].mxu0
  %v406 = vpop.f32.mrb[0].mxu0
  %v407 = vadd.f32 0.0, %v406
  %v408 = vpop.f32.mrb[0].mxu0
  %409 = vmatprep.mubr.bf16.mxu0 0
  %410 = vmatmul.mubr.bf16.gmra.mrb[0].mxu0 %v244
  %v411 = vpop.f32.mrb[0].mxu0
  %v412 = vadd.f32 0.0, %v411
  %v413 = vpop.f32.mrb[0].mxu0
  %v414 = vpop.f32.mrb[0].mxu0
  %v415 = vadd.f32 0.0, %v414
  %v416 = vpop.f32.mrb[0].mxu0
  %417 = vmatprep.mubr.bf16.mxu0 0
  %418 = vmatmul.mubr.bf16.gmra.mrb[0].mxu0 %v245
  %v419 = vpop.f32.mrb[0].mxu0
  %v420 = vadd.f32 0.0, %v419
  %v421 = vpop.f32.mrb[0].mxu0
  %v422 = vpop.f32.mrb[0].mxu0
  %v423 = vadd.f32 0.0, %v422
  %v424 = vpop.f32.mrb[0].mxu0
  %425 = vmatprep.mubr.bf16.mxu0 0
  %426 = vmatmul.mubr.bf16.gmra.mrb[0].mxu0 %v246
  %v427 = vpop.f32.mrb[0].mxu0
  %v428 = vadd.f32 0.0, %v427
  %v429 = vpop.f32.mrb[0].mxu0
  %v430 = vpop.f32.mrb[0].mxu0
  %v431 = vadd.f32 0.0, %v430
  %v432 = vpop.f32.mrb[0].mxu0
  %433 = vmatprep.mubr.bf16.mxu0 0
  %434 = vmatmul.mubr.bf16.gmra.mrb[0].mxu0 %v247
  %v435 = vpop.f32.mrb[0].mxu0
  %v436 = vadd.f32 0.0, %v435
  %v437 = vpop.f32.mrb[0].mxu0
  %v438 = vpop.f32.mrb[0].mxu0
  %v439 = vadd.f32 0.0, %v438
  %v440 = vpop.f32.mrb[0].mxu0
  %441 = vmatprep.mubr.bf16.mxu0 0
  %442 = vmatmul.mubr.bf16.gmra.mrb[0].mxu0 %v248
  %v443 = vpop.f32.mrb[0].mxu0
  %v444 = vadd.f32 0.0, %v443
  %v445 = vpop.f32.mrb[0].mxu0
  %v446 = vpop.f32.mrb[0].mxu0
  %v447 = vadd.f32 0.0, %v446
  %v448 = vpop.f32.mrb[0].mxu0
  %449 = vmatprep.mubr.bf16.mxu0 0
  %450 = vmatmul.mubr.bf16.gmra.mrb[0].mxu0 %v249
  %v451 = vpop.f32.mrb[0].mxu0
  %v452 = vadd.f32 0.0, %v451
  %v453 = vpop.f32.mrb[0].mxu0
  %v454 = vpop.f32.mrb[0].mxu0
  %v455 = vadd.f32 0.0, %v454
  %v456 = vpop.f32.mrb[0].mxu0
  %457 = vmatprep.mubr.bf16.mxu0 0
  %458 = vmatmul.mubr.bf16.gmra.mrb[0].mxu0 %v250
  %v459 = vpop.f32.mrb[0].mxu0
  %v460 = vadd.f32 0.0, %v459
  %v461 = vpop.f32.mrb[0].mxu0
  %v462 = vpop.f32.mrb[0].mxu0
  %v463 = vadd.f32 0.0, %v462
  %v464 = vpop.f32.mrb[0].mxu0
  %465 = vmatprep.mubr.bf16.mxu0 0
  %466 = vmatmul.mubr.bf16.gmra.mrb[0].mxu0 %v251
  %v467 = vpop.f32.mrb[0].mxu0
  %v468 = vadd.f32 0.0, %v467
  %v469 = vpop.f32.mrb[0].mxu0
  %v470 = vpop.f32.mrb[0].mxu0
  %v471 = vadd.f32 0.0, %v470
  %v472 = vpop.f32.mrb[0].mxu0
  %473 = vmatprep.mubr.bf16.mxu0 0
  %474 = vmatmul.mubr.bf16.gmra.mrb[0].mxu0 %v252
  %v475 = vpop.f32.mrb[0].mxu0
  %v476 = vadd.f32 0.0, %v475
  %v477 = vpop.f32.mrb[0].mxu0
  %v478 = vpop.f32.mrb[0].mxu0
  %v479 = vadd.f32 0.0, %v478
  %v480 = vpop.f32.mrb[0].mxu0
  %481 = vmatprep.mubr.bf16.mxu0 0
  %482 = vmatmul.mubr.bf16.gmra.mrb[0].mxu0 %v253
  %v483 = vpop.f32.mrb[0].mxu0
  %v484 = vadd.f32 0.0, %v483
  %v485 = vpop.f32.mrb[0].mxu0
  %v486 = vpop.f32.mrb[0].mxu0
  %v487 = vadd.f32 0.0, %v486
  %v488 = vpop.f32.mrb[0].mxu0
  %489 = vmatprep.mubr.bf16.mxu0 0
  %490 = vmatmul.mubr.bf16.gmra.mrb[0].mxu0 %v254
  %v491 = vpop.f32.mrb[0].mxu0
  %v492 = vadd.f32 0.0, %v491
  %v493 = vpop.f32.mrb[0].mxu0
  %v494 = vpop.f32.mrb[0].mxu0
  %v495 = vadd.f32 0.0, %v494
  %v496 = vpop.f32.mrb[0].mxu0
  %497 = vmatprep.mubr.bf16.mxu0 0
  %498 = vmatmul.mubr.bf16.gmra.mrb[0].mxu0 %v255
  %v499 = vpop.f32.mrb[0].mxu0
  %v500 = vadd.f32 0.0, %v499
  %v501 = vpop.f32.mrb[0].mxu0
  %v502 = vpop.f32.mrb[0].mxu0
  %v503 = vadd.f32 0.0, %v502
  %v504 = vpop.f32.mrb[0].mxu0
  %505 = vmatprep.mubr.bf16.mxu0 0
  %506 = vmatmul.mubr.bf16.gmra.mrb[0].mxu0 %v256
  %v507 = vpop.f32.mrb[0].mxu0
  %v508 = vadd.f32 0.0, %v507
  %v509 = vpop.f32.mrb[0].mxu0
  %v510 = vpop.f32.mrb[0].mxu0
  %v511 = vadd.f32 0.0, %v510
  %v512 = vpop.f32.mrb[0].mxu0
  %513 = vmatprep.mubr.bf16.mxu0 0
  %514 = vmatmul.mubr.bf16.gmra.mrb[0].mxu0 %v257
  %v515 = vpop.f32.mrb[0].mxu0
  %v516 = vadd.f32 0.0, %v515
  %v517 = vpop.f32.mrb[0].mxu0
  %v518 = vpop.f32.mrb[0].mxu0
  %v519 = vadd.f32 0.0, %v518
  %v520 = vpop.f32.mrb[0].mxu0
  %521 = vmatprep.mubr.bf16.mxu0 0
  %522 = vmatmul.mubr.bf16.gmra.mrb[0].mxu0 %v258
  %v523 = vpop.f32.mrb[0].mxu0
  %v524 = vadd.f32 0.0, %v523
  %v525 = vpop.f32.mrb[0].mxu0
  %v526 = vpop.f32.mrb[0].mxu0
  %v527 = vadd.f32 0.0, %v526
  %v528 = vpop.f32.mrb[0].mxu0
  %529 = vmatprep.mubr.bf16.mxu0 0
  %530 = vmatmul.mubr.bf16.gmra.mrb[0].mxu0 %v259
  %v531 = vpop.f32.mrb[0].mxu0
  %v532 = vadd.f32 0.0, %v531
  %v533 = vpop.f32.mrb[0].mxu0
  %v534 = vpop.f32.mrb[0].mxu0
  %v535 = vadd.f32 0.0, %v534
  %v536 = vpop.f32.mrb[0].mxu0
  %537 = vmatprep.mubr.bf16.mxu0 0
  %538 = vmatmul.mubr.bf16.gmra.mrb[0].mxu0 %v260
  %v539 = vpop.f32.mrb[0].mxu0
  %v540 = vadd.f32 0.0, %v539
  %v541 = vpop.f32.mrb[0].mxu0
  %v542 = vpop.f32.mrb[0].mxu0
  %v543 = vadd.f32 0.0, %v542
  %v544 = vpop.f32.mrb[0].mxu0
  %545 = vmatprep.mubr.bf16.mxu0 0
  %546 = vmatmul.mubr.bf16.gmra.mrb[0].mxu0 %v261
  %v547 = vpop.f32.mrb[0].mxu0
  %v548 = vadd.f32 0.0, %v547
  %v549 = vpop.f32.mrb[0].mxu0
  %v550 = vpop.f32.mrb[0].mxu0
  %v551 = vadd.f32 0.0, %v550
  %v552 = vpop.f32.mrb[0].mxu0
  %553 = vmatprep.mubr.bf16.mxu0 0
  %554 = vmatmul.mubr.bf16.gmra.mrb[0].mxu0 %v262
  %v555 = vpop.f32.mrb[0].mxu0
  %v556 = vadd.f32 0.0, %v555
  %v557 = vpop.f32.mrb[0].mxu0
  %v558 = vpop.f32.mrb[0].mxu0
  %v559 = vadd.f32 0.0, %v558
  %v560 = vpop.f32.mrb[0].mxu0
  %561 = vmatprep.mubr.bf16.mxu0 0
  %562 = vmatmul.mubr.bf16.gmra.mrb[0].mxu0 %v263
  %v563 = vpop.f32.mrb[0].mxu0
  %v564 = vadd.f32 0.0, %v563
  %v565 = vpop.f32.mrb[0].mxu0
  %v566 = vpop.f32.mrb[0].mxu0
  %v567 = vadd.f32 0.0, %v566
  %v568 = vpop.f32.mrb[0].mxu0
  %569 = vmatprep.mubr.bf16.mxu0 0
  %570 = vmatmul.mubr.bf16.gmra.mrb[0].mxu0 %v264
  %v571 = vpop.f32.mrb[0].mxu0
  %v572 = vadd.f32 0.0, %v571
  %v573 = vpop.f32.mrb[0].mxu0
  %v574 = vpop.f32.mrb[0].mxu0
  %v575 = vadd.f32 0.0, %v574
  %v576 = vpop.f32.mrb[0].mxu0
  %577 = vmatprep.mubr.bf16.mxu0 0
  %578 = vmatmul.mubr.bf16.gmra.mrb[0].mxu0 %v265
  %v579 = vpop.f32.mrb[0].mxu0
  %v580 = vadd.f32 0.0, %v579
  %v581 = vpop.f32.mrb[0].mxu0
  %v582 = vpop.f32.mrb[0].mxu0
  %v583 = vadd.f32 0.0, %v582
  %v584 = vpop.f32.mrb[0].mxu0
  %585 = vmatprep.mubr.bf16.mxu0 0
  %586 = vmatmul.mubr.bf16.gmra.mrb[0].mxu0 %v266
  %v587 = vpop.f32.mrb[0].mxu0
  %v588 = vadd.f32 0.0, %v587
  %v589 = vpop.f32.mrb[0].mxu0
  %v590 = vpop.f32.mrb[0].mxu0
  %v591 = vadd.f32 0.0, %v590
  %v592 = vpop.f32.mrb[0].mxu0
  %593 = vmatprep.mubr.bf16.mxu0 0
  %594 = vmatmul.mubr.bf16.gmra.mrb[0].mxu0 %v267
  %v595 = vpop.f32.mrb[0].mxu0
  %v596 = vadd.f32 0.0, %v595
  %v597 = vpop.f32.mrb[0].mxu0
  %v598 = vpop.f32.mrb[0].mxu0
  %v599 = vadd.f32 0.0, %v598
  %v600 = vpop.f32.mrb[0].mxu0
  %601 = vmatprep.mubr.bf16.mxu0 0
  %602 = vmatmul.mubr.bf16.gmra.mrb[0].mxu0 %v268
  %v603 = vpop.f32.mrb[0].mxu0
  %v604 = vadd.f32 0.0, %v603
  %v605 = vpop.f32.mrb[0].mxu0
  %v606 = vpop.f32.mrb[0].mxu0
  %v607 = vadd.f32 0.0, %v606
  %v608 = vpop.f32.mrb[0].mxu0
  %609 = vmatprep.mubr.bf16.mxu0 0
  %610 = vmatmul.mubr.bf16.gmra.mrb[0].mxu0 %v269
  %v611 = vpop.f32.mrb[0].mxu0
  %v612 = vadd.f32 0.0, %v611
  %v613 = vpop.f32.mrb[0].mxu0
  %v614 = vpop.f32.mrb[0].mxu0
  %v615 = vadd.f32 0.0, %v614
  %v616 = vpop.f32.mrb[0].mxu0
  %617 = vmatprep.mubr.bf16.mxu0 0
  %618 = vmatmul.mubr.bf16.gmra.mrb[0].mxu0 %v270
  %v619 = vpop.f32.mrb[0].mxu0
  %v620 = vadd.f32 0.0, %v619
  %v621 = vpop.f32.mrb[0].mxu0
  %v622 = vpop.f32.mrb[0].mxu0
  %v623 = vadd.f32 0.0, %v622
  %v624 = vpop.f32.mrb[0].mxu0
  %625 = vmatprep.mubr.bf16.mxu0 0
  %626 = vmatmul.mubr.bf16.gmra.mrb[0].mxu0 %v271
  %v627 = vpop.f32.mrb[0].mxu0
  %v628 = vadd.f32 0.0, %v627
  %v629 = vpop.f32.mrb[0].mxu0
  %v630 = vpop.f32.mrb[0].mxu0
  %v631 = vadd.f32 0.0, %v630
  %v632 = vpop.f32.mrb[0].mxu0
  %633 = vmatprep.mubr.bf16.mxu0 0
  %634 = vmatmul.mubr.bf16.gmra.mrb[0].mxu0 %v272
  %v635 = vpop.f32.mrb[0].mxu0
  %v636 = vadd.f32 0.0, %v635
  %v637 = vpop.f32.mrb[0].mxu0
  %v638 = vpop.f32.mrb[0].mxu0
  %v639 = vadd.f32 0.0, %v638
  %v640 = vpop.f32.mrb[0].mxu0
  %641 = vdwg.mxu0
  %vm642 = vcmp.ge.f32.partialorder %v388, 0.0
  %vm643 = vcmp.ge.f32.partialorder %v391, 0.0
  %vm644 = vcmp.ge.f32.partialorder %v396, 0.0
  %vm645 = vcmp.ge.f32.partialorder %v399, 0.0
  %vm646 = vcmp.ge.f32.partialorder %v404, 0.0
  %vm647 = vcmp.ge.f32.partialorder %v407, 0.0
  %vm648 = vcmp.ge.f32.partialorder %v412, 0.0
  %vm649 = vcmp.ge.f32.partialorder %v415, 0.0
  %vm650 = vcmp.ge.f32.partialorder %v420, 0.0
  %vm651 = vcmp.ge.f32.partialorder %v423, 0.0
  %vm652 = vcmp.ge.f32.partialorder %v428, 0.0
  %vm653 = vcmp.ge.f32.partialorder %v431, 0.0
  %vm654 = vcmp.ge.f32.partialorder %v436, 0.0
  %vm655 = vcmp.ge.f32.partialorder %v439, 0.0
  %vm656 = vcmp.ge.f32.partialorder %v444, 0.0
  %vm657 = vcmp.ge.f32.partialorder %v447, 0.0
  %vm658 = vcmp.ge.f32.partialorder %v452, 0.0
  %vm659 = vcmp.ge.f32.partialorder %v455, 0.0
  %vm660 = vcmp.ge.f32.partialorder %v460, 0.0
  %vm661 = vcmp.ge.f32.partialorder %v463, 0.0
  %vm662 = vcmp.ge.f32.partialorder %v468, 0.0
  %vm663 = vcmp.ge.f32.partialorder %v471, 0.0
  %vm664 = vcmp.ge.f32.partialorder %v476, 0.0
  %vm665 = vcmp.ge.f32.partialorder %v479, 0.0
  %vm666 = vcmp.ge.f32.partialorder %v484, 0.0
  %vm667 = vcmp.ge.f32.partialorder %v487, 0.0
  %vm668 = vcmp.ge.f32.partialorder %v492, 0.0
  %vm669 = vcmp.ge.f32.partialorder %v495, 0.0
  %vm670 = vcmp.ge.f32.partialorder %v500, 0.0
  %vm671 = vcmp.ge.f32.partialorder %v503, 0.0
  %vm672 = vcmp.ge.f32.partialorder %v508, 0.0
  %vm673 = vcmp.ge.f32.partialorder %v511, 0.0
  %vm674 = vcmp.ge.f32.partialorder %v516, 0.0
  %vm675 = vcmp.ge.f32.partialorder %v519, 0.0
  %vm676 = vcmp.ge.f32.partialorder %v524, 0.0
  %vm677 = vcmp.ge.f32.partialorder %v527, 0.0
  %vm678 = vcmp.ge.f32.partialorder %v532, 0.0
  %vm679 = vcmp.ge.f32.partialorder %v535, 0.0
  %vm680 = vcmp.ge.f32.partialorder %v540, 0.0
  %vm681 = vcmp.ge.f32.partialorder %v543, 0.0
  %vm682 = vcmp.ge.f32.partialorder %v548, 0.0
  %vm683 = vcmp.ge.f32.partialorder %v551, 0.0
  %vm684 = vcmp.ge.f32.partialorder %v556, 0.0
  %vm685 = vcmp.ge.f32.partialorder %v559, 0.0
  %vm686 = vcmp.ge.f32.partialorder %v564, 0.0
  %vm687 = vcmp.ge.f32.partialorder %v567, 0.0
  %vm688 = vcmp.ge.f32.partialorder %v572, 0.0
  %vm689 = vcmp.ge.f32.partialorder %v575, 0.0
  %vm690 = vcmp.ge.f32.partialorder %v580, 0.0
  %vm691 = vcmp.ge.f32.partialorder %v583, 0.0
  %vm692 = vcmp.ge.f32.partialorder %v588, 0.0
  %vm693 = vcmp.ge.f32.partialorder %v591, 0.0
  %vm694 = vcmp.ge.f32.partialorder %v596, 0.0
  %vm695 = vcmp.ge.f32.partialorder %v599, 0.0
  %vm696 = vcmp.ge.f32.partialorder %v604, 0.0
  %vm697 = vcmp.ge.f32.partialorder %v607, 0.0
  %vm698 = vcmp.ge.f32.partialorder %v612, 0.0
  %vm699 = vcmp.ge.f32.partialorder %v615, 0.0
  %vm700 = vcmp.ge.f32.partialorder %v620, 0.0
  %vm701 = vcmp.ge.f32.partialorder %v623, 0.0
  %vm702 = vcmp.ge.f32.partialorder %v628, 0.0
  %vm703 = vcmp.ge.f32.partialorder %v631, 0.0
  %vm704 = vcmp.ge.f32.partialorder %v636, 0.0
  %vm705 = vcmp.ge.f32.partialorder %v639, 0.0
  %v706 = vmul.f32 %v388, 0.2
  %v707 = vmul.f32 %v391, 0.2
  %v708 = vmul.f32 %v396, 0.2
  %v709 = vmul.f32 %v399, 0.2
  %v710 = vmul.f32 %v404, 0.2
  %v711 = vmul.f32 %v407, 0.2
  %v712 = vmul.f32 %v412, 0.2
  %v713 = vmul.f32 %v415, 0.2
  %v714 = vmul.f32 %v420, 0.2
  %v715 = vmul.f32 %v423, 0.2
  %v716 = vmul.f32 %v428, 0.2
  %v717 = vmul.f32 %v431, 0.2
  %v718 = vmul.f32 %v436, 0.2
  %v719 = vmul.f32 %v439, 0.2
  %v720 = vmul.f32 %v444, 0.2
  %v721 = vmul.f32 %v447, 0.2
  %v722 = vmul.f32 %v452, 0.2
  %v723 = vmul.f32 %v455, 0.2
  %v724 = vmul.f32 %v460, 0.2
  %v725 = vmul.f32 %v463, 0.2
  %v726 = vmul.f32 %v468, 0.2
  %v727 = vmul.f32 %v471, 0.2
  %v728 = vmul.f32 %v476, 0.2
  %v729 = vmul.f32 %v479, 0.2
  %v730 = vmul.f32 %v484, 0.2
  %v731 = vmul.f32 %v487, 0.2
  %v732 = vmul.f32 %v492, 0.2
  %v733 = vmul.f32 %v495, 0.2
  %v734 = vmul.f32 %v500, 0.2
  %v735 = vmul.f32 %v503, 0.2
  %v736 = vmul.f32 %v508, 0.2
  %v737 = vmul.f32 %v511, 0.2
  %v738 = vmul.f32 %v516, 0.2
  %v739 = vmul.f32 %v519, 0.2
  %v740 = vmul.f32 %v524, 0.2
  %v741 = vmul.f32 %v527, 0.2
  %v742 = vmul.f32 %v532, 0.2
  %v743 = vmul.f32 %v535, 0.2
  %v744 = vmul.f32 %v540, 0.2
  %v745 = vmul.f32 %v543, 0.2
  %v746 = vmul.f32 %v548, 0.2
  %v747 = vmul.f32 %v551, 0.2
  %v748 = vmul.f32 %v556, 0.2
  %v749 = vmul.f32 %v559, 0.2
  %v750 = vmul.f32 %v564, 0.2
  %v751 = vmul.f32 %v567, 0.2
  %v752 = vmul.f32 %v572, 0.2
  %v753 = vmul.f32 %v575, 0.2
  %v754 = vmul.f32 %v580, 0.2
  %v755 = vmul.f32 %v583, 0.2
  %v756 = vmul.f32 %v588, 0.2
  %v757 = vmul.f32 %v591, 0.2
  %v758 = vmul.f32 %v596, 0.2
  %v759 = vmul.f32 %v599, 0.2
  %v760 = vmul.f32 %v604, 0.2
  %v761 = vmul.f32 %v607, 0.2
  %v762 = vmul.f32 %v612, 0.2
  %v763 = vmul.f32 %v615, 0.2
  %v764 = vmul.f32 %v620, 0.2
  %v765 = vmul.f32 %v623, 0.2
  %v766 = vmul.f32 %v628, 0.2
  %v767 = vmul.f32 %v631, 0.2
  %v768 = vmul.f32 %v636, 0.2
  %v769 = vmul.f32 %v639, 0.2
  %v770 = vsel %vm642, %v388, %v706
  %v771 = vsel %vm643, %v391, %v707
  %v772 = vsel %vm644, %v396, %v708
  %v773 = vsel %vm645, %v399, %v709
  %v774 = vsel %vm646, %v404, %v710
  %v775 = vsel %vm647, %v407, %v711
  %v776 = vsel %vm648, %v412, %v712
  %v777 = vsel %vm649, %v415, %v713
  %v778 = vsel %vm650, %v420, %v714
  %v779 = vsel %vm651, %v423, %v715
  %v780 = vsel %vm652, %v428, %v716
  %v781 = vsel %vm653, %v431, %v717
  %v782 = vsel %vm654, %v436, %v718
  %v783 = vsel %vm655, %v439, %v719
  %v784 = vsel %vm656, %v444, %v720
  %v785 = vsel %vm657, %v447, %v721
  %v786 = vsel %vm658, %v452, %v722
  %v787 = vsel %vm659, %v455, %v723
  %v788 = vsel %vm660, %v460, %v724
  %v789 = vsel %vm661, %v463, %v725
  %v790 = vsel %vm662, %v468, %v726
  %v791 = vsel %vm663, %v471, %v727
  %v792 = vsel %vm664, %v476, %v728
  %v793 = vsel %vm665, %v479, %v729
  %v794 = vsel %vm666, %v484, %v730
  %v795 = vsel %vm667, %v487, %v731
  %v796 = vsel %vm668, %v492, %v732
  %v797 = vsel %vm669, %v495, %v733
  %v798 = vsel %vm670, %v500, %v734
  %v799 = vsel %vm671, %v503, %v735
  %v800 = vsel %vm672, %v508, %v736
  %v801 = vsel %vm673, %v511, %v737
  %v802 = vsel %vm674, %v516, %v738
  %v803 = vsel %vm675, %v519, %v739
  %v804 = vsel %vm676, %v524, %v740
  %v805 = vsel %vm677, %v527, %v741
  %v806 = vsel %vm678, %v532, %v742
  %v807 = vsel %vm679, %v535, %v743
  %v808 = vsel %vm680, %v540, %v744
  %v809 = vsel %vm681, %v543, %v745
  %v810 = vsel %vm682, %v548, %v746
  %v811 = vsel %vm683, %v551, %v747
  %v812 = vsel %vm684, %v556, %v748
  %v813 = vsel %vm685, %v559, %v749
  %v814 = vsel %vm686, %v564, %v750
  %v815 = vsel %vm687, %v567, %v751
  %v816 = vsel %vm688, %v572, %v752
  %v817 = vsel %vm689, %v575, %v753
  %v818 = vsel %vm690, %v580, %v754
  %v819 = vsel %vm691, %v583, %v755
  %v820 = vsel %vm692, %v588, %v756
  %v821 = vsel %vm693, %v591, %v757
  %v822 = vsel %vm694, %v596, %v758
  %v823 = vsel %vm695, %v599, %v759
  %v824 = vsel %vm696, %v604, %v760
  %v825 = vsel %vm697, %v607, %v761
  %v826 = vsel %vm698, %v612, %v762
  %v827 = vsel %vm699, %v615, %v763
  %v828 = vsel %vm700, %v620, %v764
  %v829 = vsel %vm701, %v623, %v765
  %v830 = vsel %vm702, %v628, %v766
  %v831 = vsel %vm703, %v631, %v767
  %v832 = vsel %vm704, %v636, %v768
  %v833 = vsel %vm705, %v639, %v769
  %v898 = vcombine.high %v770, %v770
  %v899 = vcombine.high %v771, %v771
  %v900 = vcombine.high %v772, %v772
  %v901 = vcombine.high %v773, %v773
  %v902 = vcombine.high %v774, %v774
  %v903 = vcombine.high %v775, %v775
  %v904 = vcombine.high %v776, %v776
  %v905 = vcombine.high %v777, %v777
  %v906 = vcombine.high %v778, %v778
  %v907 = vcombine.high %v779, %v779
  %v908 = vcombine.high %v780, %v780
  %v909 = vcombine.high %v781, %v781
  %v910 = vcombine.high %v782, %v782
  %v911 = vcombine.high %v783, %v783
  %v912 = vcombine.high %v784, %v784
  %v913 = vcombine.high %v785, %v785
  %v914 = vcombine.high %v786, %v786
  %v915 = vcombine.high %v787, %v787
  %v916 = vcombine.high %v788, %v788
  %v917 = vcombine.high %v789, %v789
  %v918 = vcombine.high %v790, %v790
  %v919 = vcombine.high %v791, %v791
  %v920 = vcombine.high %v792, %v792
  %v921 = vcombine.high %v793, %v793
  %v922 = vcombine.high %v794, %v794
  %v923 = vcombine.high %v795, %v795
  %v924 = vcombine.high %v796, %v796
  %v925 = vcombine.high %v797, %v797
  %v926 = vcombine.high %v798, %v798
  %v927 = vcombine.high %v799, %v799
  %v928 = vcombine.high %v800, %v800
  %v929 = vcombine.high %v801, %v801
  %v930 = vcombine.high %v802, %v802
  %v931 = vcombine.high %v803, %v803
  %v932 = vcombine.high %v804, %v804
  %v933 = vcombine.high %v805, %v805
  %v934 = vcombine.high %v806, %v806
  %v935 = vcombine.high %v807, %v807
  %v936 = vcombine.high %v808, %v808
  %v937 = vcombine.high %v809, %v809
  %v938 = vcombine.high %v810, %v810
  %v939 = vcombine.high %v811, %v811
  %v940 = vcombine.high %v812, %v812
  %v941 = vcombine.high %v813, %v813
  %v942 = vcombine.high %v814, %v814
  %v943 = vcombine.high %v815, %v815
  %v944 = vcombine.high %v816, %v816
  %v945 = vcombine.high %v817, %v817
  %v946 = vcombine.high %v818, %v818
  %v947 = vcombine.high %v819, %v819
  %v948 = vcombine.high %v820, %v820
  %v949 = vcombine.high %v821, %v821
  %v950 = vcombine.high %v822, %v822
  %v951 = vcombine.high %v823, %v823
  %v952 = vcombine.high %v824, %v824
  %v953 = vcombine.high %v825, %v825
  %v954 = vcombine.high %v826, %v826
  %v955 = vcombine.high %v827, %v827
  %v956 = vcombine.high %v828, %v828
  %v957 = vcombine.high %v829, %v829
  %v958 = vcombine.high %v830, %v830
  %v959 = vcombine.high %v831, %v831
  %v960 = vcombine.high %v832, %v832
  %v961 = vcombine.high %v833, %v833
  %vm1026 = vcmask 523264
  %1027 = vst.msk [vmem:[#allocation2] sm:$0xff] %vm1026, 0.0
  %1028 = vst.msk [vmem:[#allocation2 + $0x8] sm:$0xff] %vm1026, 0.0
  %vm1029 = vcmask 519168
  %1030 = vst.msk [vmem:[#allocation2 + $0x10] sm:$0xf] %vm1029, 0.0
  %1031 = vst.msk [vmem:[#allocation2 + $0x18] sm:$0xff] %vm1026, 0.0
  %1032 = vst.msk [vmem:[#allocation2 + $0x20] sm:$0xff] %vm1026, 0.0
  %1033 = vst.msk [vmem:[#allocation2 + $0x28] sm:$0xf] %vm1029, 0.0
  %1034 = vst.msk [vmem:[#allocation2 + $0x30] sm:$0xff] %vm1026, 0.0
  %1035 = vst.msk [vmem:[#allocation2 + $0x38] sm:$0xff] %vm1026, 0.0
  %1036 = vst.msk [vmem:[#allocation2 + $0x40] sm:$0xf] %vm1029, 0.0
  %1037 = vst.msk [vmem:[#allocation2 + $0x48] sm:$0xff] %vm1026, 0.0
  %1038 = vst.msk [vmem:[#allocation2 + $0x50] sm:$0xff] %vm1026, 0.0
  %1039 = vst.msk [vmem:[#allocation2 + $0x58] sm:$0xf] %vm1029, 0.0
  %1040 = vst.msk [vmem:[#allocation2 + $0x60] sm:$0xff] %vm1026, 0.0
  %1041 = vst.msk [vmem:[#allocation2 + $0x68] sm:$0xff] %vm1026, 0.0
  %1042 = vst.msk [vmem:[#allocation2 + $0x70] sm:$0xf] %vm1029, 0.0
  %1043 = vst.msk [vmem:[#allocation2 + $0x78] sm:$0xff] %vm1026, 0.0
  %1044 = vst.msk [vmem:[#allocation2 + $0x80] sm:$0xff] %vm1026, 0.0
  %1045 = vst.msk [vmem:[#allocation2 + $0x88] sm:$0xf] %vm1029, 0.0
  %1046 = vst.msk [vmem:[#allocation2 + $0x90] sm:$0xff] %vm1026, 0.0
  %1047 = vst.msk [vmem:[#allocation2 + $0x98] sm:$0xff] %vm1026, 0.0
  %1048 = vst.msk [vmem:[#allocation2 + $0xa0] sm:$0xf] %vm1029, 0.0
  %1049 = vst.msk [vmem:[#allocation2 + $0xa8] sm:$0xff] %vm1026, 0.0
  %1050 = vst.msk [vmem:[#allocation2 + $0xb0] sm:$0xff] %vm1026, 0.0
  %1051 = vst.msk [vmem:[#allocation2 + $0xb8] sm:$0xf] %vm1029, 0.0
  %1052 = vst.msk [vmem:[#allocation2 + $0xc0] sm:$0xff] %vm1026, 0.0
  %1053 = vst.msk [vmem:[#allocation2 + $0xc8] sm:$0xff] %vm1026, 0.0
  %1054 = vst.msk [vmem:[#allocation2 + $0xd0] sm:$0xf] %vm1029, 0.0
  %1055 = vst.msk [vmem:[#allocation2 + $0xd8] sm:$0xff] %vm1026, 0.0
  %1056 = vst.msk [vmem:[#allocation2 + $0xe0] sm:$0xff] %vm1026, 0.0
  %1057 = vst.msk [vmem:[#allocation2 + $0xe8] sm:$0xf] %vm1029, 0.0
  %1058 = vst.msk [vmem:[#allocation2 + $0xf0] sm:$0xff] %vm1026, 0.0
  %1059 = vst.msk [vmem:[#allocation2 + $0xf8] sm:$0xff] %vm1026, 0.0
  %1060 = vst.msk [vmem:[#allocation2 + $0x100] sm:$0xf] %vm1029, 0.0
  %1061 = vst.msk [vmem:[#allocation2 + $0x108] sm:$0xff] %vm1026, 0.0
  %1062 = vst.msk [vmem:[#allocation2 + $0x110] sm:$0xff] %vm1026, 0.0
  %1063 = vst.msk [vmem:[#allocation2 + $0x118] sm:$0xf] %vm1029, 0.0
  %1064 = vst.msk [vmem:[#allocation2 + $0x120] sm:$0xff] %vm1026, 0.0
  %1065 = vst.msk [vmem:[#allocation2 + $0x128] sm:$0xff] %vm1026, 0.0
  %1066 = vst.msk [vmem:[#allocation2 + $0x130] sm:$0xf] %vm1029, 0.0
  %1067 = vst.msk [vmem:[#allocation2 + $0x138] sm:$0xff] %vm1026, 0.0
  %1068 = vst.msk [vmem:[#allocation2 + $0x140] sm:$0xff] %vm1026, 0.0
  %1069 = vst.msk [vmem:[#allocation2 + $0x148] sm:$0xf] %vm1029, 0.0
  %1070 = vst.msk [vmem:[#allocation2 + $0x150] sm:$0xff] %vm1026, 0.0
  %1071 = vst.msk [vmem:[#allocation2 + $0x158] sm:$0xff] %vm1026, 0.0
  %1072 = vst.msk [vmem:[#allocation2 + $0x160] sm:$0xf] %vm1029, 0.0
  %1073 = vst.msk [vmem:[#allocation2 + $0x168] sm:$0xff] %vm1026, 0.0
  %1074 = vst.msk [vmem:[#allocation2 + $0x170] sm:$0xff] %vm1026, 0.0
  %1075 = vst.msk [vmem:[#allocation2 + $0x178] sm:$0xf] %vm1029, 0.0
  %1076 = vst.msk [vmem:[#allocation2 + $0x180] sm:$0xff] %vm1026, 0.0
  %1077 = vst.msk [vmem:[#allocation2 + $0x188] sm:$0xff] %vm1026, 0.0
  %1078 = vst.msk [vmem:[#allocation2 + $0x190] sm:$0xf] %vm1029, 0.0
  %1079 = vst.msk [vmem:[#allocation2 + $0x198] sm:$0xff] %vm1026, 0.0
  %1080 = vst.msk [vmem:[#allocation2 + $0x1a0] sm:$0xff] %vm1026, 0.0
  %1081 = vst.msk [vmem:[#allocation2 + $0x1a8] sm:$0xf] %vm1029, 0.0
  %1082 = vst.msk [vmem:[#allocation2 + $0x1b0] sm:$0xff] %vm1026, 0.0
  %1083 = vst.msk [vmem:[#allocation2 + $0x1b8] sm:$0xff] %vm1026, 0.0
  %1084 = vst.msk [vmem:[#allocation2 + $0x1c0] sm:$0xf] %vm1029, 0.0
  %1085 = vst.msk [vmem:[#allocation2 + $0x1c8] sm:$0xff] %vm1026, 0.0
  %1086 = vst.msk [vmem:[#allocation2 + $0x1d0] sm:$0xff] %vm1026, 0.0
  %1087 = vst.msk [vmem:[#allocation2 + $0x1d8] sm:$0xf] %vm1029, 0.0
  %1088 = vst.msk [vmem:[#allocation2 + $0x1e0] sm:$0xff] %vm1026, 0.0
  %1089 = vst.msk [vmem:[#allocation2 + $0x1e8] sm:$0xff] %vm1026, 0.0
  %1090 = vst.msk [vmem:[#allocation2 + $0x1f0] sm:$0xf] %vm1029, 0.0
  %1091 = vst.msk [vmem:[#allocation2 + $0x1f8] sm:$0xff] %vm1026, 0.0
  %1092 = vst.msk [vmem:[#allocation2 + $0x200] sm:$0xff] %vm1026, 0.0
  %1093 = vst.msk [vmem:[#allocation2 + $0x208] sm:$0xf] %vm1029, 0.0
  %1094 = vst.msk [vmem:[#allocation2 + $0x210] sm:$0xff] %vm1026, 0.0
  %1095 = vst.msk [vmem:[#allocation2 + $0x218] sm:$0xff] %vm1026, 0.0
  %1096 = vst.msk [vmem:[#allocation2 + $0x220] sm:$0xf] %vm1029, 0.0
  %1097 = vst.msk [vmem:[#allocation2 + $0x228] sm:$0xff] %vm1026, 0.0
  %1098 = vst.msk [vmem:[#allocation2 + $0x230] sm:$0xff] %vm1026, 0.0
  %1099 = vst.msk [vmem:[#allocation2 + $0x238] sm:$0xf] %vm1029, 0.0
  %1100 = vst.msk [vmem:[#allocation2 + $0x240] sm:$0xff] %vm1026, 0.0
  %1101 = vst.msk [vmem:[#allocation2 + $0x248] sm:$0xff] %vm1026, 0.0
  %1102 = vst.msk [vmem:[#allocation2 + $0x250] sm:$0xf] %vm1029, 0.0
  %1103 = vst.msk [vmem:[#allocation2 + $0x258] sm:$0xff] %vm1026, 0.0
  %1104 = vst.msk [vmem:[#allocation2 + $0x260] sm:$0xff] %vm1026, 0.0
  %1105 = vst.msk [vmem:[#allocation2 + $0x268] sm:$0xf] %vm1029, 0.0
  %1106 = vst.msk [vmem:[#allocation2 + $0x270] sm:$0xff] %vm1026, 0.0
  %1107 = vst.msk [vmem:[#allocation2 + $0x278] sm:$0xff] %vm1026, 0.0
  %1108 = vst.msk [vmem:[#allocation2 + $0x280] sm:$0xf] %vm1029, 0.0
  %1109 = vst.msk [vmem:[#allocation2 + $0x288] sm:$0xff] %vm1026, 0.0
  %1110 = vst.msk [vmem:[#allocation2 + $0x290] sm:$0xff] %vm1026, 0.0
  %1111 = vst.msk [vmem:[#allocation2 + $0x298] sm:$0xf] %vm1029, 0.0
  %1112 = vst.msk [vmem:[#allocation2 + $0x2a0] sm:$0xff] %vm1026, 0.0
  %1113 = vst.msk [vmem:[#allocation2 + $0x2a8] sm:$0xff] %vm1026, 0.0
  %1114 = vst.msk [vmem:[#allocation2 + $0x2b0] sm:$0xf] %vm1029, 0.0
  %1115 = vst.msk [vmem:[#allocation2 + $0x2b8] sm:$0xff] %vm1026, 0.0
  %1116 = vst.msk [vmem:[#allocation2 + $0x2c0] sm:$0xff] %vm1026, 0.0
  %1117 = vst.msk [vmem:[#allocation2 + $0x2c8] sm:$0xf] %vm1029, 0.0
  %1118 = vst.msk [vmem:[#allocation2 + $0x2d0] sm:$0xff] %vm1026, 0.0
  %1119 = vst.msk [vmem:[#allocation2 + $0x2d8] sm:$0xff] %vm1026, 0.0
  %1120 = vst.msk [vmem:[#allocation2 + $0x2e0] sm:$0xf] %vm1029, 0.0
  %1121 = vst.msk [vmem:[#allocation2 + $0x2e8] sm:$0xff] %vm1026, 0.0
  %1122 = vst.msk [vmem:[#allocation2 + $0x2f0] sm:$0xff] %vm1026, 0.0
  %1123 = vst.msk [vmem:[#allocation2 + $0x2f8] sm:$0xf] %vm1029, 0.0
  %1124 = vst.msk [vmem:[#allocation2 + $0x300] sm:$0xff] %vm1026, 0.0
  %1125 = vst.msk [vmem:[#allocation2 + $0x308] sm:$0xff] %vm1026, 0.0
  %1126 = vst.msk [vmem:[#allocation2 + $0x310] sm:$0xf] %vm1029, 0.0
  %1127 = vst.msk [vmem:[#allocation2 + $0x318] sm:$0xff] %vm1026, 0.0
  %1128 = vst.msk [vmem:[#allocation2 + $0x320] sm:$0xff] %vm1026, 0.0
  %1129 = vst.msk [vmem:[#allocation2 + $0x328] sm:$0xf] %vm1029, 0.0
  %1130 = vst.msk [vmem:[#allocation2 + $0x330] sm:$0xff] %vm1026, 0.0
  %1131 = vst.msk [vmem:[#allocation2 + $0x338] sm:$0xff] %vm1026, 0.0
  %1132 = vst.msk [vmem:[#allocation2 + $0x340] sm:$0xf] %vm1029, 0.0
  %1133 = vst.msk [vmem:[#allocation2 + $0x348] sm:$0xff] %vm1026, 0.0
  %1134 = vst.msk [vmem:[#allocation2 + $0x350] sm:$0xff] %vm1026, 0.0
  %1135 = vst.msk [vmem:[#allocation2 + $0x358] sm:$0xf] %vm1029, 0.0
  %1136 = vst.msk [vmem:[#allocation2 + $0x360] sm:$0xff] %vm1026, 0.0
  %1137 = vst.msk [vmem:[#allocation2 + $0x368] sm:$0xff] %vm1026, 0.0
  %1138 = vst.msk [vmem:[#allocation2 + $0x370] sm:$0xf] %vm1029, 0.0
  %1139 = vst.msk [vmem:[#allocation2 + $0x378] sm:$0xff] %vm1026, 0.0
  %1140 = vst.msk [vmem:[#allocation2 + $0x380] sm:$0xff] %vm1026, 0.0
  %1141 = vst.msk [vmem:[#allocation2 + $0x388] sm:$0xf] %vm1029, 0.0
  %1142 = vst.msk [vmem:[#allocation2 + $0x390] sm:$0xff] %vm1026, 0.0
  %1143 = vst.msk [vmem:[#allocation2 + $0x398] sm:$0xff] %vm1026, 0.0
  %1144 = vst.msk [vmem:[#allocation2 + $0x3a0] sm:$0xf] %vm1029, 0.0
  %1145 = vst.msk [vmem:[#allocation2 + $0x3a8] sm:$0xff] %vm1026, 0.0
  %1146 = vst.msk [vmem:[#allocation2 + $0x3b0] sm:$0xff] %vm1026, 0.0
  %1147 = vst.msk [vmem:[#allocation2 + $0x3b8] sm:$0xf] %vm1029, 0.0
  %s1148 = scalar_lea.vmem [#allocation2], 24
  %1149 = vst.msk [vmem:[%s1148 + $0x1] sm:$0xf] %vm1029, %v770
  %1150 = vst.msk [vmem:[%s1148 + $0x19] sm:$0xf] %vm1029, %v898
  %1151 = vst.msk [vmem:[%s1148 + $0x31] sm:$0xf] %vm1029, %v771
  %1152 = vst.msk [vmem:[%s1148 + $0x49] sm:$0xf] %vm1029, %v899
  %1153 = vst.msk [vmem:[%s1148 + $0x1e1] sm:$0xf] %vm1029, %v802
  %1154 = vst.msk [vmem:[%s1148 + $0x1f9] sm:$0xf] %vm1029, %v930
  %1155 = vst.msk [vmem:[%s1148 + $0x211] sm:$0xf] %vm1029, %v803
  %1156 = vst.msk [vmem:[%s1148 + $0x229] sm:$0xf] %vm1029, %v931
  %1157 = vst.msk [vmem:[%s1148 + $0x5] sm:$0xf] %vm1029, %v772
  %1158 = vst.msk [vmem:[%s1148 + $0x1d] sm:$0xf] %vm1029, %v900
  %1159 = vst.msk [vmem:[%s1148 + $0x35] sm:$0xf] %vm1029, %v773
  %1160 = vst.msk [vmem:[%s1148 + $0x4d] sm:$0xf] %vm1029, %v901
  %1161 = vst.msk [vmem:[%s1148 + $0x1e5] sm:$0xf] %vm1029, %v804
  %1162 = vst.msk [vmem:[%s1148 + $0x1fd] sm:$0xf] %vm1029, %v932
  %1163 = vst.msk [vmem:[%s1148 + $0x215] sm:$0xf] %vm1029, %v805
  %1164 = vst.msk [vmem:[%s1148 + $0x22d] sm:$0xf] %vm1029, %v933
  %1165 = vst.msk [vmem:[%s1148 + $0xa] sm:$0xf] %vm1029, %v774
  %1166 = vst.msk [vmem:[%s1148 + $0x22] sm:$0xf] %vm1029, %v902
  %1167 = vst.msk [vmem:[%s1148 + $0x3a] sm:$0xf] %vm1029, %v775
  %1168 = vst.msk [vmem:[%s1148 + $0x52] sm:$0xf] %vm1029, %v903
  %1169 = vst.msk [vmem:[%s1148 + $0x1ea] sm:$0xf] %vm1029, %v806
  %1170 = vst.msk [vmem:[%s1148 + $0x202] sm:$0xf] %vm1029, %v934
  %1171 = vst.msk [vmem:[%s1148 + $0x21a] sm:$0xf] %vm1029, %v807
  %1172 = vst.msk [vmem:[%s1148 + $0x232] sm:$0xf] %vm1029, %v935
  %1173 = vst.msk [vmem:[%s1148 + $0xf] sm:$0xf] %vm1029, %v776
  %1174 = vst.msk [vmem:[%s1148 + $0x27] sm:$0xf] %vm1029, %v904
  %1175 = vst.msk [vmem:[%s1148 + $0x3f] sm:$0xf] %vm1029, %v777
  %1176 = vst.msk [vmem:[%s1148 + $0x57] sm:$0xf] %vm1029, %v905
  %1177 = vst.msk [vmem:[%s1148 + $0x1ef] sm:$0xf] %vm1029, %v808
  %1178 = vst.msk [vmem:[%s1148 + $0x207] sm:$0xf] %vm1029, %v936
  %1179 = vst.msk [vmem:[%s1148 + $0x21f] sm:$0xf] %vm1029, %v809
  %1180 = vst.msk [vmem:[%s1148 + $0x237] sm:$0xf] %vm1029, %v937
  %s1181 = scalar_lea.vmem [#allocation2], 120
  %1182 = vst.msk [vmem:[%s1181 + $0x1] sm:$0xf] %vm1029, %v778
  %1183 = vst.msk [vmem:[%s1181 + $0x19] sm:$0xf] %vm1029, %v906
  %1184 = vst.msk [vmem:[%s1181 + $0x31] sm:$0xf] %vm1029, %v779
  %1185 = vst.msk [vmem:[%s1181 + $0x49] sm:$0xf] %vm1029, %v907
  %1186 = vst.msk [vmem:[%s1181 + $0x1e1] sm:$0xf] %vm1029, %v810
  %1187 = vst.msk [vmem:[%s1181 + $0x1f9] sm:$0xf] %vm1029, %v938
  %1188 = vst.msk [vmem:[%s1181 + $0x211] sm:$0xf] %vm1029, %v811
  %1189 = vst.msk [vmem:[%s1181 + $0x229] sm:$0xf] %vm1029, %v939
  %1190 = vst.msk [vmem:[%s1181 + $0x5] sm:$0xf] %vm1029, %v780
  %1191 = vst.msk [vmem:[%s1181 + $0x1d] sm:$0xf] %vm1029, %v908
  %1192 = vst.msk [vmem:[%s1181 + $0x35] sm:$0xf] %vm1029, %v781
  %1193 = vst.msk [vmem:[%s1181 + $0x4d] sm:$0xf] %vm1029, %v909
  %1194 = vst.msk [vmem:[%s1181 + $0x1e5] sm:$0xf] %vm1029, %v812
  %1195 = vst.msk [vmem:[%s1181 + $0x1fd] sm:$0xf] %vm1029, %v940
  %1196 = vst.msk [vmem:[%s1181 + $0x215] sm:$0xf] %vm1029, %v813
  %1197 = vst.msk [vmem:[%s1181 + $0x22d] sm:$0xf] %vm1029, %v941
  %1198 = vst.msk [vmem:[%s1181 + $0xa] sm:$0xf] %vm1029, %v782
  %1199 = vst.msk [vmem:[%s1181 + $0x22] sm:$0xf] %vm1029, %v910
  %1200 = vst.msk [vmem:[%s1181 + $0x3a] sm:$0xf] %vm1029, %v783
  %1201 = vst.msk [vmem:[%s1181 + $0x52] sm:$0xf] %vm1029, %v911
  %1202 = vst.msk [vmem:[%s1181 + $0x1ea] sm:$0xf] %vm1029, %v814
  %1203 = vst.msk [vmem:[%s1181 + $0x202] sm:$0xf] %vm1029, %v942
  %1204 = vst.msk [vmem:[%s1181 + $0x21a] sm:$0xf] %vm1029, %v815
  %1205 = vst.msk [vmem:[%s1181 + $0x232] sm:$0xf] %vm1029, %v943
  %1206 = vst.msk [vmem:[%s1181 + $0xf] sm:$0xf] %vm1029, %v784
  %1207 = vst.msk [vmem:[%s1181 + $0x27] sm:$0xf] %vm1029, %v912
  %1208 = vst.msk [vmem:[%s1181 + $0x3f] sm:$0xf] %vm1029, %v785
  %1209 = vst.msk [vmem:[%s1181 + $0x57] sm:$0xf] %vm1029, %v913
  %1210 = vst.msk [vmem:[%s1181 + $0x1ef] sm:$0xf] %vm1029, %v816
  %1211 = vst.msk [vmem:[%s1181 + $0x207] sm:$0xf] %vm1029, %v944
  %1212 = vst.msk [vmem:[%s1181 + $0x21f] sm:$0xf] %vm1029, %v817
  %1213 = vst.msk [vmem:[%s1181 + $0x237] sm:$0xf] %vm1029, %v945
  %s1214 = scalar_lea.vmem [#allocation2], 240
  %1215 = vst.msk [vmem:[%s1214 + $0x1] sm:$0xf] %vm1029, %v786
  %1216 = vst.msk [vmem:[%s1214 + $0x19] sm:$0xf] %vm1029, %v914
  %1217 = vst.msk [vmem:[%s1214 + $0x31] sm:$0xf] %vm1029, %v787
  %1218 = vst.msk [vmem:[%s1214 + $0x49] sm:$0xf] %vm1029, %v915
  %1219 = vst.msk [vmem:[%s1214 + $0x1e1] sm:$0xf] %vm1029, %v818
  %1220 = vst.msk [vmem:[%s1214 + $0x1f9] sm:$0xf] %vm1029, %v946
  %1221 = vst.msk [vmem:[%s1214 + $0x211] sm:$0xf] %vm1029, %v819
  %1222 = vst.msk [vmem:[%s1214 + $0x229] sm:$0xf] %vm1029, %v947
  %1223 = vst.msk [vmem:[%s1214 + $0x5] sm:$0xf] %vm1029, %v788
  %1224 = vst.msk [vmem:[%s1214 + $0x1d] sm:$0xf] %vm1029, %v916
  %1225 = vst.msk [vmem:[%s1214 + $0x35] sm:$0xf] %vm1029, %v789
  %1226 = vst.msk [vmem:[%s1214 + $0x4d] sm:$0xf] %vm1029, %v917
  %1227 = vst.msk [vmem:[%s1214 + $0x1e5] sm:$0xf] %vm1029, %v820
  %1228 = vst.msk [vmem:[%s1214 + $0x1fd] sm:$0xf] %vm1029, %v948
  %1229 = vst.msk [vmem:[%s1214 + $0x215] sm:$0xf] %vm1029, %v821
  %1230 = vst.msk [vmem:[%s1214 + $0x22d] sm:$0xf] %vm1029, %v949
  %1231 = vst.msk [vmem:[%s1214 + $0xa] sm:$0xf] %vm1029, %v790
  %1232 = vst.msk [vmem:[%s1214 + $0x22] sm:$0xf] %vm1029, %v918
  %1233 = vst.msk [vmem:[%s1214 + $0x3a] sm:$0xf] %vm1029, %v791
  %1234 = vst.msk [vmem:[%s1214 + $0x52] sm:$0xf] %vm1029, %v919
  %1235 = vst.msk [vmem:[%s1214 + $0x1ea] sm:$0xf] %vm1029, %v822
  %1236 = vst.msk [vmem:[%s1214 + $0x202] sm:$0xf] %vm1029, %v950
  %1237 = vst.msk [vmem:[%s1214 + $0x21a] sm:$0xf] %vm1029, %v823
  %1238 = vst.msk [vmem:[%s1214 + $0x232] sm:$0xf] %vm1029, %v951
  %1239 = vst.msk [vmem:[%s1214 + $0xf] sm:$0xf] %vm1029, %v792
  %1240 = vst.msk [vmem:[%s1214 + $0x27] sm:$0xf] %vm1029, %v920
  %1241 = vst.msk [vmem:[%s1214 + $0x3f] sm:$0xf] %vm1029, %v793
  %1242 = vst.msk [vmem:[%s1214 + $0x57] sm:$0xf] %vm1029, %v921
  %1243 = vst.msk [vmem:[%s1214 + $0x1ef] sm:$0xf] %vm1029, %v824
  %1244 = vst.msk [vmem:[%s1214 + $0x207] sm:$0xf] %vm1029, %v952
  %1245 = vst.msk [vmem:[%s1214 + $0x21f] sm:$0xf] %vm1029, %v825
  %1246 = vst.msk [vmem:[%s1214 + $0x237] sm:$0xf] %vm1029, %v953
  %s1247 = scalar_lea.vmem [#allocation2], 360
  %1248 = vst.msk [vmem:[%s1247 + $0x1] sm:$0xf] %vm1029, %v794
  %1249 = vst.msk [vmem:[%s1247 + $0x19] sm:$0xf] %vm1029, %v922
  %1250 = vst.msk [vmem:[%s1247 + $0x31] sm:$0xf] %vm1029, %v795
  %1251 = vst.msk [vmem:[%s1247 + $0x49] sm:$0xf] %vm1029, %v923
  %1252 = vst.msk [vmem:[%s1247 + $0x1e1] sm:$0xf] %vm1029, %v826
  %1253 = vst.msk [vmem:[%s1247 + $0x1f9] sm:$0xf] %vm1029, %v954
  %1254 = vst.msk [vmem:[%s1247 + $0x211] sm:$0xf] %vm1029, %v827
  %1255 = vst.msk [vmem:[%s1247 + $0x229] sm:$0xf] %vm1029, %v955
  %1256 = vst.msk [vmem:[%s1247 + $0x5] sm:$0xf] %vm1029, %v796
  %1257 = vst.msk [vmem:[%s1247 + $0x1d] sm:$0xf] %vm1029, %v924
  %1258 = vst.msk [vmem:[%s1247 + $0x35] sm:$0xf] %vm1029, %v797
  %1259 = vst.msk [vmem:[%s1247 + $0x4d] sm:$0xf] %vm1029, %v925
  %1260 = vst.msk [vmem:[%s1247 + $0x1e5] sm:$0xf] %vm1029, %v828
  %1261 = vst.msk [vmem:[%s1247 + $0x1fd] sm:$0xf] %vm1029, %v956
  %1262 = vst.msk [vmem:[%s1247 + $0x215] sm:$0xf] %vm1029, %v829
  %1263 = vst.msk [vmem:[%s1247 + $0x22d] sm:$0xf] %vm1029, %v957
  %1264 = vst.msk [vmem:[%s1247 + $0xa] sm:$0xf] %vm1029, %v798
  %1265 = vst.msk [vmem:[%s1247 + $0x22] sm:$0xf] %vm1029, %v926
  %1266 = vst.msk [vmem:[%s1247 + $0x3a] sm:$0xf] %vm1029, %v799
  %1267 = vst.msk [vmem:[%s1247 + $0x52] sm:$0xf] %vm1029, %v927
  %1268 = vst.msk [vmem:[%s1247 + $0x1ea] sm:$0xf] %vm1029, %v830
  %1269 = vst.msk [vmem:[%s1247 + $0x202] sm:$0xf] %vm1029, %v958
  %1270 = vst.msk [vmem:[%s1247 + $0x21a] sm:$0xf] %vm1029, %v831
  %1271 = vst.msk [vmem:[%s1247 + $0x232] sm:$0xf] %vm1029, %v959
  %1272 = vst.msk [vmem:[%s1247 + $0xf] sm:$0xf] %vm1029, %v800
  %1273 = vst.msk [vmem:[%s1247 + $0x27] sm:$0xf] %vm1029, %v928
  %1274 = vst.msk [vmem:[%s1247 + $0x3f] sm:$0xf] %vm1029, %v801
  %1275 = vst.msk [vmem:[%s1247 + $0x57] sm:$0xf] %vm1029, %v929
  %1276 = vst.msk [vmem:[%s1247 + $0x1ef] sm:$0xf] %vm1029, %v832
  %1277 = vst.msk [vmem:[%s1247 + $0x207] sm:$0xf] %vm1029, %v960
  %1278 = vst.msk [vmem:[%s1247 + $0x21f] sm:$0xf] %vm1029, %v833
  %1279 = vst.msk [vmem:[%s1247 + $0x237] sm:$0xf] %vm1029, %v961
  %v1280 = vld [vmem:[#allocation2] sm:$0xf]
  %v1281 = vld [vmem:[#allocation2 + $0x18] sm:$0xf]
  %v1282 = vld [vmem:[#allocation2 + $0x30] sm:$0xf]
  %v1283 = vld [vmem:[#allocation2 + $0x48] sm:$0xf]
  %v1284 = vld [vmem:[#allocation2 + $0x1e0] sm:$0xf]
  %v1285 = vld [vmem:[#allocation2 + $0x1f8] sm:$0xf]
  %v1286 = vld [vmem:[#allocation2 + $0x210] sm:$0xf]
  %v1287 = vld [vmem:[#allocation2 + $0x228] sm:$0xf]
  %v1288 = vld [vmem:[#allocation2 + $0x5] sm:$0xf]
  %v1289 = vld [vmem:[#allocation2 + $0x1d] sm:$0xf]
  %v1290 = vld [vmem:[#allocation2 + $0x35] sm:$0xf]
  %v1291 = vld [vmem:[#allocation2 + $0x4d] sm:$0xf]
  %v1292 = vld [vmem:[#allocation2 + $0x1e5] sm:$0xf]
  %v1293 = vld [vmem:[#allocation2 + $0x1fd] sm:$0xf]
  %v1294 = vld [vmem:[#allocation2 + $0x215] sm:$0xf]
  %v1295 = vld [vmem:[#allocation2 + $0x22d] sm:$0xf]
  %v1296 = vld [vmem:[#allocation2 + $0xa] sm:$0xf]
  %v1297 = vld [vmem:[#allocation2 + $0x22] sm:$0xf]
  %v1298 = vld [vmem:[#allocation2 + $0x3a] sm:$0xf]
  %v1299 = vld [vmem:[#allocation2 + $0x52] sm:$0xf]
  %v1300 = vld [vmem:[#allocation2 + $0x1ea] sm:$0xf]
  %v1301 = vld [vmem:[#allocation2 + $0x202] sm:$0xf]
  %v1302 = vld [vmem:[#allocation2 + $0x21a] sm:$0xf]
  %v1303 = vld [vmem:[#allocation2 + $0x232] sm:$0xf]
  %v1304 = vld [vmem:[#allocation2 + $0xf] sm:$0xf]
  %v1305 = vld [vmem:[#allocation2 + $0x27] sm:$0xf]
  %v1306 = vld [vmem:[#allocation2 + $0x3f] sm:$0xf]
  %v1307 = vld [vmem:[#allocation2 + $0x57] sm:$0xf]
  %v1308 = vld [vmem:[#allocation2 + $0x1ef] sm:$0xf]
  %v1309 = vld [vmem:[#allocation2 + $0x207] sm:$0xf]
  %v1310 = vld [vmem:[#allocation2 + $0x21f] sm:$0xf]
  %v1311 = vld [vmem:[#allocation2 + $0x237] sm:$0xf]
  %v1312 = vld [vmem:[%s1181] sm:$0xf]
  %v1313 = vld [vmem:[%s1181 + $0x18] sm:$0xf]
  %v1314 = vld [vmem:[%s1181 + $0x30] sm:$0xf]
  %v1315 = vld [vmem:[%s1181 + $0x48] sm:$0xf]
  %v1316 = vld [vmem:[%s1181 + $0x1e0] sm:$0xf]
  %v1317 = vld [vmem:[%s1181 + $0x1f8] sm:$0xf]
  %v1318 = vld [vmem:[%s1181 + $0x210] sm:$0xf]
  %v1319 = vld [vmem:[%s1181 + $0x228] sm:$0xf]
  %v1320 = vld [vmem:[%s1181 + $0x5] sm:$0xf]
  %v1321 = vld [vmem:[%s1181 + $0x1d] sm:$0xf]
  %v1322 = vld [vmem:[%s1181 + $0x35] sm:$0xf]
  %v1323 = vld [vmem:[%s1181 + $0x4d] sm:$0xf]
  %v1324 = vld [vmem:[%s1181 + $0x1e5] sm:$0xf]
  %v1325 = vld [vmem:[%s1181 + $0x1fd] sm:$0xf]
  %v1326 = vld [vmem:[%s1181 + $0x215] sm:$0xf]
  %v1327 = vld [vmem:[%s1181 + $0x22d] sm:$0xf]
  %v1328 = vld [vmem:[%s1181 + $0xa] sm:$0xf]
  %v1329 = vld [vmem:[%s1181 + $0x22] sm:$0xf]
  %v1330 = vld [vmem:[%s1181 + $0x3a] sm:$0xf]
  %v1331 = vld [vmem:[%s1181 + $0x52] sm:$0xf]
  %v1332 = vld [vmem:[%s1181 + $0x1ea] sm:$0xf]
  %v1333 = vld [vmem:[%s1181 + $0x202] sm:$0xf]
  %v1334 = vld [vmem:[%s1181 + $0x21a] sm:$0xf]
  %v1335 = vld [vmem:[%s1181 + $0x232] sm:$0xf]
  %v1336 = vld [vmem:[%s1181 + $0xf] sm:$0xf]
  %v1337 = vld [vmem:[%s1181 + $0x27] sm:$0xf]
  %v1338 = vld [vmem:[%s1181 + $0x3f] sm:$0xf]
  %v1339 = vld [vmem:[%s1181 + $0x57] sm:$0xf]
  %v1340 = vld [vmem:[%s1181 + $0x1ef] sm:$0xf]
  %v1341 = vld [vmem:[%s1181 + $0x207] sm:$0xf]
  %v1342 = vld [vmem:[%s1181 + $0x21f] sm:$0xf]
  %v1343 = vld [vmem:[%s1181 + $0x237] sm:$0xf]
  %v1344 = vld [vmem:[%s1214] sm:$0xf]
  %v1345 = vld [vmem:[%s1214 + $0x18] sm:$0xf]
  %v1346 = vld [vmem:[%s1214 + $0x30] sm:$0xf]
  %v1347 = vld [vmem:[%s1214 + $0x48] sm:$0xf]
  %v1348 = vld [vmem:[%s1214 + $0x1e0] sm:$0xf]
  %v1349 = vld [vmem:[%s1214 + $0x1f8] sm:$0xf]
  %v1350 = vld [vmem:[%s1214 + $0x210] sm:$0xf]
  %v1351 = vld [vmem:[%s1214 + $0x228] sm:$0xf]
  %v1352 = vld [vmem:[%s1214 + $0x5] sm:$0xf]
  %v1353 = vld [vmem:[%s1214 + $0x1d] sm:$0xf]
  %v1354 = vld [vmem:[%s1214 + $0x35] sm:$0xf]
  %v1355 = vld [vmem:[%s1214 + $0x4d] sm:$0xf]
  %v1356 = vld [vmem:[%s1214 + $0x1e5] sm:$0xf]
  %v1357 = vld [vmem:[%s1214 + $0x1fd] sm:$0xf]
  %v1358 = vld [vmem:[%s1214 + $0x215] sm:$0xf]
  %v1359 = vld [vmem:[%s1214 + $0x22d] sm:$0xf]
  %v1360 = vld [vmem:[%s1214 + $0xa] sm:$0xf]
  %v1361 = vld [vmem:[%s1214 + $0x22] sm:$0xf]
  %v1362 = vld [vmem:[%s1214 + $0x3a] sm:$0xf]
  %v1363 = vld [vmem:[%s1214 + $0x52] sm:$0xf]
  %v1364 = vld [vmem:[%s1214 + $0x1ea] sm:$0xf]
  %v1365 = vld [vmem:[%s1214 + $0x202] sm:$0xf]
  %v1366 = vld [vmem:[%s1214 + $0x21a] sm:$0xf]
  %v1367 = vld [vmem:[%s1214 + $0x232] sm:$0xf]
  %v1368 = vld [vmem:[%s1214 + $0xf] sm:$0xf]
  %v1369 = vld [vmem:[%s1214 + $0x27] sm:$0xf]
  %v1370 = vld [vmem:[%s1214 + $0x3f] sm:$0xf]
  %v1371 = vld [vmem:[%s1214 + $0x57] sm:$0xf]
  %v1372 = vld [vmem:[%s1214 + $0x1ef] sm:$0xf]
  %v1373 = vld [vmem:[%s1214 + $0x207] sm:$0xf]
  %v1374 = vld [vmem:[%s1214 + $0x21f] sm:$0xf]
  %v1375 = vld [vmem:[%s1214 + $0x237] sm:$0xf]
  %v1376 = vld [vmem:[%s1247] sm:$0xf]
  %v1377 = vld [vmem:[%s1247 + $0x18] sm:$0xf]
  %v1378 = vld [vmem:[%s1247 + $0x30] sm:$0xf]
  %v1379 = vld [vmem:[%s1247 + $0x48] sm:$0xf]
  %v1380 = vld [vmem:[%s1247 + $0x1e0] sm:$0xf]
  %v1381 = vld [vmem:[%s1247 + $0x1f8] sm:$0xf]
  %v1382 = vld [vmem:[%s1247 + $0x210] sm:$0xf]
  %v1383 = vld [vmem:[%s1247 + $0x228] sm:$0xf]
  %v1384 = vld [vmem:[%s1247 + $0x5] sm:$0xf]
  %v1385 = vld [vmem:[%s1247 + $0x1d] sm:$0xf]
  %v1386 = vld [vmem:[%s1247 + $0x35] sm:$0xf]
  %v1387 = vld [vmem:[%s1247 + $0x4d] sm:$0xf]
  %v1388 = vld [vmem:[%s1247 + $0x1e5] sm:$0xf]
  %v1389 = vld [vmem:[%s1247 + $0x1fd] sm:$0xf]
  %v1390 = vld [vmem:[%s1247 + $0x215] sm:$0xf]
  %v1391 = vld [vmem:[%s1247 + $0x22d] sm:$0xf]
  %v1392 = vld [vmem:[%s1247 + $0xa] sm:$0xf]
  %v1393 = vld [vmem:[%s1247 + $0x22] sm:$0xf]
  %v1394 = vld [vmem:[%s1247 + $0x3a] sm:$0xf]
  %v1395 = vld [vmem:[%s1247 + $0x52] sm:$0xf]
  %v1396 = vld [vmem:[%s1247 + $0x1ea] sm:$0xf]
  %v1397 = vld [vmem:[%s1247 + $0x202] sm:$0xf]
  %v1398 = vld [vmem:[%s1247 + $0x21a] sm:$0xf]
  %v1399 = vld [vmem:[%s1247 + $0x232] sm:$0xf]
  %v1400 = vld [vmem:[%s1247 + $0xf] sm:$0xf]
  %v1401 = vld [vmem:[%s1247 + $0x27] sm:$0xf]
  %v1402 = vld [vmem:[%s1247 + $0x3f] sm:$0xf]
  %v1403 = vld [vmem:[%s1247 + $0x57] sm:$0xf]
  %v1404 = vld [vmem:[%s1247 + $0x1ef] sm:$0xf]
  %v1405 = vld [vmem:[%s1247 + $0x207] sm:$0xf]
  %v1406 = vld [vmem:[%s1247 + $0x21f] sm:$0xf]
  %v1407 = vld [vmem:[%s1247 + $0x237] sm:$0xf]
  %1416 = vrot.lane.b32.xlu0 %v1288, 64
  %v1417 = vpop.permute.xlu0 %1416
  %1418 = vrot.lane.b32.xlu0 %v1289, 64
  %v1419 = vpop.permute.xlu0 %1418
  %1420 = vrot.lane.b32.xlu0 %v1290, 64
  %v1421 = vpop.permute.xlu0 %1420
  %1422 = vrot.lane.b32.xlu0 %v1291, 64
  %v1423 = vpop.permute.xlu0 %1422
  %1424 = vrot.lane.b32.xlu0 %v1292, 64
  %v1425 = vpop.permute.xlu0 %1424
  %1426 = vrot.lane.b32.xlu0 %v1293, 64
  %v1427 = vpop.permute.xlu0 %1426
  %1428 = vrot.lane.b32.xlu0 %v1294, 64
  %v1429 = vpop.permute.xlu0 %1428
  %1430 = vrot.lane.b32.xlu0 %v1295, 64
  %v1431 = vpop.permute.xlu0 %1430
  %1448 = vrot.lane.b32.xlu0 %v1304, 64
  %v1449 = vpop.permute.xlu0 %1448
  %1450 = vrot.lane.b32.xlu0 %v1305, 64
  %v1451 = vpop.permute.xlu0 %1450
  %1452 = vrot.lane.b32.xlu0 %v1306, 64
  %v1453 = vpop.permute.xlu0 %1452
  %1454 = vrot.lane.b32.xlu0 %v1307, 64
  %v1455 = vpop.permute.xlu0 %1454
  %1456 = vrot.lane.b32.xlu0 %v1308, 64
  %v1457 = vpop.permute.xlu0 %1456
  %1458 = vrot.lane.b32.xlu0 %v1309, 64
  %v1459 = vpop.permute.xlu0 %1458
  %1460 = vrot.lane.b32.xlu0 %v1310, 64
  %v1461 = vpop.permute.xlu0 %1460
  %1462 = vrot.lane.b32.xlu0 %v1311, 64
  %v1463 = vpop.permute.xlu0 %1462
  %1480 = vrot.lane.b32.xlu0 %v1320, 64
  %v1481 = vpop.permute.xlu0 %1480
  %1482 = vrot.lane.b32.xlu0 %v1321, 64
  %v1483 = vpop.permute.xlu0 %1482
  %1484 = vrot.lane.b32.xlu0 %v1322, 64
  %v1485 = vpop.permute.xlu0 %1484
  %1486 = vrot.lane.b32.xlu0 %v1323, 64
  %v1487 = vpop.permute.xlu0 %1486
  %1488 = vrot.lane.b32.xlu0 %v1324, 64
  %v1489 = vpop.permute.xlu0 %1488
  %1490 = vrot.lane.b32.xlu0 %v1325, 64
  %v1491 = vpop.permute.xlu0 %1490
  %1492 = vrot.lane.b32.xlu0 %v1326, 64
  %v1493 = vpop.permute.xlu0 %1492
  %1494 = vrot.lane.b32.xlu0 %v1327, 64
  %v1495 = vpop.permute.xlu0 %1494
  %1512 = vrot.lane.b32.xlu0 %v1336, 64
  %v1513 = vpop.permute.xlu0 %1512
  %1514 = vrot.lane.b32.xlu0 %v1337, 64
  %v1515 = vpop.permute.xlu0 %1514
  %1516 = vrot.lane.b32.xlu0 %v1338, 64
  %v1517 = vpop.permute.xlu0 %1516
  %1518 = vrot.lane.b32.xlu0 %v1339, 64
  %v1519 = vpop.permute.xlu0 %1518
  %1520 = vrot.lane.b32.xlu0 %v1340, 64
  %v1521 = vpop.permute.xlu0 %1520
  %1522 = vrot.lane.b32.xlu0 %v1341, 64
  %v1523 = vpop.permute.xlu0 %1522
  %1524 = vrot.lane.b32.xlu0 %v1342, 64
  %v1525 = vpop.permute.xlu0 %1524
  %1526 = vrot.lane.b32.xlu0 %v1343, 64
  %v1527 = vpop.permute.xlu0 %1526
  %1544 = vrot.lane.b32.xlu0 %v1352, 64
  %v1545 = vpop.permute.xlu0 %1544
  %1546 = vrot.lane.b32.xlu0 %v1353, 64
  %v1547 = vpop.permute.xlu0 %1546
  %1548 = vrot.lane.b32.xlu0 %v1354, 64
  %v1549 = vpop.permute.xlu0 %1548
  %1550 = vrot.lane.b32.xlu0 %v1355, 64
  %v1551 = vpop.permute.xlu0 %1550
  %1552 = vrot.lane.b32.xlu0 %v1356, 64
  %v1553 = vpop.permute.xlu0 %1552
  %1554 = vrot.lane.b32.xlu0 %v1357, 64
  %v1555 = vpop.permute.xlu0 %1554
  %1556 = vrot.lane.b32.xlu0 %v1358, 64
  %v1557 = vpop.permute.xlu0 %1556
  %1558 = vrot.lane.b32.xlu0 %v1359, 64
  %v1559 = vpop.permute.xlu0 %1558
  %1576 = vrot.lane.b32.xlu0 %v1368, 64
  %v1577 = vpop.permute.xlu0 %1576
  %1578 = vrot.lane.b32.xlu0 %v1369, 64
  %v1579 = vpop.permute.xlu0 %1578
  %1580 = vrot.lane.b32.xlu0 %v1370, 64
  %v1581 = vpop.permute.xlu0 %1580
  %1582 = vrot.lane.b32.xlu0 %v1371, 64
  %v1583 = vpop.permute.xlu0 %1582
  %1584 = vrot.lane.b32.xlu0 %v1372, 64
  %v1585 = vpop.permute.xlu0 %1584
  %1586 = vrot.lane.b32.xlu0 %v1373, 64
  %v1587 = vpop.permute.xlu0 %1586
  %1588 = vrot.lane.b32.xlu0 %v1374, 64
  %v1589 = vpop.permute.xlu0 %1588
  %1590 = vrot.lane.b32.xlu0 %v1375, 64
  %v1591 = vpop.permute.xlu0 %1590
  %1608 = vrot.lane.b32.xlu0 %v1384, 64
  %v1609 = vpop.permute.xlu0 %1608
  %1610 = vrot.lane.b32.xlu0 %v1385, 64
  %v1611 = vpop.permute.xlu0 %1610
  %1612 = vrot.lane.b32.xlu0 %v1386, 64
  %v1613 = vpop.permute.xlu0 %1612
  %1614 = vrot.lane.b32.xlu0 %v1387, 64
  %v1615 = vpop.permute.xlu0 %1614
  %1616 = vrot.lane.b32.xlu0 %v1388, 64
  %v1617 = vpop.permute.xlu0 %1616
  %1618 = vrot.lane.b32.xlu0 %v1389, 64
  %v1619 = vpop.permute.xlu0 %1618
  %1620 = vrot.lane.b32.xlu0 %v1390, 64
  %v1621 = vpop.permute.xlu0 %1620
  %1622 = vrot.lane.b32.xlu0 %v1391, 64
  %v1623 = vpop.permute.xlu0 %1622
  %1640 = vrot.lane.b32.xlu0 %v1400, 64
  %v1641 = vpop.permute.xlu0 %1640
  %1642 = vrot.lane.b32.xlu0 %v1401, 64
  %v1643 = vpop.permute.xlu0 %1642
  %1644 = vrot.lane.b32.xlu0 %v1402, 64
  %v1645 = vpop.permute.xlu0 %1644
  %1646 = vrot.lane.b32.xlu0 %v1403, 64
  %v1647 = vpop.permute.xlu0 %1646
  %1648 = vrot.lane.b32.xlu0 %v1404, 64
  %v1649 = vpop.permute.xlu0 %1648
  %1650 = vrot.lane.b32.xlu0 %v1405, 64
  %v1651 = vpop.permute.xlu0 %1650
  %1652 = vrot.lane.b32.xlu0 %v1406, 64
  %v1653 = vpop.permute.xlu0 %1652
  %1654 = vrot.lane.b32.xlu0 %v1407, 64
  %v1655 = vpop.permute.xlu0 %1654
  %v1664 = vsel %vm1026, %v1280, %v1417
  %v1665 = vsel %vm1026, %v1281, %v1419
  %v1666 = vsel %vm1026, %v1282, %v1421
  %v1667 = vsel %vm1026, %v1283, %v1423
  %v1668 = vsel %vm1026, %v1284, %v1425
  %v1669 = vsel %vm1026, %v1285, %v1427
  %v1670 = vsel %vm1026, %v1286, %v1429
  %v1671 = vsel %vm1026, %v1287, %v1431
  %v1672 = vsel %vm1026, %v1296, %v1449
  %v1673 = vsel %vm1026, %v1297, %v1451
  %v1674 = vsel %vm1026, %v1298, %v1453
  %v1675 = vsel %vm1026, %v1299, %v1455
  %v1676 = vsel %vm1026, %v1300, %v1457
  %v1677 = vsel %vm1026, %v1301, %v1459
  %v1678 = vsel %vm1026, %v1302, %v1461
  %v1679 = vsel %vm1026, %v1303, %v1463
  %v1680 = vsel %vm1026, %v1312, %v1481
  %v1681 = vsel %vm1026, %v1313, %v1483
  %v1682 = vsel %vm1026, %v1314, %v1485
  %v1683 = vsel %vm1026, %v1315, %v1487
  %v1684 = vsel %vm1026, %v1316, %v1489
  %v1685 = vsel %vm1026, %v1317, %v1491
  %v1686 = vsel %vm1026, %v1318, %v1493
  %v1687 = vsel %vm1026, %v1319, %v1495
  %v1688 = vsel %vm1026, %v1328, %v1513
  %v1689 = vsel %vm1026, %v1329, %v1515
  %v1690 = vsel %vm1026, %v1330, %v1517
  %v1691 = vsel %vm1026, %v1331, %v1519
  %v1692 = vsel %vm1026, %v1332, %v1521
  %v1693 = vsel %vm1026, %v1333, %v1523
  %v1694 = vsel %vm1026, %v1334, %v1525
  %v1695 = vsel %vm1026, %v1335, %v1527
  %v1696 = vsel %vm1026, %v1344, %v1545
  %v1697 = vsel %vm1026, %v1345, %v1547
  %v1698 = vsel %vm1026, %v1346, %v1549
  %v1699 = vsel %vm1026, %v1347, %v1551
  %v1700 = vsel %vm1026, %v1348, %v1553
  %v1701 = vsel %vm1026, %v1349, %v1555
  %v1702 = vsel %vm1026, %v1350, %v1557
  %v1703 = vsel %vm1026, %v1351, %v1559
  %v1704 = vsel %vm1026, %v1360, %v1577
  %v1705 = vsel %vm1026, %v1361, %v1579
  %v1706 = vsel %vm1026, %v1362, %v1581
  %v1707 = vsel %vm1026, %v1363, %v1583
  %v1708 = vsel %vm1026, %v1364, %v1585
  %v1709 = vsel %vm1026, %v1365, %v1587
  %v1710 = vsel %vm1026, %v1366, %v1589
  %v1711 = vsel %vm1026, %v1367, %v1591
  %v1712 = vsel %vm1026, %v1376, %v1609
  %v1713 = vsel %vm1026, %v1377, %v1611
  %v1714 = vsel %vm1026, %v1378, %v1613
  %v1715 = vsel %vm1026, %v1379, %v1615
  %v1716 = vsel %vm1026, %v1380, %v1617
  %v1717 = vsel %vm1026, %v1381, %v1619
  %v1718 = vsel %vm1026, %v1382, %v1621
  %v1719 = vsel %vm1026, %v1383, %v1623
  %v1720 = vsel %vm1026, %v1392, %v1641
  %v1721 = vsel %vm1026, %v1393, %v1643
  %v1722 = vsel %vm1026, %v1394, %v1645
  %v1723 = vsel %vm1026, %v1395, %v1647
  %v1724 = vsel %vm1026, %v1396, %v1649
  %v1725 = vsel %vm1026, %v1397, %v1651
  %v1726 = vsel %vm1026, %v1398, %v1653
  %v1727 = vsel %vm1026, %v1399, %v1655
  %v1728 = vpack.c.bf16 %v1664, %v1664
  %v1729 = vpack.c.bf16 %v1672, %v1672
  %v1730 = vpack.c.bf16 %v1680, %v1680
  %v1731 = vpack.c.bf16 %v1688, %v1688
  %v1732 = vpack.c.bf16 %v1696, %v1696
  %v1733 = vpack.c.bf16 %v1704, %v1704
  %v1734 = vpack.c.bf16 %v1712, %v1712
  %v1735 = vpack.c.bf16 %v1720, %v1720
  %v1736 = vpack.c.bf16 %v1665, %v1665
  %v1737 = vpack.c.bf16 %v1673, %v1673
  %v1738 = vpack.c.bf16 %v1681, %v1681
  %v1739 = vpack.c.bf16 %v1689, %v1689
  %v1740 = vpack.c.bf16 %v1697, %v1697
  %v1741 = vpack.c.bf16 %v1705, %v1705
  %v1742 = vpack.c.bf16 %v1713, %v1713
  %v1743 = vpack.c.bf16 %v1721, %v1721
  %v1744 = vpack.c.bf16 %v1666, %v1666
  %v1745 = vpack.c.bf16 %v1674, %v1674
  %v1746 = vpack.c.bf16 %v1682, %v1682
  %v1747 = vpack.c.bf16 %v1690, %v1690
  %v1748 = vpack.c.bf16 %v1698, %v1698
  %v1749 = vpack.c.bf16 %v1706, %v1706
  %v1750 = vpack.c.bf16 %v1714, %v1714
  %v1751 = vpack.c.bf16 %v1722, %v1722
  %v1752 = vpack.c.bf16 %v1667, %v1667
  %v1753 = vpack.c.bf16 %v1675, %v1675
  %v1754 = vpack.c.bf16 %v1683, %v1683
  %v1755 = vpack.c.bf16 %v1691, %v1691
  %v1756 = vpack.c.bf16 %v1699, %v1699
  %v1757 = vpack.c.bf16 %v1707, %v1707
  %v1758 = vpack.c.bf16 %v1715, %v1715
  %v1759 = vpack.c.bf16 %v1723, %v1723
  %v1760 = vpack.c.bf16 %v1668, %v1668
  %v1761 = vpack.c.bf16 %v1676, %v1676
  %v1762 = vpack.c.bf16 %v1684, %v1684
  %v1763 = vpack.c.bf16 %v1692, %v1692
  %v1764 = vpack.c.bf16 %v1700, %v1700
  %v1765 = vpack.c.bf16 %v1708, %v1708
  %v1766 = vpack.c.bf16 %v1716, %v1716
  %v1767 = vpack.c.bf16 %v1724, %v1724
  %v1768 = vpack.c.bf16 %v1669, %v1669
  %v1769 = vpack.c.bf16 %v1677, %v1677
  %v1770 = vpack.c.bf16 %v1685, %v1685
  %v1771 = vpack.c.bf16 %v1693, %v1693
  %v1772 = vpack.c.bf16 %v1701, %v1701
  %v1773 = vpack.c.bf16 %v1709, %v1709
  %v1774 = vpack.c.bf16 %v1717, %v1717
  %v1775 = vpack.c.bf16 %v1725, %v1725
  %v1776 = vpack.c.bf16 %v1670, %v1670
  %v1777 = vpack.c.bf16 %v1678, %v1678
  %v1778 = vpack.c.bf16 %v1686, %v1686
  %v1779 = vpack.c.bf16 %v1694, %v1694
  %v1780 = vpack.c.bf16 %v1702, %v1702
  %v1781 = vpack.c.bf16 %v1710, %v1710
  %v1782 = vpack.c.bf16 %v1718, %v1718
  %v1783 = vpack.c.bf16 %v1726, %v1726
  %v1784 = vpack.c.bf16 %v1671, %v1671
  %v1785 = vpack.c.bf16 %v1679, %v1679
  %v1786 = vpack.c.bf16 %v1687, %v1687
  %v1787 = vpack.c.bf16 %v1695, %v1695
  %v1788 = vpack.c.bf16 %v1703, %v1703
  %v1789 = vpack.c.bf16 %v1711, %v1711
  %v1790 = vpack.c.bf16 %v1719, %v1719
  %v1791 = vpack.c.bf16 %v1727, %v1727
  %v1856 = vcombine.low %v1728, %v1729
  %v1857 = vcombine.low %v1730, %v1731
  %v1859 = vunpack.c.l.s4 1983009808
  %v1860 = vunpack.c.0.s8 %v1859
  %v1861 = vlaneseq
  %v1862 = vshrl.u32 %v1861, 7
  %v1863 = vsub.s32 %v1860, %v1862
  %v1864 = vrot.slane %v1856, %v1863
  %v1866 = vunpack.c.l.s4 1983009808
  %v1867 = vunpack.c.0.s8 %v1866
  %v1868 = vlaneseq
  %v1869 = vshrl.u32 %v1868, 7
  %v1870 = vsub.s32 %v1867, %v1869
  %v1871 = vrot.slane %v1857, %v1870
  %v1872 = vcombine.low %v1864, %v1871
  %v1873 = vcombine.low %v1732, %v1733
  %v1874 = vcombine.low %v1734, %v1735
  %v1876 = vunpack.c.l.s4 1983009808
  %v1877 = vunpack.c.0.s8 %v1876
  %v1878 = vlaneseq
  %v1879 = vshrl.u32 %v1878, 7
  %v1880 = vsub.s32 %v1877, %v1879
  %v1881 = vrot.slane %v1873, %v1880
  %v1883 = vunpack.c.l.s4 1983009808
  %v1884 = vunpack.c.0.s8 %v1883
  %v1885 = vlaneseq
  %v1886 = vshrl.u32 %v1885, 7
  %v1887 = vsub.s32 %v1884, %v1886
  %v1888 = vrot.slane %v1874, %v1887
  %v1889 = vcombine.low %v1881, %v1888
  %v1890 = vcombine.low %v1736, %v1737
  %v1891 = vcombine.low %v1738, %v1739
  %v1893 = vunpack.c.l.s4 1983009808
  %v1894 = vunpack.c.0.s8 %v1893
  %v1895 = vlaneseq
  %v1896 = vshrl.u32 %v1895, 7
  %v1897 = vsub.s32 %v1894, %v1896
  %v1898 = vrot.slane %v1890, %v1897
  %v1900 = vunpack.c.l.s4 1983009808
  %v1901 = vunpack.c.0.s8 %v1900
  %v1902 = vlaneseq
  %v1903 = vshrl.u32 %v1902, 7
  %v1904 = vsub.s32 %v1901, %v1903
  %v1905 = vrot.slane %v1891, %v1904
  %v1906 = vcombine.low %v1898, %v1905
  %v1907 = vcombine.low %v1740, %v1741
  %v1908 = vcombine.low %v1742, %v1743
  %v1910 = vunpack.c.l.s4 1983009808
  %v1911 = vunpack.c.0.s8 %v1910
  %v1912 = vlaneseq
  %v1913 = vshrl.u32 %v1912, 7
  %v1914 = vsub.s32 %v1911, %v1913
  %v1915 = vrot.slane %v1907, %v1914
  %v1917 = vunpack.c.l.s4 1983009808
  %v1918 = vunpack.c.0.s8 %v1917
  %v1919 = vlaneseq
  %v1920 = vshrl.u32 %v1919, 7
  %v1921 = vsub.s32 %v1918, %v1920
  %v1922 = vrot.slane %v1908, %v1921
  %v1923 = vcombine.low %v1915, %v1922
  %v1924 = vcombine.low %v1744, %v1745
  %v1925 = vcombine.low %v1746, %v1747
  %v1927 = vunpack.c.l.s4 1983009808
  %v1928 = vunpack.c.0.s8 %v1927
  %v1929 = vlaneseq
  %v1930 = vshrl.u32 %v1929, 7
  %v1931 = vsub.s32 %v1928, %v1930
  %v1932 = vrot.slane %v1924, %v1931
  %v1934 = vunpack.c.l.s4 1983009808
  %v1935 = vunpack.c.0.s8 %v1934
  %v1936 = vlaneseq
  %v1937 = vshrl.u32 %v1936, 7
  %v1938 = vsub.s32 %v1935, %v1937
  %v1939 = vrot.slane %v1925, %v1938
  %v1940 = vcombine.low %v1932, %v1939
  %v1941 = vcombine.low %v1748, %v1749
  %v1942 = vcombine.low %v1750, %v1751
  %v1944 = vunpack.c.l.s4 1983009808
  %v1945 = vunpack.c.0.s8 %v1944
  %v1946 = vlaneseq
  %v1947 = vshrl.u32 %v1946, 7
  %v1948 = vsub.s32 %v1945, %v1947
  %v1949 = vrot.slane %v1941, %v1948
  %v1951 = vunpack.c.l.s4 1983009808
  %v1952 = vunpack.c.0.s8 %v1951
  %v1953 = vlaneseq
  %v1954 = vshrl.u32 %v1953, 7
  %v1955 = vsub.s32 %v1952, %v1954
  %v1956 = vrot.slane %v1942, %v1955
  %v1957 = vcombine.low %v1949, %v1956
  %v1958 = vcombine.low %v1752, %v1753
  %v1959 = vcombine.low %v1754, %v1755
  %v1961 = vunpack.c.l.s4 1983009808
  %v1962 = vunpack.c.0.s8 %v1961
  %v1963 = vlaneseq
  %v1964 = vshrl.u32 %v1963, 7
  %v1965 = vsub.s32 %v1962, %v1964
  %v1966 = vrot.slane %v1958, %v1965
  %v1968 = vunpack.c.l.s4 1983009808
  %v1969 = vunpack.c.0.s8 %v1968
  %v1970 = vlaneseq
  %v1971 = vshrl.u32 %v1970, 7
  %v1972 = vsub.s32 %v1969, %v1971
  %v1973 = vrot.slane %v1959, %v1972
  %v1974 = vcombine.low %v1966, %v1973
  %v1975 = vcombine.low %v1756, %v1757
  %v1976 = vcombine.low %v1758, %v1759
  %v1978 = vunpack.c.l.s4 1983009808
  %v1979 = vunpack.c.0.s8 %v1978
  %v1980 = vlaneseq
  %v1981 = vshrl.u32 %v1980, 7
  %v1982 = vsub.s32 %v1979, %v1981
  %v1983 = vrot.slane %v1975, %v1982
  %v1985 = vunpack.c.l.s4 1983009808
  %v1986 = vunpack.c.0.s8 %v1985
  %v1987 = vlaneseq
  %v1988 = vshrl.u32 %v1987, 7
  %v1989 = vsub.s32 %v1986, %v1988
  %v1990 = vrot.slane %v1976, %v1989
  %v1991 = vcombine.low %v1983, %v1990
  %v1992 = vcombine.low %v1760, %v1761
  %v1993 = vcombine.low %v1762, %v1763
  %v1995 = vunpack.c.l.s4 1983009808
  %v1996 = vunpack.c.0.s8 %v1995
  %v1997 = vlaneseq
  %v1998 = vshrl.u32 %v1997, 7
  %v1999 = vsub.s32 %v1996, %v1998
  %v2000 = vrot.slane %v1992, %v1999
  %v2002 = vunpack.c.l.s4 1983009808
  %v2003 = vunpack.c.0.s8 %v2002
  %v2004 = vlaneseq
  %v2005 = vshrl.u32 %v2004, 7
  %v2006 = vsub.s32 %v2003, %v2005
  %v2007 = vrot.slane %v1993, %v2006
  %v2008 = vcombine.low %v2000, %v2007
  %v2009 = vcombine.low %v1764, %v1765
  %v2010 = vcombine.low %v1766, %v1767
  %v2012 = vunpack.c.l.s4 1983009808
  %v2013 = vunpack.c.0.s8 %v2012
  %v2014 = vlaneseq
  %v2015 = vshrl.u32 %v2014, 7
  %v2016 = vsub.s32 %v2013, %v2015
  %v2017 = vrot.slane %v2009, %v2016
  %v2019 = vunpack.c.l.s4 1983009808
  %v2020 = vunpack.c.0.s8 %v2019
  %v2021 = vlaneseq
  %v2022 = vshrl.u32 %v2021, 7
  %v2023 = vsub.s32 %v2020, %v2022
  %v2024 = vrot.slane %v2010, %v2023
  %v2025 = vcombine.low %v2017, %v2024
  %v2026 = vcombine.low %v1768, %v1769
  %v2027 = vcombine.low %v1770, %v1771
  %v2029 = vunpack.c.l.s4 1983009808
  %v2030 = vunpack.c.0.s8 %v2029
  %v2031 = vlaneseq
  %v2032 = vshrl.u32 %v2031, 7
  %v2033 = vsub.s32 %v2030, %v2032
  %v2034 = vrot.slane %v2026, %v2033
  %v2036 = vunpack.c.l.s4 1983009808
  %v2037 = vunpack.c.0.s8 %v2036
  %v2038 = vlaneseq
  %v2039 = vshrl.u32 %v2038, 7
  %v2040 = vsub.s32 %v2037, %v2039
  %v2041 = vrot.slane %v2027, %v2040
  %v2042 = vcombine.low %v2034, %v2041
  %v2043 = vcombine.low %v1772, %v1773
  %v2044 = vcombine.low %v1774, %v1775
  %v2046 = vunpack.c.l.s4 1983009808
  %v2047 = vunpack.c.0.s8 %v2046
  %v2048 = vlaneseq
  %v2049 = vshrl.u32 %v2048, 7
  %v2050 = vsub.s32 %v2047, %v2049
  %v2051 = vrot.slane %v2043, %v2050
  %v2053 = vunpack.c.l.s4 1983009808
  %v2054 = vunpack.c.0.s8 %v2053
  %v2055 = vlaneseq
  %v2056 = vshrl.u32 %v2055, 7
  %v2057 = vsub.s32 %v2054, %v2056
  %v2058 = vrot.slane %v2044, %v2057
  %v2059 = vcombine.low %v2051, %v2058
  %v2060 = vcombine.low %v1776, %v1777
  %v2061 = vcombine.low %v1778, %v1779
  %v2063 = vunpack.c.l.s4 1983009808
  %v2064 = vunpack.c.0.s8 %v2063
  %v2065 = vlaneseq
  %v2066 = vshrl.u32 %v2065, 7
  %v2067 = vsub.s32 %v2064, %v2066
  %v2068 = vrot.slane %v2060, %v2067
  %v2070 = vunpack.c.l.s4 1983009808
  %v2071 = vunpack.c.0.s8 %v2070
  %v2072 = vlaneseq
  %v2073 = vshrl.u32 %v2072, 7
  %v2074 = vsub.s32 %v2071, %v2073
  %v2075 = vrot.slane %v2061, %v2074
  %v2076 = vcombine.low %v2068, %v2075
  %v2077 = vcombine.low %v1780, %v1781
  %v2078 = vcombine.low %v1782, %v1783
  %v2080 = vunpack.c.l.s4 1983009808
  %v2081 = vunpack.c.0.s8 %v2080
  %v2082 = vlaneseq
  %v2083 = vshrl.u32 %v2082, 7
  %v2084 = vsub.s32 %v2081, %v2083
  %v2085 = vrot.slane %v2077, %v2084
  %v2087 = vunpack.c.l.s4 1983009808
  %v2088 = vunpack.c.0.s8 %v2087
  %v2089 = vlaneseq
  %v2090 = vshrl.u32 %v2089, 7
  %v2091 = vsub.s32 %v2088, %v2090
  %v2092 = vrot.slane %v2078, %v2091
  %v2093 = vcombine.low %v2085, %v2092
  %v2094 = vcombine.low %v1784, %v1785
  %v2095 = vcombine.low %v1786, %v1787
  %v2097 = vunpack.c.l.s4 1983009808
  %v2098 = vunpack.c.0.s8 %v2097
  %v2099 = vlaneseq
  %v2100 = vshrl.u32 %v2099, 7
  %v2101 = vsub.s32 %v2098, %v2100
  %v2102 = vrot.slane %v2094, %v2101
  %v2104 = vunpack.c.l.s4 1983009808
  %v2105 = vunpack.c.0.s8 %v2104
  %v2106 = vlaneseq
  %v2107 = vshrl.u32 %v2106, 7
  %v2108 = vsub.s32 %v2105, %v2107
  %v2109 = vrot.slane %v2095, %v2108
  %v2110 = vcombine.low %v2102, %v2109
  %v2111 = vcombine.low %v1788, %v1789
  %v2112 = vcombine.low %v1790, %v1791
  %v2114 = vunpack.c.l.s4 1983009808
  %v2115 = vunpack.c.0.s8 %v2114
  %v2116 = vlaneseq
  %v2117 = vshrl.u32 %v2116, 7
  %v2118 = vsub.s32 %v2115, %v2117
  %v2119 = vrot.slane %v2111, %v2118
  %v2121 = vunpack.c.l.s4 1983009808
  %v2122 = vunpack.c.0.s8 %v2121
  %v2123 = vlaneseq
  %v2124 = vshrl.u32 %v2123, 7
  %v2125 = vsub.s32 %v2122, %v2124
  %v2126 = vrot.slane %v2112, %v2125
  %v2127 = vcombine.low %v2119, %v2126
  %v2128 = vld [vmem:[%s2] sm:$0xf]
  %v2129 = vld [vmem:[%s2 + $0x4] sm:$0xf]
  %v2130 = vld [vmem:[%s2 + $0x8] sm:$0xf]
  %v2131 = vld [vmem:[%s2 + $0xc] sm:$0xf]
  %v2132 = vld [vmem:[%s2 + $0x10] sm:$0xf]
  %v2133 = vld [vmem:[%s2 + $0x14] sm:$0xf]
  %v2134 = vld [vmem:[%s2 + $0x18] sm:$0xf]
  %v2135 = vld [vmem:[%s2 + $0x1c] sm:$0xf]
  %v2136 = vld [vmem:[%s2 + $0x20] sm:$0xf]
  %v2137 = vld [vmem:[%s2 + $0x24] sm:$0xf]
  %v2138 = vld [vmem:[%s2 + $0x28] sm:$0xf]
  %v2139 = vld [vmem:[%s2 + $0x2c] sm:$0xf]
  %v2140 = vld [vmem:[%s2 + $0x30] sm:$0xf]
  %v2141 = vld [vmem:[%s2 + $0x34] sm:$0xf]
  %v2142 = vld [vmem:[%s2 + $0x38] sm:$0xf]
  %v2143 = vld [vmem:[%s2 + $0x3c] sm:$0xf]
  %v2144 = vld [vmem:[%s2 + $0x40] sm:$0xf]
  %v2145 = vld [vmem:[%s2 + $0x44] sm:$0xf]
  %v2146 = vld [vmem:[%s2 + $0x48] sm:$0xf]
  %v2147 = vld [vmem:[%s2 + $0x4c] sm:$0xf]
  %v2148 = vld [vmem:[%s2 + $0x50] sm:$0xf]
  %v2149 = vld [vmem:[%s2 + $0x54] sm:$0xf]
  %v2150 = vld [vmem:[%s2 + $0x58] sm:$0xf]
  %v2151 = vld [vmem:[%s2 + $0x5c] sm:$0xf]
  %v2152 = vld [vmem:[%s2 + $0x60] sm:$0xf]
  %v2153 = vld [vmem:[%s2 + $0x64] sm:$0xf]
  %v2154 = vld [vmem:[%s2 + $0x68] sm:$0xf]
  %v2155 = vld [vmem:[%s2 + $0x6c] sm:$0xf]
  %v2156 = vld [vmem:[%s2 + $0x70] sm:$0xf]
  %v2157 = vld [vmem:[%s2 + $0x74] sm:$0xf]
  %v2158 = vld [vmem:[%s2 + $0x78] sm:$0xf]
  %v2159 = vld [vmem:[%s2 + $0x7c] sm:$0xf]
  %v2160 = vld [vmem:[%s2 + $0x80] sm:$0xf]
  %v2161 = vld [vmem:[%s2 + $0x84] sm:$0xf]
  %v2162 = vld [vmem:[%s2 + $0x88] sm:$0xf]
  %v2163 = vld [vmem:[%s2 + $0x8c] sm:$0xf]
  %v2164 = vld [vmem:[%s2 + $0x90] sm:$0xf]
  %v2165 = vld [vmem:[%s2 + $0x94] sm:$0xf]
  %v2166 = vld [vmem:[%s2 + $0x98] sm:$0xf]
  %v2167 = vld [vmem:[%s2 + $0x9c] sm:$0xf]
  %v2168 = vld [vmem:[%s2 + $0xa0] sm:$0xf]
  %v2169 = vld [vmem:[%s2 + $0xa4] sm:$0xf]
  %v2170 = vld [vmem:[%s2 + $0xa8] sm:$0xf]
  %v2171 = vld [vmem:[%s2 + $0xac] sm:$0xf]
  %v2172 = vld [vmem:[%s2 + $0xb0] sm:$0xf]
  %v2173 = vld [vmem:[%s2 + $0xb4] sm:$0xf]
  %v2174 = vld [vmem:[%s2 + $0xb8] sm:$0xf]
  %v2175 = vld [vmem:[%s2 + $0xbc] sm:$0xf]
  %v2176 = vld [vmem:[%s2 + $0xc0] sm:$0xf]
  %v2177 = vld [vmem:[%s2 + $0xc4] sm:$0xf]
  %v2178 = vld [vmem:[%s2 + $0xc8] sm:$0xf]
  %v2179 = vld [vmem:[%s2 + $0xcc] sm:$0xf]
  %v2180 = vld [vmem:[%s2 + $0xd0] sm:$0xf]
  %v2181 = vld [vmem:[%s2 + $0xd4] sm:$0xf]
  %v2182 = vld [vmem:[%s2 + $0xd8] sm:$0xf]
  %v2183 = vld [vmem:[%s2 + $0xdc] sm:$0xf]
  %v2184 = vld [vmem:[%s2 + $0xe0] sm:$0xf]
  %v2185 = vld [vmem:[%s2 + $0xe4] sm:$0xf]
  %v2186 = vld [vmem:[%s2 + $0xe8] sm:$0xf]
  %v2187 = vld [vmem:[%s2 + $0xec] sm:$0xf]
  %v2188 = vld [vmem:[%s2 + $0xf0] sm:$0xf]
  %v2189 = vld [vmem:[%s2 + $0xf4] sm:$0xf]
  %v2190 = vld [vmem:[%s2 + $0xf8] sm:$0xf]
  %v2191 = vld [vmem:[%s2 + $0xfc] sm:$0xf]
  %v2192 = vld [vmem:[%s2 + $0x100] sm:$0xf]
  %v2193 = vld [vmem:[%s2 + $0x104] sm:$0xf]
  %v2194 = vld [vmem:[%s2 + $0x108] sm:$0xf]
  %v2195 = vld [vmem:[%s2 + $0x10c] sm:$0xf]
  %v2196 = vld [vmem:[%s2 + $0x110] sm:$0xf]
  %v2197 = vld [vmem:[%s2 + $0x114] sm:$0xf]
  %v2198 = vld [vmem:[%s2 + $0x118] sm:$0xf]
  %v2199 = vld [vmem:[%s2 + $0x11c] sm:$0xf]
  %v2200 = vld [vmem:[%s2 + $0x120] sm:$0xf]
  %v2201 = vld [vmem:[%s2 + $0x124] sm:$0xf]
  %v2202 = vld [vmem:[%s2 + $0x128] sm:$0xf]
  %v2203 = vld [vmem:[%s2 + $0x12c] sm:$0xf]
  %v2204 = vld [vmem:[%s2 + $0x130] sm:$0xf]
  %v2205 = vld [vmem:[%s2 + $0x134] sm:$0xf]
  %v2206 = vld [vmem:[%s2 + $0x138] sm:$0xf]
  %v2207 = vld [vmem:[%s2 + $0x13c] sm:$0xf]
  %v2208 = vld [vmem:[%s2 + $0x140] sm:$0xf]
  %v2209 = vld [vmem:[%s2 + $0x144] sm:$0xf]
  %v2210 = vld [vmem:[%s2 + $0x148] sm:$0xf]
  %v2211 = vld [vmem:[%s2 + $0x14c] sm:$0xf]
  %v2212 = vld [vmem:[%s2 + $0x150] sm:$0xf]
  %v2213 = vld [vmem:[%s2 + $0x154] sm:$0xf]
  %v2214 = vld [vmem:[%s2 + $0x158] sm:$0xf]
  %v2215 = vld [vmem:[%s2 + $0x15c] sm:$0xf]
  %v2216 = vld [vmem:[%s2 + $0x160] sm:$0xf]
  %v2217 = vld [vmem:[%s2 + $0x164] sm:$0xf]
  %v2218 = vld [vmem:[%s2 + $0x168] sm:$0xf]
  %v2219 = vld [vmem:[%s2 + $0x16c] sm:$0xf]
  %v2220 = vld [vmem:[%s2 + $0x170] sm:$0xf]
  %v2221 = vld [vmem:[%s2 + $0x174] sm:$0xf]
  %v2222 = vld [vmem:[%s2 + $0x178] sm:$0xf]
  %v2223 = vld [vmem:[%s2 + $0x17c] sm:$0xf]
  %v2224 = vld [vmem:[%s2 + $0x180] sm:$0xf]
  %v2225 = vld [vmem:[%s2 + $0x184] sm:$0xf]
  %v2226 = vld [vmem:[%s2 + $0x188] sm:$0xf]
  %v2227 = vld [vmem:[%s2 + $0x18c] sm:$0xf]
  %v2228 = vld [vmem:[%s2 + $0x190] sm:$0xf]
  %v2229 = vld [vmem:[%s2 + $0x194] sm:$0xf]
  %v2230 = vld [vmem:[%s2 + $0x198] sm:$0xf]
  %v2231 = vld [vmem:[%s2 + $0x19c] sm:$0xf]
  %v2232 = vld [vmem:[%s2 + $0x1a0] sm:$0xf]
  %v2233 = vld [vmem:[%s2 + $0x1a4] sm:$0xf]
  %v2234 = vld [vmem:[%s2 + $0x1a8] sm:$0xf]
  %v2235 = vld [vmem:[%s2 + $0x1ac] sm:$0xf]
  %v2236 = vld [vmem:[%s2 + $0x1b0] sm:$0xf]
  %v2237 = vld [vmem:[%s2 + $0x1b4] sm:$0xf]
  %v2238 = vld [vmem:[%s2 + $0x1b8] sm:$0xf]
  %v2239 = vld [vmem:[%s2 + $0x1bc] sm:$0xf]
  %v2240 = vld [vmem:[%s2 + $0x1c0] sm:$0xf]
  %v2241 = vld [vmem:[%s2 + $0x1c4] sm:$0xf]
  %v2242 = vld [vmem:[%s2 + $0x1c8] sm:$0xf]
  %v2243 = vld [vmem:[%s2 + $0x1cc] sm:$0xf]
  %v2244 = vld [vmem:[%s2 + $0x1d0] sm:$0xf]
  %v2245 = vld [vmem:[%s2 + $0x1d4] sm:$0xf]
  %v2246 = vld [vmem:[%s2 + $0x1d8] sm:$0xf]
  %v2247 = vld [vmem:[%s2 + $0x1dc] sm:$0xf]
  %v2248 = vld [vmem:[%s2 + $0x1e0] sm:$0xf]
  %v2249 = vld [vmem:[%s2 + $0x1e4] sm:$0xf]
  %v2250 = vld [vmem:[%s2 + $0x1e8] sm:$0xf]
  %v2251 = vld [vmem:[%s2 + $0x1ec] sm:$0xf]
  %v2252 = vld [vmem:[%s2 + $0x1f0] sm:$0xf]
  %v2253 = vld [vmem:[%s2 + $0x1f4] sm:$0xf]
  %v2254 = vld [vmem:[%s2 + $0x1f8] sm:$0xf]
  %v2255 = vld [vmem:[%s2 + $0x1fc] sm:$0xf]
  %v2256 = vcombine.low %v1872, %v1906
  %v2257 = vcombine.high %v1872, %v1906
  %v2258 = vcombine.low %v1940, %v1974
  %v2259 = vcombine.high %v1940, %v1974
  %v2261 = vunpack.c.l.s4 1983009808
  %v2262 = vunpack.c.0.s8 %v2261
  %v2263 = vlaneseq
  %v2264 = vshrl.u32 %v2263, 7
  %v2265 = vsub.s32 %v2262, %v2264
  %v2266 = vrot.slane %v2256, %v2265
  %v2268 = vunpack.c.l.s4 1983009808
  %v2269 = vunpack.c.0.s8 %v2268
  %v2270 = vlaneseq
  %v2271 = vshrl.u32 %v2270, 7
  %v2272 = vsub.s32 %v2269, %v2271
  %v2273 = vrot.slane %v2257, %v2272
  %v2275 = vunpack.c.l.s4 1983009808
  %v2276 = vunpack.c.0.s8 %v2275
  %v2277 = vlaneseq
  %v2278 = vshrl.u32 %v2277, 7
  %v2279 = vsub.s32 %v2276, %v2278
  %v2280 = vrot.slane %v2258, %v2279
  %v2282 = vunpack.c.l.s4 1983009808
  %v2283 = vunpack.c.0.s8 %v2282
  %v2284 = vlaneseq
  %v2285 = vshrl.u32 %v2284, 7
  %v2286 = vsub.s32 %v2283, %v2285
  %v2287 = vrot.slane %v2259, %v2286
  %v2288 = vcombine.low %v2266, %v2280
  %v2289 = vcombine.high %v2266, %v2280
  %v2290 = vcombine.low %v2273, %v2287
  %v2291 = vcombine.high %v2273, %v2287
  %v2292 = vcombine.low %v1889, %v1923
  %v2293 = vcombine.high %v1889, %v1923
  %v2294 = vcombine.low %v1957, %v1991
  %v2295 = vcombine.high %v1957, %v1991
  %v2297 = vunpack.c.l.s4 1983009808
  %v2298 = vunpack.c.0.s8 %v2297
  %v2299 = vlaneseq
  %v2300 = vshrl.u32 %v2299, 7
  %v2301 = vsub.s32 %v2298, %v2300
  %v2302 = vrot.slane %v2292, %v2301
  %v2304 = vunpack.c.l.s4 1983009808
  %v2305 = vunpack.c.0.s8 %v2304
  %v2306 = vlaneseq
  %v2307 = vshrl.u32 %v2306, 7
  %v2308 = vsub.s32 %v2305, %v2307
  %v2309 = vrot.slane %v2293, %v2308
  %v2311 = vunpack.c.l.s4 1983009808
  %v2312 = vunpack.c.0.s8 %v2311
  %v2313 = vlaneseq
  %v2314 = vshrl.u32 %v2313, 7
  %v2315 = vsub.s32 %v2312, %v2314
  %v2316 = vrot.slane %v2294, %v2315
  %v2318 = vunpack.c.l.s4 1983009808
  %v2319 = vunpack.c.0.s8 %v2318
  %v2320 = vlaneseq
  %v2321 = vshrl.u32 %v2320, 7
  %v2322 = vsub.s32 %v2319, %v2321
  %v2323 = vrot.slane %v2295, %v2322
  %v2324 = vcombine.low %v2302, %v2316
  %v2325 = vcombine.high %v2302, %v2316
  %v2326 = vcombine.low %v2309, %v2323
  %v2327 = vcombine.high %v2309, %v2323
  %v2328 = vcombine.low %v2008, %v2042
  %v2329 = vcombine.high %v2008, %v2042
  %v2330 = vcombine.low %v2076, %v2110
  %v2331 = vcombine.high %v2076, %v2110
  %v2333 = vunpack.c.l.s4 1983009808
  %v2334 = vunpack.c.0.s8 %v2333
  %v2335 = vlaneseq
  %v2336 = vshrl.u32 %v2335, 7
  %v2337 = vsub.s32 %v2334, %v2336
  %v2338 = vrot.slane %v2328, %v2337
  %v2340 = vunpack.c.l.s4 1983009808
  %v2341 = vunpack.c.0.s8 %v2340
  %v2342 = vlaneseq
  %v2343 = vshrl.u32 %v2342, 7
  %v2344 = vsub.s32 %v2341, %v2343
  %v2345 = vrot.slane %v2329, %v2344
  %v2347 = vunpack.c.l.s4 1983009808
  %v2348 = vunpack.c.0.s8 %v2347
  %v2349 = vlaneseq
  %v2350 = vshrl.u32 %v2349, 7
  %v2351 = vsub.s32 %v2348, %v2350
  %v2352 = vrot.slane %v2330, %v2351
  %v2354 = vunpack.c.l.s4 1983009808
  %v2355 = vunpack.c.0.s8 %v2354
  %v2356 = vlaneseq
  %v2357 = vshrl.u32 %v2356, 7
  %v2358 = vsub.s32 %v2355, %v2357
  %v2359 = vrot.slane %v2331, %v2358
  %v2360 = vcombine.low %v2338, %v2352
  %v2361 = vcombine.high %v2338, %v2352
  %v2362 = vcombine.low %v2345, %v2359
  %v2363 = vcombine.high %v2345, %v2359
  %v2364 = vcombine.low %v2025, %v2059
  %v2365 = vcombine.high %v2025, %v2059
  %v2366 = vcombine.low %v2093, %v2127
  %v2367 = vcombine.high %v2093, %v2127
  %v2369 = vunpack.c.l.s4 1983009808
  %v2370 = vunpack.c.0.s8 %v2369
  %v2371 = vlaneseq
  %v2372 = vshrl.u32 %v2371, 7
  %v2373 = vsub.s32 %v2370, %v2372
  %v2374 = vrot.slane %v2364, %v2373
  %v2376 = vunpack.c.l.s4 1983009808
  %v2377 = vunpack.c.0.s8 %v2376
  %v2378 = vlaneseq
  %v2379 = vshrl.u32 %v2378, 7
  %v2380 = vsub.s32 %v2377, %v2379
  %v2381 = vrot.slane %v2365, %v2380
  %v2383 = vunpack.c.l.s4 1983009808
  %v2384 = vunpack.c.0.s8 %v2383
  %v2385 = vlaneseq
  %v2386 = vshrl.u32 %v2385, 7
  %v2387 = vsub.s32 %v2384, %v2386
  %v2388 = vrot.slane %v2366, %v2387
  %v2390 = vunpack.c.l.s4 1983009808
  %v2391 = vunpack.c.0.s8 %v2390
  %v2392 = vlaneseq
  %v2393 = vshrl.u32 %v2392, 7
  %v2394 = vsub.s32 %v2391, %v2393
  %v2395 = vrot.slane %v2367, %v2394
  %v2396 = vcombine.low %v2374, %v2388
  %v2397 = vcombine.high %v2374, %v2388
  %v2398 = vcombine.low %v2381, %v2395
  %v2399 = vcombine.high %v2381, %v2395
  %v2544 = vunpack.c.l.b16 %v2128
  %v2545 = vunpack.c.l.b16 %v2129
  %v2546 = vunpack.c.l.b16 %v2130
  %v2547 = vunpack.c.l.b16 %v2131
  %v2548 = vunpack.c.l.b16 %v2132
  %v2549 = vunpack.c.l.b16 %v2133
  %v2550 = vunpack.c.l.b16 %v2134
  %v2551 = vunpack.c.l.b16 %v2135
  %v2552 = vunpack.c.l.b16 %v2136
  %v2553 = vunpack.c.l.b16 %v2137
  %v2554 = vunpack.c.l.b16 %v2138
  %v2555 = vunpack.c.l.b16 %v2139
  %v2556 = vunpack.c.l.b16 %v2140
  %v2557 = vunpack.c.l.b16 %v2141
  %v2558 = vunpack.c.l.b16 %v2142
  %v2559 = vunpack.c.l.b16 %v2143
  %v2560 = vunpack.c.l.b16 %v2144
  %v2561 = vunpack.c.l.b16 %v2145
  %v2562 = vunpack.c.l.b16 %v2146
  %v2563 = vunpack.c.l.b16 %v2147
  %v2564 = vunpack.c.l.b16 %v2148
  %v2565 = vunpack.c.l.b16 %v2149
  %v2566 = vunpack.c.l.b16 %v2150
  %v2567 = vunpack.c.l.b16 %v2151
  %v2568 = vunpack.c.l.b16 %v2152
  %v2569 = vunpack.c.l.b16 %v2153
  %v2570 = vunpack.c.l.b16 %v2154
  %v2571 = vunpack.c.l.b16 %v2155
  %v2572 = vunpack.c.l.b16 %v2156
  %v2573 = vunpack.c.l.b16 %v2157
  %v2574 = vunpack.c.l.b16 %v2158
  %v2575 = vunpack.c.l.b16 %v2159
  %v2576 = vunpack.c.l.b16 %v2160
  %v2577 = vunpack.c.l.b16 %v2161
  %v2578 = vunpack.c.l.b16 %v2162
  %v2579 = vunpack.c.l.b16 %v2163
  %v2580 = vunpack.c.l.b16 %v2164
  %v2581 = vunpack.c.l.b16 %v2165
  %v2582 = vunpack.c.l.b16 %v2166
  %v2583 = vunpack.c.l.b16 %v2167
  %v2584 = vunpack.c.l.b16 %v2168
  %v2585 = vunpack.c.l.b16 %v2169
  %v2586 = vunpack.c.l.b16 %v2170
  %v2587 = vunpack.c.l.b16 %v2171
  %v2588 = vunpack.c.l.b16 %v2172
  %v2589 = vunpack.c.l.b16 %v2173
  %v2590 = vunpack.c.l.b16 %v2174
  %v2591 = vunpack.c.l.b16 %v2175
  %v2592 = vunpack.c.l.b16 %v2176
  %v2593 = vunpack.c.l.b16 %v2177
  %v2594 = vunpack.c.l.b16 %v2178
  %v2595 = vunpack.c.l.b16 %v2179
  %v2596 = vunpack.c.l.b16 %v2180
  %v2597 = vunpack.c.l.b16 %v2181
  %v2598 = vunpack.c.l.b16 %v2182
  %v2599 = vunpack.c.l.b16 %v2183
  %v2600 = vunpack.c.l.b16 %v2184
  %v2601 = vunpack.c.l.b16 %v2185
  %v2602 = vunpack.c.l.b16 %v2186
  %v2603 = vunpack.c.l.b16 %v2187
  %v2604 = vunpack.c.l.b16 %v2188
  %v2605 = vunpack.c.l.b16 %v2189
  %v2606 = vunpack.c.l.b16 %v2190
  %v2607 = vunpack.c.l.b16 %v2191
  %v2608 = vunpack.c.l.b16 %v2192
  %v2609 = vunpack.c.l.b16 %v2193
  %v2610 = vunpack.c.l.b16 %v2194
  %v2611 = vunpack.c.l.b16 %v2195
  %v2612 = vunpack.c.l.b16 %v2196
  %v2613 = vunpack.c.l.b16 %v2197
  %v2614 = vunpack.c.l.b16 %v2198
  %v2615 = vunpack.c.l.b16 %v2199
  %v2616 = vunpack.c.l.b16 %v2200
  %v2617 = vunpack.c.l.b16 %v2201
  %v2618 = vunpack.c.l.b16 %v2202
  %v2619 = vunpack.c.l.b16 %v2203
  %v2620 = vunpack.c.l.b16 %v2204
  %v2621 = vunpack.c.l.b16 %v2205
  %v2622 = vunpack.c.l.b16 %v2206
  %v2623 = vunpack.c.l.b16 %v2207
  %v2624 = vunpack.c.l.b16 %v2208
  %v2625 = vunpack.c.l.b16 %v2209
  %v2626 = vunpack.c.l.b16 %v2210
  %v2627 = vunpack.c.l.b16 %v2211
  %v2628 = vunpack.c.l.b16 %v2212
  %v2629 = vunpack.c.l.b16 %v2213
  %v2630 = vunpack.c.l.b16 %v2214
  %v2631 = vunpack.c.l.b16 %v2215
  %v2632 = vunpack.c.l.b16 %v2216
  %v2633 = vunpack.c.l.b16 %v2217
  %v2634 = vunpack.c.l.b16 %v2218
  %v2635 = vunpack.c.l.b16 %v2219
  %v2636 = vunpack.c.l.b16 %v2220
  %v2637 = vunpack.c.l.b16 %v2221
  %v2638 = vunpack.c.l.b16 %v2222
  %v2639 = vunpack.c.l.b16 %v2223
  %v2640 = vunpack.c.l.b16 %v2224
  %v2641 = vunpack.c.l.b16 %v2225
  %v2642 = vunpack.c.l.b16 %v2226
  %v2643 = vunpack.c.l.b16 %v2227
  %v2644 = vunpack.c.l.b16 %v2228
  %v2645 = vunpack.c.l.b16 %v2229
  %v2646 = vunpack.c.l.b16 %v2230
  %v2647 = vunpack.c.l.b16 %v2231
  %v2648 = vunpack.c.l.b16 %v2232
  %v2649 = vunpack.c.l.b16 %v2233
  %v2650 = vunpack.c.l.b16 %v2234
  %v2651 = vunpack.c.l.b16 %v2235
  %v2652 = vunpack.c.l.b16 %v2236
  %v2653 = vunpack.c.l.b16 %v2237
  %v2654 = vunpack.c.l.b16 %v2238
  %v2655 = vunpack.c.l.b16 %v2239
  %v2656 = vunpack.c.l.b16 %v2240
  %v2657 = vunpack.c.l.b16 %v2241
  %v2658 = vunpack.c.l.b16 %v2242
  %v2659 = vunpack.c.l.b16 %v2243
  %v2660 = vunpack.c.l.b16 %v2244
  %v2661 = vunpack.c.l.b16 %v2245
  %v2662 = vunpack.c.l.b16 %v2246
  %v2663 = vunpack.c.l.b16 %v2247
  %v2664 = vunpack.c.l.b16 %v2248
  %v2665 = vunpack.c.l.b16 %v2249
  %v2666 = vunpack.c.l.b16 %v2250
  %v2667 = vunpack.c.l.b16 %v2251
  %v2668 = vunpack.c.l.b16 %v2252
  %v2669 = vunpack.c.l.b16 %v2253
  %v2670 = vunpack.c.l.b16 %v2254
  %v2671 = vunpack.c.l.b16 %v2255
  %v2672 = vpack.c.b16 %v2545, %v2544
  %v2673 = vpack.c.b16 %v2547, %v2546
  %v2674 = vpack.c.b16 %v2549, %v2548
  %v2675 = vpack.c.b16 %v2551, %v2550
  %v2676 = vpack.c.b16 %v2553, %v2552
  %v2677 = vpack.c.b16 %v2555, %v2554
  %v2678 = vpack.c.b16 %v2557, %v2556
  %v2679 = vpack.c.b16 %v2559, %v2558
  %v2680 = vpack.c.b16 %v2561, %v2560
  %v2681 = vpack.c.b16 %v2563, %v2562
  %v2682 = vpack.c.b16 %v2565, %v2564
  %v2683 = vpack.c.b16 %v2567, %v2566
  %v2684 = vpack.c.b16 %v2569, %v2568
  %v2685 = vpack.c.b16 %v2571, %v2570
  %v2686 = vpack.c.b16 %v2573, %v2572
  %v2687 = vpack.c.b16 %v2575, %v2574
  %v2688 = vpack.c.b16 %v2577, %v2576
  %v2689 = vpack.c.b16 %v2579, %v2578
  %v2690 = vpack.c.b16 %v2581, %v2580
  %v2691 = vpack.c.b16 %v2583, %v2582
  %v2692 = vpack.c.b16 %v2585, %v2584
  %v2693 = vpack.c.b16 %v2587, %v2586
  %v2694 = vpack.c.b16 %v2589, %v2588
  %v2695 = vpack.c.b16 %v2591, %v2590
  %v2696 = vpack.c.b16 %v2593, %v2592
  %v2697 = vpack.c.b16 %v2595, %v2594
  %v2698 = vpack.c.b16 %v2597, %v2596
  %v2699 = vpack.c.b16 %v2599, %v2598
  %v2700 = vpack.c.b16 %v2601, %v2600
  %v2701 = vpack.c.b16 %v2603, %v2602
  %v2702 = vpack.c.b16 %v2605, %v2604
  %v2703 = vpack.c.b16 %v2607, %v2606
  %v2704 = vpack.c.b16 %v2609, %v2608
  %v2705 = vpack.c.b16 %v2611, %v2610
  %v2706 = vpack.c.b16 %v2613, %v2612
  %v2707 = vpack.c.b16 %v2615, %v2614
  %v2708 = vpack.c.b16 %v2617, %v2616
  %v2709 = vpack.c.b16 %v2619, %v2618
  %v2710 = vpack.c.b16 %v2621, %v2620
  %v2711 = vpack.c.b16 %v2623, %v2622
  %v2712 = vpack.c.b16 %v2625, %v2624
  %v2713 = vpack.c.b16 %v2627, %v2626
  %v2714 = vpack.c.b16 %v2629, %v2628
  %v2715 = vpack.c.b16 %v2631, %v2630
  %v2716 = vpack.c.b16 %v2633, %v2632
  %v2717 = vpack.c.b16 %v2635, %v2634
  %v2718 = vpack.c.b16 %v2637, %v2636
  %v2719 = vpack.c.b16 %v2639, %v2638
  %v2720 = vpack.c.b16 %v2641, %v2640
  %v2721 = vpack.c.b16 %v2643, %v2642
  %v2722 = vpack.c.b16 %v2645, %v2644
  %v2723 = vpack.c.b16 %v2647, %v2646
  %v2724 = vpack.c.b16 %v2649, %v2648
  %v2725 = vpack.c.b16 %v2651, %v2650
  %v2726 = vpack.c.b16 %v2653, %v2652
  %v2727 = vpack.c.b16 %v2655, %v2654
  %v2728 = vpack.c.b16 %v2657, %v2656
  %v2729 = vpack.c.b16 %v2659, %v2658
  %v2730 = vpack.c.b16 %v2661, %v2660
  %v2731 = vpack.c.b16 %v2663, %v2662
  %v2732 = vpack.c.b16 %v2665, %v2664
  %v2733 = vpack.c.b16 %v2667, %v2666
  %v2734 = vpack.c.b16 %v2669, %v2668
  %v2735 = vpack.c.b16 %v2671, %v2670
  %2800 = vmatprep.subr.bf16.mxu0 0
  %2801 = vmatpush1.bf16.msra.mxu0 %v2672
  %2802 = vmatprep.subr.bf16.mxu0 0
  %2803 = vmatpush1.bf16.msra.mxu0 %v2673
  %2804 = vmatprep.subr.bf16.mxu0 0
  %2805 = vmatpush1.bf16.msra.mxu0 %v2674
  %2806 = vmatprep.subr.bf16.mxu0 0
  %2807 = vmatpush1.bf16.msra.mxu0 %v2675
  %2808 = vmatprep.subr.bf16.mxu0 0
  %2809 = vmatpush1.bf16.msra.mxu0 %v2676
  %2810 = vmatprep.subr.bf16.mxu0 0
  %2811 = vmatpush1.bf16.msra.mxu0 %v2677
  %2812 = vmatprep.subr.bf16.mxu0 0
  %2813 = vmatpush1.bf16.msra.mxu0 %v2678
  %2814 = vmatprep.subr.bf16.mxu0 0
  %2815 = vmatpush1.bf16.msra.mxu0 %v2679
  %2816 = vmatprep.subr.bf16.mxu0 0
  %2817 = vmatpush1.bf16.msra.mxu0 %v2680
  %2818 = vmatprep.subr.bf16.mxu0 0
  %2819 = vmatpush1.bf16.msra.mxu0 %v2681
  %2820 = vmatprep.subr.bf16.mxu0 0
  %2821 = vmatpush1.bf16.msra.mxu0 %v2682
  %2822 = vmatprep.subr.bf16.mxu0 0
  %2823 = vmatpush1.bf16.msra.mxu0 %v2683
  %2824 = vmatprep.subr.bf16.mxu0 0
  %2825 = vmatpush1.bf16.msra.mxu0 %v2684
  %2826 = vmatprep.subr.bf16.mxu0 0
  %2827 = vmatpush1.bf16.msra.mxu0 %v2685
  %2828 = vmatprep.subr.bf16.mxu0 0
  %2829 = vmatpush1.bf16.msra.mxu0 %v2686
  %2830 = vmatprep.subr.bf16.mxu0 0
  %2831 = vmatpush1.bf16.msra.mxu0 %v2687
  %2832 = vmatprep.mubr.bf16.mxu0 %v2289
  %2833 = vmatmul.mubr.bf16.gmra.mrb[0].mxu0 %v2288
  %v2834 = vpop.f32.mrb[0].mxu0
  %v2835 = vadd.f32 0.0, %v2834
  %v2836 = vpop.f32.mrb[0].mxu0
  %v2837 = vpop.f32.mrb[0].mxu0
  %v2838 = vadd.f32 0.0, %v2837
  %v2839 = vpop.f32.mrb[0].mxu0
  %2840 = vmatprep.mubr.bf16.mxu0 %v2361
  %2841 = vmatmul.mubr.bf16.gmra.mrb[0].mxu0 %v2360
  %v2842 = vpop.f32.mrb[0].mxu0
  %v2843 = vadd.f32 0.0, %v2842
  %v2844 = vpop.f32.mrb[0].mxu0
  %v2845 = vpop.f32.mrb[0].mxu0
  %v2846 = vadd.f32 0.0, %v2845
  %v2847 = vpop.f32.mrb[0].mxu0
  %2848 = vdwg.mxu0
  %2849 = vmatprep.subr.bf16.mxu0 0
  %2850 = vmatpush1.bf16.msra.mxu0 %v2688
  %2851 = vmatprep.subr.bf16.mxu0 0
  %2852 = vmatpush1.bf16.msra.mxu0 %v2689
  %2853 = vmatprep.subr.bf16.mxu0 0
  %2854 = vmatpush1.bf16.msra.mxu0 %v2690
  %2855 = vmatprep.subr.bf16.mxu0 0
  %2856 = vmatpush1.bf16.msra.mxu0 %v2691
  %2857 = vmatprep.subr.bf16.mxu0 0
  %2858 = vmatpush1.bf16.msra.mxu0 %v2692
  %2859 = vmatprep.subr.bf16.mxu0 0
  %2860 = vmatpush1.bf16.msra.mxu0 %v2693
  %2861 = vmatprep.subr.bf16.mxu0 0
  %2862 = vmatpush1.bf16.msra.mxu0 %v2694
  %2863 = vmatprep.subr.bf16.mxu0 0
  %2864 = vmatpush1.bf16.msra.mxu0 %v2695
  %2865 = vmatprep.subr.bf16.mxu0 0
  %2866 = vmatpush1.bf16.msra.mxu0 %v2696
  %2867 = vmatprep.subr.bf16.mxu0 0
  %2868 = vmatpush1.bf16.msra.mxu0 %v2697
  %2869 = vmatprep.subr.bf16.mxu0 0
  %2870 = vmatpush1.bf16.msra.mxu0 %v2698
  %2871 = vmatprep.subr.bf16.mxu0 0
  %2872 = vmatpush1.bf16.msra.mxu0 %v2699
  %2873 = vmatprep.subr.bf16.mxu0 0
  %2874 = vmatpush1.bf16.msra.mxu0 %v2700
  %2875 = vmatprep.subr.bf16.mxu0 0
  %2876 = vmatpush1.bf16.msra.mxu0 %v2701
  %2877 = vmatprep.subr.bf16.mxu0 0
  %2878 = vmatpush1.bf16.msra.mxu0 %v2702
  %2879 = vmatprep.subr.bf16.mxu0 0
  %2880 = vmatpush1.bf16.msra.mxu0 %v2703
  %2881 = vmatprep.mubr.bf16.mxu0 %v2291
  %2882 = vmatmul.mubr.bf16.gmra.mrb[0].mxu0 %v2290
  %v2883 = vpop.f32.mrb[0].mxu0
  %v2884 = vadd.f32 %v2835, %v2883
  %v2885 = vpop.f32.mrb[0].mxu0
  %v2886 = vpop.f32.mrb[0].mxu0
  %v2887 = vadd.f32 %v2838, %v2886
  %v2888 = vpop.f32.mrb[0].mxu0
  %2889 = vmatprep.mubr.bf16.mxu0 %v2363
  %2890 = vmatmul.mubr.bf16.gmra.mrb[0].mxu0 %v2362
  %v2891 = vpop.f32.mrb[0].mxu0
  %v2892 = vadd.f32 %v2843, %v2891
  %v2893 = vpop.f32.mrb[0].mxu0
  %v2894 = vpop.f32.mrb[0].mxu0
  %v2895 = vadd.f32 %v2846, %v2894
  %v2896 = vpop.f32.mrb[0].mxu0
  %2897 = vdwg.mxu0
  %2898 = vmatprep.subr.bf16.mxu0 0
  %2899 = vmatpush1.bf16.msra.mxu0 %v2704
  %2900 = vmatprep.subr.bf16.mxu0 0
  %2901 = vmatpush1.bf16.msra.mxu0 %v2705
  %2902 = vmatprep.subr.bf16.mxu0 0
  %2903 = vmatpush1.bf16.msra.mxu0 %v2706
  %2904 = vmatprep.subr.bf16.mxu0 0
  %2905 = vmatpush1.bf16.msra.mxu0 %v2707
  %2906 = vmatprep.subr.bf16.mxu0 0
  %2907 = vmatpush1.bf16.msra.mxu0 %v2708
  %2908 = vmatprep.subr.bf16.mxu0 0
  %2909 = vmatpush1.bf16.msra.mxu0 %v2709
  %2910 = vmatprep.subr.bf16.mxu0 0
  %2911 = vmatpush1.bf16.msra.mxu0 %v2710
  %2912 = vmatprep.subr.bf16.mxu0 0
  %2913 = vmatpush1.bf16.msra.mxu0 %v2711
  %2914 = vmatprep.subr.bf16.mxu0 0
  %2915 = vmatpush1.bf16.msra.mxu0 %v2712
  %2916 = vmatprep.subr.bf16.mxu0 0
  %2917 = vmatpush1.bf16.msra.mxu0 %v2713
  %2918 = vmatprep.subr.bf16.mxu0 0
  %2919 = vmatpush1.bf16.msra.mxu0 %v2714
  %2920 = vmatprep.subr.bf16.mxu0 0
  %2921 = vmatpush1.bf16.msra.mxu0 %v2715
  %2922 = vmatprep.subr.bf16.mxu0 0
  %2923 = vmatpush1.bf16.msra.mxu0 %v2716
  %2924 = vmatprep.subr.bf16.mxu0 0
  %2925 = vmatpush1.bf16.msra.mxu0 %v2717
  %2926 = vmatprep.subr.bf16.mxu0 0
  %2927 = vmatpush1.bf16.msra.mxu0 %v2718
  %2928 = vmatprep.subr.bf16.mxu0 0
  %2929 = vmatpush1.bf16.msra.mxu0 %v2719
  %2930 = vmatprep.mubr.bf16.mxu0 %v2325
  %2931 = vmatmul.mubr.bf16.gmra.mrb[0].mxu0 %v2324
  %v2932 = vpop.f32.mrb[0].mxu0
  %v2933 = vadd.f32 %v2884, %v2932
  %v2934 = vpop.f32.mrb[0].mxu0
  %v2935 = vpop.f32.mrb[0].mxu0
  %v2936 = vadd.f32 %v2887, %v2935
  %v2937 = vpop.f32.mrb[0].mxu0
  %2938 = vmatprep.mubr.bf16.mxu0 %v2397
  %2939 = vmatmul.mubr.bf16.gmra.mrb[0].mxu0 %v2396
  %v2940 = vpop.f32.mrb[0].mxu0
  %v2941 = vadd.f32 %v2892, %v2940
  %v2942 = vpop.f32.mrb[0].mxu0
  %v2943 = vpop.f32.mrb[0].mxu0
  %v2944 = vadd.f32 %v2895, %v2943
  %v2945 = vpop.f32.mrb[0].mxu0
  %2946 = vdwg.mxu0
  %2947 = vmatprep.subr.bf16.mxu0 0
  %2948 = vmatpush1.bf16.msra.mxu0 %v2720
  %2949 = vmatprep.subr.bf16.mxu0 0
  %2950 = vmatpush1.bf16.msra.mxu0 %v2721
  %2951 = vmatprep.subr.bf16.mxu0 0
  %2952 = vmatpush1.bf16.msra.mxu0 %v2722
  %2953 = vmatprep.subr.bf16.mxu0 0
  %2954 = vmatpush1.bf16.msra.mxu0 %v2723
  %2955 = vmatprep.subr.bf16.mxu0 0
  %2956 = vmatpush1.bf16.msra.mxu0 %v2724
  %2957 = vmatprep.subr.bf16.mxu0 0
  %2958 = vmatpush1.bf16.msra.mxu0 %v2725
  %2959 = vmatprep.subr.bf16.mxu0 0
  %2960 = vmatpush1.bf16.msra.mxu0 %v2726
  %2961 = vmatprep.subr.bf16.mxu0 0
  %2962 = vmatpush1.bf16.msra.mxu0 %v2727
  %2963 = vmatprep.subr.bf16.mxu0 0
  %2964 = vmatpush1.bf16.msra.mxu0 %v2728
  %2965 = vmatprep.subr.bf16.mxu0 0
  %2966 = vmatpush1.bf16.msra.mxu0 %v2729
  %2967 = vmatprep.subr.bf16.mxu0 0
  %2968 = vmatpush1.bf16.msra.mxu0 %v2730
  %2969 = vmatprep.subr.bf16.mxu0 0
  %2970 = vmatpush1.bf16.msra.mxu0 %v2731
  %2971 = vmatprep.subr.bf16.mxu0 0
  %2972 = vmatpush1.bf16.msra.mxu0 %v2732
  %2973 = vmatprep.subr.bf16.mxu0 0
  %2974 = vmatpush1.bf16.msra.mxu0 %v2733
  %2975 = vmatprep.subr.bf16.mxu0 0
  %2976 = vmatpush1.bf16.msra.mxu0 %v2734
  %2977 = vmatprep.subr.bf16.mxu0 0
  %2978 = vmatpush1.bf16.msra.mxu0 %v2735
  %2979 = vmatprep.mubr.bf16.mxu0 %v2327
  %2980 = vmatmul.mubr.bf16.gmra.mrb[0].mxu0 %v2326
  %v2981 = vpop.f32.mrb[0].mxu0
  %v2982 = vadd.f32 %v2933, %v2981
  %v2983 = vpop.f32.mrb[0].mxu0
  %v2984 = vpop.f32.mrb[0].mxu0
  %v2985 = vadd.f32 %v2936, %v2984
  %v2986 = vpop.f32.mrb[0].mxu0
  %2987 = vmatprep.mubr.bf16.mxu0 %v2399
  %2988 = vmatmul.mubr.bf16.gmra.mrb[0].mxu0 %v2398
  %v2989 = vpop.f32.mrb[0].mxu0
  %v2990 = vadd.f32 %v2941, %v2989
  %v2991 = vpop.f32.mrb[0].mxu0
  %v2992 = vpop.f32.mrb[0].mxu0
  %v2993 = vadd.f32 %v2944, %v2992
  %v2994 = vpop.f32.mrb[0].mxu0
  %2995 = vdwg.mxu0
  %v2996 = vld [vmem:[#allocation2 + $0x1] sm:$0xf]
  %v2997 = vld [vmem:[#allocation2 + $0x19] sm:$0xf]
  %v2998 = vld [vmem:[#allocation2 + $0x31] sm:$0xf]
  %v2999 = vld [vmem:[#allocation2 + $0x49] sm:$0xf]
  %v3000 = vld [vmem:[#allocation2 + $0x1e1] sm:$0xf]
  %v3001 = vld [vmem:[#allocation2 + $0x1f9] sm:$0xf]
  %v3002 = vld [vmem:[#allocation2 + $0x211] sm:$0xf]
  %v3003 = vld [vmem:[#allocation2 + $0x229] sm:$0xf]
  %v3004 = vld [vmem:[#allocation2 + $0x6] sm:$0xf]
  %v3005 = vld [vmem:[#allocation2 + $0x1e] sm:$0xf]
  %v3006 = vld [vmem:[#allocation2 + $0x36] sm:$0xf]
  %v3007 = vld [vmem:[#allocation2 + $0x4e] sm:$0xf]
  %v3008 = vld [vmem:[#allocation2 + $0x1e6] sm:$0xf]
  %v3009 = vld [vmem:[#allocation2 + $0x1fe] sm:$0xf]
  %v3010 = vld [vmem:[#allocation2 + $0x216] sm:$0xf]
  %v3011 = vld [vmem:[#allocation2 + $0x22e] sm:$0xf]
  %v3012 = vld [vmem:[%s1181 + $0x1] sm:$0xf]
  %v3013 = vld [vmem:[%s1181 + $0x19] sm:$0xf]
  %v3014 = vld [vmem:[%s1181 + $0x31] sm:$0xf]
  %v3015 = vld [vmem:[%s1181 + $0x49] sm:$0xf]
  %v3016 = vld [vmem:[%s1181 + $0x1e1] sm:$0xf]
  %v3017 = vld [vmem:[%s1181 + $0x1f9] sm:$0xf]
  %v3018 = vld [vmem:[%s1181 + $0x211] sm:$0xf]
  %v3019 = vld [vmem:[%s1181 + $0x229] sm:$0xf]
  %v3020 = vld [vmem:[%s1181 + $0x6] sm:$0xf]
  %v3021 = vld [vmem:[%s1181 + $0x1e] sm:$0xf]
  %v3022 = vld [vmem:[%s1181 + $0x36] sm:$0xf]
  %v3023 = vld [vmem:[%s1181 + $0x4e] sm:$0xf]
  %v3024 = vld [vmem:[%s1181 + $0x1e6] sm:$0xf]
  %v3025 = vld [vmem:[%s1181 + $0x1fe] sm:$0xf]
  %v3026 = vld [vmem:[%s1181 + $0x216] sm:$0xf]
  %v3027 = vld [vmem:[%s1181 + $0x22e] sm:$0xf]
  %v3028 = vld [vmem:[%s1214 + $0x1] sm:$0xf]
  %v3029 = vld [vmem:[%s1214 + $0x19] sm:$0xf]
  %v3030 = vld [vmem:[%s1214 + $0x31] sm:$0xf]
  %v3031 = vld [vmem:[%s1214 + $0x49] sm:$0xf]
  %v3032 = vld [vmem:[%s1214 + $0x1e1] sm:$0xf]
  %v3033 = vld [vmem:[%s1214 + $0x1f9] sm:$0xf]
  %v3034 = vld [vmem:[%s1214 + $0x211] sm:$0xf]
  %v3035 = vld [vmem:[%s1214 + $0x229] sm:$0xf]
  %v3036 = vld [vmem:[%s1214 + $0x6] sm:$0xf]
  %v3037 = vld [vmem:[%s1214 + $0x1e] sm:$0xf]
  %v3038 = vld [vmem:[%s1214 + $0x36] sm:$0xf]
  %v3039 = vld [vmem:[%s1214 + $0x4e] sm:$0xf]
  %v3040 = vld [vmem:[%s1214 + $0x1e6] sm:$0xf]
  %v3041 = vld [vmem:[%s1214 + $0x1fe] sm:$0xf]
  %v3042 = vld [vmem:[%s1214 + $0x216] sm:$0xf]
  %v3043 = vld [vmem:[%s1214 + $0x22e] sm:$0xf]
  %v3044 = vld [vmem:[%s1247 + $0x1] sm:$0xf]
  %v3045 = vld [vmem:[%s1247 + $0x19] sm:$0xf]
  %v3046 = vld [vmem:[%s1247 + $0x31] sm:$0xf]
  %v3047 = vld [vmem:[%s1247 + $0x49] sm:$0xf]
  %v3048 = vld [vmem:[%s1247 + $0x1e1] sm:$0xf]
  %v3049 = vld [vmem:[%s1247 + $0x1f9] sm:$0xf]
  %v3050 = vld [vmem:[%s1247 + $0x211] sm:$0xf]
  %v3051 = vld [vmem:[%s1247 + $0x229] sm:$0xf]
  %v3052 = vld [vmem:[%s1247 + $0x6] sm:$0xf]
  %v3053 = vld [vmem:[%s1247 + $0x1e] sm:$0xf]
  %v3054 = vld [vmem:[%s1247 + $0x36] sm:$0xf]
  %v3055 = vld [vmem:[%s1247 + $0x4e] sm:$0xf]
  %v3056 = vld [vmem:[%s1247 + $0x1e6] sm:$0xf]
  %v3057 = vld [vmem:[%s1247 + $0x1fe] sm:$0xf]
  %v3058 = vld [vmem:[%s1247 + $0x216] sm:$0xf]
  %v3059 = vld [vmem:[%s1247 + $0x22e] sm:$0xf]
  %3068 = vrot.lane.b32.xlu0 %v3004, 64
  %v3069 = vpop.permute.xlu0 %3068
  %3070 = vrot.lane.b32.xlu0 %v3005, 64
  %v3071 = vpop.permute.xlu0 %3070
  %3072 = vrot.lane.b32.xlu0 %v3006, 64
  %v3073 = vpop.permute.xlu0 %3072
  %3074 = vrot.lane.b32.xlu0 %v3007, 64
  %v3075 = vpop.permute.xlu0 %3074
  %3076 = vrot.lane.b32.xlu0 %v3008, 64
  %v3077 = vpop.permute.xlu0 %3076
  %3078 = vrot.lane.b32.xlu0 %v3009, 64
  %v3079 = vpop.permute.xlu0 %3078
  %3080 = vrot.lane.b32.xlu0 %v3010, 64
  %v3081 = vpop.permute.xlu0 %3080
  %3082 = vrot.lane.b32.xlu0 %v3011, 64
  %v3083 = vpop.permute.xlu0 %3082
  %3100 = vrot.lane.b32.xlu0 %v3020, 64
  %v3101 = vpop.permute.xlu0 %3100
  %3102 = vrot.lane.b32.xlu0 %v3021, 64
  %v3103 = vpop.permute.xlu0 %3102
  %3104 = vrot.lane.b32.xlu0 %v3022, 64
  %v3105 = vpop.permute.xlu0 %3104
  %3106 = vrot.lane.b32.xlu0 %v3023, 64
  %v3107 = vpop.permute.xlu0 %3106
  %3108 = vrot.lane.b32.xlu0 %v3024, 64
  %v3109 = vpop.permute.xlu0 %3108
  %3110 = vrot.lane.b32.xlu0 %v3025, 64
  %v3111 = vpop.permute.xlu0 %3110
  %3112 = vrot.lane.b32.xlu0 %v3026, 64
  %v3113 = vpop.permute.xlu0 %3112
  %3114 = vrot.lane.b32.xlu0 %v3027, 64
  %v3115 = vpop.permute.xlu0 %3114
  %3132 = vrot.lane.b32.xlu0 %v3036, 64
  %v3133 = vpop.permute.xlu0 %3132
  %3134 = vrot.lane.b32.xlu0 %v3037, 64
  %v3135 = vpop.permute.xlu0 %3134
  %3136 = vrot.lane.b32.xlu0 %v3038, 64
  %v3137 = vpop.permute.xlu0 %3136
  %3138 = vrot.lane.b32.xlu0 %v3039, 64
  %v3139 = vpop.permute.xlu0 %3138
  %3140 = vrot.lane.b32.xlu0 %v3040, 64
  %v3141 = vpop.permute.xlu0 %3140
  %3142 = vrot.lane.b32.xlu0 %v3041, 64
  %v3143 = vpop.permute.xlu0 %3142
  %3144 = vrot.lane.b32.xlu0 %v3042, 64
  %v3145 = vpop.permute.xlu0 %3144
  %3146 = vrot.lane.b32.xlu0 %v3043, 64
  %v3147 = vpop.permute.xlu0 %3146
  %3164 = vrot.lane.b32.xlu0 %v3052, 64
  %v3165 = vpop.permute.xlu0 %3164
  %3166 = vrot.lane.b32.xlu0 %v3053, 64
  %v3167 = vpop.permute.xlu0 %3166
  %3168 = vrot.lane.b32.xlu0 %v3054, 64
  %v3169 = vpop.permute.xlu0 %3168
  %3170 = vrot.lane.b32.xlu0 %v3055, 64
  %v3171 = vpop.permute.xlu0 %3170
  %3172 = vrot.lane.b32.xlu0 %v3056, 64
  %v3173 = vpop.permute.xlu0 %3172
  %3174 = vrot.lane.b32.xlu0 %v3057, 64
  %v3175 = vpop.permute.xlu0 %3174
  %3176 = vrot.lane.b32.xlu0 %v3058, 64
  %v3177 = vpop.permute.xlu0 %3176
  %3178 = vrot.lane.b32.xlu0 %v3059, 64
  %v3179 = vpop.permute.xlu0 %3178
  %v3188 = vsel %vm1026, %v2996, %v3069
  %v3189 = vsel %vm1026, %v2997, %v3071
  %v3190 = vsel %vm1026, %v2998, %v3073
  %v3191 = vsel %vm1026, %v2999, %v3075
  %v3192 = vsel %vm1026, %v3000, %v3077
  %v3193 = vsel %vm1026, %v3001, %v3079
  %v3194 = vsel %vm1026, %v3002, %v3081
  %v3195 = vsel %vm1026, %v3003, %v3083
  %v3196 = vsel %vm1026, %v3012, %v3101
  %v3197 = vsel %vm1026, %v3013, %v3103
  %v3198 = vsel %vm1026, %v3014, %v3105
  %v3199 = vsel %vm1026, %v3015, %v3107
  %v3200 = vsel %vm1026, %v3016, %v3109
  %v3201 = vsel %vm1026, %v3017, %v3111
  %v3202 = vsel %vm1026, %v3018, %v3113
  %v3203 = vsel %vm1026, %v3019, %v3115
  %v3204 = vsel %vm1026, %v3028, %v3133
  %v3205 = vsel %vm1026, %v3029, %v3135
  %v3206 = vsel %vm1026, %v3030, %v3137
  %v3207 = vsel %vm1026, %v3031, %v3139
  %v3208 = vsel %vm1026, %v3032, %v3141
  %v3209 = vsel %vm1026, %v3033, %v3143
  %v3210 = vsel %vm1026, %v3034, %v3145
  %v3211 = vsel %vm1026, %v3035, %v3147
  %v3212 = vsel %vm1026, %v3044, %v3165
  %v3213 = vsel %vm1026, %v3045, %v3167
  %v3214 = vsel %vm1026, %v3046, %v3169
  %v3215 = vsel %vm1026, %v3047, %v3171
  %v3216 = vsel %vm1026, %v3048, %v3173
  %v3217 = vsel %vm1026, %v3049, %v3175
  %v3218 = vsel %vm1026, %v3050, %v3177
  %v3219 = vsel %vm1026, %v3051, %v3179
  %v3220 = vpack.c.bf16 %v3188, %v3188
  %v3221 = vpack.c.bf16 %v3196, %v3196
  %v3222 = vpack.c.bf16 %v3204, %v3204
  %v3223 = vpack.c.bf16 %v3212, %v3212
  %v3224 = vpack.c.bf16 %v3189, %v3189
  %v3225 = vpack.c.bf16 %v3197, %v3197
  %v3226 = vpack.c.bf16 %v3205, %v3205
  %v3227 = vpack.c.bf16 %v3213, %v3213
  %v3228 = vpack.c.bf16 %v3190, %v3190
  %v3229 = vpack.c.bf16 %v3198, %v3198
  %v3230 = vpack.c.bf16 %v3206, %v3206
  %v3231 = vpack.c.bf16 %v3214, %v3214
  %v3232 = vpack.c.bf16 %v3191, %v3191
  %v3233 = vpack.c.bf16 %v3199, %v3199
  %v3234 = vpack.c.bf16 %v3207, %v3207
  %v3235 = vpack.c.bf16 %v3215, %v3215
  %v3236 = vpack.c.bf16 %v3192, %v3192
  %v3237 = vpack.c.bf16 %v3200, %v3200
  %v3238 = vpack.c.bf16 %v3208, %v3208
  %v3239 = vpack.c.bf16 %v3216, %v3216
  %v3240 = vpack.c.bf16 %v3193, %v3193
  %v3241 = vpack.c.bf16 %v3201, %v3201
  %v3242 = vpack.c.bf16 %v3209, %v3209
  %v3243 = vpack.c.bf16 %v3217, %v3217
  %v3244 = vpack.c.bf16 %v3194, %v3194
  %v3245 = vpack.c.bf16 %v3202, %v3202
  %v3246 = vpack.c.bf16 %v3210, %v3210
  %v3247 = vpack.c.bf16 %v3218, %v3218
  %v3248 = vpack.c.bf16 %v3195, %v3195
  %v3249 = vpack.c.bf16 %v3203, %v3203
  %v3250 = vpack.c.bf16 %v3211, %v3211
  %v3251 = vpack.c.bf16 %v3219, %v3219
  %v3284 = vcombine.low %v1729, %v3220
  %v3285 = vcombine.low %v1731, %v3221
  %v3287 = vunpack.c.l.s4 1983009808
  %v3288 = vunpack.c.0.s8 %v3287
  %v3289 = vlaneseq
  %v3290 = vshrl.u32 %v3289, 7
  %v3291 = vsub.s32 %v3288, %v3290
  %v3292 = vrot.slane %v3284, %v3291
  %v3294 = vunpack.c.l.s4 1983009808
  %v3295 = vunpack.c.0.s8 %v3294
  %v3296 = vlaneseq
  %v3297 = vshrl.u32 %v3296, 7
  %v3298 = vsub.s32 %v3295, %v3297
  %v3299 = vrot.slane %v3285, %v3298
  %v3300 = vcombine.low %v3292, %v3299
  %v3301 = vcombine.low %v1733, %v3222
  %v3302 = vcombine.low %v1735, %v3223
  %v3304 = vunpack.c.l.s4 1983009808
  %v3305 = vunpack.c.0.s8 %v3304
  %v3306 = vlaneseq
  %v3307 = vshrl.u32 %v3306, 7
  %v3308 = vsub.s32 %v3305, %v3307
  %v3309 = vrot.slane %v3301, %v3308
  %v3311 = vunpack.c.l.s4 1983009808
  %v3312 = vunpack.c.0.s8 %v3311
  %v3313 = vlaneseq
  %v3314 = vshrl.u32 %v3313, 7
  %v3315 = vsub.s32 %v3312, %v3314
  %v3316 = vrot.slane %v3302, %v3315
  %v3317 = vcombine.low %v3309, %v3316
  %v3318 = vcombine.low %v1737, %v3224
  %v3319 = vcombine.low %v1739, %v3225
  %v3321 = vunpack.c.l.s4 1983009808
  %v3322 = vunpack.c.0.s8 %v3321
  %v3323 = vlaneseq
  %v3324 = vshrl.u32 %v3323, 7
  %v3325 = vsub.s32 %v3322, %v3324
  %v3326 = vrot.slane %v3318, %v3325
  %v3328 = vunpack.c.l.s4 1983009808
  %v3329 = vunpack.c.0.s8 %v3328
  %v3330 = vlaneseq
  %v3331 = vshrl.u32 %v3330, 7
  %v3332 = vsub.s32 %v3329, %v3331
  %v3333 = vrot.slane %v3319, %v3332
  %v3334 = vcombine.low %v3326, %v3333
  %v3335 = vcombine.low %v1741, %v3226
  %v3336 = vcombine.low %v1743, %v3227
  %v3338 = vunpack.c.l.s4 1983009808
  %v3339 = vunpack.c.0.s8 %v3338
  %v3340 = vlaneseq
  %v3341 = vshrl.u32 %v3340, 7
  %v3342 = vsub.s32 %v3339, %v3341
  %v3343 = vrot.slane %v3335, %v3342
  %v3345 = vunpack.c.l.s4 1983009808
  %v3346 = vunpack.c.0.s8 %v3345
  %v3347 = vlaneseq
  %v3348 = vshrl.u32 %v3347, 7
  %v3349 = vsub.s32 %v3346, %v3348
  %v3350 = vrot.slane %v3336, %v3349
  %v3351 = vcombine.low %v3343, %v3350
  %v3352 = vcombine.low %v1745, %v3228
  %v3353 = vcombine.low %v1747, %v3229
  %v3355 = vunpack.c.l.s4 1983009808
  %v3356 = vunpack.c.0.s8 %v3355
  %v3357 = vlaneseq
  %v3358 = vshrl.u32 %v3357, 7
  %v3359 = vsub.s32 %v3356, %v3358
  %v3360 = vrot.slane %v3352, %v3359
  %v3362 = vunpack.c.l.s4 1983009808
  %v3363 = vunpack.c.0.s8 %v3362
  %v3364 = vlaneseq
  %v3365 = vshrl.u32 %v3364, 7
  %v3366 = vsub.s32 %v3363, %v3365
  %v3367 = vrot.slane %v3353, %v3366
  %v3368 = vcombine.low %v3360, %v3367
  %v3369 = vcombine.low %v1749, %v3230
  %v3370 = vcombine.low %v1751, %v3231
  %v3372 = vunpack.c.l.s4 1983009808
  %v3373 = vunpack.c.0.s8 %v3372
  %v3374 = vlaneseq
  %v3375 = vshrl.u32 %v3374, 7
  %v3376 = vsub.s32 %v3373, %v3375
  %v3377 = vrot.slane %v3369, %v3376
  %v3379 = vunpack.c.l.s4 1983009808
  %v3380 = vunpack.c.0.s8 %v3379
  %v3381 = vlaneseq
  %v3382 = vshrl.u32 %v3381, 7
  %v3383 = vsub.s32 %v3380, %v3382
  %v3384 = vrot.slane %v3370, %v3383
  %v3385 = vcombine.low %v3377, %v3384
  %v3386 = vcombine.low %v1753, %v3232
  %v3387 = vcombine.low %v1755, %v3233
  %v3389 = vunpack.c.l.s4 1983009808
  %v3390 = vunpack.c.0.s8 %v3389
  %v3391 = vlaneseq
  %v3392 = vshrl.u32 %v3391, 7
  %v3393 = vsub.s32 %v3390, %v3392
  %v3394 = vrot.slane %v3386, %v3393
  %v3396 = vunpack.c.l.s4 1983009808
  %v3397 = vunpack.c.0.s8 %v3396
  %v3398 = vlaneseq
  %v3399 = vshrl.u32 %v3398, 7
  %v3400 = vsub.s32 %v3397, %v3399
  %v3401 = vrot.slane %v3387, %v3400
  %v3402 = vcombine.low %v3394, %v3401
  %v3403 = vcombine.low %v1757, %v3234
  %v3404 = vcombine.low %v1759, %v3235
  %v3406 = vunpack.c.l.s4 1983009808
  %v3407 = vunpack.c.0.s8 %v3406
  %v3408 = vlaneseq
  %v3409 = vshrl.u32 %v3408, 7
  %v3410 = vsub.s32 %v3407, %v3409
  %v3411 = vrot.slane %v3403, %v3410
  %v3413 = vunpack.c.l.s4 1983009808
  %v3414 = vunpack.c.0.s8 %v3413
  %v3415 = vlaneseq
  %v3416 = vshrl.u32 %v3415, 7
  %v3417 = vsub.s32 %v3414, %v3416
  %v3418 = vrot.slane %v3404, %v3417
  %v3419 = vcombine.low %v3411, %v3418
  %v3420 = vcombine.low %v1761, %v3236
  %v3421 = vcombine.low %v1763, %v3237
  %v3423 = vunpack.c.l.s4 1983009808
  %v3424 = vunpack.c.0.s8 %v3423
  %v3425 = vlaneseq
  %v3426 = vshrl.u32 %v3425, 7
  %v3427 = vsub.s32 %v3424, %v3426
  %v3428 = vrot.slane %v3420, %v3427
  %v3430 = vunpack.c.l.s4 1983009808
  %v3431 = vunpack.c.0.s8 %v3430
  %v3432 = vlaneseq
  %v3433 = vshrl.u32 %v3432, 7
  %v3434 = vsub.s32 %v3431, %v3433
  %v3435 = vrot.slane %v3421, %v3434
  %v3436 = vcombine.low %v3428, %v3435
  %v3437 = vcombine.low %v1765, %v3238
  %v3438 = vcombine.low %v1767, %v3239
  %v3440 = vunpack.c.l.s4 1983009808
  %v3441 = vunpack.c.0.s8 %v3440
  %v3442 = vlaneseq
  %v3443 = vshrl.u32 %v3442, 7
  %v3444 = vsub.s32 %v3441, %v3443
  %v3445 = vrot.slane %v3437, %v3444
  %v3447 = vunpack.c.l.s4 1983009808
  %v3448 = vunpack.c.0.s8 %v3447
  %v3449 = vlaneseq
  %v3450 = vshrl.u32 %v3449, 7
  %v3451 = vsub.s32 %v3448, %v3450
  %v3452 = vrot.slane %v3438, %v3451
  %v3453 = vcombine.low %v3445, %v3452
  %v3454 = vcombine.low %v1769, %v3240
  %v3455 = vcombine.low %v1771, %v3241
  %v3457 = vunpack.c.l.s4 1983009808
  %v3458 = vunpack.c.0.s8 %v3457
  %v3459 = vlaneseq
  %v3460 = vshrl.u32 %v3459, 7
  %v3461 = vsub.s32 %v3458, %v3460
  %v3462 = vrot.slane %v3454, %v3461
  %v3464 = vunpack.c.l.s4 1983009808
  %v3465 = vunpack.c.0.s8 %v3464
  %v3466 = vlaneseq
  %v3467 = vshrl.u32 %v3466, 7
  %v3468 = vsub.s32 %v3465, %v3467
  %v3469 = vrot.slane %v3455, %v3468
  %v3470 = vcombine.low %v3462, %v3469
  %v3471 = vcombine.low %v1773, %v3242
  %v3472 = vcombine.low %v1775, %v3243
  %v3474 = vunpack.c.l.s4 1983009808
  %v3475 = vunpack.c.0.s8 %v3474
  %v3476 = vlaneseq
  %v3477 = vshrl.u32 %v3476, 7
  %v3478 = vsub.s32 %v3475, %v3477
  %v3479 = vrot.slane %v3471, %v3478
  %v3481 = vunpack.c.l.s4 1983009808
  %v3482 = vunpack.c.0.s8 %v3481
  %v3483 = vlaneseq
  %v3484 = vshrl.u32 %v3483, 7
  %v3485 = vsub.s32 %v3482, %v3484
  %v3486 = vrot.slane %v3472, %v3485
  %v3487 = vcombine.low %v3479, %v3486
  %v3488 = vcombine.low %v1777, %v3244
  %v3489 = vcombine.low %v1779, %v3245
  %v3491 = vunpack.c.l.s4 1983009808
  %v3492 = vunpack.c.0.s8 %v3491
  %v3493 = vlaneseq
  %v3494 = vshrl.u32 %v3493, 7
  %v3495 = vsub.s32 %v3492, %v3494
  %v3496 = vrot.slane %v3488, %v3495
  %v3498 = vunpack.c.l.s4 1983009808
  %v3499 = vunpack.c.0.s8 %v3498
  %v3500 = vlaneseq
  %v3501 = vshrl.u32 %v3500, 7
  %v3502 = vsub.s32 %v3499, %v3501
  %v3503 = vrot.slane %v3489, %v3502
  %v3504 = vcombine.low %v3496, %v3503
  %v3505 = vcombine.low %v1781, %v3246
  %v3506 = vcombine.low %v1783, %v3247
  %v3508 = vunpack.c.l.s4 1983009808
  %v3509 = vunpack.c.0.s8 %v3508
  %v3510 = vlaneseq
  %v3511 = vshrl.u32 %v3510, 7
  %v3512 = vsub.s32 %v3509, %v3511
  %v3513 = vrot.slane %v3505, %v3512
  %v3515 = vunpack.c.l.s4 1983009808
  %v3516 = vunpack.c.0.s8 %v3515
  %v3517 = vlaneseq
  %v3518 = vshrl.u32 %v3517, 7
  %v3519 = vsub.s32 %v3516, %v3518
  %v3520 = vrot.slane %v3506, %v3519
  %v3521 = vcombine.low %v3513, %v3520
  %v3522 = vcombine.low %v1785, %v3248
  %v3523 = vcombine.low %v1787, %v3249
  %v3525 = vunpack.c.l.s4 1983009808
  %v3526 = vunpack.c.0.s8 %v3525
  %v3527 = vlaneseq
  %v3528 = vshrl.u32 %v3527, 7
  %v3529 = vsub.s32 %v3526, %v3528
  %v3530 = vrot.slane %v3522, %v3529
  %v3532 = vunpack.c.l.s4 1983009808
  %v3533 = vunpack.c.0.s8 %v3532
  %v3534 = vlaneseq
  %v3535 = vshrl.u32 %v3534, 7
  %v3536 = vsub.s32 %v3533, %v3535
  %v3537 = vrot.slane %v3523, %v3536
  %v3538 = vcombine.low %v3530, %v3537
  %v3539 = vcombine.low %v1789, %v3250
  %v3540 = vcombine.low %v1791, %v3251
  %v3542 = vunpack.c.l.s4 1983009808
  %v3543 = vunpack.c.0.s8 %v3542
  %v3544 = vlaneseq
  %v3545 = vshrl.u32 %v3544, 7
  %v3546 = vsub.s32 %v3543, %v3545
  %v3547 = vrot.slane %v3539, %v3546
  %v3549 = vunpack.c.l.s4 1983009808
  %v3550 = vunpack.c.0.s8 %v3549
  %v3551 = vlaneseq
  %v3552 = vshrl.u32 %v3551, 7
  %v3553 = vsub.s32 %v3550, %v3552
  %v3554 = vrot.slane %v3540, %v3553
  %v3555 = vcombine.low %v3547, %v3554
  %v3556 = vcombine.low %v3300, %v3334
  %v3557 = vcombine.high %v3300, %v3334
  %v3558 = vcombine.low %v3368, %v3402
  %v3559 = vcombine.high %v3368, %v3402
  %v3561 = vunpack.c.l.s4 1983009808
  %v3562 = vunpack.c.0.s8 %v3561
  %v3563 = vlaneseq
  %v3564 = vshrl.u32 %v3563, 7
  %v3565 = vsub.s32 %v3562, %v3564
  %v3566 = vrot.slane %v3556, %v3565
  %v3568 = vunpack.c.l.s4 1983009808
  %v3569 = vunpack.c.0.s8 %v3568
  %v3570 = vlaneseq
  %v3571 = vshrl.u32 %v3570, 7
  %v3572 = vsub.s32 %v3569, %v3571
  %v3573 = vrot.slane %v3557, %v3572
  %v3575 = vunpack.c.l.s4 1983009808
  %v3576 = vunpack.c.0.s8 %v3575
  %v3577 = vlaneseq
  %v3578 = vshrl.u32 %v3577, 7
  %v3579 = vsub.s32 %v3576, %v3578
  %v3580 = vrot.slane %v3558, %v3579
  %v3582 = vunpack.c.l.s4 1983009808
  %v3583 = vunpack.c.0.s8 %v3582
  %v3584 = vlaneseq
  %v3585 = vshrl.u32 %v3584, 7
  %v3586 = vsub.s32 %v3583, %v3585
  %v3587 = vrot.slane %v3559, %v3586
  %v3588 = vcombine.low %v3566, %v3580
  %v3589 = vcombine.high %v3566, %v3580
  %v3590 = vcombine.low %v3573, %v3587
  %v3591 = vcombine.high %v3573, %v3587
  %v3592 = vcombine.low %v3317, %v3351
  %v3593 = vcombine.high %v3317, %v3351
  %v3594 = vcombine.low %v3385, %v3419
  %v3595 = vcombine.high %v3385, %v3419
  %v3597 = vunpack.c.l.s4 1983009808
  %v3598 = vunpack.c.0.s8 %v3597
  %v3599 = vlaneseq
  %v3600 = vshrl.u32 %v3599, 7
  %v3601 = vsub.s32 %v3598, %v3600
  %v3602 = vrot.slane %v3592, %v3601
  %v3604 = vunpack.c.l.s4 1983009808
  %v3605 = vunpack.c.0.s8 %v3604
  %v3606 = vlaneseq
  %v3607 = vshrl.u32 %v3606, 7
  %v3608 = vsub.s32 %v3605, %v3607
  %v3609 = vrot.slane %v3593, %v3608
  %v3611 = vunpack.c.l.s4 1983009808
  %v3612 = vunpack.c.0.s8 %v3611
  %v3613 = vlaneseq
  %v3614 = vshrl.u32 %v3613, 7
  %v3615 = vsub.s32 %v3612, %v3614
  %v3616 = vrot.slane %v3594, %v3615
  %v3618 = vunpack.c.l.s4 1983009808
  %v3619 = vunpack.c.0.s8 %v3618
  %v3620 = vlaneseq
  %v3621 = vshrl.u32 %v3620, 7
  %v3622 = vsub.s32 %v3619, %v3621
  %v3623 = vrot.slane %v3595, %v3622
  %v3624 = vcombine.low %v3602, %v3616
  %v3625 = vcombine.high %v3602, %v3616
  %v3626 = vcombine.low %v3609, %v3623
  %v3627 = vcombine.high %v3609, %v3623
  %v3628 = vcombine.low %v3436, %v3470
  %v3629 = vcombine.high %v3436, %v3470
  %v3630 = vcombine.low %v3504, %v3538
  %v3631 = vcombine.high %v3504, %v3538
  %v3633 = vunpack.c.l.s4 1983009808
  %v3634 = vunpack.c.0.s8 %v3633
  %v3635 = vlaneseq
  %v3636 = vshrl.u32 %v3635, 7
  %v3637 = vsub.s32 %v3634, %v3636
  %v3638 = vrot.slane %v3628, %v3637
  %v3640 = vunpack.c.l.s4 1983009808
  %v3641 = vunpack.c.0.s8 %v3640
  %v3642 = vlaneseq
  %v3643 = vshrl.u32 %v3642, 7
  %v3644 = vsub.s32 %v3641, %v3643
  %v3645 = vrot.slane %v3629, %v3644
  %v3647 = vunpack.c.l.s4 1983009808
  %v3648 = vunpack.c.0.s8 %v3647
  %v3649 = vlaneseq
  %v3650 = vshrl.u32 %v3649, 7
  %v3651 = vsub.s32 %v3648, %v3650
  %v3652 = vrot.slane %v3630, %v3651
  %v3654 = vunpack.c.l.s4 1983009808
  %v3655 = vunpack.c.0.s8 %v3654
  %v3656 = vlaneseq
  %v3657 = vshrl.u32 %v3656, 7
  %v3658 = vsub.s32 %v3655, %v3657
  %v3659 = vrot.slane %v3631, %v3658
  %v3660 = vcombine.low %v3638, %v3652
  %v3661 = vcombine.high %v3638, %v3652
  %v3662 = vcombine.low %v3645, %v3659
  %v3663 = vcombine.high %v3645, %v3659
  %v3664 = vcombine.low %v3453, %v3487
  %v3665 = vcombine.high %v3453, %v3487
  %v3666 = vcombine.low %v3521, %v3555
  %v3667 = vcombine.high %v3521, %v3555
  %v3669 = vunpack.c.l.s4 1983009808
  %v3670 = vunpack.c.0.s8 %v3669
  %v3671 = vlaneseq
  %v3672 = vshrl.u32 %v3671, 7
  %v3673 = vsub.s32 %v3670, %v3672
  %v3674 = vrot.slane %v3664, %v3673
  %v3676 = vunpack.c.l.s4 1983009808
  %v3677 = vunpack.c.0.s8 %v3676
  %v3678 = vlaneseq
  %v3679 = vshrl.u32 %v3678, 7
  %v3680 = vsub.s32 %v3677, %v3679
  %v3681 = vrot.slane %v3665, %v3680
  %v3683 = vunpack.c.l.s4 1983009808
  %v3684 = vunpack.c.0.s8 %v3683
  %v3685 = vlaneseq
  %v3686 = vshrl.u32 %v3685, 7
  %v3687 = vsub.s32 %v3684, %v3686
  %v3688 = vrot.slane %v3666, %v3687
  %v3690 = vunpack.c.l.s4 1983009808
  %v3691 = vunpack.c.0.s8 %v3690
  %v3692 = vlaneseq
  %v3693 = vshrl.u32 %v3692, 7
  %v3694 = vsub.s32 %v3691, %v3693
  %v3695 = vrot.slane %v3667, %v3694
  %v3696 = vcombine.low %v3674, %v3688
  %v3697 = vcombine.high %v3674, %v3688
  %v3698 = vcombine.low %v3681, %v3695
  %v3699 = vcombine.high %v3681, %v3695
  %3716 = vmatprep.subr.bf16.mxu0 0
  %3717 = vmatpush1.bf16.msra.mxu0 %v2672
  %3718 = vmatprep.subr.bf16.mxu0 0
  %3719 = vmatpush1.bf16.msra.mxu0 %v2673
  %3720 = vmatprep.subr.bf16.mxu0 0
  %3721 = vmatpush1.bf16.msra.mxu0 %v2674
  %3722 = vmatprep.subr.bf16.mxu0 0
  %3723 = vmatpush1.bf16.msra.mxu0 %v2675
  %3724 = vmatprep.subr.bf16.mxu0 0
  %3725 = vmatpush1.bf16.msra.mxu0 %v2676
  %3726 = vmatprep.subr.bf16.mxu0 0
  %3727 = vmatpush1.bf16.msra.mxu0 %v2677
  %3728 = vmatprep.subr.bf16.mxu0 0
  %3729 = vmatpush1.bf16.msra.mxu0 %v2678
  %3730 = vmatprep.subr.bf16.mxu0 0
  %3731 = vmatpush1.bf16.msra.mxu0 %v2679
  %3732 = vmatprep.subr.bf16.mxu0 0
  %3733 = vmatpush1.bf16.msra.mxu0 %v2680
  %3734 = vmatprep.subr.bf16.mxu0 0
  %3735 = vmatpush1.bf16.msra.mxu0 %v2681
  %3736 = vmatprep.subr.bf16.mxu0 0
  %3737 = vmatpush1.bf16.msra.mxu0 %v2682
  %3738 = vmatprep.subr.bf16.mxu0 0
  %3739 = vmatpush1.bf16.msra.mxu0 %v2683
  %3740 = vmatprep.subr.bf16.mxu0 0
  %3741 = vmatpush1.bf16.msra.mxu0 %v2684
  %3742 = vmatprep.subr.bf16.mxu0 0
  %3743 = vmatpush1.bf16.msra.mxu0 %v2685
  %3744 = vmatprep.subr.bf16.mxu0 0
  %3745 = vmatpush1.bf16.msra.mxu0 %v2686
  %3746 = vmatprep.subr.bf16.mxu0 0
  %3747 = vmatpush1.bf16.msra.mxu0 %v2687
  %3748 = vmatprep.mubr.bf16.mxu0 %v3589
  %3749 = vmatmul.mubr.bf16.gmra.mrb[0].mxu0 %v3588
  %v3750 = vpop.f32.mrb[0].mxu0
  %v3751 = vadd.f32 0.0, %v3750
  %v3752 = vpop.f32.mrb[0].mxu0
  %v3753 = vpop.f32.mrb[0].mxu0
  %v3754 = vadd.f32 0.0, %v3753
  %v3755 = vpop.f32.mrb[0].mxu0
  %3756 = vmatprep.mubr.bf16.mxu0 %v3661
  %3757 = vmatmul.mubr.bf16.gmra.mrb[0].mxu0 %v3660
  %v3758 = vpop.f32.mrb[0].mxu0
  %v3759 = vadd.f32 0.0, %v3758
  %v3760 = vpop.f32.mrb[0].mxu0
  %v3761 = vpop.f32.mrb[0].mxu0
  %v3762 = vadd.f32 0.0, %v3761
  %v3763 = vpop.f32.mrb[0].mxu0
  %3764 = vdwg.mxu0
  %3765 = vmatprep.subr.bf16.mxu0 0
  %3766 = vmatpush1.bf16.msra.mxu0 %v2688
  %3767 = vmatprep.subr.bf16.mxu0 0
  %3768 = vmatpush1.bf16.msra.mxu0 %v2689
  %3769 = vmatprep.subr.bf16.mxu0 0
  %3770 = vmatpush1.bf16.msra.mxu0 %v2690
  %3771 = vmatprep.subr.bf16.mxu0 0
  %3772 = vmatpush1.bf16.msra.mxu0 %v2691
  %3773 = vmatprep.subr.bf16.mxu0 0
  %3774 = vmatpush1.bf16.msra.mxu0 %v2692
  %3775 = vmatprep.subr.bf16.mxu0 0
  %3776 = vmatpush1.bf16.msra.mxu0 %v2693
  %3777 = vmatprep.subr.bf16.mxu0 0
  %3778 = vmatpush1.bf16.msra.mxu0 %v2694
  %3779 = vmatprep.subr.bf16.mxu0 0
  %3780 = vmatpush1.bf16.msra.mxu0 %v2695
  %3781 = vmatprep.subr.bf16.mxu0 0
  %3782 = vmatpush1.bf16.msra.mxu0 %v2696
  %3783 = vmatprep.subr.bf16.mxu0 0
  %3784 = vmatpush1.bf16.msra.mxu0 %v2697
  %3785 = vmatprep.subr.bf16.mxu0 0
  %3786 = vmatpush1.bf16.msra.mxu0 %v2698
  %3787 = vmatprep.subr.bf16.mxu0 0
  %3788 = vmatpush1.bf16.msra.mxu0 %v2699
  %3789 = vmatprep.subr.bf16.mxu0 0
  %3790 = vmatpush1.bf16.msra.mxu0 %v2700
  %3791 = vmatprep.subr.bf16.mxu0 0
  %3792 = vmatpush1.bf16.msra.mxu0 %v2701
  %3793 = vmatprep.subr.bf16.mxu0 0
  %3794 = vmatpush1.bf16.msra.mxu0 %v2702
  %3795 = vmatprep.subr.bf16.mxu0 0
  %3796 = vmatpush1.bf16.msra.mxu0 %v2703
  %3797 = vmatprep.mubr.bf16.mxu0 %v3591
  %3798 = vmatmul.mubr.bf16.gmra.mrb[0].mxu0 %v3590
  %v3799 = vpop.f32.mrb[0].mxu0
  %v3800 = vadd.f32 %v3751, %v3799
  %v3801 = vpop.f32.mrb[0].mxu0
  %v3802 = vpop.f32.mrb[0].mxu0
  %v3803 = vadd.f32 %v3754, %v3802
  %v3804 = vpop.f32.mrb[0].mxu0
  %3805 = vmatprep.mubr.bf16.mxu0 %v3663
  %3806 = vmatmul.mubr.bf16.gmra.mrb[0].mxu0 %v3662
  %v3807 = vpop.f32.mrb[0].mxu0
  %v3808 = vadd.f32 %v3759, %v3807
  %v3809 = vpop.f32.mrb[0].mxu0
  %v3810 = vpop.f32.mrb[0].mxu0
  %v3811 = vadd.f32 %v3762, %v3810
  %v3812 = vpop.f32.mrb[0].mxu0
  %3813 = vdwg.mxu0
  %3814 = vmatprep.subr.bf16.mxu0 0
  %3815 = vmatpush1.bf16.msra.mxu0 %v2704
  %3816 = vmatprep.subr.bf16.mxu0 0
  %3817 = vmatpush1.bf16.msra.mxu0 %v2705
  %3818 = vmatprep.subr.bf16.mxu0 0
  %3819 = vmatpush1.bf16.msra.mxu0 %v2706
  %3820 = vmatprep.subr.bf16.mxu0 0
  %3821 = vmatpush1.bf16.msra.mxu0 %v2707
  %3822 = vmatprep.subr.bf16.mxu0 0
  %3823 = vmatpush1.bf16.msra.mxu0 %v2708
  %3824 = vmatprep.subr.bf16.mxu0 0
  %3825 = vmatpush1.bf16.msra.mxu0 %v2709
  %3826 = vmatprep.subr.bf16.mxu0 0
  %3827 = vmatpush1.bf16.msra.mxu0 %v2710
  %3828 = vmatprep.subr.bf16.mxu0 0
  %3829 = vmatpush1.bf16.msra.mxu0 %v2711
  %3830 = vmatprep.subr.bf16.mxu0 0
  %3831 = vmatpush1.bf16.msra.mxu0 %v2712
  %3832 = vmatprep.subr.bf16.mxu0 0
  %3833 = vmatpush1.bf16.msra.mxu0 %v2713
  %3834 = vmatprep.subr.bf16.mxu0 0
  %3835 = vmatpush1.bf16.msra.mxu0 %v2714
  %3836 = vmatprep.subr.bf16.mxu0 0
  %3837 = vmatpush1.bf16.msra.mxu0 %v2715
  %3838 = vmatprep.subr.bf16.mxu0 0
  %3839 = vmatpush1.bf16.msra.mxu0 %v2716
  %3840 = vmatprep.subr.bf16.mxu0 0
  %3841 = vmatpush1.bf16.msra.mxu0 %v2717
  %3842 = vmatprep.subr.bf16.mxu0 0
  %3843 = vmatpush1.bf16.msra.mxu0 %v2718
  %3844 = vmatprep.subr.bf16.mxu0 0
  %3845 = vmatpush1.bf16.msra.mxu0 %v2719
  %3846 = vmatprep.mubr.bf16.mxu0 %v3625
  %3847 = vmatmul.mubr.bf16.gmra.mrb[0].mxu0 %v3624
  %v3848 = vpop.f32.mrb[0].mxu0
  %v3849 = vadd.f32 %v3800, %v3848
  %v3850 = vpop.f32.mrb[0].mxu0
  %v3851 = vpop.f32.mrb[0].mxu0
  %v3852 = vadd.f32 %v3803, %v3851
  %v3853 = vpop.f32.mrb[0].mxu0
  %3854 = vmatprep.mubr.bf16.mxu0 %v3697
  %3855 = vmatmul.mubr.bf16.gmra.mrb[0].mxu0 %v3696
  %v3856 = vpop.f32.mrb[0].mxu0
  %v3857 = vadd.f32 %v3808, %v3856
  %v3858 = vpop.f32.mrb[0].mxu0
  %v3859 = vpop.f32.mrb[0].mxu0
  %v3860 = vadd.f32 %v3811, %v3859
  %v3861 = vpop.f32.mrb[0].mxu0
  %3862 = vdwg.mxu0
  %3863 = vmatprep.subr.bf16.mxu0 0
  %3864 = vmatpush1.bf16.msra.mxu0 %v2720
  %3865 = vmatprep.subr.bf16.mxu0 0
  %3866 = vmatpush1.bf16.msra.mxu0 %v2721
  %3867 = vmatprep.subr.bf16.mxu0 0
  %3868 = vmatpush1.bf16.msra.mxu0 %v2722
  %3869 = vmatprep.subr.bf16.mxu0 0
  %3870 = vmatpush1.bf16.msra.mxu0 %v2723
  %3871 = vmatprep.subr.bf16.mxu0 0
  %3872 = vmatpush1.bf16.msra.mxu0 %v2724
  %3873 = vmatprep.subr.bf16.mxu0 0
  %3874 = vmatpush1.bf16.msra.mxu0 %v2725
  %3875 = vmatprep.subr.bf16.mxu0 0
  %3876 = vmatpush1.bf16.msra.mxu0 %v2726
  %3877 = vmatprep.subr.bf16.mxu0 0
  %3878 = vmatpush1.bf16.msra.mxu0 %v2727
  %3879 = vmatprep.subr.bf16.mxu0 0
  %3880 = vmatpush1.bf16.msra.mxu0 %v2728
  %3881 = vmatprep.subr.bf16.mxu0 0
  %3882 = vmatpush1.bf16.msra.mxu0 %v2729
  %3883 = vmatprep.subr.bf16.mxu0 0
  %3884 = vmatpush1.bf16.msra.mxu0 %v2730
  %3885 = vmatprep.subr.bf16.mxu0 0
  %3886 = vmatpush1.bf16.msra.mxu0 %v2731
  %3887 = vmatprep.subr.bf16.mxu0 0
  %3888 = vmatpush1.bf16.msra.mxu0 %v2732
  %3889 = vmatprep.subr.bf16.mxu0 0
  %3890 = vmatpush1.bf16.msra.mxu0 %v2733
  %3891 = vmatprep.subr.bf16.mxu0 0
  %3892 = vmatpush1.bf16.msra.mxu0 %v2734
  %3893 = vmatprep.subr.bf16.mxu0 0
  %3894 = vmatpush1.bf16.msra.mxu0 %v2735
  %3895 = vmatprep.mubr.bf16.mxu0 %v3627
  %3896 = vmatmul.mubr.bf16.gmra.mrb[0].mxu0 %v3626
  %v3897 = vpop.f32.mrb[0].mxu0
  %v3898 = vadd.f32 %v3849, %v3897
  %v3899 = vpop.f32.mrb[0].mxu0
  %v3900 = vpop.f32.mrb[0].mxu0
  %v3901 = vadd.f32 %v3852, %v3900
  %v3902 = vpop.f32.mrb[0].mxu0
  %3903 = vmatprep.mubr.bf16.mxu0 %v3699
  %3904 = vmatmul.mubr.bf16.gmra.mrb[0].mxu0 %v3698
  %v3905 = vpop.f32.mrb[0].mxu0
  %v3906 = vadd.f32 %v3857, %v3905
  %v3907 = vpop.f32.mrb[0].mxu0
  %v3908 = vpop.f32.mrb[0].mxu0
  %v3909 = vadd.f32 %v3860, %v3908
  %v3910 = vpop.f32.mrb[0].mxu0
  %3911 = vdwg.mxu0
  %v3912 = vld [vmem:[%s1148] sm:$0xf]
  %v3913 = vld [vmem:[%s1148 + $0x18] sm:$0xf]
  %v3914 = vld [vmem:[%s1148 + $0x30] sm:$0xf]
  %v3915 = vld [vmem:[%s1148 + $0x48] sm:$0xf]
  %v3916 = vld [vmem:[%s1148 + $0x1e0] sm:$0xf]
  %v3917 = vld [vmem:[%s1148 + $0x1f8] sm:$0xf]
  %v3918 = vld [vmem:[%s1148 + $0x210] sm:$0xf]
  %v3919 = vld [vmem:[%s1148 + $0x228] sm:$0xf]
  %v3920 = vld [vmem:[%s1148 + $0x5] sm:$0xf]
  %v3921 = vld [vmem:[%s1148 + $0x1d] sm:$0xf]
  %v3922 = vld [vmem:[%s1148 + $0x35] sm:$0xf]
  %v3923 = vld [vmem:[%s1148 + $0x4d] sm:$0xf]
  %v3924 = vld [vmem:[%s1148 + $0x1e5] sm:$0xf]
  %v3925 = vld [vmem:[%s1148 + $0x1fd] sm:$0xf]
  %v3926 = vld [vmem:[%s1148 + $0x215] sm:$0xf]
  %v3927 = vld [vmem:[%s1148 + $0x22d] sm:$0xf]
  %v3928 = vld [vmem:[%s1148 + $0xa] sm:$0xf]
  %v3929 = vld [vmem:[%s1148 + $0x22] sm:$0xf]
  %v3930 = vld [vmem:[%s1148 + $0x3a] sm:$0xf]
  %v3931 = vld [vmem:[%s1148 + $0x52] sm:$0xf]
  %v3932 = vld [vmem:[%s1148 + $0x1ea] sm:$0xf]
  %v3933 = vld [vmem:[%s1148 + $0x202] sm:$0xf]
  %v3934 = vld [vmem:[%s1148 + $0x21a] sm:$0xf]
  %v3935 = vld [vmem:[%s1148 + $0x232] sm:$0xf]
  %v3936 = vld [vmem:[%s1148 + $0xf] sm:$0xf]
  %v3937 = vld [vmem:[%s1148 + $0x27] sm:$0xf]
  %v3938 = vld [vmem:[%s1148 + $0x3f] sm:$0xf]
  %v3939 = vld [vmem:[%s1148 + $0x57] sm:$0xf]
  %v3940 = vld [vmem:[%s1148 + $0x1ef] sm:$0xf]
  %v3941 = vld [vmem:[%s1148 + $0x207] sm:$0xf]
  %v3942 = vld [vmem:[%s1148 + $0x21f] sm:$0xf]
  %v3943 = vld [vmem:[%s1148 + $0x237] sm:$0xf]
  %s3944 = scalar_lea.vmem [#allocation2], 144
  %v3945 = vld [vmem:[%s3944] sm:$0xf]
  %v3946 = vld [vmem:[%s3944 + $0x18] sm:$0xf]
  %v3947 = vld [vmem:[%s3944 + $0x30] sm:$0xf]
  %v3948 = vld [vmem:[%s3944 + $0x48] sm:$0xf]
  %v3949 = vld [vmem:[%s3944 + $0x1e0] sm:$0xf]
  %v3950 = vld [vmem:[%s3944 + $0x1f8] sm:$0xf]
  %v3951 = vld [vmem:[%s3944 + $0x210] sm:$0xf]
  %v3952 = vld [vmem:[%s3944 + $0x228] sm:$0xf]
  %v3953 = vld [vmem:[%s3944 + $0x5] sm:$0xf]
  %v3954 = vld [vmem:[%s3944 + $0x1d] sm:$0xf]
  %v3955 = vld [vmem:[%s3944 + $0x35] sm:$0xf]
  %v3956 = vld [vmem:[%s3944 + $0x4d] sm:$0xf]
  %v3957 = vld [vmem:[%s3944 + $0x1e5] sm:$0xf]
  %v3958 = vld [vmem:[%s3944 + $0x1fd] sm:$0xf]
  %v3959 = vld [vmem:[%s3944 + $0x215] sm:$0xf]
  %v3960 = vld [vmem:[%s3944 + $0x22d] sm:$0xf]
  %v3961 = vld [vmem:[%s3944 + $0xa] sm:$0xf]
  %v3962 = vld [vmem:[%s3944 + $0x22] sm:$0xf]
  %v3963 = vld [vmem:[%s3944 + $0x3a] sm:$0xf]
  %v3964 = vld [vmem:[%s3944 + $0x52] sm:$0xf]
  %v3965 = vld [vmem:[%s3944 + $0x1ea] sm:$0xf]
  %v3966 = vld [vmem:[%s3944 + $0x202] sm:$0xf]
  %v3967 = vld [vmem:[%s3944 + $0x21a] sm:$0xf]
  %v3968 = vld [vmem:[%s3944 + $0x232] sm:$0xf]
  %v3969 = vld [vmem:[%s3944 + $0xf] sm:$0xf]
  %v3970 = vld [vmem:[%s3944 + $0x27] sm:$0xf]
  %v3971 = vld [vmem:[%s3944 + $0x3f] sm:$0xf]
  %v3972 = vld [vmem:[%s3944 + $0x57] sm:$0xf]
  %v3973 = vld [vmem:[%s3944 + $0x1ef] sm:$0xf]
  %v3974 = vld [vmem:[%s3944 + $0x207] sm:$0xf]
  %v3975 = vld [vmem:[%s3944 + $0x21f] sm:$0xf]
  %v3976 = vld [vmem:[%s3944 + $0x237] sm:$0xf]
  %3985 = vrot.lane.b32.xlu0 %v3920, 64
  %v3986 = vpop.permute.xlu0 %3985
  %3987 = vrot.lane.b32.xlu0 %v3921, 64
  %v3988 = vpop.permute.xlu0 %3987
  %3989 = vrot.lane.b32.xlu0 %v3922, 64
  %v3990 = vpop.permute.xlu0 %3989
  %3991 = vrot.lane.b32.xlu0 %v3923, 64
  %v3992 = vpop.permute.xlu0 %3991
  %3993 = vrot.lane.b32.xlu0 %v3924, 64
  %v3994 = vpop.permute.xlu0 %3993
  %3995 = vrot.lane.b32.xlu0 %v3925, 64
  %v3996 = vpop.permute.xlu0 %3995
  %3997 = vrot.lane.b32.xlu0 %v3926, 64
  %v3998 = vpop.permute.xlu0 %3997
  %3999 = vrot.lane.b32.xlu0 %v3927, 64
  %v4000 = vpop.permute.xlu0 %3999
  %4017 = vrot.lane.b32.xlu0 %v3936, 64
  %v4018 = vpop.permute.xlu0 %4017
  %4019 = vrot.lane.b32.xlu0 %v3937, 64
  %v4020 = vpop.permute.xlu0 %4019
  %4021 = vrot.lane.b32.xlu0 %v3938, 64
  %v4022 = vpop.permute.xlu0 %4021
  %4023 = vrot.lane.b32.xlu0 %v3939, 64
  %v4024 = vpop.permute.xlu0 %4023
  %4025 = vrot.lane.b32.xlu0 %v3940, 64
  %v4026 = vpop.permute.xlu0 %4025
  %4027 = vrot.lane.b32.xlu0 %v3941, 64
  %v4028 = vpop.permute.xlu0 %4027
  %4029 = vrot.lane.b32.xlu0 %v3942, 64
  %v4030 = vpop.permute.xlu0 %4029
  %4031 = vrot.lane.b32.xlu0 %v3943, 64
  %v4032 = vpop.permute.xlu0 %4031
  %4049 = vrot.lane.b32.xlu0 %v3953, 64
  %v4050 = vpop.permute.xlu0 %4049
  %4051 = vrot.lane.b32.xlu0 %v3954, 64
  %v4052 = vpop.permute.xlu0 %4051
  %4053 = vrot.lane.b32.xlu0 %v3955, 64
  %v4054 = vpop.permute.xlu0 %4053
  %4055 = vrot.lane.b32.xlu0 %v3956, 64
  %v4056 = vpop.permute.xlu0 %4055
  %4057 = vrot.lane.b32.xlu0 %v3957, 64
  %v4058 = vpop.permute.xlu0 %4057
  %4059 = vrot.lane.b32.xlu0 %v3958, 64
  %v4060 = vpop.permute.xlu0 %4059
  %4061 = vrot.lane.b32.xlu0 %v3959, 64
  %v4062 = vpop.permute.xlu0 %4061
  %4063 = vrot.lane.b32.xlu0 %v3960, 64
  %v4064 = vpop.permute.xlu0 %4063
  %4081 = vrot.lane.b32.xlu0 %v3969, 64
  %v4082 = vpop.permute.xlu0 %4081
  %4083 = vrot.lane.b32.xlu0 %v3970, 64
  %v4084 = vpop.permute.xlu0 %4083
  %4085 = vrot.lane.b32.xlu0 %v3971, 64
  %v4086 = vpop.permute.xlu0 %4085
  %4087 = vrot.lane.b32.xlu0 %v3972, 64
  %v4088 = vpop.permute.xlu0 %4087
  %4089 = vrot.lane.b32.xlu0 %v3973, 64
  %v4090 = vpop.permute.xlu0 %4089
  %4091 = vrot.lane.b32.xlu0 %v3974, 64
  %v4092 = vpop.permute.xlu0 %4091
  %4093 = vrot.lane.b32.xlu0 %v3975, 64
  %v4094 = vpop.permute.xlu0 %4093
  %4095 = vrot.lane.b32.xlu0 %v3976, 64
  %v4096 = vpop.permute.xlu0 %4095
  %v4105 = vsel %vm1026, %v3912, %v3986
  %v4106 = vsel %vm1026, %v3913, %v3988
  %v4107 = vsel %vm1026, %v3914, %v3990
  %v4108 = vsel %vm1026, %v3915, %v3992
  %v4109 = vsel %vm1026, %v3916, %v3994
  %v4110 = vsel %vm1026, %v3917, %v3996
  %v4111 = vsel %vm1026, %v3918, %v3998
  %v4112 = vsel %vm1026, %v3919, %v4000
  %v4113 = vsel %vm1026, %v3928, %v4018
  %v4114 = vsel %vm1026, %v3929, %v4020
  %v4115 = vsel %vm1026, %v3930, %v4022
  %v4116 = vsel %vm1026, %v3931, %v4024
  %v4117 = vsel %vm1026, %v3932, %v4026
  %v4118 = vsel %vm1026, %v3933, %v4028
  %v4119 = vsel %vm1026, %v3934, %v4030
  %v4120 = vsel %vm1026, %v3935, %v4032
  %v4121 = vsel %vm1026, %v3945, %v4050
  %v4122 = vsel %vm1026, %v3946, %v4052
  %v4123 = vsel %vm1026, %v3947, %v4054
  %v4124 = vsel %vm1026, %v3948, %v4056
  %v4125 = vsel %vm1026, %v3949, %v4058
  %v4126 = vsel %vm1026, %v3950, %v4060
  %v4127 = vsel %vm1026, %v3951, %v4062
  %v4128 = vsel %vm1026, %v3952, %v4064
  %v4129 = vsel %vm1026, %v3961, %v4082
  %v4130 = vsel %vm1026, %v3962, %v4084
  %v4131 = vsel %vm1026, %v3963, %v4086
  %v4132 = vsel %vm1026, %v3964, %v4088
  %v4133 = vsel %vm1026, %v3965, %v4090
  %v4134 = vsel %vm1026, %v3966, %v4092
  %v4135 = vsel %vm1026, %v3967, %v4094
  %v4136 = vsel %vm1026, %v3968, %v4096
  %v4137 = vpack.c.bf16 %v4105, %v4105
  %v4138 = vpack.c.bf16 %v4113, %v4113
  %v4139 = vpack.c.bf16 %v4121, %v4121
  %v4140 = vpack.c.bf16 %v4129, %v4129
  %v4141 = vpack.c.bf16 %v4106, %v4106
  %v4142 = vpack.c.bf16 %v4114, %v4114
  %v4143 = vpack.c.bf16 %v4122, %v4122
  %v4144 = vpack.c.bf16 %v4130, %v4130
  %v4145 = vpack.c.bf16 %v4107, %v4107
  %v4146 = vpack.c.bf16 %v4115, %v4115
  %v4147 = vpack.c.bf16 %v4123, %v4123
  %v4148 = vpack.c.bf16 %v4131, %v4131
  %v4149 = vpack.c.bf16 %v4108, %v4108
  %v4150 = vpack.c.bf16 %v4116, %v4116
  %v4151 = vpack.c.bf16 %v4124, %v4124
  %v4152 = vpack.c.bf16 %v4132, %v4132
  %v4153 = vpack.c.bf16 %v4109, %v4109
  %v4154 = vpack.c.bf16 %v4117, %v4117
  %v4155 = vpack.c.bf16 %v4125, %v4125
  %v4156 = vpack.c.bf16 %v4133, %v4133
  %v4157 = vpack.c.bf16 %v4110, %v4110
  %v4158 = vpack.c.bf16 %v4118, %v4118
  %v4159 = vpack.c.bf16 %v4126, %v4126
  %v4160 = vpack.c.bf16 %v4134, %v4134
  %v4161 = vpack.c.bf16 %v4111, %v4111
  %v4162 = vpack.c.bf16 %v4119, %v4119
  %v4163 = vpack.c.bf16 %v4127, %v4127
  %v4164 = vpack.c.bf16 %v4135, %v4135
  %v4165 = vpack.c.bf16 %v4112, %v4112
  %v4166 = vpack.c.bf16 %v4120, %v4120
  %v4167 = vpack.c.bf16 %v4128, %v4128
  %v4168 = vpack.c.bf16 %v4136, %v4136
  %v4201 = vcombine.low %v4137, %v4138
  %v4202 = vcombine.low %v4139, %v4140
  %v4204 = vunpack.c.l.s4 1983009808
  %v4205 = vunpack.c.0.s8 %v4204
  %v4206 = vlaneseq
  %v4207 = vshrl.u32 %v4206, 7
  %v4208 = vsub.s32 %v4205, %v4207
  %v4209 = vrot.slane %v4201, %v4208
  %v4211 = vunpack.c.l.s4 1983009808
  %v4212 = vunpack.c.0.s8 %v4211
  %v4213 = vlaneseq
  %v4214 = vshrl.u32 %v4213, 7
  %v4215 = vsub.s32 %v4212, %v4214
  %v4216 = vrot.slane %v4202, %v4215
  %v4217 = vcombine.low %v4209, %v4216
  %v4218 = vcombine.low %v4141, %v4142
  %v4219 = vcombine.low %v4143, %v4144
  %v4221 = vunpack.c.l.s4 1983009808
  %v4222 = vunpack.c.0.s8 %v4221
  %v4223 = vlaneseq
  %v4224 = vshrl.u32 %v4223, 7
  %v4225 = vsub.s32 %v4222, %v4224
  %v4226 = vrot.slane %v4218, %v4225
  %v4228 = vunpack.c.l.s4 1983009808
  %v4229 = vunpack.c.0.s8 %v4228
  %v4230 = vlaneseq
  %v4231 = vshrl.u32 %v4230, 7
  %v4232 = vsub.s32 %v4229, %v4231
  %v4233 = vrot.slane %v4219, %v4232
  %v4234 = vcombine.low %v4226, %v4233
  %v4235 = vcombine.low %v4145, %v4146
  %v4236 = vcombine.low %v4147, %v4148
  %v4238 = vunpack.c.l.s4 1983009808
  %v4239 = vunpack.c.0.s8 %v4238
  %v4240 = vlaneseq
  %v4241 = vshrl.u32 %v4240, 7
  %v4242 = vsub.s32 %v4239, %v4241
  %v4243 = vrot.slane %v4235, %v4242
  %v4245 = vunpack.c.l.s4 1983009808
  %v4246 = vunpack.c.0.s8 %v4245
  %v4247 = vlaneseq
  %v4248 = vshrl.u32 %v4247, 7
  %v4249 = vsub.s32 %v4246, %v4248
  %v4250 = vrot.slane %v4236, %v4249
  %v4251 = vcombine.low %v4243, %v4250
  %v4252 = vcombine.low %v4149, %v4150
  %v4253 = vcombine.low %v4151, %v4152
  %v4255 = vunpack.c.l.s4 1983009808
  %v4256 = vunpack.c.0.s8 %v4255
  %v4257 = vlaneseq
  %v4258 = vshrl.u32 %v4257, 7
  %v4259 = vsub.s32 %v4256, %v4258
  %v4260 = vrot.slane %v4252, %v4259
  %v4262 = vunpack.c.l.s4 1983009808
  %v4263 = vunpack.c.0.s8 %v4262
  %v4264 = vlaneseq
  %v4265 = vshrl.u32 %v4264, 7
  %v4266 = vsub.s32 %v4263, %v4265
  %v4267 = vrot.slane %v4253, %v4266
  %v4268 = vcombine.low %v4260, %v4267
  %v4269 = vcombine.low %v4153, %v4154
  %v4270 = vcombine.low %v4155, %v4156
  %v4272 = vunpack.c.l.s4 1983009808
  %v4273 = vunpack.c.0.s8 %v4272
  %v4274 = vlaneseq
  %v4275 = vshrl.u32 %v4274, 7
  %v4276 = vsub.s32 %v4273, %v4275
  %v4277 = vrot.slane %v4269, %v4276
  %v4279 = vunpack.c.l.s4 1983009808
  %v4280 = vunpack.c.0.s8 %v4279
  %v4281 = vlaneseq
  %v4282 = vshrl.u32 %v4281, 7
  %v4283 = vsub.s32 %v4280, %v4282
  %v4284 = vrot.slane %v4270, %v4283
  %v4285 = vcombine.low %v4277, %v4284
  %v4286 = vcombine.low %v4157, %v4158
  %v4287 = vcombine.low %v4159, %v4160
  %v4289 = vunpack.c.l.s4 1983009808
  %v4290 = vunpack.c.0.s8 %v4289
  %v4291 = vlaneseq
  %v4292 = vshrl.u32 %v4291, 7
  %v4293 = vsub.s32 %v4290, %v4292
  %v4294 = vrot.slane %v4286, %v4293
  %v4296 = vunpack.c.l.s4 1983009808
  %v4297 = vunpack.c.0.s8 %v4296
  %v4298 = vlaneseq
  %v4299 = vshrl.u32 %v4298, 7
  %v4300 = vsub.s32 %v4297, %v4299
  %v4301 = vrot.slane %v4287, %v4300
  %v4302 = vcombine.low %v4294, %v4301
  %v4303 = vcombine.low %v4161, %v4162
  %v4304 = vcombine.low %v4163, %v4164
  %v4306 = vunpack.c.l.s4 1983009808
  %v4307 = vunpack.c.0.s8 %v4306
  %v4308 = vlaneseq
  %v4309 = vshrl.u32 %v4308, 7
  %v4310 = vsub.s32 %v4307, %v4309
  %v4311 = vrot.slane %v4303, %v4310
  %v4313 = vunpack.c.l.s4 1983009808
  %v4314 = vunpack.c.0.s8 %v4313
  %v4315 = vlaneseq
  %v4316 = vshrl.u32 %v4315, 7
  %v4317 = vsub.s32 %v4314, %v4316
  %v4318 = vrot.slane %v4304, %v4317
  %v4319 = vcombine.low %v4311, %v4318
  %v4320 = vcombine.low %v4165, %v4166
  %v4321 = vcombine.low %v4167, %v4168
  %v4323 = vunpack.c.l.s4 1983009808
  %v4324 = vunpack.c.0.s8 %v4323
  %v4325 = vlaneseq
  %v4326 = vshrl.u32 %v4325, 7
  %v4327 = vsub.s32 %v4324, %v4326
  %v4328 = vrot.slane %v4320, %v4327
  %v4330 = vunpack.c.l.s4 1983009808
  %v4331 = vunpack.c.0.s8 %v4330
  %v4332 = vlaneseq
  %v4333 = vshrl.u32 %v4332, 7
  %v4334 = vsub.s32 %v4331, %v4333
  %v4335 = vrot.slane %v4321, %v4334
  %v4336 = vcombine.low %v4328, %v4335
  %v4337 = vcombine.low %v4217, %v4234
  %v4338 = vcombine.high %v4217, %v4234
  %v4339 = vcombine.low %v4251, %v4268
  %v4340 = vcombine.high %v4251, %v4268
  %v4342 = vunpack.c.l.s4 1983009808
  %v4343 = vunpack.c.0.s8 %v4342
  %v4344 = vlaneseq
  %v4345 = vshrl.u32 %v4344, 7
  %v4346 = vsub.s32 %v4343, %v4345
  %v4347 = vrot.slane %v4337, %v4346
  %v4349 = vunpack.c.l.s4 1983009808
  %v4350 = vunpack.c.0.s8 %v4349
  %v4351 = vlaneseq
  %v4352 = vshrl.u32 %v4351, 7
  %v4353 = vsub.s32 %v4350, %v4352
  %v4354 = vrot.slane %v4338, %v4353
  %v4356 = vunpack.c.l.s4 1983009808
  %v4357 = vunpack.c.0.s8 %v4356
  %v4358 = vlaneseq
  %v4359 = vshrl.u32 %v4358, 7
  %v4360 = vsub.s32 %v4357, %v4359
  %v4361 = vrot.slane %v4339, %v4360
  %v4363 = vunpack.c.l.s4 1983009808
  %v4364 = vunpack.c.0.s8 %v4363
  %v4365 = vlaneseq
  %v4366 = vshrl.u32 %v4365, 7
  %v4367 = vsub.s32 %v4364, %v4366
  %v4368 = vrot.slane %v4340, %v4367
  %v4369 = vcombine.low %v4347, %v4361
  %v4370 = vcombine.high %v4347, %v4361
  %v4371 = vcombine.low %v4354, %v4368
  %v4372 = vcombine.high %v4354, %v4368
  %v4373 = vcombine.low %v4285, %v4302
  %v4374 = vcombine.high %v4285, %v4302
  %v4375 = vcombine.low %v4319, %v4336
  %v4376 = vcombine.high %v4319, %v4336
  %v4378 = vunpack.c.l.s4 1983009808
  %v4379 = vunpack.c.0.s8 %v4378
  %v4380 = vlaneseq
  %v4381 = vshrl.u32 %v4380, 7
  %v4382 = vsub.s32 %v4379, %v4381
  %v4383 = vrot.slane %v4373, %v4382
  %v4385 = vunpack.c.l.s4 1983009808
  %v4386 = vunpack.c.0.s8 %v4385
  %v4387 = vlaneseq
  %v4388 = vshrl.u32 %v4387, 7
  %v4389 = vsub.s32 %v4386, %v4388
  %v4390 = vrot.slane %v4374, %v4389
  %v4392 = vunpack.c.l.s4 1983009808
  %v4393 = vunpack.c.0.s8 %v4392
  %v4394 = vlaneseq
  %v4395 = vshrl.u32 %v4394, 7
  %v4396 = vsub.s32 %v4393, %v4395
  %v4397 = vrot.slane %v4375, %v4396
  %v4399 = vunpack.c.l.s4 1983009808
  %v4400 = vunpack.c.0.s8 %v4399
  %v4401 = vlaneseq
  %v4402 = vshrl.u32 %v4401, 7
  %v4403 = vsub.s32 %v4400, %v4402
  %v4404 = vrot.slane %v4376, %v4403
  %v4405 = vcombine.low %v4383, %v4397
  %v4406 = vcombine.high %v4383, %v4397
  %v4407 = vcombine.low %v4390, %v4404
  %v4408 = vcombine.high %v4390, %v4404
  %4417 = vmatprep.subr.bf16.mxu0 0
  %4418 = vmatpush1.bf16.msra.mxu0 %v2672
  %4419 = vmatprep.subr.bf16.mxu0 0
  %4420 = vmatpush1.bf16.msra.mxu0 %v2673
  %4421 = vmatprep.subr.bf16.mxu0 0
  %4422 = vmatpush1.bf16.msra.mxu0 %v2674
  %4423 = vmatprep.subr.bf16.mxu0 0
  %4424 = vmatpush1.bf16.msra.mxu0 %v2675
  %4425 = vmatprep.subr.bf16.mxu0 0
  %4426 = vmatpush1.bf16.msra.mxu0 %v2676
  %4427 = vmatprep.subr.bf16.mxu0 0
  %4428 = vmatpush1.bf16.msra.mxu0 %v2677
  %4429 = vmatprep.subr.bf16.mxu0 0
  %4430 = vmatpush1.bf16.msra.mxu0 %v2678
  %4431 = vmatprep.subr.bf16.mxu0 0
  %4432 = vmatpush1.bf16.msra.mxu0 %v2679
  %4433 = vmatprep.subr.bf16.mxu0 0
  %4434 = vmatpush1.bf16.msra.mxu0 %v2680
  %4435 = vmatprep.subr.bf16.mxu0 0
  %4436 = vmatpush1.bf16.msra.mxu0 %v2681
  %4437 = vmatprep.subr.bf16.mxu0 0
  %4438 = vmatpush1.bf16.msra.mxu0 %v2682
  %4439 = vmatprep.subr.bf16.mxu0 0
  %4440 = vmatpush1.bf16.msra.mxu0 %v2683
  %4441 = vmatprep.subr.bf16.mxu0 0
  %4442 = vmatpush1.bf16.msra.mxu0 %v2684
  %4443 = vmatprep.subr.bf16.mxu0 0
  %4444 = vmatpush1.bf16.msra.mxu0 %v2685
  %4445 = vmatprep.subr.bf16.mxu0 0
  %4446 = vmatpush1.bf16.msra.mxu0 %v2686
  %4447 = vmatprep.subr.bf16.mxu0 0
  %4448 = vmatpush1.bf16.msra.mxu0 %v2687
  %4449 = vmatprep.mubr.bf16.mxu0 %v2325
  %4450 = vmatmul.mubr.bf16.gmra.mrb[0].mxu0 %v2324
  %v4451 = vpop.f32.mrb[0].mxu0
  %v4452 = vadd.f32 0.0, %v4451
  %v4453 = vpop.f32.mrb[0].mxu0
  %v4454 = vpop.f32.mrb[0].mxu0
  %v4455 = vadd.f32 0.0, %v4454
  %v4456 = vpop.f32.mrb[0].mxu0
  %4457 = vmatprep.mubr.bf16.mxu0 %v2397
  %4458 = vmatmul.mubr.bf16.gmra.mrb[0].mxu0 %v2396
  %v4459 = vpop.f32.mrb[0].mxu0
  %v4460 = vadd.f32 0.0, %v4459
  %v4461 = vpop.f32.mrb[0].mxu0
  %v4462 = vpop.f32.mrb[0].mxu0
  %v4463 = vadd.f32 0.0, %v4462
  %v4464 = vpop.f32.mrb[0].mxu0
  %4465 = vdwg.mxu0
  %4466 = vmatprep.subr.bf16.mxu0 0
  %4467 = vmatpush1.bf16.msra.mxu0 %v2688
  %4468 = vmatprep.subr.bf16.mxu0 0
  %4469 = vmatpush1.bf16.msra.mxu0 %v2689
  %4470 = vmatprep.subr.bf16.mxu0 0
  %4471 = vmatpush1.bf16.msra.mxu0 %v2690
  %4472 = vmatprep.subr.bf16.mxu0 0
  %4473 = vmatpush1.bf16.msra.mxu0 %v2691
  %4474 = vmatprep.subr.bf16.mxu0 0
  %4475 = vmatpush1.bf16.msra.mxu0 %v2692
  %4476 = vmatprep.subr.bf16.mxu0 0
  %4477 = vmatpush1.bf16.msra.mxu0 %v2693
  %4478 = vmatprep.subr.bf16.mxu0 0
  %4479 = vmatpush1.bf16.msra.mxu0 %v2694
  %4480 = vmatprep.subr.bf16.mxu0 0
  %4481 = vmatpush1.bf16.msra.mxu0 %v2695
  %4482 = vmatprep.subr.bf16.mxu0 0
  %4483 = vmatpush1.bf16.msra.mxu0 %v2696
  %4484 = vmatprep.subr.bf16.mxu0 0
  %4485 = vmatpush1.bf16.msra.mxu0 %v2697
  %4486 = vmatprep.subr.bf16.mxu0 0
  %4487 = vmatpush1.bf16.msra.mxu0 %v2698
  %4488 = vmatprep.subr.bf16.mxu0 0
  %4489 = vmatpush1.bf16.msra.mxu0 %v2699
  %4490 = vmatprep.subr.bf16.mxu0 0
  %4491 = vmatpush1.bf16.msra.mxu0 %v2700
  %4492 = vmatprep.subr.bf16.mxu0 0
  %4493 = vmatpush1.bf16.msra.mxu0 %v2701
  %4494 = vmatprep.subr.bf16.mxu0 0
  %4495 = vmatpush1.bf16.msra.mxu0 %v2702
  %4496 = vmatprep.subr.bf16.mxu0 0
  %4497 = vmatpush1.bf16.msra.mxu0 %v2703
  %4498 = vmatprep.mubr.bf16.mxu0 %v2327
  %4499 = vmatmul.mubr.bf16.gmra.mrb[0].mxu0 %v2326
  %v4500 = vpop.f32.mrb[0].mxu0
  %v4501 = vadd.f32 %v4452, %v4500
  %v4502 = vpop.f32.mrb[0].mxu0
  %v4503 = vpop.f32.mrb[0].mxu0
  %v4504 = vadd.f32 %v4455, %v4503
  %v4505 = vpop.f32.mrb[0].mxu0
  %4506 = vmatprep.mubr.bf16.mxu0 %v2399
  %4507 = vmatmul.mubr.bf16.gmra.mrb[0].mxu0 %v2398
  %v4508 = vpop.f32.mrb[0].mxu0
  %v4509 = vadd.f32 %v4460, %v4508
  %v4510 = vpop.f32.mrb[0].mxu0
  %v4511 = vpop.f32.mrb[0].mxu0
  %v4512 = vadd.f32 %v4463, %v4511
  %v4513 = vpop.f32.mrb[0].mxu0
  %4514 = vdwg.mxu0
  %4515 = vmatprep.subr.bf16.mxu0 0
  %4516 = vmatpush1.bf16.msra.mxu0 %v2704
  %4517 = vmatprep.subr.bf16.mxu0 0
  %4518 = vmatpush1.bf16.msra.mxu0 %v2705
  %4519 = vmatprep.subr.bf16.mxu0 0
  %4520 = vmatpush1.bf16.msra.mxu0 %v2706
  %4521 = vmatprep.subr.bf16.mxu0 0
  %4522 = vmatpush1.bf16.msra.mxu0 %v2707
  %4523 = vmatprep.subr.bf16.mxu0 0
  %4524 = vmatpush1.bf16.msra.mxu0 %v2708
  %4525 = vmatprep.subr.bf16.mxu0 0
  %4526 = vmatpush1.bf16.msra.mxu0 %v2709
  %4527 = vmatprep.subr.bf16.mxu0 0
  %4528 = vmatpush1.bf16.msra.mxu0 %v2710
  %4529 = vmatprep.subr.bf16.mxu0 0
  %4530 = vmatpush1.bf16.msra.mxu0 %v2711
  %4531 = vmatprep.subr.bf16.mxu0 0
  %4532 = vmatpush1.bf16.msra.mxu0 %v2712
  %4533 = vmatprep.subr.bf16.mxu0 0
  %4534 = vmatpush1.bf16.msra.mxu0 %v2713
  %4535 = vmatprep.subr.bf16.mxu0 0
  %4536 = vmatpush1.bf16.msra.mxu0 %v2714
  %4537 = vmatprep.subr.bf16.mxu0 0
  %4538 = vmatpush1.bf16.msra.mxu0 %v2715
  %4539 = vmatprep.subr.bf16.mxu0 0
  %4540 = vmatpush1.bf16.msra.mxu0 %v2716
  %4541 = vmatprep.subr.bf16.mxu0 0
  %4542 = vmatpush1.bf16.msra.mxu0 %v2717
  %4543 = vmatprep.subr.bf16.mxu0 0
  %4544 = vmatpush1.bf16.msra.mxu0 %v2718
  %4545 = vmatprep.subr.bf16.mxu0 0
  %4546 = vmatpush1.bf16.msra.mxu0 %v2719
  %4547 = vmatprep.mubr.bf16.mxu0 %v4370
  %4548 = vmatmul.mubr.bf16.gmra.mrb[0].mxu0 %v4369
  %v4549 = vpop.f32.mrb[0].mxu0
  %v4550 = vadd.f32 %v4501, %v4549
  %v4551 = vpop.f32.mrb[0].mxu0
  %v4552 = vpop.f32.mrb[0].mxu0
  %v4553 = vadd.f32 %v4504, %v4552
  %v4554 = vpop.f32.mrb[0].mxu0
  %4555 = vmatprep.mubr.bf16.mxu0 %v4406
  %4556 = vmatmul.mubr.bf16.gmra.mrb[0].mxu0 %v4405
  %v4557 = vpop.f32.mrb[0].mxu0
  %v4558 = vadd.f32 %v4509, %v4557
  %v4559 = vpop.f32.mrb[0].mxu0
  %v4560 = vpop.f32.mrb[0].mxu0
  %v4561 = vadd.f32 %v4512, %v4560
  %v4562 = vpop.f32.mrb[0].mxu0
  %4563 = vdwg.mxu0
  %4564 = vmatprep.subr.bf16.mxu0 0
  %4565 = vmatpush1.bf16.msra.mxu0 %v2720
  %4566 = vmatprep.subr.bf16.mxu0 0
  %4567 = vmatpush1.bf16.msra.mxu0 %v2721
  %4568 = vmatprep.subr.bf16.mxu0 0
  %4569 = vmatpush1.bf16.msra.mxu0 %v2722
  %4570 = vmatprep.subr.bf16.mxu0 0
  %4571 = vmatpush1.bf16.msra.mxu0 %v2723
  %4572 = vmatprep.subr.bf16.mxu0 0
  %4573 = vmatpush1.bf16.msra.mxu0 %v2724
  %4574 = vmatprep.subr.bf16.mxu0 0
  %4575 = vmatpush1.bf16.msra.mxu0 %v2725
  %4576 = vmatprep.subr.bf16.mxu0 0
  %4577 = vmatpush1.bf16.msra.mxu0 %v2726
  %4578 = vmatprep.subr.bf16.mxu0 0
  %4579 = vmatpush1.bf16.msra.mxu0 %v2727
  %4580 = vmatprep.subr.bf16.mxu0 0
  %4581 = vmatpush1.bf16.msra.mxu0 %v2728
  %4582 = vmatprep.subr.bf16.mxu0 0
  %4583 = vmatpush1.bf16.msra.mxu0 %v2729
  %4584 = vmatprep.subr.bf16.mxu0 0
  %4585 = vmatpush1.bf16.msra.mxu0 %v2730
  %4586 = vmatprep.subr.bf16.mxu0 0
  %4587 = vmatpush1.bf16.msra.mxu0 %v2731
  %4588 = vmatprep.subr.bf16.mxu0 0
  %4589 = vmatpush1.bf16.msra.mxu0 %v2732
  %4590 = vmatprep.subr.bf16.mxu0 0
  %4591 = vmatpush1.bf16.msra.mxu0 %v2733
  %4592 = vmatprep.subr.bf16.mxu0 0
  %4593 = vmatpush1.bf16.msra.mxu0 %v2734
  %4594 = vmatprep.subr.bf16.mxu0 0
  %4595 = vmatpush1.bf16.msra.mxu0 %v2735
  %4596 = vmatprep.mubr.bf16.mxu0 %v4372
  %4597 = vmatmul.mubr.bf16.gmra.mrb[0].mxu0 %v4371
  %v4598 = vpop.f32.mrb[0].mxu0
  %v4599 = vadd.f32 %v4550, %v4598
  %v4600 = vpop.f32.mrb[0].mxu0
  %v4601 = vpop.f32.mrb[0].mxu0
  %v4602 = vadd.f32 %v4553, %v4601
  %v4603 = vpop.f32.mrb[0].mxu0
  %4604 = vmatprep.mubr.bf16.mxu0 %v4408
  %4605 = vmatmul.mubr.bf16.gmra.mrb[0].mxu0 %v4407
  %v4606 = vpop.f32.mrb[0].mxu0
  %v4607 = vadd.f32 %v4558, %v4606
  %v4608 = vpop.f32.mrb[0].mxu0
  %v4609 = vpop.f32.mrb[0].mxu0
  %v4610 = vadd.f32 %v4561, %v4609
  %v4611 = vpop.f32.mrb[0].mxu0
  %4612 = vdwg.mxu0
  %v4613 = vld [vmem:[%s1148 + $0x1] sm:$0xf]
  %v4614 = vld [vmem:[%s1148 + $0x19] sm:$0xf]
  %v4615 = vld [vmem:[%s1148 + $0x31] sm:$0xf]
  %v4616 = vld [vmem:[%s1148 + $0x49] sm:$0xf]
  %v4617 = vld [vmem:[%s1148 + $0x1e1] sm:$0xf]
  %v4618 = vld [vmem:[%s1148 + $0x1f9] sm:$0xf]
  %v4619 = vld [vmem:[%s1148 + $0x211] sm:$0xf]
  %v4620 = vld [vmem:[%s1148 + $0x229] sm:$0xf]
  %v4621 = vld [vmem:[%s1148 + $0x6] sm:$0xf]
  %v4622 = vld [vmem:[%s1148 + $0x1e] sm:$0xf]
  %v4623 = vld [vmem:[%s1148 + $0x36] sm:$0xf]
  %v4624 = vld [vmem:[%s1148 + $0x4e] sm:$0xf]
  %v4625 = vld [vmem:[%s1148 + $0x1e6] sm:$0xf]
  %v4626 = vld [vmem:[%s1148 + $0x1fe] sm:$0xf]
  %v4627 = vld [vmem:[%s1148 + $0x216] sm:$0xf]
  %v4628 = vld [vmem:[%s1148 + $0x22e] sm:$0xf]
  %v4629 = vld [vmem:[%s3944 + $0x1] sm:$0xf]
  %v4630 = vld [vmem:[%s3944 + $0x19] sm:$0xf]
  %v4631 = vld [vmem:[%s3944 + $0x31] sm:$0xf]
  %v4632 = vld [vmem:[%s3944 + $0x49] sm:$0xf]
  %v4633 = vld [vmem:[%s3944 + $0x1e1] sm:$0xf]
  %v4634 = vld [vmem:[%s3944 + $0x1f9] sm:$0xf]
  %v4635 = vld [vmem:[%s3944 + $0x211] sm:$0xf]
  %v4636 = vld [vmem:[%s3944 + $0x229] sm:$0xf]
  %v4637 = vld [vmem:[%s3944 + $0x6] sm:$0xf]
  %v4638 = vld [vmem:[%s3944 + $0x1e] sm:$0xf]
  %v4639 = vld [vmem:[%s3944 + $0x36] sm:$0xf]
  %v4640 = vld [vmem:[%s3944 + $0x4e] sm:$0xf]
  %v4641 = vld [vmem:[%s3944 + $0x1e6] sm:$0xf]
  %v4642 = vld [vmem:[%s3944 + $0x1fe] sm:$0xf]
  %v4643 = vld [vmem:[%s3944 + $0x216] sm:$0xf]
  %v4644 = vld [vmem:[%s3944 + $0x22e] sm:$0xf]
  %4653 = vrot.lane.b32.xlu0 %v4621, 64
  %v4654 = vpop.permute.xlu0 %4653
  %4655 = vrot.lane.b32.xlu0 %v4622, 64
  %v4656 = vpop.permute.xlu0 %4655
  %4657 = vrot.lane.b32.xlu0 %v4623, 64
  %v4658 = vpop.permute.xlu0 %4657
  %4659 = vrot.lane.b32.xlu0 %v4624, 64
  %v4660 = vpop.permute.xlu0 %4659
  %4661 = vrot.lane.b32.xlu0 %v4625, 64
  %v4662 = vpop.permute.xlu0 %4661
  %4663 = vrot.lane.b32.xlu0 %v4626, 64
  %v4664 = vpop.permute.xlu0 %4663
  %4665 = vrot.lane.b32.xlu0 %v4627, 64
  %v4666 = vpop.permute.xlu0 %4665
  %4667 = vrot.lane.b32.xlu0 %v4628, 64
  %v4668 = vpop.permute.xlu0 %4667
  %4685 = vrot.lane.b32.xlu0 %v4637, 64
  %v4686 = vpop.permute.xlu0 %4685
  %4687 = vrot.lane.b32.xlu0 %v4638, 64
  %v4688 = vpop.permute.xlu0 %4687
  %4689 = vrot.lane.b32.xlu0 %v4639, 64
  %v4690 = vpop.permute.xlu0 %4689
  %4691 = vrot.lane.b32.xlu0 %v4640, 64
  %v4692 = vpop.permute.xlu0 %4691
  %4693 = vrot.lane.b32.xlu0 %v4641, 64
  %v4694 = vpop.permute.xlu0 %4693
  %4695 = vrot.lane.b32.xlu0 %v4642, 64
  %v4696 = vpop.permute.xlu0 %4695
  %4697 = vrot.lane.b32.xlu0 %v4643, 64
  %v4698 = vpop.permute.xlu0 %4697
  %4699 = vrot.lane.b32.xlu0 %v4644, 64
  %v4700 = vpop.permute.xlu0 %4699
  %v4709 = vsel %vm1026, %v4613, %v4654
  %v4710 = vsel %vm1026, %v4614, %v4656
  %v4711 = vsel %vm1026, %v4615, %v4658
  %v4712 = vsel %vm1026, %v4616, %v4660
  %v4713 = vsel %vm1026, %v4617, %v4662
  %v4714 = vsel %vm1026, %v4618, %v4664
  %v4715 = vsel %vm1026, %v4619, %v4666
  %v4716 = vsel %vm1026, %v4620, %v4668
  %v4717 = vsel %vm1026, %v4629, %v4686
  %v4718 = vsel %vm1026, %v4630, %v4688
  %v4719 = vsel %vm1026, %v4631, %v4690
  %v4720 = vsel %vm1026, %v4632, %v4692
  %v4721 = vsel %vm1026, %v4633, %v4694
  %v4722 = vsel %vm1026, %v4634, %v4696
  %v4723 = vsel %vm1026, %v4635, %v4698
  %v4724 = vsel %vm1026, %v4636, %v4700
  %v4725 = vpack.c.bf16 %v4709, %v4709
  %v4726 = vpack.c.bf16 %v4717, %v4717
  %v4727 = vpack.c.bf16 %v4710, %v4710
  %v4728 = vpack.c.bf16 %v4718, %v4718
  %v4729 = vpack.c.bf16 %v4711, %v4711
  %v4730 = vpack.c.bf16 %v4719, %v4719
  %v4731 = vpack.c.bf16 %v4712, %v4712
  %v4732 = vpack.c.bf16 %v4720, %v4720
  %v4733 = vpack.c.bf16 %v4713, %v4713
  %v4734 = vpack.c.bf16 %v4721, %v4721
  %v4735 = vpack.c.bf16 %v4714, %v4714
  %v4736 = vpack.c.bf16 %v4722, %v4722
  %v4737 = vpack.c.bf16 %v4715, %v4715
  %v4738 = vpack.c.bf16 %v4723, %v4723
  %v4739 = vpack.c.bf16 %v4716, %v4716
  %v4740 = vpack.c.bf16 %v4724, %v4724
  %v4757 = vcombine.low %v4138, %v4725
  %v4758 = vcombine.low %v4140, %v4726
  %v4760 = vunpack.c.l.s4 1983009808
  %v4761 = vunpack.c.0.s8 %v4760
  %v4762 = vlaneseq
  %v4763 = vshrl.u32 %v4762, 7
  %v4764 = vsub.s32 %v4761, %v4763
  %v4765 = vrot.slane %v4757, %v4764
  %v4767 = vunpack.c.l.s4 1983009808
  %v4768 = vunpack.c.0.s8 %v4767
  %v4769 = vlaneseq
  %v4770 = vshrl.u32 %v4769, 7
  %v4771 = vsub.s32 %v4768, %v4770
  %v4772 = vrot.slane %v4758, %v4771
  %v4773 = vcombine.low %v4765, %v4772
  %v4774 = vcombine.low %v4142, %v4727
  %v4775 = vcombine.low %v4144, %v4728
  %v4777 = vunpack.c.l.s4 1983009808
  %v4778 = vunpack.c.0.s8 %v4777
  %v4779 = vlaneseq
  %v4780 = vshrl.u32 %v4779, 7
  %v4781 = vsub.s32 %v4778, %v4780
  %v4782 = vrot.slane %v4774, %v4781
  %v4784 = vunpack.c.l.s4 1983009808
  %v4785 = vunpack.c.0.s8 %v4784
  %v4786 = vlaneseq
  %v4787 = vshrl.u32 %v4786, 7
  %v4788 = vsub.s32 %v4785, %v4787
  %v4789 = vrot.slane %v4775, %v4788
  %v4790 = vcombine.low %v4782, %v4789
  %v4791 = vcombine.low %v4146, %v4729
  %v4792 = vcombine.low %v4148, %v4730
  %v4794 = vunpack.c.l.s4 1983009808
  %v4795 = vunpack.c.0.s8 %v4794
  %v4796 = vlaneseq
  %v4797 = vshrl.u32 %v4796, 7
  %v4798 = vsub.s32 %v4795, %v4797
  %v4799 = vrot.slane %v4791, %v4798
  %v4801 = vunpack.c.l.s4 1983009808
  %v4802 = vunpack.c.0.s8 %v4801
  %v4803 = vlaneseq
  %v4804 = vshrl.u32 %v4803, 7
  %v4805 = vsub.s32 %v4802, %v4804
  %v4806 = vrot.slane %v4792, %v4805
  %v4807 = vcombine.low %v4799, %v4806
  %v4808 = vcombine.low %v4150, %v4731
  %v4809 = vcombine.low %v4152, %v4732
  %v4811 = vunpack.c.l.s4 1983009808
  %v4812 = vunpack.c.0.s8 %v4811
  %v4813 = vlaneseq
  %v4814 = vshrl.u32 %v4813, 7
  %v4815 = vsub.s32 %v4812, %v4814
  %v4816 = vrot.slane %v4808, %v4815
  %v4818 = vunpack.c.l.s4 1983009808
  %v4819 = vunpack.c.0.s8 %v4818
  %v4820 = vlaneseq
  %v4821 = vshrl.u32 %v4820, 7
  %v4822 = vsub.s32 %v4819, %v4821
  %v4823 = vrot.slane %v4809, %v4822
  %v4824 = vcombine.low %v4816, %v4823
  %v4825 = vcombine.low %v4154, %v4733
  %v4826 = vcombine.low %v4156, %v4734
  %v4828 = vunpack.c.l.s4 1983009808
  %v4829 = vunpack.c.0.s8 %v4828
  %v4830 = vlaneseq
  %v4831 = vshrl.u32 %v4830, 7
  %v4832 = vsub.s32 %v4829, %v4831
  %v4833 = vrot.slane %v4825, %v4832
  %v4835 = vunpack.c.l.s4 1983009808
  %v4836 = vunpack.c.0.s8 %v4835
  %v4837 = vlaneseq
  %v4838 = vshrl.u32 %v4837, 7
  %v4839 = vsub.s32 %v4836, %v4838
  %v4840 = vrot.slane %v4826, %v4839
  %v4841 = vcombine.low %v4833, %v4840
  %v4842 = vcombine.low %v4158, %v4735
  %v4843 = vcombine.low %v4160, %v4736
  %v4845 = vunpack.c.l.s4 1983009808
  %v4846 = vunpack.c.0.s8 %v4845
  %v4847 = vlaneseq
  %v4848 = vshrl.u32 %v4847, 7
  %v4849 = vsub.s32 %v4846, %v4848
  %v4850 = vrot.slane %v4842, %v4849
  %v4852 = vunpack.c.l.s4 1983009808
  %v4853 = vunpack.c.0.s8 %v4852
  %v4854 = vlaneseq
  %v4855 = vshrl.u32 %v4854, 7
  %v4856 = vsub.s32 %v4853, %v4855
  %v4857 = vrot.slane %v4843, %v4856
  %v4858 = vcombine.low %v4850, %v4857
  %v4859 = vcombine.low %v4162, %v4737
  %v4860 = vcombine.low %v4164, %v4738
  %v4862 = vunpack.c.l.s4 1983009808
  %v4863 = vunpack.c.0.s8 %v4862
  %v4864 = vlaneseq
  %v4865 = vshrl.u32 %v4864, 7
  %v4866 = vsub.s32 %v4863, %v4865
  %v4867 = vrot.slane %v4859, %v4866
  %v4869 = vunpack.c.l.s4 1983009808
  %v4870 = vunpack.c.0.s8 %v4869
  %v4871 = vlaneseq
  %v4872 = vshrl.u32 %v4871, 7
  %v4873 = vsub.s32 %v4870, %v4872
  %v4874 = vrot.slane %v4860, %v4873
  %v4875 = vcombine.low %v4867, %v4874
  %v4876 = vcombine.low %v4166, %v4739
  %v4877 = vcombine.low %v4168, %v4740
  %v4879 = vunpack.c.l.s4 1983009808
  %v4880 = vunpack.c.0.s8 %v4879
  %v4881 = vlaneseq
  %v4882 = vshrl.u32 %v4881, 7
  %v4883 = vsub.s32 %v4880, %v4882
  %v4884 = vrot.slane %v4876, %v4883
  %v4886 = vunpack.c.l.s4 1983009808
  %v4887 = vunpack.c.0.s8 %v4886
  %v4888 = vlaneseq
  %v4889 = vshrl.u32 %v4888, 7
  %v4890 = vsub.s32 %v4887, %v4889
  %v4891 = vrot.slane %v4877, %v4890
  %v4892 = vcombine.low %v4884, %v4891
  %v4893 = vcombine.low %v4773, %v4790
  %v4894 = vcombine.high %v4773, %v4790
  %v4895 = vcombine.low %v4807, %v4824
  %v4896 = vcombine.high %v4807, %v4824
  %v4898 = vunpack.c.l.s4 1983009808
  %v4899 = vunpack.c.0.s8 %v4898
  %v4900 = vlaneseq
  %v4901 = vshrl.u32 %v4900, 7
  %v4902 = vsub.s32 %v4899, %v4901
  %v4903 = vrot.slane %v4893, %v4902
  %v4905 = vunpack.c.l.s4 1983009808
  %v4906 = vunpack.c.0.s8 %v4905
  %v4907 = vlaneseq
  %v4908 = vshrl.u32 %v4907, 7
  %v4909 = vsub.s32 %v4906, %v4908
  %v4910 = vrot.slane %v4894, %v4909
  %v4912 = vunpack.c.l.s4 1983009808
  %v4913 = vunpack.c.0.s8 %v4912
  %v4914 = vlaneseq
  %v4915 = vshrl.u32 %v4914, 7
  %v4916 = vsub.s32 %v4913, %v4915
  %v4917 = vrot.slane %v4895, %v4916
  %v4919 = vunpack.c.l.s4 1983009808
  %v4920 = vunpack.c.0.s8 %v4919
  %v4921 = vlaneseq
  %v4922 = vshrl.u32 %v4921, 7
  %v4923 = vsub.s32 %v4920, %v4922
  %v4924 = vrot.slane %v4896, %v4923
  %v4925 = vcombine.low %v4903, %v4917
  %v4926 = vcombine.high %v4903, %v4917
  %v4927 = vcombine.low %v4910, %v4924
  %v4928 = vcombine.high %v4910, %v4924
  %v4929 = vcombine.low %v4841, %v4858
  %v4930 = vcombine.high %v4841, %v4858
  %v4931 = vcombine.low %v4875, %v4892
  %v4932 = vcombine.high %v4875, %v4892
  %v4934 = vunpack.c.l.s4 1983009808
  %v4935 = vunpack.c.0.s8 %v4934
  %v4936 = vlaneseq
  %v4937 = vshrl.u32 %v4936, 7
  %v4938 = vsub.s32 %v4935, %v4937
  %v4939 = vrot.slane %v4929, %v4938
  %v4941 = vunpack.c.l.s4 1983009808
  %v4942 = vunpack.c.0.s8 %v4941
  %v4943 = vlaneseq
  %v4944 = vshrl.u32 %v4943, 7
  %v4945 = vsub.s32 %v4942, %v4944
  %v4946 = vrot.slane %v4930, %v4945
  %v4948 = vunpack.c.l.s4 1983009808
  %v4949 = vunpack.c.0.s8 %v4948
  %v4950 = vlaneseq
  %v4951 = vshrl.u32 %v4950, 7
  %v4952 = vsub.s32 %v4949, %v4951
  %v4953 = vrot.slane %v4931, %v4952
  %v4955 = vunpack.c.l.s4 1983009808
  %v4956 = vunpack.c.0.s8 %v4955
  %v4957 = vlaneseq
  %v4958 = vshrl.u32 %v4957, 7
  %v4959 = vsub.s32 %v4956, %v4958
  %v4960 = vrot.slane %v4932, %v4959
  %v4961 = vcombine.low %v4939, %v4953
  %v4962 = vcombine.high %v4939, %v4953
  %v4963 = vcombine.low %v4946, %v4960
  %v4964 = vcombine.high %v4946, %v4960
  %4973 = vmatprep.subr.bf16.mxu0 0
  %4974 = vmatpush1.bf16.msra.mxu0 %v2672
  %4975 = vmatprep.subr.bf16.mxu0 0
  %4976 = vmatpush1.bf16.msra.mxu0 %v2673
  %4977 = vmatprep.subr.bf16.mxu0 0
  %4978 = vmatpush1.bf16.msra.mxu0 %v2674
  %4979 = vmatprep.subr.bf16.mxu0 0
  %4980 = vmatpush1.bf16.msra.mxu0 %v2675
  %4981 = vmatprep.subr.bf16.mxu0 0
  %4982 = vmatpush1.bf16.msra.mxu0 %v2676
  %4983 = vmatprep.subr.bf16.mxu0 0
  %4984 = vmatpush1.bf16.msra.mxu0 %v2677
  %4985 = vmatprep.subr.bf16.mxu0 0
  %4986 = vmatpush1.bf16.msra.mxu0 %v2678
  %4987 = vmatprep.subr.bf16.mxu0 0
  %4988 = vmatpush1.bf16.msra.mxu0 %v2679
  %4989 = vmatprep.subr.bf16.mxu0 0
  %4990 = vmatpush1.bf16.msra.mxu0 %v2680
  %4991 = vmatprep.subr.bf16.mxu0 0
  %4992 = vmatpush1.bf16.msra.mxu0 %v2681
  %4993 = vmatprep.subr.bf16.mxu0 0
  %4994 = vmatpush1.bf16.msra.mxu0 %v2682
  %4995 = vmatprep.subr.bf16.mxu0 0
  %4996 = vmatpush1.bf16.msra.mxu0 %v2683
  %4997 = vmatprep.subr.bf16.mxu0 0
  %4998 = vmatpush1.bf16.msra.mxu0 %v2684
  %4999 = vmatprep.subr.bf16.mxu0 0
  %5000 = vmatpush1.bf16.msra.mxu0 %v2685
  %5001 = vmatprep.subr.bf16.mxu0 0
  %5002 = vmatpush1.bf16.msra.mxu0 %v2686
  %5003 = vmatprep.subr.bf16.mxu0 0
  %5004 = vmatpush1.bf16.msra.mxu0 %v2687
  %5005 = vmatprep.mubr.bf16.mxu0 %v3625
  %5006 = vmatmul.mubr.bf16.gmra.mrb[0].mxu0 %v3624
  %v5007 = vpop.f32.mrb[0].mxu0
  %v5008 = vadd.f32 0.0, %v5007
  %v5009 = vpop.f32.mrb[0].mxu0
  %v5010 = vpop.f32.mrb[0].mxu0
  %v5011 = vadd.f32 0.0, %v5010
  %v5012 = vpop.f32.mrb[0].mxu0
  %5013 = vmatprep.mubr.bf16.mxu0 %v3697
  %5014 = vmatmul.mubr.bf16.gmra.mrb[0].mxu0 %v3696
  %v5015 = vpop.f32.mrb[0].mxu0
  %v5016 = vadd.f32 0.0, %v5015
  %v5017 = vpop.f32.mrb[0].mxu0
  %v5018 = vpop.f32.mrb[0].mxu0
  %v5019 = vadd.f32 0.0, %v5018
  %v5020 = vpop.f32.mrb[0].mxu0
  %5021 = vdwg.mxu0
  %5022 = vmatprep.subr.bf16.mxu0 0
  %5023 = vmatpush1.bf16.msra.mxu0 %v2688
  %5024 = vmatprep.subr.bf16.mxu0 0
  %5025 = vmatpush1.bf16.msra.mxu0 %v2689
  %5026 = vmatprep.subr.bf16.mxu0 0
  %5027 = vmatpush1.bf16.msra.mxu0 %v2690
  %5028 = vmatprep.subr.bf16.mxu0 0
  %5029 = vmatpush1.bf16.msra.mxu0 %v2691
  %5030 = vmatprep.subr.bf16.mxu0 0
  %5031 = vmatpush1.bf16.msra.mxu0 %v2692
  %5032 = vmatprep.subr.bf16.mxu0 0
  %5033 = vmatpush1.bf16.msra.mxu0 %v2693
  %5034 = vmatprep.subr.bf16.mxu0 0
  %5035 = vmatpush1.bf16.msra.mxu0 %v2694
  %5036 = vmatprep.subr.bf16.mxu0 0
  %5037 = vmatpush1.bf16.msra.mxu0 %v2695
  %5038 = vmatprep.subr.bf16.mxu0 0
  %5039 = vmatpush1.bf16.msra.mxu0 %v2696
  %5040 = vmatprep.subr.bf16.mxu0 0
  %5041 = vmatpush1.bf16.msra.mxu0 %v2697
  %5042 = vmatprep.subr.bf16.mxu0 0
  %5043 = vmatpush1.bf16.msra.mxu0 %v2698
  %5044 = vmatprep.subr.bf16.mxu0 0
  %5045 = vmatpush1.bf16.msra.mxu0 %v2699
  %5046 = vmatprep.subr.bf16.mxu0 0
  %5047 = vmatpush1.bf16.msra.mxu0 %v2700
  %5048 = vmatprep.subr.bf16.mxu0 0
  %5049 = vmatpush1.bf16.msra.mxu0 %v2701
  %5050 = vmatprep.subr.bf16.mxu0 0
  %5051 = vmatpush1.bf16.msra.mxu0 %v2702
  %5052 = vmatprep.subr.bf16.mxu0 0
  %5053 = vmatpush1.bf16.msra.mxu0 %v2703
  %5054 = vmatprep.mubr.bf16.mxu0 %v3627
  %5055 = vmatmul.mubr.bf16.gmra.mrb[0].mxu0 %v3626
  %v5056 = vpop.f32.mrb[0].mxu0
  %v5057 = vadd.f32 %v5008, %v5056
  %v5058 = vpop.f32.mrb[0].mxu0
  %v5059 = vpop.f32.mrb[0].mxu0
  %v5060 = vadd.f32 %v5011, %v5059
  %v5061 = vpop.f32.mrb[0].mxu0
  %5062 = vmatprep.mubr.bf16.mxu0 %v3699
  %5063 = vmatmul.mubr.bf16.gmra.mrb[0].mxu0 %v3698
  %v5064 = vpop.f32.mrb[0].mxu0
  %v5065 = vadd.f32 %v5016, %v5064
  %v5066 = vpop.f32.mrb[0].mxu0
  %v5067 = vpop.f32.mrb[0].mxu0
  %v5068 = vadd.f32 %v5019, %v5067
  %v5069 = vpop.f32.mrb[0].mxu0
  %5070 = vdwg.mxu0
  %5071 = vmatprep.subr.bf16.mxu0 0
  %5072 = vmatpush1.bf16.msra.mxu0 %v2704
  %5073 = vmatprep.subr.bf16.mxu0 0
  %5074 = vmatpush1.bf16.msra.mxu0 %v2705
  %5075 = vmatprep.subr.bf16.mxu0 0
  %5076 = vmatpush1.bf16.msra.mxu0 %v2706
  %5077 = vmatprep.subr.bf16.mxu0 0
  %5078 = vmatpush1.bf16.msra.mxu0 %v2707
  %5079 = vmatprep.subr.bf16.mxu0 0
  %5080 = vmatpush1.bf16.msra.mxu0 %v2708
  %5081 = vmatprep.subr.bf16.mxu0 0
  %5082 = vmatpush1.bf16.msra.mxu0 %v2709
  %5083 = vmatprep.subr.bf16.mxu0 0
  %5084 = vmatpush1.bf16.msra.mxu0 %v2710
  %5085 = vmatprep.subr.bf16.mxu0 0
  %5086 = vmatpush1.bf16.msra.mxu0 %v2711
  %5087 = vmatprep.subr.bf16.mxu0 0
  %5088 = vmatpush1.bf16.msra.mxu0 %v2712
  %5089 = vmatprep.subr.bf16.mxu0 0
  %5090 = vmatpush1.bf16.msra.mxu0 %v2713
  %5091 = vmatprep.subr.bf16.mxu0 0
  %5092 = vmatpush1.bf16.msra.mxu0 %v2714
  %5093 = vmatprep.subr.bf16.mxu0 0
  %5094 = vmatpush1.bf16.msra.mxu0 %v2715
  %5095 = vmatprep.subr.bf16.mxu0 0
  %5096 = vmatpush1.bf16.msra.mxu0 %v2716
  %5097 = vmatprep.subr.bf16.mxu0 0
  %5098 = vmatpush1.bf16.msra.mxu0 %v2717
  %5099 = vmatprep.subr.bf16.mxu0 0
  %5100 = vmatpush1.bf16.msra.mxu0 %v2718
  %5101 = vmatprep.subr.bf16.mxu0 0
  %5102 = vmatpush1.bf16.msra.mxu0 %v2719
  %5103 = vmatprep.mubr.bf16.mxu0 %v4926
  %5104 = vmatmul.mubr.bf16.gmra.mrb[0].mxu0 %v4925
  %v5105 = vpop.f32.mrb[0].mxu0
  %v5106 = vadd.f32 %v5057, %v5105
  %v5107 = vpop.f32.mrb[0].mxu0
  %v5108 = vpop.f32.mrb[0].mxu0
  %v5109 = vadd.f32 %v5060, %v5108
  %v5110 = vpop.f32.mrb[0].mxu0
  %5111 = vmatprep.mubr.bf16.mxu0 %v4962
  %5112 = vmatmul.mubr.bf16.gmra.mrb[0].mxu0 %v4961
  %v5113 = vpop.f32.mrb[0].mxu0
  %v5114 = vadd.f32 %v5065, %v5113
  %v5115 = vpop.f32.mrb[0].mxu0
  %v5116 = vpop.f32.mrb[0].mxu0
  %v5117 = vadd.f32 %v5068, %v5116
  %v5118 = vpop.f32.mrb[0].mxu0
  %5119 = vdwg.mxu0
  %5120 = vmatprep.subr.bf16.mxu0 0
  %5121 = vmatpush1.bf16.msra.mxu0 %v2720
  %5122 = vmatprep.subr.bf16.mxu0 0
  %5123 = vmatpush1.bf16.msra.mxu0 %v2721
  %5124 = vmatprep.subr.bf16.mxu0 0
  %5125 = vmatpush1.bf16.msra.mxu0 %v2722
  %5126 = vmatprep.subr.bf16.mxu0 0
  %5127 = vmatpush1.bf16.msra.mxu0 %v2723
  %5128 = vmatprep.subr.bf16.mxu0 0
  %5129 = vmatpush1.bf16.msra.mxu0 %v2724
  %5130 = vmatprep.subr.bf16.mxu0 0
  %5131 = vmatpush1.bf16.msra.mxu0 %v2725
  %5132 = vmatprep.subr.bf16.mxu0 0
  %5133 = vmatpush1.bf16.msra.mxu0 %v2726
  %5134 = vmatprep.subr.bf16.mxu0 0
  %5135 = vmatpush1.bf16.msra.mxu0 %v2727
  %5136 = vmatprep.subr.bf16.mxu0 0
  %5137 = vmatpush1.bf16.msra.mxu0 %v2728
  %5138 = vmatprep.subr.bf16.mxu0 0
  %5139 = vmatpush1.bf16.msra.mxu0 %v2729
  %5140 = vmatprep.subr.bf16.mxu0 0
  %5141 = vmatpush1.bf16.msra.mxu0 %v2730
  %5142 = vmatprep.subr.bf16.mxu0 0
  %5143 = vmatpush1.bf16.msra.mxu0 %v2731
  %5144 = vmatprep.subr.bf16.mxu0 0
  %5145 = vmatpush1.bf16.msra.mxu0 %v2732
  %5146 = vmatprep.subr.bf16.mxu0 0
  %5147 = vmatpush1.bf16.msra.mxu0 %v2733
  %5148 = vmatprep.subr.bf16.mxu0 0
  %5149 = vmatpush1.bf16.msra.mxu0 %v2734
  %5150 = vmatprep.subr.bf16.mxu0 0
  %5151 = vmatpush1.bf16.msra.mxu0 %v2735
  %5152 = vmatprep.mubr.bf16.mxu0 %v4928
  %5153 = vmatmul.mubr.bf16.gmra.mrb[0].mxu0 %v4927
  %v5154 = vpop.f32.mrb[0].mxu0
  %v5155 = vadd.f32 %v5106, %v5154
  %v5156 = vpop.f32.mrb[0].mxu0
  %v5157 = vpop.f32.mrb[0].mxu0
  %v5158 = vadd.f32 %v5109, %v5157
  %v5159 = vpop.f32.mrb[0].mxu0
  %5160 = vmatprep.mubr.bf16.mxu0 %v4964
  %5161 = vmatmul.mubr.bf16.gmra.mrb[0].mxu0 %v4963
  %v5162 = vpop.f32.mrb[0].mxu0
  %v5163 = vadd.f32 %v5114, %v5162
  %v5164 = vpop.f32.mrb[0].mxu0
  %v5165 = vpop.f32.mrb[0].mxu0
  %v5166 = vadd.f32 %v5117, %v5165
  %v5167 = vpop.f32.mrb[0].mxu0
  %5168 = vdwg.mxu0
  %v5169 = vadd.f32 %v2982, %v2985
  %v5170 = vadd.f32 %v5169, %v2990
  %v5171 = vadd.f32 %v5170, %v2993
  %v5172 = vadd.f32 %v5171, %v3898
  %v5173 = vadd.f32 %v5172, %v3901
  %v5174 = vadd.f32 %v5173, %v3906
  %v5175 = vadd.f32 %v5174, %v3909
  %v5176 = vadd.f32 %v5175, %v4599
  %v5177 = vadd.f32 %v5176, %v4602
  %v5178 = vadd.f32 %v5177, %v4607
  %v5179 = vadd.f32 %v5178, %v4610
  %v5180 = vadd.f32 %v5179, %v5155
  %v5181 = vadd.f32 %v5180, %v5158
  %v5182 = vadd.f32 %v5181, %v5163
  %v5183 = vadd.f32 %v5182, %v5166
  %v5184 = vrot.slane %v5183, 4
  %v5185 = vadd.f32 %v5183, %v5184
  %v5186 = vrot.slane %v5185, 2
  %v5187 = vadd.f32 %v5185, %v5186
  %v5188 = vrot.slane %v5187, 1
  %v5189 = vadd.f32 %v5187, %v5188
  %v5190 = vrcp.pop 128.0
  %v5191 = vmul.f32 %v5189, %v5190
  %v5192 = vsub.f32 %v2982, %v5191
  %v5193 = vsub.f32 %v2985, %v5191
  %v5194 = vsub.f32 %v2990, %v5191
  %v5195 = vsub.f32 %v2993, %v5191
  %v5196 = vsub.f32 %v3898, %v5191
  %v5197 = vsub.f32 %v3901, %v5191
  %v5198 = vsub.f32 %v3906, %v5191
  %v5199 = vsub.f32 %v3909, %v5191
  %v5200 = vsub.f32 %v4599, %v5191
  %v5201 = vsub.f32 %v4602, %v5191
  %v5202 = vsub.f32 %v4607, %v5191
  %v5203 = vsub.f32 %v4610, %v5191
  %v5204 = vsub.f32 %v5155, %v5191
  %v5205 = vsub.f32 %v5158, %v5191
  %v5206 = vsub.f32 %v5163, %v5191
  %v5207 = vsub.f32 %v5166, %v5191
  %v5208 = vmul.f32 %v5192, %v5192
  %v5209 = vmul.f32 %v5193, %v5193
  %v5210 = vmul.f32 %v5194, %v5194
  %v5211 = vmul.f32 %v5195, %v5195
  %v5212 = vmul.f32 %v5196, %v5196
  %v5213 = vmul.f32 %v5197, %v5197
  %v5214 = vmul.f32 %v5198, %v5198
  %v5215 = vmul.f32 %v5199, %v5199
  %v5216 = vmul.f32 %v5200, %v5200
  %v5217 = vmul.f32 %v5201, %v5201
  %v5218 = vmul.f32 %v5202, %v5202
  %v5219 = vmul.f32 %v5203, %v5203
  %v5220 = vmul.f32 %v5204, %v5204
  %v5221 = vmul.f32 %v5205, %v5205
  %v5222 = vmul.f32 %v5206, %v5206
  %v5223 = vmul.f32 %v5207, %v5207
  %v5224 = vadd.f32 %v5208, %v5209
  %v5225 = vadd.f32 %v5224, %v5210
  %v5226 = vadd.f32 %v5225, %v5211
  %v5227 = vadd.f32 %v5226, %v5212
  %v5228 = vadd.f32 %v5227, %v5213
  %v5229 = vadd.f32 %v5228, %v5214
  %v5230 = vadd.f32 %v5229, %v5215
  %v5231 = vadd.f32 %v5230, %v5216
  %v5232 = vadd.f32 %v5231, %v5217
  %v5233 = vadd.f32 %v5232, %v5218
  %v5234 = vadd.f32 %v5233, %v5219
  %v5235 = vadd.f32 %v5234, %v5220
  %v5236 = vadd.f32 %v5235, %v5221
  %v5237 = vadd.f32 %v5236, %v5222
  %v5238 = vadd.f32 %v5237, %v5223
  %v5239 = vrot.slane %v5238, 4
  %v5240 = vadd.f32 %v5238, %v5239
  %v5241 = vrot.slane %v5240, 2
  %v5242 = vadd.f32 %v5240, %v5241
  %v5243 = vrot.slane %v5242, 1
  %v5244 = vadd.f32 %v5242, %v5243
  %v5245 = vmul.f32 %v5244, %v5190
  %v5246 = vadd.f32 %v5245, 1e-05
  %v5247 = vrsqrt.pop %v5246
  %v5248 = vmul.f32 %v5192, %v5247
  %v5249 = vmul.f32 %v5193, %v5247
  %v5250 = vmul.f32 %v5194, %v5247
  %v5251 = vmul.f32 %v5195, %v5247
  %v5252 = vmul.f32 %v5196, %v5247
  %v5253 = vmul.f32 %v5197, %v5247
  %v5254 = vmul.f32 %v5198, %v5247
  %v5255 = vmul.f32 %v5199, %v5247
  %v5256 = vmul.f32 %v5200, %v5247
  %v5257 = vmul.f32 %v5201, %v5247
  %v5258 = vmul.f32 %v5202, %v5247
  %v5259 = vmul.f32 %v5203, %v5247
  %v5260 = vmul.f32 %v5204, %v5247
  %v5261 = vmul.f32 %v5205, %v5247
  %v5262 = vmul.f32 %v5206, %v5247
  %v5263 = vmul.f32 %v5207, %v5247
  %v5264 = vld [vmem:[%s3] sm:$0x1]
  %v5266 = vlaneseq
  %v5267 = vshrl.u32 %v5266, 7
  %v5268 = vsub.s32 0, %v5267
  %v5269 = vrot.slane %v5264, %v5268
  %v5271 = vmul.f32 %v5248, %v5269
  %v5272 = vmul.f32 %v5249, %v5269
  %v5273 = vmul.f32 %v5250, %v5269
  %v5274 = vmul.f32 %v5251, %v5269
  %v5275 = vmul.f32 %v5252, %v5269
  %v5276 = vmul.f32 %v5253, %v5269
  %v5277 = vmul.f32 %v5254, %v5269
  %v5278 = vmul.f32 %v5255, %v5269
  %v5279 = vmul.f32 %v5256, %v5269
  %v5280 = vmul.f32 %v5257, %v5269
  %v5281 = vmul.f32 %v5258, %v5269
  %v5282 = vmul.f32 %v5259, %v5269
  %v5283 = vmul.f32 %v5260, %v5269
  %v5284 = vmul.f32 %v5261, %v5269
  %v5285 = vmul.f32 %v5262, %v5269
  %v5286 = vmul.f32 %v5263, %v5269
  %v5287 = vld [vmem:[%s4] sm:$0x1]
  %v5289 = vlaneseq
  %v5290 = vshrl.u32 %v5289, 7
  %v5291 = vsub.s32 0, %v5290
  %v5292 = vrot.slane %v5287, %v5291
  %v5294 = vadd.f32 %v5271, %v5292
  %v5295 = vadd.f32 %v5272, %v5292
  %v5296 = vadd.f32 %v5273, %v5292
  %v5297 = vadd.f32 %v5274, %v5292
  %v5298 = vadd.f32 %v5275, %v5292
  %v5299 = vadd.f32 %v5276, %v5292
  %v5300 = vadd.f32 %v5277, %v5292
  %v5301 = vadd.f32 %v5278, %v5292
  %v5302 = vadd.f32 %v5279, %v5292
  %v5303 = vadd.f32 %v5280, %v5292
  %v5304 = vadd.f32 %v5281, %v5292
  %v5305 = vadd.f32 %v5282, %v5292
  %v5306 = vadd.f32 %v5283, %v5292
  %v5307 = vadd.f32 %v5284, %v5292
  %v5308 = vadd.f32 %v5285, %v5292
  %v5309 = vadd.f32 %v5286, %v5292
  %vm5310 = vcmp.ge.f32.partialorder %v5294, 0.0
  %vm5311 = vcmp.ge.f32.partialorder %v5295, 0.0
  %vm5312 = vcmp.ge.f32.partialorder %v5296, 0.0
  %vm5313 = vcmp.ge.f32.partialorder %v5297, 0.0
  %vm5314 = vcmp.ge.f32.partialorder %v5298, 0.0
  %vm5315 = vcmp.ge.f32.partialorder %v5299, 0.0
  %vm5316 = vcmp.ge.f32.partialorder %v5300, 0.0
  %vm5317 = vcmp.ge.f32.partialorder %v5301, 0.0
  %vm5318 = vcmp.ge.f32.partialorder %v5302, 0.0
  %vm5319 = vcmp.ge.f32.partialorder %v5303, 0.0
  %vm5320 = vcmp.ge.f32.partialorder %v5304, 0.0
  %vm5321 = vcmp.ge.f32.partialorder %v5305, 0.0
  %vm5322 = vcmp.ge.f32.partialorder %v5306, 0.0
  %vm5323 = vcmp.ge.f32.partialorder %v5307, 0.0
  %vm5324 = vcmp.ge.f32.partialorder %v5308, 0.0
  %vm5325 = vcmp.ge.f32.partialorder %v5309, 0.0
  %v5326 = vmul.f32 %v5294, 0.2
  %v5327 = vmul.f32 %v5295, 0.2
  %v5328 = vmul.f32 %v5296, 0.2
  %v5329 = vmul.f32 %v5297, 0.2
  %v5330 = vmul.f32 %v5298, 0.2
  %v5331 = vmul.f32 %v5299, 0.2
  %v5332 = vmul.f32 %v5300, 0.2
  %v5333 = vmul.f32 %v5301, 0.2
  %v5334 = vmul.f32 %v5302, 0.2
  %v5335 = vmul.f32 %v5303, 0.2
  %v5336 = vmul.f32 %v5304, 0.2
  %v5337 = vmul.f32 %v5305, 0.2
  %v5338 = vmul.f32 %v5306, 0.2
  %v5339 = vmul.f32 %v5307, 0.2
  %v5340 = vmul.f32 %v5308, 0.2
  %v5341 = vmul.f32 %v5309, 0.2
  %v5342 = vsel %vm5310, %v5294, %v5326
  %v5343 = vsel %vm5311, %v5295, %v5327
  %v5344 = vsel %vm5312, %v5296, %v5328
  %v5345 = vsel %vm5313, %v5297, %v5329
  %v5346 = vsel %vm5314, %v5298, %v5330
  %v5347 = vsel %vm5315, %v5299, %v5331
  %v5348 = vsel %vm5316, %v5300, %v5332
  %v5349 = vsel %vm5317, %v5301, %v5333
  %v5350 = vsel %vm5318, %v5302, %v5334
  %v5351 = vsel %vm5319, %v5303, %v5335
  %v5352 = vsel %vm5320, %v5304, %v5336
  %v5353 = vsel %vm5321, %v5305, %v5337
  %v5354 = vsel %vm5322, %v5306, %v5338
  %v5355 = vsel %vm5323, %v5307, %v5339
  %v5356 = vsel %vm5324, %v5308, %v5340
  %v5357 = vsel %vm5325, %v5309, %v5341
  %5358 = vst [vmem:[#allocation3] sm:$0xff] 0.0
  %5359 = vst [vmem:[#allocation3 + $0x8] sm:$0x3] 0.0
  %5360 = vst [vmem:[#allocation3 + $0x10] sm:$0xff] 0.0
  %5361 = vst [vmem:[#allocation3 + $0x18] sm:$0x3] 0.0
  %5362 = vst [vmem:[#allocation3 + $0x20] sm:$0xff] 0.0
  %5363 = vst [vmem:[#allocation3 + $0x28] sm:$0x3] 0.0
  %5364 = vst [vmem:[#allocation3 + $0x30] sm:$0xff] 0.0
  %5365 = vst [vmem:[#allocation3 + $0x38] sm:$0x3] 0.0
  %5366 = vst [vmem:[#allocation3 + $0x40] sm:$0xff] 0.0
  %5367 = vst [vmem:[#allocation3 + $0x48] sm:$0x3] 0.0
  %5368 = vst [vmem:[#allocation3 + $0x50] sm:$0xff] 0.0
  %5369 = vst [vmem:[#allocation3 + $0x58] sm:$0x3] 0.0
  %5370 = vst [vmem:[#allocation3 + $0x60] sm:$0xff] 0.0
  %5371 = vst [vmem:[#allocation3 + $0x68] sm:$0x3] 0.0
  %5372 = vst [vmem:[#allocation3 + $0x70] sm:$0xff] 0.0
  %5373 = vst [vmem:[#allocation3 + $0x78] sm:$0x3] 0.0
  %5374 = vst [vmem:[#allocation3 + $0x80] sm:$0xff] 0.0
  %5375 = vst [vmem:[#allocation3 + $0x88] sm:$0x3] 0.0
  %5376 = vst [vmem:[#allocation3 + $0x90] sm:$0xff] 0.0
  %5377 = vst [vmem:[#allocation3 + $0x98] sm:$0x3] 0.0
  %5378 = vst [vmem:[#allocation3 + $0xa0] sm:$0xff] 0.0
  %5379 = vst [vmem:[#allocation3 + $0xa8] sm:$0x3] 0.0
  %5380 = vst [vmem:[#allocation3 + $0xb0] sm:$0xff] 0.0
  %5381 = vst [vmem:[#allocation3 + $0xb8] sm:$0x3] 0.0
  %5382 = vst [vmem:[#allocation3 + $0xc0] sm:$0xff] 0.0
  %5383 = vst [vmem:[#allocation3 + $0xc8] sm:$0x3] 0.0
  %5384 = vst [vmem:[#allocation3 + $0xd0] sm:$0xff] 0.0
  %5385 = vst [vmem:[#allocation3 + $0xd8] sm:$0x3] 0.0
  %5386 = vst [vmem:[#allocation3 + $0xe0] sm:$0xff] 0.0
  %5387 = vst [vmem:[#allocation3 + $0xe8] sm:$0x3] 0.0
  %5388 = vst [vmem:[#allocation3 + $0xf0] sm:$0xff] 0.0
  %5389 = vst [vmem:[#allocation3 + $0xf8] sm:$0x3] 0.0
  %5390 = vst [vmem:[#allocation3 + $0x100] sm:$0xff] 0.0
  %5391 = vst [vmem:[#allocation3 + $0x108] sm:$0x3] 0.0
  %5392 = vst [vmem:[#allocation3 + $0x110] sm:$0xff] 0.0
  %5393 = vst [vmem:[#allocation3 + $0x118] sm:$0x3] 0.0
  %5394 = vst [vmem:[#allocation3 + $0x120] sm:$0xff] 0.0
  %5395 = vst [vmem:[#allocation3 + $0x128] sm:$0x3] 0.0
  %5396 = vst [vmem:[#allocation3 + $0x130] sm:$0xff] 0.0
  %5397 = vst [vmem:[#allocation3 + $0x138] sm:$0x3] 0.0
  %v5402 = vcombine.high %v5342, %v5342
  %v5403 = vcombine.high %v5343, %v5343
  %v5404 = vcombine.high %v5344, %v5344
  %v5405 = vcombine.high %v5345, %v5345
  %s5410 = scalar_lea.vmem [#allocation3], 80
  %5411 = vst [vmem:[%s5410 + $0x5] sm:$0xf] %v5342
  %5412 = vst [vmem:[%s5410 + $0x15] sm:$0xf] %v5402
  %5413 = vst [vmem:[%s5410 + $0x25] sm:$0xf] %v5343
  %5414 = vst [vmem:[%s5410 + $0x35] sm:$0xf] %v5403
  %5415 = vst [vmem:[%s5410 + $0xa5] sm:$0xf] %v5344
  %5416 = vst [vmem:[%s5410 + $0xb5] sm:$0xf] %v5404
  %5417 = vst [vmem:[%s5410 + $0xc5] sm:$0xf] %v5345
  %5418 = vst [vmem:[%s5410 + $0xd5] sm:$0xf] %v5405
  %v5423 = vcombine.high %v5346, %v5346
  %v5424 = vcombine.high %v5347, %v5347
  %v5425 = vcombine.high %v5348, %v5348
  %v5426 = vcombine.high %v5349, %v5349
  %5431 = vst [vmem:[%s5410 + $0x1] sm:$0xf] %v5346
  %5432 = vst [vmem:[%s5410 + $0x11] sm:$0xf] %v5423
  %5433 = vst [vmem:[%s5410 + $0x21] sm:$0xf] %v5347
  %5434 = vst [vmem:[%s5410 + $0x31] sm:$0xf] %v5424
  %5435 = vst [vmem:[%s5410 + $0xa1] sm:$0xf] %v5348
  %5436 = vst [vmem:[%s5410 + $0xb1] sm:$0xf] %v5425
  %5437 = vst [vmem:[%s5410 + $0xc1] sm:$0xf] %v5349
  %5438 = vst [vmem:[%s5410 + $0xd1] sm:$0xf] %v5426
  %v5443 = vcombine.high %v5350, %v5350
  %v5444 = vcombine.high %v5351, %v5351
  %v5445 = vcombine.high %v5352, %v5352
  %v5446 = vcombine.high %v5353, %v5353
  %s5451 = scalar_lea.vmem [#allocation3], 16
  %5452 = vst [vmem:[%s5451 + $0x5] sm:$0xf] %v5350
  %5453 = vst [vmem:[%s5451 + $0x15] sm:$0xf] %v5443
  %5454 = vst [vmem:[%s5451 + $0x25] sm:$0xf] %v5351
  %5455 = vst [vmem:[%s5451 + $0x35] sm:$0xf] %v5444
  %5456 = vst [vmem:[%s5451 + $0xa5] sm:$0xf] %v5352
  %5457 = vst [vmem:[%s5451 + $0xb5] sm:$0xf] %v5445
  %5458 = vst [vmem:[%s5451 + $0xc5] sm:$0xf] %v5353
  %5459 = vst [vmem:[%s5451 + $0xd5] sm:$0xf] %v5446
  %v5464 = vcombine.high %v5354, %v5354
  %v5465 = vcombine.high %v5355, %v5355
  %v5466 = vcombine.high %v5356, %v5356
  %v5467 = vcombine.high %v5357, %v5357
  %5472 = vst [vmem:[%s5451 + $0x1] sm:$0xf] %v5354
  %5473 = vst [vmem:[%s5451 + $0x11] sm:$0xf] %v5464
  %5474 = vst [vmem:[%s5451 + $0x21] sm:$0xf] %v5355
  %5475 = vst [vmem:[%s5451 + $0x31] sm:$0xf] %v5465
  %5476 = vst [vmem:[%s5451 + $0xa1] sm:$0xf] %v5356
  %5477 = vst [vmem:[%s5451 + $0xb1] sm:$0xf] %v5466
  %5478 = vst [vmem:[%s5451 + $0xc1] sm:$0xf] %v5357
  %5479 = vst [vmem:[%s5451 + $0xd1] sm:$0xf] %v5467
  %v5480 = vld [vmem:[#allocation3] sm:$0xf]
  %v5481 = vld [vmem:[#allocation3 + $0x10] sm:$0xf]
  %v5482 = vld [vmem:[#allocation3 + $0x20] sm:$0xf]
  %v5483 = vld [vmem:[#allocation3 + $0x30] sm:$0xf]
  %v5484 = vld [vmem:[#allocation3 + $0xa0] sm:$0xf]
  %v5485 = vld [vmem:[#allocation3 + $0xb0] sm:$0xf]
  %v5486 = vld [vmem:[#allocation3 + $0xc0] sm:$0xf]
  %v5487 = vld [vmem:[#allocation3 + $0xd0] sm:$0xf]
  %v5488 = vld [vmem:[#allocation3 + $0x5] sm:$0xf]
  %v5489 = vld [vmem:[#allocation3 + $0x15] sm:$0xf]
  %v5490 = vld [vmem:[#allocation3 + $0x25] sm:$0xf]
  %v5491 = vld [vmem:[#allocation3 + $0x35] sm:$0xf]
  %v5492 = vld [vmem:[#allocation3 + $0xa5] sm:$0xf]
  %v5493 = vld [vmem:[#allocation3 + $0xb5] sm:$0xf]
  %v5494 = vld [vmem:[#allocation3 + $0xc5] sm:$0xf]
  %v5495 = vld [vmem:[#allocation3 + $0xd5] sm:$0xf]
  %v5496 = vld [vmem:[#allocation3 + $0x1] sm:$0xf]
  %v5497 = vld [vmem:[#allocation3 + $0x11] sm:$0xf]
  %v5498 = vld [vmem:[#allocation3 + $0x21] sm:$0xf]
  %v5499 = vld [vmem:[#allocation3 + $0x31] sm:$0xf]
  %v5500 = vld [vmem:[#allocation3 + $0xa1] sm:$0xf]
  %v5501 = vld [vmem:[#allocation3 + $0xb1] sm:$0xf]
  %v5502 = vld [vmem:[#allocation3 + $0xc1] sm:$0xf]
  %v5503 = vld [vmem:[#allocation3 + $0xd1] sm:$0xf]
  %v5504 = vld [vmem:[#allocation3 + $0x6] sm:$0xf]
  %v5505 = vld [vmem:[#allocation3 + $0x16] sm:$0xf]
  %v5506 = vld [vmem:[#allocation3 + $0x26] sm:$0xf]
  %v5507 = vld [vmem:[#allocation3 + $0x36] sm:$0xf]
  %v5508 = vld [vmem:[#allocation3 + $0xa6] sm:$0xf]
  %v5509 = vld [vmem:[#allocation3 + $0xb6] sm:$0xf]
  %v5510 = vld [vmem:[#allocation3 + $0xc6] sm:$0xf]
  %v5511 = vld [vmem:[#allocation3 + $0xd6] sm:$0xf]
  %v5512 = vld [vmem:[%s5410] sm:$0xf]
  %v5513 = vld [vmem:[%s5410 + $0x10] sm:$0xf]
  %v5514 = vld [vmem:[%s5410 + $0x20] sm:$0xf]
  %v5515 = vld [vmem:[%s5410 + $0x30] sm:$0xf]
  %v5516 = vld [vmem:[%s5410 + $0xa0] sm:$0xf]
  %v5517 = vld [vmem:[%s5410 + $0xb0] sm:$0xf]
  %v5518 = vld [vmem:[%s5410 + $0xc0] sm:$0xf]
  %v5519 = vld [vmem:[%s5410 + $0xd0] sm:$0xf]
  %v5520 = vld [vmem:[%s5410 + $0x5] sm:$0xf]
  %v5521 = vld [vmem:[%s5410 + $0x15] sm:$0xf]
  %v5522 = vld [vmem:[%s5410 + $0x25] sm:$0xf]
  %v5523 = vld [vmem:[%s5410 + $0x35] sm:$0xf]
  %v5524 = vld [vmem:[%s5410 + $0xa5] sm:$0xf]
  %v5525 = vld [vmem:[%s5410 + $0xb5] sm:$0xf]
  %v5526 = vld [vmem:[%s5410 + $0xc5] sm:$0xf]
  %v5527 = vld [vmem:[%s5410 + $0xd5] sm:$0xf]
  %v5528 = vld [vmem:[%s5410 + $0x1] sm:$0xf]
  %v5529 = vld [vmem:[%s5410 + $0x11] sm:$0xf]
  %v5530 = vld [vmem:[%s5410 + $0x21] sm:$0xf]
  %v5531 = vld [vmem:[%s5410 + $0x31] sm:$0xf]
  %v5532 = vld [vmem:[%s5410 + $0xa1] sm:$0xf]
  %v5533 = vld [vmem:[%s5410 + $0xb1] sm:$0xf]
  %v5534 = vld [vmem:[%s5410 + $0xc1] sm:$0xf]
  %v5535 = vld [vmem:[%s5410 + $0xd1] sm:$0xf]
  %v5536 = vld [vmem:[%s5410 + $0x6] sm:$0xf]
  %v5537 = vld [vmem:[%s5410 + $0x16] sm:$0xf]
  %v5538 = vld [vmem:[%s5410 + $0x26] sm:$0xf]
  %v5539 = vld [vmem:[%s5410 + $0x36] sm:$0xf]
  %v5540 = vld [vmem:[%s5410 + $0xa6] sm:$0xf]
  %v5541 = vld [vmem:[%s5410 + $0xb6] sm:$0xf]
  %v5542 = vld [vmem:[%s5410 + $0xc6] sm:$0xf]
  %v5543 = vld [vmem:[%s5410 + $0xd6] sm:$0xf]
  %v5544 = vld [vmem:[%s5451] sm:$0xf]
  %v5545 = vld [vmem:[%s5451 + $0x10] sm:$0xf]
  %v5546 = vld [vmem:[%s5451 + $0x20] sm:$0xf]
  %v5547 = vld [vmem:[%s5451 + $0x30] sm:$0xf]
  %v5548 = vld [vmem:[%s5451 + $0xa0] sm:$0xf]
  %v5549 = vld [vmem:[%s5451 + $0xb0] sm:$0xf]
  %v5550 = vld [vmem:[%s5451 + $0xc0] sm:$0xf]
  %v5551 = vld [vmem:[%s5451 + $0xd0] sm:$0xf]
  %v5552 = vld [vmem:[%s5451 + $0x5] sm:$0xf]
  %v5553 = vld [vmem:[%s5451 + $0x15] sm:$0xf]
  %v5554 = vld [vmem:[%s5451 + $0x25] sm:$0xf]
  %v5555 = vld [vmem:[%s5451 + $0x35] sm:$0xf]
  %v5556 = vld [vmem:[%s5451 + $0xa5] sm:$0xf]
  %v5557 = vld [vmem:[%s5451 + $0xb5] sm:$0xf]
  %v5558 = vld [vmem:[%s5451 + $0xc5] sm:$0xf]
  %v5559 = vld [vmem:[%s5451 + $0xd5] sm:$0xf]
  %v5560 = vld [vmem:[%s5451 + $0x1] sm:$0xf]
  %v5561 = vld [vmem:[%s5451 + $0x11] sm:$0xf]
  %v5562 = vld [vmem:[%s5451 + $0x21] sm:$0xf]
  %v5563 = vld [vmem:[%s5451 + $0x31] sm:$0xf]
  %v5564 = vld [vmem:[%s5451 + $0xa1] sm:$0xf]
  %v5565 = vld [vmem:[%s5451 + $0xb1] sm:$0xf]
  %v5566 = vld [vmem:[%s5451 + $0xc1] sm:$0xf]
  %v5567 = vld [vmem:[%s5451 + $0xd1] sm:$0xf]
  %v5568 = vld [vmem:[%s5451 + $0x6] sm:$0xf]
  %v5569 = vld [vmem:[%s5451 + $0x16] sm:$0xf]
  %v5570 = vld [vmem:[%s5451 + $0x26] sm:$0xf]
  %v5571 = vld [vmem:[%s5451 + $0x36] sm:$0xf]
  %v5572 = vld [vmem:[%s5451 + $0xa6] sm:$0xf]
  %v5573 = vld [vmem:[%s5451 + $0xb6] sm:$0xf]
  %v5574 = vld [vmem:[%s5451 + $0xc6] sm:$0xf]
  %v5575 = vld [vmem:[%s5451 + $0xd6] sm:$0xf]
  %s5576 = scalar_lea.vmem [#allocation3], 96
  %v5577 = vld [vmem:[%s5576] sm:$0xf]
  %v5578 = vld [vmem:[%s5576 + $0x10] sm:$0xf]
  %v5579 = vld [vmem:[%s5576 + $0x20] sm:$0xf]
  %v5580 = vld [vmem:[%s5576 + $0x30] sm:$0xf]
  %v5581 = vld [vmem:[%s5576 + $0xa0] sm:$0xf]
  %v5582 = vld [vmem:[%s5576 + $0xb0] sm:$0xf]
  %v5583 = vld [vmem:[%s5576 + $0xc0] sm:$0xf]
  %v5584 = vld [vmem:[%s5576 + $0xd0] sm:$0xf]
  %v5585 = vld [vmem:[%s5576 + $0x5] sm:$0xf]
  %v5586 = vld [vmem:[%s5576 + $0x15] sm:$0xf]
  %v5587 = vld [vmem:[%s5576 + $0x25] sm:$0xf]
  %v5588 = vld [vmem:[%s5576 + $0x35] sm:$0xf]
  %v5589 = vld [vmem:[%s5576 + $0xa5] sm:$0xf]
  %v5590 = vld [vmem:[%s5576 + $0xb5] sm:$0xf]
  %v5591 = vld [vmem:[%s5576 + $0xc5] sm:$0xf]
  %v5592 = vld [vmem:[%s5576 + $0xd5] sm:$0xf]
  %v5593 = vld [vmem:[%s5576 + $0x1] sm:$0xf]
  %v5594 = vld [vmem:[%s5576 + $0x11] sm:$0xf]
  %v5595 = vld [vmem:[%s5576 + $0x21] sm:$0xf]
  %v5596 = vld [vmem:[%s5576 + $0x31] sm:$0xf]
  %v5597 = vld [vmem:[%s5576 + $0xa1] sm:$0xf]
  %v5598 = vld [vmem:[%s5576 + $0xb1] sm:$0xf]
  %v5599 = vld [vmem:[%s5576 + $0xc1] sm:$0xf]
  %v5600 = vld [vmem:[%s5576 + $0xd1] sm:$0xf]
  %v5601 = vld [vmem:[%s5576 + $0x6] sm:$0xf]
  %v5602 = vld [vmem:[%s5576 + $0x16] sm:$0xf]
  %v5603 = vld [vmem:[%s5576 + $0x26] sm:$0xf]
  %v5604 = vld [vmem:[%s5576 + $0x36] sm:$0xf]
  %v5605 = vld [vmem:[%s5576 + $0xa6] sm:$0xf]
  %v5606 = vld [vmem:[%s5576 + $0xb6] sm:$0xf]
  %v5607 = vld [vmem:[%s5576 + $0xc6] sm:$0xf]
  %v5608 = vld [vmem:[%s5576 + $0xd6] sm:$0xf]
  %v5609 = vpack.c.bf16 %v5480, %v5480
  %v5610 = vpack.c.bf16 %v5488, %v5488
  %v5611 = vpack.c.bf16 %v5496, %v5496
  %v5612 = vpack.c.bf16 %v5504, %v5504
  %v5613 = vpack.c.bf16 %v5512, %v5512
  %v5614 = vpack.c.bf16 %v5520, %v5520
  %v5615 = vpack.c.bf16 %v5528, %v5528
  %v5616 = vpack.c.bf16 %v5536, %v5536
  %v5617 = vpack.c.bf16 %v5544, %v5544
  %v5618 = vpack.c.bf16 %v5552, %v5552
  %v5619 = vpack.c.bf16 %v5560, %v5560
  %v5620 = vpack.c.bf16 %v5568, %v5568
  %v5621 = vpack.c.bf16 %v5577, %v5577
  %v5622 = vpack.c.bf16 %v5585, %v5585
  %v5623 = vpack.c.bf16 %v5593, %v5593
  %v5624 = vpack.c.bf16 %v5601, %v5601
  %v5625 = vpack.c.bf16 %v5481, %v5481
  %v5626 = vpack.c.bf16 %v5489, %v5489
  %v5627 = vpack.c.bf16 %v5497, %v5497
  %v5628 = vpack.c.bf16 %v5505, %v5505
  %v5629 = vpack.c.bf16 %v5513, %v5513
  %v5630 = vpack.c.bf16 %v5521, %v5521
  %v5631 = vpack.c.bf16 %v5529, %v5529
  %v5632 = vpack.c.bf16 %v5537, %v5537
  %v5633 = vpack.c.bf16 %v5545, %v5545
  %v5634 = vpack.c.bf16 %v5553, %v5553
  %v5635 = vpack.c.bf16 %v5561, %v5561
  %v5636 = vpack.c.bf16 %v5569, %v5569
  %v5637 = vpack.c.bf16 %v5578, %v5578
  %v5638 = vpack.c.bf16 %v5586, %v5586
  %v5639 = vpack.c.bf16 %v5594, %v5594
  %v5640 = vpack.c.bf16 %v5602, %v5602
  %v5641 = vpack.c.bf16 %v5482, %v5482
  %v5642 = vpack.c.bf16 %v5490, %v5490
  %v5643 = vpack.c.bf16 %v5498, %v5498
  %v5644 = vpack.c.bf16 %v5506, %v5506
  %v5645 = vpack.c.bf16 %v5514, %v5514
  %v5646 = vpack.c.bf16 %v5522, %v5522
  %v5647 = vpack.c.bf16 %v5530, %v5530
  %v5648 = vpack.c.bf16 %v5538, %v5538
  %v5649 = vpack.c.bf16 %v5546, %v5546
  %v5650 = vpack.c.bf16 %v5554, %v5554
  %v5651 = vpack.c.bf16 %v5562, %v5562
  %v5652 = vpack.c.bf16 %v5570, %v5570
  %v5653 = vpack.c.bf16 %v5579, %v5579
  %v5654 = vpack.c.bf16 %v5587, %v5587
  %v5655 = vpack.c.bf16 %v5595, %v5595
  %v5656 = vpack.c.bf16 %v5603, %v5603
  %v5657 = vpack.c.bf16 %v5483, %v5483
  %v5658 = vpack.c.bf16 %v5491, %v5491
  %v5659 = vpack.c.bf16 %v5499, %v5499
  %v5660 = vpack.c.bf16 %v5507, %v5507
  %v5661 = vpack.c.bf16 %v5515, %v5515
  %v5662 = vpack.c.bf16 %v5523, %v5523
  %v5663 = vpack.c.bf16 %v5531, %v5531
  %v5664 = vpack.c.bf16 %v5539, %v5539
  %v5665 = vpack.c.bf16 %v5547, %v5547
  %v5666 = vpack.c.bf16 %v5555, %v5555
  %v5667 = vpack.c.bf16 %v5563, %v5563
  %v5668 = vpack.c.bf16 %v5571, %v5571
  %v5669 = vpack.c.bf16 %v5580, %v5580
  %v5670 = vpack.c.bf16 %v5588, %v5588
  %v5671 = vpack.c.bf16 %v5596, %v5596
  %v5672 = vpack.c.bf16 %v5604, %v5604
  %v5673 = vpack.c.bf16 %v5484, %v5484
  %v5674 = vpack.c.bf16 %v5492, %v5492
  %v5675 = vpack.c.bf16 %v5500, %v5500
  %v5676 = vpack.c.bf16 %v5508, %v5508
  %v5677 = vpack.c.bf16 %v5516, %v5516
  %v5678 = vpack.c.bf16 %v5524, %v5524
  %v5679 = vpack.c.bf16 %v5532, %v5532
  %v5680 = vpack.c.bf16 %v5540, %v5540
  %v5681 = vpack.c.bf16 %v5548, %v5548
  %v5682 = vpack.c.bf16 %v5556, %v5556
  %v5683 = vpack.c.bf16 %v5564, %v5564
  %v5684 = vpack.c.bf16 %v5572, %v5572
  %v5685 = vpack.c.bf16 %v5581, %v5581
  %v5686 = vpack.c.bf16 %v5589, %v5589
  %v5687 = vpack.c.bf16 %v5597, %v5597
  %v5688 = vpack.c.bf16 %v5605, %v5605
  %v5689 = vpack.c.bf16 %v5485, %v5485
  %v5690 = vpack.c.bf16 %v5493, %v5493
  %v5691 = vpack.c.bf16 %v5501, %v5501
  %v5692 = vpack.c.bf16 %v5509, %v5509
  %v5693 = vpack.c.bf16 %v5517, %v5517
  %v5694 = vpack.c.bf16 %v5525, %v5525
  %v5695 = vpack.c.bf16 %v5533, %v5533
  %v5696 = vpack.c.bf16 %v5541, %v5541
  %v5697 = vpack.c.bf16 %v5549, %v5549
  %v5698 = vpack.c.bf16 %v5557, %v5557
  %v5699 = vpack.c.bf16 %v5565, %v5565
  %v5700 = vpack.c.bf16 %v5573, %v5573
  %v5701 = vpack.c.bf16 %v5582, %v5582
  %v5702 = vpack.c.bf16 %v5590, %v5590
  %v5703 = vpack.c.bf16 %v5598, %v5598
  %v5704 = vpack.c.bf16 %v5606, %v5606
  %v5705 = vpack.c.bf16 %v5486, %v5486
  %v5706 = vpack.c.bf16 %v5494, %v5494
  %v5707 = vpack.c.bf16 %v5502, %v5502
  %v5708 = vpack.c.bf16 %v5510, %v5510
  %v5709 = vpack.c.bf16 %v5518, %v5518
  %v5710 = vpack.c.bf16 %v5526, %v5526
  %v5711 = vpack.c.bf16 %v5534, %v5534
  %v5712 = vpack.c.bf16 %v5542, %v5542
  %v5713 = vpack.c.bf16 %v5550, %v5550
  %v5714 = vpack.c.bf16 %v5558, %v5558
  %v5715 = vpack.c.bf16 %v5566, %v5566
  %v5716 = vpack.c.bf16 %v5574, %v5574
  %v5717 = vpack.c.bf16 %v5583, %v5583
  %v5718 = vpack.c.bf16 %v5591, %v5591
  %v5719 = vpack.c.bf16 %v5599, %v5599
  %v5720 = vpack.c.bf16 %v5607, %v5607
  %v5721 = vpack.c.bf16 %v5487, %v5487
  %v5722 = vpack.c.bf16 %v5495, %v5495
  %v5723 = vpack.c.bf16 %v5503, %v5503
  %v5724 = vpack.c.bf16 %v5511, %v5511
  %v5725 = vpack.c.bf16 %v5519, %v5519
  %v5726 = vpack.c.bf16 %v5527, %v5527
  %v5727 = vpack.c.bf16 %v5535, %v5535
  %v5728 = vpack.c.bf16 %v5543, %v5543
  %v5729 = vpack.c.bf16 %v5551, %v5551
  %v5730 = vpack.c.bf16 %v5559, %v5559
  %v5731 = vpack.c.bf16 %v5567, %v5567
  %v5732 = vpack.c.bf16 %v5575, %v5575
  %v5733 = vpack.c.bf16 %v5584, %v5584
  %v5734 = vpack.c.bf16 %v5592, %v5592
  %v5735 = vpack.c.bf16 %v5600, %v5600
  %v5736 = vpack.c.bf16 %v5608, %v5608
  %v5865 = vcombine.low %v5609, %v5610
  %v5866 = vcombine.low %v5611, %v5612
  %v5868 = vunpack.c.l.s4 1983009808
  %v5869 = vunpack.c.0.s8 %v5868
  %v5870 = vlaneseq
  %v5871 = vshrl.u32 %v5870, 7
  %v5872 = vsub.s32 %v5869, %v5871
  %v5873 = vrot.slane %v5865, %v5872
  %v5875 = vunpack.c.l.s4 1983009808
  %v5876 = vunpack.c.0.s8 %v5875
  %v5877 = vlaneseq
  %v5878 = vshrl.u32 %v5877, 7
  %v5879 = vsub.s32 %v5876, %v5878
  %v5880 = vrot.slane %v5866, %v5879
  %v5881 = vcombine.low %v5873, %v5880
  %v5882 = vcombine.low %v5613, %v5614
  %v5883 = vcombine.low %v5615, %v5616
  %v5885 = vunpack.c.l.s4 1983009808
  %v5886 = vunpack.c.0.s8 %v5885
  %v5887 = vlaneseq
  %v5888 = vshrl.u32 %v5887, 7
  %v5889 = vsub.s32 %v5886, %v5888
  %v5890 = vrot.slane %v5882, %v5889
  %v5892 = vunpack.c.l.s4 1983009808
  %v5893 = vunpack.c.0.s8 %v5892
  %v5894 = vlaneseq
  %v5895 = vshrl.u32 %v5894, 7
  %v5896 = vsub.s32 %v5893, %v5895
  %v5897 = vrot.slane %v5883, %v5896
  %v5898 = vcombine.low %v5890, %v5897
  %v5899 = vcombine.low %v5617, %v5618
  %v5900 = vcombine.low %v5619, %v5620
  %v5902 = vunpack.c.l.s4 1983009808
  %v5903 = vunpack.c.0.s8 %v5902
  %v5904 = vlaneseq
  %v5905 = vshrl.u32 %v5904, 7
  %v5906 = vsub.s32 %v5903, %v5905
  %v5907 = vrot.slane %v5899, %v5906
  %v5909 = vunpack.c.l.s4 1983009808
  %v5910 = vunpack.c.0.s8 %v5909
  %v5911 = vlaneseq
  %v5912 = vshrl.u32 %v5911, 7
  %v5913 = vsub.s32 %v5910, %v5912
  %v5914 = vrot.slane %v5900, %v5913
  %v5915 = vcombine.low %v5907, %v5914
  %v5916 = vcombine.low %v5621, %v5622
  %v5917 = vcombine.low %v5623, %v5624
  %v5919 = vunpack.c.l.s4 1983009808
  %v5920 = vunpack.c.0.s8 %v5919
  %v5921 = vlaneseq
  %v5922 = vshrl.u32 %v5921, 7
  %v5923 = vsub.s32 %v5920, %v5922
  %v5924 = vrot.slane %v5916, %v5923
  %v5926 = vunpack.c.l.s4 1983009808
  %v5927 = vunpack.c.0.s8 %v5926
  %v5928 = vlaneseq
  %v5929 = vshrl.u32 %v5928, 7
  %v5930 = vsub.s32 %v5927, %v5929
  %v5931 = vrot.slane %v5917, %v5930
  %v5932 = vcombine.low %v5924, %v5931
  %v5933 = vcombine.low %v5625, %v5626
  %v5934 = vcombine.low %v5627, %v5628
  %v5936 = vunpack.c.l.s4 1983009808
  %v5937 = vunpack.c.0.s8 %v5936
  %v5938 = vlaneseq
  %v5939 = vshrl.u32 %v5938, 7
  %v5940 = vsub.s32 %v5937, %v5939
  %v5941 = vrot.slane %v5933, %v5940
  %v5943 = vunpack.c.l.s4 1983009808
  %v5944 = vunpack.c.0.s8 %v5943
  %v5945 = vlaneseq
  %v5946 = vshrl.u32 %v5945, 7
  %v5947 = vsub.s32 %v5944, %v5946
  %v5948 = vrot.slane %v5934, %v5947
  %v5949 = vcombine.low %v5941, %v5948
  %v5950 = vcombine.low %v5629, %v5630
  %v5951 = vcombine.low %v5631, %v5632
  %v5953 = vunpack.c.l.s4 1983009808
  %v5954 = vunpack.c.0.s8 %v5953
  %v5955 = vlaneseq
  %v5956 = vshrl.u32 %v5955, 7
  %v5957 = vsub.s32 %v5954, %v5956
  %v5958 = vrot.slane %v5950, %v5957
  %v5960 = vunpack.c.l.s4 1983009808
  %v5961 = vunpack.c.0.s8 %v5960
  %v5962 = vlaneseq
  %v5963 = vshrl.u32 %v5962, 7
  %v5964 = vsub.s32 %v5961, %v5963
  %v5965 = vrot.slane %v5951, %v5964
  %v5966 = vcombine.low %v5958, %v5965
  %v5967 = vcombine.low %v5633, %v5634
  %v5968 = vcombine.low %v5635, %v5636
  %v5970 = vunpack.c.l.s4 1983009808
  %v5971 = vunpack.c.0.s8 %v5970
  %v5972 = vlaneseq
  %v5973 = vshrl.u32 %v5972, 7
  %v5974 = vsub.s32 %v5971, %v5973
  %v5975 = vrot.slane %v5967, %v5974
  %v5977 = vunpack.c.l.s4 1983009808
  %v5978 = vunpack.c.0.s8 %v5977
  %v5979 = vlaneseq
  %v5980 = vshrl.u32 %v5979, 7
  %v5981 = vsub.s32 %v5978, %v5980
  %v5982 = vrot.slane %v5968, %v5981
  %v5983 = vcombine.low %v5975, %v5982
  %v5984 = vcombine.low %v5637, %v5638
  %v5985 = vcombine.low %v5639, %v5640
  %v5987 = vunpack.c.l.s4 1983009808
  %v5988 = vunpack.c.0.s8 %v5987
  %v5989 = vlaneseq
  %v5990 = vshrl.u32 %v5989, 7
  %v5991 = vsub.s32 %v5988, %v5990
  %v5992 = vrot.slane %v5984, %v5991
  %v5994 = vunpack.c.l.s4 1983009808
  %v5995 = vunpack.c.0.s8 %v5994
  %v5996 = vlaneseq
  %v5997 = vshrl.u32 %v5996, 7
  %v5998 = vsub.s32 %v5995, %v5997
  %v5999 = vrot.slane %v5985, %v5998
  %v6000 = vcombine.low %v5992, %v5999
  %v6001 = vcombine.low %v5641, %v5642
  %v6002 = vcombine.low %v5643, %v5644
  %v6004 = vunpack.c.l.s4 1983009808
  %v6005 = vunpack.c.0.s8 %v6004
  %v6006 = vlaneseq
  %v6007 = vshrl.u32 %v6006, 7
  %v6008 = vsub.s32 %v6005, %v6007
  %v6009 = vrot.slane %v6001, %v6008
  %v6011 = vunpack.c.l.s4 1983009808
  %v6012 = vunpack.c.0.s8 %v6011
  %v6013 = vlaneseq
  %v6014 = vshrl.u32 %v6013, 7
  %v6015 = vsub.s32 %v6012, %v6014
  %v6016 = vrot.slane %v6002, %v6015
  %v6017 = vcombine.low %v6009, %v6016
  %v6018 = vcombine.low %v5645, %v5646
  %v6019 = vcombine.low %v5647, %v5648
  %v6021 = vunpack.c.l.s4 1983009808
  %v6022 = vunpack.c.0.s8 %v6021
  %v6023 = vlaneseq
  %v6024 = vshrl.u32 %v6023, 7
  %v6025 = vsub.s32 %v6022, %v6024
  %v6026 = vrot.slane %v6018, %v6025
  %v6028 = vunpack.c.l.s4 1983009808
  %v6029 = vunpack.c.0.s8 %v6028
  %v6030 = vlaneseq
  %v6031 = vshrl.u32 %v6030, 7
  %v6032 = vsub.s32 %v6029, %v6031
  %v6033 = vrot.slane %v6019, %v6032
  %v6034 = vcombine.low %v6026, %v6033
  %v6035 = vcombine.low %v5649, %v5650
  %v6036 = vcombine.low %v5651, %v5652
  %v6038 = vunpack.c.l.s4 1983009808
  %v6039 = vunpack.c.0.s8 %v6038
  %v6040 = vlaneseq
  %v6041 = vshrl.u32 %v6040, 7
  %v6042 = vsub.s32 %v6039, %v6041
  %v6043 = vrot.slane %v6035, %v6042
  %v6045 = vunpack.c.l.s4 1983009808
  %v6046 = vunpack.c.0.s8 %v6045
  %v6047 = vlaneseq
  %v6048 = vshrl.u32 %v6047, 7
  %v6049 = vsub.s32 %v6046, %v6048
  %v6050 = vrot.slane %v6036, %v6049
  %v6051 = vcombine.low %v6043, %v6050
  %v6052 = vcombine.low %v5653, %v5654
  %v6053 = vcombine.low %v5655, %v5656
  %v6055 = vunpack.c.l.s4 1983009808
  %v6056 = vunpack.c.0.s8 %v6055
  %v6057 = vlaneseq
  %v6058 = vshrl.u32 %v6057, 7
  %v6059 = vsub.s32 %v6056, %v6058
  %v6060 = vrot.slane %v6052, %v6059
  %v6062 = vunpack.c.l.s4 1983009808
  %v6063 = vunpack.c.0.s8 %v6062
  %v6064 = vlaneseq
  %v6065 = vshrl.u32 %v6064, 7
  %v6066 = vsub.s32 %v6063, %v6065
  %v6067 = vrot.slane %v6053, %v6066
  %v6068 = vcombine.low %v6060, %v6067
  %v6069 = vcombine.low %v5657, %v5658
  %v6070 = vcombine.low %v5659, %v5660
  %v6072 = vunpack.c.l.s4 1983009808
  %v6073 = vunpack.c.0.s8 %v6072
  %v6074 = vlaneseq
  %v6075 = vshrl.u32 %v6074, 7
  %v6076 = vsub.s32 %v6073, %v6075
  %v6077 = vrot.slane %v6069, %v6076
  %v6079 = vunpack.c.l.s4 1983009808
  %v6080 = vunpack.c.0.s8 %v6079
  %v6081 = vlaneseq
  %v6082 = vshrl.u32 %v6081, 7
  %v6083 = vsub.s32 %v6080, %v6082
  %v6084 = vrot.slane %v6070, %v6083
  %v6085 = vcombine.low %v6077, %v6084
  %v6086 = vcombine.low %v5661, %v5662
  %v6087 = vcombine.low %v5663, %v5664
  %v6089 = vunpack.c.l.s4 1983009808
  %v6090 = vunpack.c.0.s8 %v6089
  %v6091 = vlaneseq
  %v6092 = vshrl.u32 %v6091, 7
  %v6093 = vsub.s32 %v6090, %v6092
  %v6094 = vrot.slane %v6086, %v6093
  %v6096 = vunpack.c.l.s4 1983009808
  %v6097 = vunpack.c.0.s8 %v6096
  %v6098 = vlaneseq
  %v6099 = vshrl.u32 %v6098, 7
  %v6100 = vsub.s32 %v6097, %v6099
  %v6101 = vrot.slane %v6087, %v6100
  %v6102 = vcombine.low %v6094, %v6101
  %v6103 = vcombine.low %v5665, %v5666
  %v6104 = vcombine.low %v5667, %v5668
  %v6106 = vunpack.c.l.s4 1983009808
  %v6107 = vunpack.c.0.s8 %v6106
  %v6108 = vlaneseq
  %v6109 = vshrl.u32 %v6108, 7
  %v6110 = vsub.s32 %v6107, %v6109
  %v6111 = vrot.slane %v6103, %v6110
  %v6113 = vunpack.c.l.s4 1983009808
  %v6114 = vunpack.c.0.s8 %v6113
  %v6115 = vlaneseq
  %v6116 = vshrl.u32 %v6115, 7
  %v6117 = vsub.s32 %v6114, %v6116
  %v6118 = vrot.slane %v6104, %v6117
  %v6119 = vcombine.low %v6111, %v6118
  %v6120 = vcombine.low %v5669, %v5670
  %v6121 = vcombine.low %v5671, %v5672
  %v6123 = vunpack.c.l.s4 1983009808
  %v6124 = vunpack.c.0.s8 %v6123
  %v6125 = vlaneseq
  %v6126 = vshrl.u32 %v6125, 7
  %v6127 = vsub.s32 %v6124, %v6126
  %v6128 = vrot.slane %v6120, %v6127
  %v6130 = vunpack.c.l.s4 1983009808
  %v6131 = vunpack.c.0.s8 %v6130
  %v6132 = vlaneseq
  %v6133 = vshrl.u32 %v6132, 7
  %v6134 = vsub.s32 %v6131, %v6133
  %v6135 = vrot.slane %v6121, %v6134
  %v6136 = vcombine.low %v6128, %v6135
  %v6137 = vcombine.low %v5673, %v5674
  %v6138 = vcombine.low %v5675, %v5676
  %v6140 = vunpack.c.l.s4 1983009808
  %v6141 = vunpack.c.0.s8 %v6140
  %v6142 = vlaneseq
  %v6143 = vshrl.u32 %v6142, 7
  %v6144 = vsub.s32 %v6141, %v6143
  %v6145 = vrot.slane %v6137, %v6144
  %v6147 = vunpack.c.l.s4 1983009808
  %v6148 = vunpack.c.0.s8 %v6147
  %v6149 = vlaneseq
  %v6150 = vshrl.u32 %v6149, 7
  %v6151 = vsub.s32 %v6148, %v6150
  %v6152 = vrot.slane %v6138, %v6151
  %v6153 = vcombine.low %v6145, %v6152
  %v6154 = vcombine.low %v5677, %v5678
  %v6155 = vcombine.low %v5679, %v5680
  %v6157 = vunpack.c.l.s4 1983009808
  %v6158 = vunpack.c.0.s8 %v6157
  %v6159 = vlaneseq
  %v6160 = vshrl.u32 %v6159, 7
  %v6161 = vsub.s32 %v6158, %v6160
  %v6162 = vrot.slane %v6154, %v6161
  %v6164 = vunpack.c.l.s4 1983009808
  %v6165 = vunpack.c.0.s8 %v6164
  %v6166 = vlaneseq
  %v6167 = vshrl.u32 %v6166, 7
  %v6168 = vsub.s32 %v6165, %v6167
  %v6169 = vrot.slane %v6155, %v6168
  %v6170 = vcombine.low %v6162, %v6169
  %v6171 = vcombine.low %v5681, %v5682
  %v6172 = vcombine.low %v5683, %v5684
  %v6174 = vunpack.c.l.s4 1983009808
  %v6175 = vunpack.c.0.s8 %v6174
  %v6176 = vlaneseq
  %v6177 = vshrl.u32 %v6176, 7
  %v6178 = vsub.s32 %v6175, %v6177
  %v6179 = vrot.slane %v6171, %v6178
  %v6181 = vunpack.c.l.s4 1983009808
  %v6182 = vunpack.c.0.s8 %v6181
  %v6183 = vlaneseq
  %v6184 = vshrl.u32 %v6183, 7
  %v6185 = vsub.s32 %v6182, %v6184
  %v6186 = vrot.slane %v6172, %v6185
  %v6187 = vcombine.low %v6179, %v6186
  %v6188 = vcombine.low %v5685, %v5686
  %v6189 = vcombine.low %v5687, %v5688
  %v6191 = vunpack.c.l.s4 1983009808
  %v6192 = vunpack.c.0.s8 %v6191
  %v6193 = vlaneseq
  %v6194 = vshrl.u32 %v6193, 7
  %v6195 = vsub.s32 %v6192, %v6194
  %v6196 = vrot.slane %v6188, %v6195
  %v6198 = vunpack.c.l.s4 1983009808
  %v6199 = vunpack.c.0.s8 %v6198
  %v6200 = vlaneseq
  %v6201 = vshrl.u32 %v6200, 7
  %v6202 = vsub.s32 %v6199, %v6201
  %v6203 = vrot.slane %v6189, %v6202
  %v6204 = vcombine.low %v6196, %v6203
  %v6205 = vcombine.low %v5689, %v5690
  %v6206 = vcombine.low %v5691, %v5692
  %v6208 = vunpack.c.l.s4 1983009808
  %v6209 = vunpack.c.0.s8 %v6208
  %v6210 = vlaneseq
  %v6211 = vshrl.u32 %v6210, 7
  %v6212 = vsub.s32 %v6209, %v6211
  %v6213 = vrot.slane %v6205, %v6212
  %v6215 = vunpack.c.l.s4 1983009808
  %v6216 = vunpack.c.0.s8 %v6215
  %v6217 = vlaneseq
  %v6218 = vshrl.u32 %v6217, 7
  %v6219 = vsub.s32 %v6216, %v6218
  %v6220 = vrot.slane %v6206, %v6219
  %v6221 = vcombine.low %v6213, %v6220
  %v6222 = vcombine.low %v5693, %v5694
  %v6223 = vcombine.low %v5695, %v5696
  %v6225 = vunpack.c.l.s4 1983009808
  %v6226 = vunpack.c.0.s8 %v6225
  %v6227 = vlaneseq
  %v6228 = vshrl.u32 %v6227, 7
  %v6229 = vsub.s32 %v6226, %v6228
  %v6230 = vrot.slane %v6222, %v6229
  %v6232 = vunpack.c.l.s4 1983009808
  %v6233 = vunpack.c.0.s8 %v6232
  %v6234 = vlaneseq
  %v6235 = vshrl.u32 %v6234, 7
  %v6236 = vsub.s32 %v6233, %v6235
  %v6237 = vrot.slane %v6223, %v6236
  %v6238 = vcombine.low %v6230, %v6237
  %v6239 = vcombine.low %v5697, %v5698
  %v6240 = vcombine.low %v5699, %v5700
  %v6242 = vunpack.c.l.s4 1983009808
  %v6243 = vunpack.c.0.s8 %v6242
  %v6244 = vlaneseq
  %v6245 = vshrl.u32 %v6244, 7
  %v6246 = vsub.s32 %v6243, %v6245
  %v6247 = vrot.slane %v6239, %v6246
  %v6249 = vunpack.c.l.s4 1983009808
  %v6250 = vunpack.c.0.s8 %v6249
  %v6251 = vlaneseq
  %v6252 = vshrl.u32 %v6251, 7
  %v6253 = vsub.s32 %v6250, %v6252
  %v6254 = vrot.slane %v6240, %v6253
  %v6255 = vcombine.low %v6247, %v6254
  %v6256 = vcombine.low %v5701, %v5702
  %v6257 = vcombine.low %v5703, %v5704
  %v6259 = vunpack.c.l.s4 1983009808
  %v6260 = vunpack.c.0.s8 %v6259
  %v6261 = vlaneseq
  %v6262 = vshrl.u32 %v6261, 7
  %v6263 = vsub.s32 %v6260, %v6262
  %v6264 = vrot.slane %v6256, %v6263
  %v6266 = vunpack.c.l.s4 1983009808
  %v6267 = vunpack.c.0.s8 %v6266
  %v6268 = vlaneseq
  %v6269 = vshrl.u32 %v6268, 7
  %v6270 = vsub.s32 %v6267, %v6269
  %v6271 = vrot.slane %v6257, %v6270
  %v6272 = vcombine.low %v6264, %v6271
  %v6273 = vcombine.low %v5705, %v5706
  %v6274 = vcombine.low %v5707, %v5708
  %v6276 = vunpack.c.l.s4 1983009808
  %v6277 = vunpack.c.0.s8 %v6276
  %v6278 = vlaneseq
  %v6279 = vshrl.u32 %v6278, 7
  %v6280 = vsub.s32 %v6277, %v6279
  %v6281 = vrot.slane %v6273, %v6280
  %v6283 = vunpack.c.l.s4 1983009808
  %v6284 = vunpack.c.0.s8 %v6283
  %v6285 = vlaneseq
  %v6286 = vshrl.u32 %v6285, 7
  %v6287 = vsub.s32 %v6284, %v6286
  %v6288 = vrot.slane %v6274, %v6287
  %v6289 = vcombine.low %v6281, %v6288
  %v6290 = vcombine.low %v5709, %v5710
  %v6291 = vcombine.low %v5711, %v5712
  %v6293 = vunpack.c.l.s4 1983009808
  %v6294 = vunpack.c.0.s8 %v6293
  %v6295 = vlaneseq
  %v6296 = vshrl.u32 %v6295, 7
  %v6297 = vsub.s32 %v6294, %v6296
  %v6298 = vrot.slane %v6290, %v6297
  %v6300 = vunpack.c.l.s4 1983009808
  %v6301 = vunpack.c.0.s8 %v6300
  %v6302 = vlaneseq
  %v6303 = vshrl.u32 %v6302, 7
  %v6304 = vsub.s32 %v6301, %v6303
  %v6305 = vrot.slane %v6291, %v6304
  %v6306 = vcombine.low %v6298, %v6305
  %v6307 = vcombine.low %v5713, %v5714
  %v6308 = vcombine.low %v5715, %v5716
  %v6310 = vunpack.c.l.s4 1983009808
  %v6311 = vunpack.c.0.s8 %v6310
  %v6312 = vlaneseq
  %v6313 = vshrl.u32 %v6312, 7
  %v6314 = vsub.s32 %v6311, %v6313
  %v6315 = vrot.slane %v6307, %v6314
  %v6317 = vunpack.c.l.s4 1983009808
  %v6318 = vunpack.c.0.s8 %v6317
  %v6319 = vlaneseq
  %v6320 = vshrl.u32 %v6319, 7
  %v6321 = vsub.s32 %v6318, %v6320
  %v6322 = vrot.slane %v6308, %v6321
  %v6323 = vcombine.low %v6315, %v6322
  %v6324 = vcombine.low %v5717, %v5718
  %v6325 = vcombine.low %v5719, %v5720
  %v6327 = vunpack.c.l.s4 1983009808
  %v6328 = vunpack.c.0.s8 %v6327
  %v6329 = vlaneseq
  %v6330 = vshrl.u32 %v6329, 7
  %v6331 = vsub.s32 %v6328, %v6330
  %v6332 = vrot.slane %v6324, %v6331
  %v6334 = vunpack.c.l.s4 1983009808
  %v6335 = vunpack.c.0.s8 %v6334
  %v6336 = vlaneseq
  %v6337 = vshrl.u32 %v6336, 7
  %v6338 = vsub.s32 %v6335, %v6337
  %v6339 = vrot.slane %v6325, %v6338
  %v6340 = vcombine.low %v6332, %v6339
  %v6341 = vcombine.low %v5721, %v5722
  %v6342 = vcombine.low %v5723, %v5724
  %v6344 = vunpack.c.l.s4 1983009808
  %v6345 = vunpack.c.0.s8 %v6344
  %v6346 = vlaneseq
  %v6347 = vshrl.u32 %v6346, 7
  %v6348 = vsub.s32 %v6345, %v6347
  %v6349 = vrot.slane %v6341, %v6348
  %v6351 = vunpack.c.l.s4 1983009808
  %v6352 = vunpack.c.0.s8 %v6351
  %v6353 = vlaneseq
  %v6354 = vshrl.u32 %v6353, 7
  %v6355 = vsub.s32 %v6352, %v6354
  %v6356 = vrot.slane %v6342, %v6355
  %v6357 = vcombine.low %v6349, %v6356
  %v6358 = vcombine.low %v5725, %v5726
  %v6359 = vcombine.low %v5727, %v5728
  %v6361 = vunpack.c.l.s4 1983009808
  %v6362 = vunpack.c.0.s8 %v6361
  %v6363 = vlaneseq
  %v6364 = vshrl.u32 %v6363, 7
  %v6365 = vsub.s32 %v6362, %v6364
  %v6366 = vrot.slane %v6358, %v6365
  %v6368 = vunpack.c.l.s4 1983009808
  %v6369 = vunpack.c.0.s8 %v6368
  %v6370 = vlaneseq
  %v6371 = vshrl.u32 %v6370, 7
  %v6372 = vsub.s32 %v6369, %v6371
  %v6373 = vrot.slane %v6359, %v6372
  %v6374 = vcombine.low %v6366, %v6373
  %v6375 = vcombine.low %v5729, %v5730
  %v6376 = vcombine.low %v5731, %v5732
  %v6378 = vunpack.c.l.s4 1983009808
  %v6379 = vunpack.c.0.s8 %v6378
  %v6380 = vlaneseq
  %v6381 = vshrl.u32 %v6380, 7
  %v6382 = vsub.s32 %v6379, %v6381
  %v6383 = vrot.slane %v6375, %v6382
  %v6385 = vunpack.c.l.s4 1983009808
  %v6386 = vunpack.c.0.s8 %v6385
  %v6387 = vlaneseq
  %v6388 = vshrl.u32 %v6387, 7
  %v6389 = vsub.s32 %v6386, %v6388
  %v6390 = vrot.slane %v6376, %v6389
  %v6391 = vcombine.low %v6383, %v6390
  %v6392 = vcombine.low %v5733, %v5734
  %v6393 = vcombine.low %v5735, %v5736
  %v6395 = vunpack.c.l.s4 1983009808
  %v6396 = vunpack.c.0.s8 %v6395
  %v6397 = vlaneseq
  %v6398 = vshrl.u32 %v6397, 7
  %v6399 = vsub.s32 %v6396, %v6398
  %v6400 = vrot.slane %v6392, %v6399
  %v6402 = vunpack.c.l.s4 1983009808
  %v6403 = vunpack.c.0.s8 %v6402
  %v6404 = vlaneseq
  %v6405 = vshrl.u32 %v6404, 7
  %v6406 = vsub.s32 %v6403, %v6405
  %v6407 = vrot.slane %v6393, %v6406
  %v6408 = vcombine.low %v6400, %v6407
  %v6409 = vld [vmem:[%s5] sm:$0xff]
  %v6410 = vld [vmem:[%s5 + $0x8] sm:$0xff]
  %v6411 = vld [vmem:[%s5 + $0x10] sm:$0xff]
  %v6412 = vld [vmem:[%s5 + $0x18] sm:$0xff]
  %v6413 = vld [vmem:[%s5 + $0x20] sm:$0xff]
  %v6414 = vld [vmem:[%s5 + $0x28] sm:$0xff]
  %v6415 = vld [vmem:[%s5 + $0x30] sm:$0xff]
  %v6416 = vld [vmem:[%s5 + $0x38] sm:$0xff]
  %v6417 = vld [vmem:[%s5 + $0x40] sm:$0xff]
  %v6418 = vld [vmem:[%s5 + $0x48] sm:$0xff]
  %v6419 = vld [vmem:[%s5 + $0x50] sm:$0xff]
  %v6420 = vld [vmem:[%s5 + $0x58] sm:$0xff]
  %v6421 = vld [vmem:[%s5 + $0x60] sm:$0xff]
  %v6422 = vld [vmem:[%s5 + $0x68] sm:$0xff]
  %v6423 = vld [vmem:[%s5 + $0x70] sm:$0xff]
  %v6424 = vld [vmem:[%s5 + $0x78] sm:$0xff]
  %v6425 = vld [vmem:[%s5 + $0x80] sm:$0xff]
  %v6426 = vld [vmem:[%s5 + $0x88] sm:$0xff]
  %v6427 = vld [vmem:[%s5 + $0x90] sm:$0xff]
  %v6428 = vld [vmem:[%s5 + $0x98] sm:$0xff]
  %v6429 = vld [vmem:[%s5 + $0xa0] sm:$0xff]
  %v6430 = vld [vmem:[%s5 + $0xa8] sm:$0xff]
  %v6431 = vld [vmem:[%s5 + $0xb0] sm:$0xff]
  %v6432 = vld [vmem:[%s5 + $0xb8] sm:$0xff]
  %v6433 = vld [vmem:[%s5 + $0xc0] sm:$0xff]
  %v6434 = vld [vmem:[%s5 + $0xc8] sm:$0xff]
  %v6435 = vld [vmem:[%s5 + $0xd0] sm:$0xff]
  %v6436 = vld [vmem:[%s5 + $0xd8] sm:$0xff]
  %v6437 = vld [vmem:[%s5 + $0xe0] sm:$0xff]
  %v6438 = vld [vmem:[%s5 + $0xe8] sm:$0xff]
  %v6439 = vld [vmem:[%s5 + $0xf0] sm:$0xff]
  %v6440 = vld [vmem:[%s5 + $0xf8] sm:$0xff]
  %v6441 = vld [vmem:[%s5 + $0x100] sm:$0xff]
  %v6442 = vld [vmem:[%s5 + $0x108] sm:$0xff]
  %v6443 = vld [vmem:[%s5 + $0x110] sm:$0xff]
  %v6444 = vld [vmem:[%s5 + $0x118] sm:$0xff]
  %v6445 = vld [vmem:[%s5 + $0x120] sm:$0xff]
  %v6446 = vld [vmem:[%s5 + $0x128] sm:$0xff]
  %v6447 = vld [vmem:[%s5 + $0x130] sm:$0xff]
  %v6448 = vld [vmem:[%s5 + $0x138] sm:$0xff]
  %v6449 = vld [vmem:[%s5 + $0x140] sm:$0xff]
  %v6450 = vld [vmem:[%s5 + $0x148] sm:$0xff]
  %v6451 = vld [vmem:[%s5 + $0x150] sm:$0xff]
  %v6452 = vld [vmem:[%s5 + $0x158] sm:$0xff]
  %v6453 = vld [vmem:[%s5 + $0x160] sm:$0xff]
  %v6454 = vld [vmem:[%s5 + $0x168] sm:$0xff]
  %v6455 = vld [vmem:[%s5 + $0x170] sm:$0xff]
  %v6456 = vld [vmem:[%s5 + $0x178] sm:$0xff]
  %v6457 = vld [vmem:[%s5 + $0x180] sm:$0xff]
  %v6458 = vld [vmem:[%s5 + $0x188] sm:$0xff]
  %v6459 = vld [vmem:[%s5 + $0x190] sm:$0xff]
  %v6460 = vld [vmem:[%s5 + $0x198] sm:$0xff]
  %v6461 = vld [vmem:[%s5 + $0x1a0] sm:$0xff]
  %v6462 = vld [vmem:[%s5 + $0x1a8] sm:$0xff]
  %v6463 = vld [vmem:[%s5 + $0x1b0] sm:$0xff]
  %v6464 = vld [vmem:[%s5 + $0x1b8] sm:$0xff]
  %v6465 = vld [vmem:[%s5 + $0x1c0] sm:$0xff]
  %v6466 = vld [vmem:[%s5 + $0x1c8] sm:$0xff]
  %v6467 = vld [vmem:[%s5 + $0x1d0] sm:$0xff]
  %v6468 = vld [vmem:[%s5 + $0x1d8] sm:$0xff]
  %v6469 = vld [vmem:[%s5 + $0x1e0] sm:$0xff]
  %v6470 = vld [vmem:[%s5 + $0x1e8] sm:$0xff]
  %v6471 = vld [vmem:[%s5 + $0x1f0] sm:$0xff]
  %v6472 = vld [vmem:[%s5 + $0x1f8] sm:$0xff]
  %v6473 = vld [vmem:[%s5 + $0x200] sm:$0xff]
  %v6474 = vld [vmem:[%s5 + $0x208] sm:$0xff]
  %v6475 = vld [vmem:[%s5 + $0x210] sm:$0xff]
  %v6476 = vld [vmem:[%s5 + $0x218] sm:$0xff]
  %v6477 = vld [vmem:[%s5 + $0x220] sm:$0xff]
  %v6478 = vld [vmem:[%s5 + $0x228] sm:$0xff]
  %v6479 = vld [vmem:[%s5 + $0x230] sm:$0xff]
  %v6480 = vld [vmem:[%s5 + $0x238] sm:$0xff]
  %v6481 = vld [vmem:[%s5 + $0x240] sm:$0xff]
  %v6482 = vld [vmem:[%s5 + $0x248] sm:$0xff]
  %v6483 = vld [vmem:[%s5 + $0x250] sm:$0xff]
  %v6484 = vld [vmem:[%s5 + $0x258] sm:$0xff]
  %v6485 = vld [vmem:[%s5 + $0x260] sm:$0xff]
  %v6486 = vld [vmem:[%s5 + $0x268] sm:$0xff]
  %v6487 = vld [vmem:[%s5 + $0x270] sm:$0xff]
  %v6488 = vld [vmem:[%s5 + $0x278] sm:$0xff]
  %v6489 = vld [vmem:[%s5 + $0x280] sm:$0xff]
  %v6490 = vld [vmem:[%s5 + $0x288] sm:$0xff]
  %v6491 = vld [vmem:[%s5 + $0x290] sm:$0xff]
  %v6492 = vld [vmem:[%s5 + $0x298] sm:$0xff]
  %v6493 = vld [vmem:[%s5 + $0x2a0] sm:$0xff]
  %v6494 = vld [vmem:[%s5 + $0x2a8] sm:$0xff]
  %v6495 = vld [vmem:[%s5 + $0x2b0] sm:$0xff]
  %v6496 = vld [vmem:[%s5 + $0x2b8] sm:$0xff]
  %v6497 = vld [vmem:[%s5 + $0x2c0] sm:$0xff]
  %v6498 = vld [vmem:[%s5 + $0x2c8] sm:$0xff]
  %v6499 = vld [vmem:[%s5 + $0x2d0] sm:$0xff]
  %v6500 = vld [vmem:[%s5 + $0x2d8] sm:$0xff]
  %v6501 = vld [vmem:[%s5 + $0x2e0] sm:$0xff]
  %v6502 = vld [vmem:[%s5 + $0x2e8] sm:$0xff]
  %v6503 = vld [vmem:[%s5 + $0x2f0] sm:$0xff]
  %v6504 = vld [vmem:[%s5 + $0x2f8] sm:$0xff]
  %v6505 = vld [vmem:[%s5 + $0x300] sm:$0xff]
  %v6506 = vld [vmem:[%s5 + $0x308] sm:$0xff]
  %v6507 = vld [vmem:[%s5 + $0x310] sm:$0xff]
  %v6508 = vld [vmem:[%s5 + $0x318] sm:$0xff]
  %v6509 = vld [vmem:[%s5 + $0x320] sm:$0xff]
  %v6510 = vld [vmem:[%s5 + $0x328] sm:$0xff]
  %v6511 = vld [vmem:[%s5 + $0x330] sm:$0xff]
  %v6512 = vld [vmem:[%s5 + $0x338] sm:$0xff]
  %v6513 = vld [vmem:[%s5 + $0x340] sm:$0xff]
  %v6514 = vld [vmem:[%s5 + $0x348] sm:$0xff]
  %v6515 = vld [vmem:[%s5 + $0x350] sm:$0xff]
  %v6516 = vld [vmem:[%s5 + $0x358] sm:$0xff]
  %v6517 = vld [vmem:[%s5 + $0x360] sm:$0xff]
  %v6518 = vld [vmem:[%s5 + $0x368] sm:$0xff]
  %v6519 = vld [vmem:[%s5 + $0x370] sm:$0xff]
  %v6520 = vld [vmem:[%s5 + $0x378] sm:$0xff]
  %v6521 = vld [vmem:[%s5 + $0x380] sm:$0xff]
  %v6522 = vld [vmem:[%s5 + $0x388] sm:$0xff]
  %v6523 = vld [vmem:[%s5 + $0x390] sm:$0xff]
  %v6524 = vld [vmem:[%s5 + $0x398] sm:$0xff]
  %v6525 = vld [vmem:[%s5 + $0x3a0] sm:$0xff]
  %v6526 = vld [vmem:[%s5 + $0x3a8] sm:$0xff]
  %v6527 = vld [vmem:[%s5 + $0x3b0] sm:$0xff]
  %v6528 = vld [vmem:[%s5 + $0x3b8] sm:$0xff]
  %v6529 = vld [vmem:[%s5 + $0x3c0] sm:$0xff]
  %v6530 = vld [vmem:[%s5 + $0x3c8] sm:$0xff]
  %v6531 = vld [vmem:[%s5 + $0x3d0] sm:$0xff]
  %v6532 = vld [vmem:[%s5 + $0x3d8] sm:$0xff]
  %v6533 = vld [vmem:[%s5 + $0x3e0] sm:$0xff]
  %v6534 = vld [vmem:[%s5 + $0x3e8] sm:$0xff]
  %v6535 = vld [vmem:[%s5 + $0x3f0] sm:$0xff]
  %v6536 = vld [vmem:[%s5 + $0x3f8] sm:$0xff]
  %v6537 = vld [vmem:[%s5 + $0x400] sm:$0xff]
  %v6538 = vld [vmem:[%s5 + $0x408] sm:$0xff]
  %v6539 = vld [vmem:[%s5 + $0x410] sm:$0xff]
  %v6540 = vld [vmem:[%s5 + $0x418] sm:$0xff]
  %v6541 = vld [vmem:[%s5 + $0x420] sm:$0xff]
  %v6542 = vld [vmem:[%s5 + $0x428] sm:$0xff]
  %v6543 = vld [vmem:[%s5 + $0x430] sm:$0xff]
  %v6544 = vld [vmem:[%s5 + $0x438] sm:$0xff]
  %v6545 = vld [vmem:[%s5 + $0x440] sm:$0xff]
  %v6546 = vld [vmem:[%s5 + $0x448] sm:$0xff]
  %v6547 = vld [vmem:[%s5 + $0x450] sm:$0xff]
  %v6548 = vld [vmem:[%s5 + $0x458] sm:$0xff]
  %v6549 = vld [vmem:[%s5 + $0x460] sm:$0xff]
  %v6550 = vld [vmem:[%s5 + $0x468] sm:$0xff]
  %v6551 = vld [vmem:[%s5 + $0x470] sm:$0xff]
  %v6552 = vld [vmem:[%s5 + $0x478] sm:$0xff]
  %v6553 = vld [vmem:[%s5 + $0x480] sm:$0xff]
  %v6554 = vld [vmem:[%s5 + $0x488] sm:$0xff]
  %v6555 = vld [vmem:[%s5 + $0x490] sm:$0xff]
  %v6556 = vld [vmem:[%s5 + $0x498] sm:$0xff]
  %v6557 = vld [vmem:[%s5 + $0x4a0] sm:$0xff]
  %v6558 = vld [vmem:[%s5 + $0x4a8] sm:$0xff]
  %v6559 = vld [vmem:[%s5 + $0x4b0] sm:$0xff]
  %v6560 = vld [vmem:[%s5 + $0x4b8] sm:$0xff]
  %v6561 = vld [vmem:[%s5 + $0x4c0] sm:$0xff]
  %v6562 = vld [vmem:[%s5 + $0x4c8] sm:$0xff]
  %v6563 = vld [vmem:[%s5 + $0x4d0] sm:$0xff]
  %v6564 = vld [vmem:[%s5 + $0x4d8] sm:$0xff]
  %v6565 = vld [vmem:[%s5 + $0x4e0] sm:$0xff]
  %v6566 = vld [vmem:[%s5 + $0x4e8] sm:$0xff]
  %v6567 = vld [vmem:[%s5 + $0x4f0] sm:$0xff]
  %v6568 = vld [vmem:[%s5 + $0x4f8] sm:$0xff]
  %v6569 = vld [vmem:[%s5 + $0x500] sm:$0xff]
  %v6570 = vld [vmem:[%s5 + $0x508] sm:$0xff]
  %v6571 = vld [vmem:[%s5 + $0x510] sm:$0xff]
  %v6572 = vld [vmem:[%s5 + $0x518] sm:$0xff]
  %v6573 = vld [vmem:[%s5 + $0x520] sm:$0xff]
  %v6574 = vld [vmem:[%s5 + $0x528] sm:$0xff]
  %v6575 = vld [vmem:[%s5 + $0x530] sm:$0xff]
  %v6576 = vld [vmem:[%s5 + $0x538] sm:$0xff]
  %v6577 = vld [vmem:[%s5 + $0x540] sm:$0xff]
  %v6578 = vld [vmem:[%s5 + $0x548] sm:$0xff]
  %v6579 = vld [vmem:[%s5 + $0x550] sm:$0xff]
  %v6580 = vld [vmem:[%s5 + $0x558] sm:$0xff]
  %v6581 = vld [vmem:[%s5 + $0x560] sm:$0xff]
  %v6582 = vld [vmem:[%s5 + $0x568] sm:$0xff]
  %v6583 = vld [vmem:[%s5 + $0x570] sm:$0xff]
  %v6584 = vld [vmem:[%s5 + $0x578] sm:$0xff]
  %v6585 = vld [vmem:[%s5 + $0x580] sm:$0xff]
  %v6586 = vld [vmem:[%s5 + $0x588] sm:$0xff]
  %v6587 = vld [vmem:[%s5 + $0x590] sm:$0xff]
  %v6588 = vld [vmem:[%s5 + $0x598] sm:$0xff]
  %v6589 = vld [vmem:[%s5 + $0x5a0] sm:$0xff]
  %v6590 = vld [vmem:[%s5 + $0x5a8] sm:$0xff]
  %v6591 = vld [vmem:[%s5 + $0x5b0] sm:$0xff]
  %v6592 = vld [vmem:[%s5 + $0x5b8] sm:$0xff]
  %v6593 = vld [vmem:[%s5 + $0x5c0] sm:$0xff]
  %v6594 = vld [vmem:[%s5 + $0x5c8] sm:$0xff]
  %v6595 = vld [vmem:[%s5 + $0x5d0] sm:$0xff]
  %v6596 = vld [vmem:[%s5 + $0x5d8] sm:$0xff]
  %v6597 = vld [vmem:[%s5 + $0x5e0] sm:$0xff]
  %v6598 = vld [vmem:[%s5 + $0x5e8] sm:$0xff]
  %v6599 = vld [vmem:[%s5 + $0x5f0] sm:$0xff]
  %v6600 = vld [vmem:[%s5 + $0x5f8] sm:$0xff]
  %v6601 = vld [vmem:[%s5 + $0x600] sm:$0xff]
  %v6602 = vld [vmem:[%s5 + $0x608] sm:$0xff]
  %v6603 = vld [vmem:[%s5 + $0x610] sm:$0xff]
  %v6604 = vld [vmem:[%s5 + $0x618] sm:$0xff]
  %v6605 = vld [vmem:[%s5 + $0x620] sm:$0xff]
  %v6606 = vld [vmem:[%s5 + $0x628] sm:$0xff]
  %v6607 = vld [vmem:[%s5 + $0x630] sm:$0xff]
  %v6608 = vld [vmem:[%s5 + $0x638] sm:$0xff]
  %v6609 = vld [vmem:[%s5 + $0x640] sm:$0xff]
  %v6610 = vld [vmem:[%s5 + $0x648] sm:$0xff]
  %v6611 = vld [vmem:[%s5 + $0x650] sm:$0xff]
  %v6612 = vld [vmem:[%s5 + $0x658] sm:$0xff]
  %v6613 = vld [vmem:[%s5 + $0x660] sm:$0xff]
  %v6614 = vld [vmem:[%s5 + $0x668] sm:$0xff]
  %v6615 = vld [vmem:[%s5 + $0x670] sm:$0xff]
  %v6616 = vld [vmem:[%s5 + $0x678] sm:$0xff]
  %v6617 = vld [vmem:[%s5 + $0x680] sm:$0xff]
  %v6618 = vld [vmem:[%s5 + $0x688] sm:$0xff]
  %v6619 = vld [vmem:[%s5 + $0x690] sm:$0xff]
  %v6620 = vld [vmem:[%s5 + $0x698] sm:$0xff]
  %v6621 = vld [vmem:[%s5 + $0x6a0] sm:$0xff]
  %v6622 = vld [vmem:[%s5 + $0x6a8] sm:$0xff]
  %v6623 = vld [vmem:[%s5 + $0x6b0] sm:$0xff]
  %v6624 = vld [vmem:[%s5 + $0x6b8] sm:$0xff]
  %v6625 = vld [vmem:[%s5 + $0x6c0] sm:$0xff]
  %v6626 = vld [vmem:[%s5 + $0x6c8] sm:$0xff]
  %v6627 = vld [vmem:[%s5 + $0x6d0] sm:$0xff]
  %v6628 = vld [vmem:[%s5 + $0x6d8] sm:$0xff]
  %v6629 = vld [vmem:[%s5 + $0x6e0] sm:$0xff]
  %v6630 = vld [vmem:[%s5 + $0x6e8] sm:$0xff]
  %v6631 = vld [vmem:[%s5 + $0x6f0] sm:$0xff]
  %v6632 = vld [vmem:[%s5 + $0x6f8] sm:$0xff]
  %v6633 = vld [vmem:[%s5 + $0x700] sm:$0xff]
  %v6634 = vld [vmem:[%s5 + $0x708] sm:$0xff]
  %v6635 = vld [vmem:[%s5 + $0x710] sm:$0xff]
  %v6636 = vld [vmem:[%s5 + $0x718] sm:$0xff]
  %v6637 = vld [vmem:[%s5 + $0x720] sm:$0xff]
  %v6638 = vld [vmem:[%s5 + $0x728] sm:$0xff]
  %v6639 = vld [vmem:[%s5 + $0x730] sm:$0xff]
  %v6640 = vld [vmem:[%s5 + $0x738] sm:$0xff]
  %v6641 = vld [vmem:[%s5 + $0x740] sm:$0xff]
  %v6642 = vld [vmem:[%s5 + $0x748] sm:$0xff]
  %v6643 = vld [vmem:[%s5 + $0x750] sm:$0xff]
  %v6644 = vld [vmem:[%s5 + $0x758] sm:$0xff]
  %v6645 = vld [vmem:[%s5 + $0x760] sm:$0xff]
  %v6646 = vld [vmem:[%s5 + $0x768] sm:$0xff]
  %v6647 = vld [vmem:[%s5 + $0x770] sm:$0xff]
  %v6648 = vld [vmem:[%s5 + $0x778] sm:$0xff]
  %v6649 = vld [vmem:[%s5 + $0x780] sm:$0xff]
  %v6650 = vld [vmem:[%s5 + $0x788] sm:$0xff]
  %v6651 = vld [vmem:[%s5 + $0x790] sm:$0xff]
  %v6652 = vld [vmem:[%s5 + $0x798] sm:$0xff]
  %v6653 = vld [vmem:[%s5 + $0x7a0] sm:$0xff]
  %v6654 = vld [vmem:[%s5 + $0x7a8] sm:$0xff]
  %v6655 = vld [vmem:[%s5 + $0x7b0] sm:$0xff]
  %v6656 = vld [vmem:[%s5 + $0x7b8] sm:$0xff]
  %v6657 = vld [vmem:[%s5 + $0x7c0] sm:$0xff]
  %v6658 = vld [vmem:[%s5 + $0x7c8] sm:$0xff]
  %v6659 = vld [vmem:[%s5 + $0x7d0] sm:$0xff]
  %v6660 = vld [vmem:[%s5 + $0x7d8] sm:$0xff]
  %v6661 = vld [vmem:[%s5 + $0x7e0] sm:$0xff]
  %v6662 = vld [vmem:[%s5 + $0x7e8] sm:$0xff]
  %v6663 = vld [vmem:[%s5 + $0x7f0] sm:$0xff]
  %v6664 = vld [vmem:[%s5 + $0x7f8] sm:$0xff]
  %v6665 = vcombine.low %v5881, %v5949
  %v6666 = vcombine.high %v5881, %v5949
  %v6667 = vcombine.low %v6017, %v6085
  %v6668 = vcombine.high %v6017, %v6085
  %v6670 = vunpack.c.l.s4 1983009808
  %v6671 = vunpack.c.0.s8 %v6670
  %v6672 = vlaneseq
  %v6673 = vshrl.u32 %v6672, 7
  %v6674 = vsub.s32 %v6671, %v6673
  %v6675 = vrot.slane %v6665, %v6674
  %v6677 = vunpack.c.l.s4 1983009808
  %v6678 = vunpack.c.0.s8 %v6677
  %v6679 = vlaneseq
  %v6680 = vshrl.u32 %v6679, 7
  %v6681 = vsub.s32 %v6678, %v6680
  %v6682 = vrot.slane %v6666, %v6681
  %v6684 = vunpack.c.l.s4 1983009808
  %v6685 = vunpack.c.0.s8 %v6684
  %v6686 = vlaneseq
  %v6687 = vshrl.u32 %v6686, 7
  %v6688 = vsub.s32 %v6685, %v6687
  %v6689 = vrot.slane %v6667, %v6688
  %v6691 = vunpack.c.l.s4 1983009808
  %v6692 = vunpack.c.0.s8 %v6691
  %v6693 = vlaneseq
  %v6694 = vshrl.u32 %v6693, 7
  %v6695 = vsub.s32 %v6692, %v6694
  %v6696 = vrot.slane %v6668, %v6695
  %v6697 = vcombine.low %v6675, %v6689
  %v6698 = vcombine.high %v6675, %v6689
  %v6699 = vcombine.low %v6682, %v6696
  %v6700 = vcombine.high %v6682, %v6696
  %v6701 = vcombine.low %v5898, %v5966
  %v6702 = vcombine.high %v5898, %v5966
  %v6703 = vcombine.low %v6034, %v6102
  %v6704 = vcombine.high %v6034, %v6102
  %v6706 = vunpack.c.l.s4 1983009808
  %v6707 = vunpack.c.0.s8 %v6706
  %v6708 = vlaneseq
  %v6709 = vshrl.u32 %v6708, 7
  %v6710 = vsub.s32 %v6707, %v6709
  %v6711 = vrot.slane %v6701, %v6710
  %v6713 = vunpack.c.l.s4 1983009808
  %v6714 = vunpack.c.0.s8 %v6713
  %v6715 = vlaneseq
  %v6716 = vshrl.u32 %v6715, 7
  %v6717 = vsub.s32 %v6714, %v6716
  %v6718 = vrot.slane %v6702, %v6717
  %v6720 = vunpack.c.l.s4 1983009808
  %v6721 = vunpack.c.0.s8 %v6720
  %v6722 = vlaneseq
  %v6723 = vshrl.u32 %v6722, 7
  %v6724 = vsub.s32 %v6721, %v6723
  %v6725 = vrot.slane %v6703, %v6724
  %v6727 = vunpack.c.l.s4 1983009808
  %v6728 = vunpack.c.0.s8 %v6727
  %v6729 = vlaneseq
  %v6730 = vshrl.u32 %v6729, 7
  %v6731 = vsub.s32 %v6728, %v6730
  %v6732 = vrot.slane %v6704, %v6731
  %v6733 = vcombine.low %v6711, %v6725
  %v6734 = vcombine.high %v6711, %v6725
  %v6735 = vcombine.low %v6718, %v6732
  %v6736 = vcombine.high %v6718, %v6732
  %v6737 = vcombine.low %v5915, %v5983
  %v6738 = vcombine.high %v5915, %v5983
  %v6739 = vcombine.low %v6051, %v6119
  %v6740 = vcombine.high %v6051, %v6119
  %v6742 = vunpack.c.l.s4 1983009808
  %v6743 = vunpack.c.0.s8 %v6742
  %v6744 = vlaneseq
  %v6745 = vshrl.u32 %v6744, 7
  %v6746 = vsub.s32 %v6743, %v6745
  %v6747 = vrot.slane %v6737, %v6746
  %v6749 = vunpack.c.l.s4 1983009808
  %v6750 = vunpack.c.0.s8 %v6749
  %v6751 = vlaneseq
  %v6752 = vshrl.u32 %v6751, 7
  %v6753 = vsub.s32 %v6750, %v6752
  %v6754 = vrot.slane %v6738, %v6753
  %v6756 = vunpack.c.l.s4 1983009808
  %v6757 = vunpack.c.0.s8 %v6756
  %v6758 = vlaneseq
  %v6759 = vshrl.u32 %v6758, 7
  %v6760 = vsub.s32 %v6757, %v6759
  %v6761 = vrot.slane %v6739, %v6760
  %v6763 = vunpack.c.l.s4 1983009808
  %v6764 = vunpack.c.0.s8 %v6763
  %v6765 = vlaneseq
  %v6766 = vshrl.u32 %v6765, 7
  %v6767 = vsub.s32 %v6764, %v6766
  %v6768 = vrot.slane %v6740, %v6767
  %v6769 = vcombine.low %v6747, %v6761
  %v6770 = vcombine.high %v6747, %v6761
  %v6771 = vcombine.low %v6754, %v6768
  %v6772 = vcombine.high %v6754, %v6768
  %v6773 = vcombine.low %v5932, %v6000
  %v6774 = vcombine.high %v5932, %v6000
  %v6775 = vcombine.low %v6068, %v6136
  %v6776 = vcombine.high %v6068, %v6136
  %v6778 = vunpack.c.l.s4 1983009808
  %v6779 = vunpack.c.0.s8 %v6778
  %v6780 = vlaneseq
  %v6781 = vshrl.u32 %v6780, 7
  %v6782 = vsub.s32 %v6779, %v6781
  %v6783 = vrot.slane %v6773, %v6782
  %v6785 = vunpack.c.l.s4 1983009808
  %v6786 = vunpack.c.0.s8 %v6785
  %v6787 = vlaneseq
  %v6788 = vshrl.u32 %v6787, 7
  %v6789 = vsub.s32 %v6786, %v6788
  %v6790 = vrot.slane %v6774, %v6789
  %v6792 = vunpack.c.l.s4 1983009808
  %v6793 = vunpack.c.0.s8 %v6792
  %v6794 = vlaneseq
  %v6795 = vshrl.u32 %v6794, 7
  %v6796 = vsub.s32 %v6793, %v6795
  %v6797 = vrot.slane %v6775, %v6796
  %v6799 = vunpack.c.l.s4 1983009808
  %v6800 = vunpack.c.0.s8 %v6799
  %v6801 = vlaneseq
  %v6802 = vshrl.u32 %v6801, 7
  %v6803 = vsub.s32 %v6800, %v6802
  %v6804 = vrot.slane %v6776, %v6803
  %v6805 = vcombine.low %v6783, %v6797
  %v6806 = vcombine.high %v6783, %v6797
  %v6807 = vcombine.low %v6790, %v6804
  %v6808 = vcombine.high %v6790, %v6804
  %v6809 = vcombine.low %v6153, %v6221
  %v6810 = vcombine.high %v6153, %v6221
  %v6811 = vcombine.low %v6289, %v6357
  %v6812 = vcombine.high %v6289, %v6357
  %v6814 = vunpack.c.l.s4 1983009808
  %v6815 = vunpack.c.0.s8 %v6814
  %v6816 = vlaneseq
  %v6817 = vshrl.u32 %v6816, 7
  %v6818 = vsub.s32 %v6815, %v6817
  %v6819 = vrot.slane %v6809, %v6818
  %v6821 = vunpack.c.l.s4 1983009808
  %v6822 = vunpack.c.0.s8 %v6821
  %v6823 = vlaneseq
  %v6824 = vshrl.u32 %v6823, 7
  %v6825 = vsub.s32 %v6822, %v6824
  %v6826 = vrot.slane %v6810, %v6825
  %v6828 = vunpack.c.l.s4 1983009808
  %v6829 = vunpack.c.0.s8 %v6828
  %v6830 = vlaneseq
  %v6831 = vshrl.u32 %v6830, 7
  %v6832 = vsub.s32 %v6829, %v6831
  %v6833 = vrot.slane %v6811, %v6832
  %v6835 = vunpack.c.l.s4 1983009808
  %v6836 = vunpack.c.0.s8 %v6835
  %v6837 = vlaneseq
  %v6838 = vshrl.u32 %v6837, 7
  %v6839 = vsub.s32 %v6836, %v6838
  %v6840 = vrot.slane %v6812, %v6839
  %v6841 = vcombine.low %v6819, %v6833
  %v6842 = vcombine.high %v6819, %v6833
  %v6843 = vcombine.low %v6826, %v6840
  %v6844 = vcombine.high %v6826, %v6840
  %v6845 = vcombine.low %v6170, %v6238
  %v6846 = vcombine.high %v6170, %v6238
  %v6847 = vcombine.low %v6306, %v6374
  %v6848 = vcombine.high %v6306, %v6374
  %v6850 = vunpack.c.l.s4 1983009808
  %v6851 = vunpack.c.0.s8 %v6850
  %v6852 = vlaneseq
  %v6853 = vshrl.u32 %v6852, 7
  %v6854 = vsub.s32 %v6851, %v6853
  %v6855 = vrot.slane %v6845, %v6854
  %v6857 = vunpack.c.l.s4 1983009808
  %v6858 = vunpack.c.0.s8 %v6857
  %v6859 = vlaneseq
  %v6860 = vshrl.u32 %v6859, 7
  %v6861 = vsub.s32 %v6858, %v6860
  %v6862 = vrot.slane %v6846, %v6861
  %v6864 = vunpack.c.l.s4 1983009808
  %v6865 = vunpack.c.0.s8 %v6864
  %v6866 = vlaneseq
  %v6867 = vshrl.u32 %v6866, 7
  %v6868 = vsub.s32 %v6865, %v6867
  %v6869 = vrot.slane %v6847, %v6868
  %v6871 = vunpack.c.l.s4 1983009808
  %v6872 = vunpack.c.0.s8 %v6871
  %v6873 = vlaneseq
  %v6874 = vshrl.u32 %v6873, 7
  %v6875 = vsub.s32 %v6872, %v6874
  %v6876 = vrot.slane %v6848, %v6875
  %v6877 = vcombine.low %v6855, %v6869
  %v6878 = vcombine.high %v6855, %v6869
  %v6879 = vcombine.low %v6862, %v6876
  %v6880 = vcombine.high %v6862, %v6876
  %v6881 = vcombine.low %v6187, %v6255
  %v6882 = vcombine.high %v6187, %v6255
  %v6883 = vcombine.low %v6323, %v6391
  %v6884 = vcombine.high %v6323, %v6391
  %v6886 = vunpack.c.l.s4 1983009808
  %v6887 = vunpack.c.0.s8 %v6886
  %v6888 = vlaneseq
  %v6889 = vshrl.u32 %v6888, 7
  %v6890 = vsub.s32 %v6887, %v6889
  %v6891 = vrot.slane %v6881, %v6890
  %v6893 = vunpack.c.l.s4 1983009808
  %v6894 = vunpack.c.0.s8 %v6893
  %v6895 = vlaneseq
  %v6896 = vshrl.u32 %v6895, 7
  %v6897 = vsub.s32 %v6894, %v6896
  %v6898 = vrot.slane %v6882, %v6897
  %v6900 = vunpack.c.l.s4 1983009808
  %v6901 = vunpack.c.0.s8 %v6900
  %v6902 = vlaneseq
  %v6903 = vshrl.u32 %v6902, 7
  %v6904 = vsub.s32 %v6901, %v6903
  %v6905 = vrot.slane %v6883, %v6904
  %v6907 = vunpack.c.l.s4 1983009808
  %v6908 = vunpack.c.0.s8 %v6907
  %v6909 = vlaneseq
  %v6910 = vshrl.u32 %v6909, 7
  %v6911 = vsub.s32 %v6908, %v6910
  %v6912 = vrot.slane %v6884, %v6911
  %v6913 = vcombine.low %v6891, %v6905
  %v6914 = vcombine.high %v6891, %v6905
  %v6915 = vcombine.low %v6898, %v6912
  %v6916 = vcombine.high %v6898, %v6912
  %v6917 = vcombine.low %v6204, %v6272
  %v6918 = vcombine.high %v6204, %v6272
  %v6919 = vcombine.low %v6340, %v6408
  %v6920 = vcombine.high %v6340, %v6408
  %v6922 = vunpack.c.l.s4 1983009808
  %v6923 = vunpack.c.0.s8 %v6922
  %v6924 = vlaneseq
  %v6925 = vshrl.u32 %v6924, 7
  %v6926 = vsub.s32 %v6923, %v6925
  %v6927 = vrot.slane %v6917, %v6926
  %v6929 = vunpack.c.l.s4 1983009808
  %v6930 = vunpack.c.0.s8 %v6929
  %v6931 = vlaneseq
  %v6932 = vshrl.u32 %v6931, 7
  %v6933 = vsub.s32 %v6930, %v6932
  %v6934 = vrot.slane %v6918, %v6933
  %v6936 = vunpack.c.l.s4 1983009808
  %v6937 = vunpack.c.0.s8 %v6936
  %v6938 = vlaneseq
  %v6939 = vshrl.u32 %v6938, 7
  %v6940 = vsub.s32 %v6937, %v6939
  %v6941 = vrot.slane %v6919, %v6940
  %v6943 = vunpack.c.l.s4 1983009808
  %v6944 = vunpack.c.0.s8 %v6943
  %v6945 = vlaneseq
  %v6946 = vshrl.u32 %v6945, 7
  %v6947 = vsub.s32 %v6944, %v6946
  %v6948 = vrot.slane %v6920, %v6947
  %v6949 = vcombine.low %v6927, %v6941
  %v6950 = vcombine.high %v6927, %v6941
  %v6951 = vcombine.low %v6934, %v6948
  %v6952 = vcombine.high %v6934, %v6948
  %v7241 = vunpack.c.l.b16 %v6409
  %v7242 = vunpack.c.h.b16 %v6409
  %v7243 = vunpack.c.l.b16 %v6410
  %v7244 = vunpack.c.h.b16 %v6410
  %v7245 = vunpack.c.l.b16 %v6411
  %v7246 = vunpack.c.h.b16 %v6411
  %v7247 = vunpack.c.l.b16 %v6412
  %v7248 = vunpack.c.h.b16 %v6412
  %v7249 = vunpack.c.l.b16 %v6413
  %v7250 = vunpack.c.h.b16 %v6413
  %v7251 = vunpack.c.l.b16 %v6414
  %v7252 = vunpack.c.h.b16 %v6414
  %v7253 = vunpack.c.l.b16 %v6415
  %v7254 = vunpack.c.h.b16 %v6415
  %v7255 = vunpack.c.l.b16 %v6416
  %v7256 = vunpack.c.h.b16 %v6416
  %v7257 = vunpack.c.l.b16 %v6417
  %v7258 = vunpack.c.h.b16 %v6417
  %v7259 = vunpack.c.l.b16 %v6418
  %v7260 = vunpack.c.h.b16 %v6418
  %v7261 = vunpack.c.l.b16 %v6419
  %v7262 = vunpack.c.h.b16 %v6419
  %v7263 = vunpack.c.l.b16 %v6420
  %v7264 = vunpack.c.h.b16 %v6420
  %v7265 = vunpack.c.l.b16 %v6421
  %v7266 = vunpack.c.h.b16 %v6421
  %v7267 = vunpack.c.l.b16 %v6422
  %v7268 = vunpack.c.h.b16 %v6422
  %v7269 = vunpack.c.l.b16 %v6423
  %v7270 = vunpack.c.h.b16 %v6423
  %v7271 = vunpack.c.l.b16 %v6424
  %v7272 = vunpack.c.h.b16 %v6424
  %v7273 = vunpack.c.l.b16 %v6425
  %v7274 = vunpack.c.h.b16 %v6425
  %v7275 = vunpack.c.l.b16 %v6426
  %v7276 = vunpack.c.h.b16 %v6426
  %v7277 = vunpack.c.l.b16 %v6427
  %v7278 = vunpack.c.h.b16 %v6427
  %v7279 = vunpack.c.l.b16 %v6428
  %v7280 = vunpack.c.h.b16 %v6428
  %v7281 = vunpack.c.l.b16 %v6429
  %v7282 = vunpack.c.h.b16 %v6429
  %v7283 = vunpack.c.l.b16 %v6430
  %v7284 = vunpack.c.h.b16 %v6430
  %v7285 = vunpack.c.l.b16 %v6431
  %v7286 = vunpack.c.h.b16 %v6431
  %v7287 = vunpack.c.l.b16 %v6432
  %v7288 = vunpack.c.h.b16 %v6432
  %v7289 = vunpack.c.l.b16 %v6433
  %v7290 = vunpack.c.h.b16 %v6433
  %v7291 = vunpack.c.l.b16 %v6434
  %v7292 = vunpack.c.h.b16 %v6434
  %v7293 = vunpack.c.l.b16 %v6435
  %v7294 = vunpack.c.h.b16 %v6435
  %v7295 = vunpack.c.l.b16 %v6436
  %v7296 = vunpack.c.h.b16 %v6436
  %v7297 = vunpack.c.l.b16 %v6437
  %v7298 = vunpack.c.h.b16 %v6437
  %v7299 = vunpack.c.l.b16 %v6438
  %v7300 = vunpack.c.h.b16 %v6438
  %v7301 = vunpack.c.l.b16 %v6439
  %v7302 = vunpack.c.h.b16 %v6439
  %v7303 = vunpack.c.l.b16 %v6440
  %v7304 = vunpack.c.h.b16 %v6440
  %v7305 = vunpack.c.l.b16 %v6441
  %v7306 = vunpack.c.h.b16 %v6441
  %v7307 = vunpack.c.l.b16 %v6442
  %v7308 = vunpack.c.h.b16 %v6442
  %v7309 = vunpack.c.l.b16 %v6443
  %v7310 = vunpack.c.h.b16 %v6443
  %v7311 = vunpack.c.l.b16 %v6444
  %v7312 = vunpack.c.h.b16 %v6444
  %v7313 = vunpack.c.l.b16 %v6445
  %v7314 = vunpack.c.h.b16 %v6445
  %v7315 = vunpack.c.l.b16 %v6446
  %v7316 = vunpack.c.h.b16 %v6446
  %v7317 = vunpack.c.l.b16 %v6447
  %v7318 = vunpack.c.h.b16 %v6447
  %v7319 = vunpack.c.l.b16 %v6448
  %v7320 = vunpack.c.h.b16 %v6448
  %v7321 = vunpack.c.l.b16 %v6449
  %v7322 = vunpack.c.h.b16 %v6449
  %v7323 = vunpack.c.l.b16 %v6450
  %v7324 = vunpack.c.h.b16 %v6450
  %v7325 = vunpack.c.l.b16 %v6451
  %v7326 = vunpack.c.h.b16 %v6451
  %v7327 = vunpack.c.l.b16 %v6452
  %v7328 = vunpack.c.h.b16 %v6452
  %v7329 = vunpack.c.l.b16 %v6453
  %v7330 = vunpack.c.h.b16 %v6453
  %v7331 = vunpack.c.l.b16 %v6454
  %v7332 = vunpack.c.h.b16 %v6454
  %v7333 = vunpack.c.l.b16 %v6455
  %v7334 = vunpack.c.h.b16 %v6455
  %v7335 = vunpack.c.l.b16 %v6456
  %v7336 = vunpack.c.h.b16 %v6456
  %v7337 = vunpack.c.l.b16 %v6457
  %v7338 = vunpack.c.h.b16 %v6457
  %v7339 = vunpack.c.l.b16 %v6458
  %v7340 = vunpack.c.h.b16 %v6458
  %v7341 = vunpack.c.l.b16 %v6459
  %v7342 = vunpack.c.h.b16 %v6459
  %v7343 = vunpack.c.l.b16 %v6460
  %v7344 = vunpack.c.h.b16 %v6460
  %v7345 = vunpack.c.l.b16 %v6461
  %v7346 = vunpack.c.h.b16 %v6461
  %v7347 = vunpack.c.l.b16 %v6462
  %v7348 = vunpack.c.h.b16 %v6462
  %v7349 = vunpack.c.l.b16 %v6463
  %v7350 = vunpack.c.h.b16 %v6463
  %v7351 = vunpack.c.l.b16 %v6464
  %v7352 = vunpack.c.h.b16 %v6464
  %v7353 = vunpack.c.l.b16 %v6465
  %v7354 = vunpack.c.h.b16 %v6465
  %v7355 = vunpack.c.l.b16 %v6466
  %v7356 = vunpack.c.h.b16 %v6466
  %v7357 = vunpack.c.l.b16 %v6467
  %v7358 = vunpack.c.h.b16 %v6467
  %v7359 = vunpack.c.l.b16 %v6468
  %v7360 = vunpack.c.h.b16 %v6468
  %v7361 = vunpack.c.l.b16 %v6469
  %v7362 = vunpack.c.h.b16 %v6469
  %v7363 = vunpack.c.l.b16 %v6470
  %v7364 = vunpack.c.h.b16 %v6470
  %v7365 = vunpack.c.l.b16 %v6471
  %v7366 = vunpack.c.h.b16 %v6471
  %v7367 = vunpack.c.l.b16 %v6472
  %v7368 = vunpack.c.h.b16 %v6472
  %v7369 = vunpack.c.l.b16 %v6473
  %v7370 = vunpack.c.h.b16 %v6473
  %v7371 = vunpack.c.l.b16 %v6474
  %v7372 = vunpack.c.h.b16 %v6474
  %v7373 = vunpack.c.l.b16 %v6475
  %v7374 = vunpack.c.h.b16 %v6475
  %v7375 = vunpack.c.l.b16 %v6476
  %v7376 = vunpack.c.h.b16 %v6476
  %v7377 = vunpack.c.l.b16 %v6477
  %v7378 = vunpack.c.h.b16 %v6477
  %v7379 = vunpack.c.l.b16 %v6478
  %v7380 = vunpack.c.h.b16 %v6478
  %v7381 = vunpack.c.l.b16 %v6479
  %v7382 = vunpack.c.h.b16 %v6479
  %v7383 = vunpack.c.l.b16 %v6480
  %v7384 = vunpack.c.h.b16 %v6480
  %v7385 = vunpack.c.l.b16 %v6481
  %v7386 = vunpack.c.h.b16 %v6481
  %v7387 = vunpack.c.l.b16 %v6482
  %v7388 = vunpack.c.h.b16 %v6482
  %v7389 = vunpack.c.l.b16 %v6483
  %v7390 = vunpack.c.h.b16 %v6483
  %v7391 = vunpack.c.l.b16 %v6484
  %v7392 = vunpack.c.h.b16 %v6484
  %v7393 = vunpack.c.l.b16 %v6485
  %v7394 = vunpack.c.h.b16 %v6485
  %v7395 = vunpack.c.l.b16 %v6486
  %v7396 = vunpack.c.h.b16 %v6486
  %v7397 = vunpack.c.l.b16 %v6487
  %v7398 = vunpack.c.h.b16 %v6487
  %v7399 = vunpack.c.l.b16 %v6488
  %v7400 = vunpack.c.h.b16 %v6488
  %v7401 = vunpack.c.l.b16 %v6489
  %v7402 = vunpack.c.h.b16 %v6489
  %v7403 = vunpack.c.l.b16 %v6490
  %v7404 = vunpack.c.h.b16 %v6490
  %v7405 = vunpack.c.l.b16 %v6491
  %v7406 = vunpack.c.h.b16 %v6491
  %v7407 = vunpack.c.l.b16 %v6492
  %v7408 = vunpack.c.h.b16 %v6492
  %v7409 = vunpack.c.l.b16 %v6493
  %v7410 = vunpack.c.h.b16 %v6493
  %v7411 = vunpack.c.l.b16 %v6494
  %v7412 = vunpack.c.h.b16 %v6494
  %v7413 = vunpack.c.l.b16 %v6495
  %v7414 = vunpack.c.h.b16 %v6495
  %v7415 = vunpack.c.l.b16 %v6496
  %v7416 = vunpack.c.h.b16 %v6496
  %v7417 = vunpack.c.l.b16 %v6497
  %v7418 = vunpack.c.h.b16 %v6497
  %v7419 = vunpack.c.l.b16 %v6498
  %v7420 = vunpack.c.h.b16 %v6498
  %v7421 = vunpack.c.l.b16 %v6499
  %v7422 = vunpack.c.h.b16 %v6499
  %v7423 = vunpack.c.l.b16 %v6500
  %v7424 = vunpack.c.h.b16 %v6500
  %v7425 = vunpack.c.l.b16 %v6501
  %v7426 = vunpack.c.h.b16 %v6501
  %v7427 = vunpack.c.l.b16 %v6502
  %v7428 = vunpack.c.h.b16 %v6502
  %v7429 = vunpack.c.l.b16 %v6503
  %v7430 = vunpack.c.h.b16 %v6503
  %v7431 = vunpack.c.l.b16 %v6504
  %v7432 = vunpack.c.h.b16 %v6504
  %v7433 = vunpack.c.l.b16 %v6505
  %v7434 = vunpack.c.h.b16 %v6505
  %v7435 = vunpack.c.l.b16 %v6506
  %v7436 = vunpack.c.h.b16 %v6506
  %v7437 = vunpack.c.l.b16 %v6507
  %v7438 = vunpack.c.h.b16 %v6507
  %v7439 = vunpack.c.l.b16 %v6508
  %v7440 = vunpack.c.h.b16 %v6508
  %v7441 = vunpack.c.l.b16 %v6509
  %v7442 = vunpack.c.h.b16 %v6509
  %v7443 = vunpack.c.l.b16 %v6510
  %v7444 = vunpack.c.h.b16 %v6510
  %v7445 = vunpack.c.l.b16 %v6511
  %v7446 = vunpack.c.h.b16 %v6511
  %v7447 = vunpack.c.l.b16 %v6512
  %v7448 = vunpack.c.h.b16 %v6512
  %v7449 = vunpack.c.l.b16 %v6513
  %v7450 = vunpack.c.h.b16 %v6513
  %v7451 = vunpack.c.l.b16 %v6514
  %v7452 = vunpack.c.h.b16 %v6514
  %v7453 = vunpack.c.l.b16 %v6515
  %v7454 = vunpack.c.h.b16 %v6515
  %v7455 = vunpack.c.l.b16 %v6516
  %v7456 = vunpack.c.h.b16 %v6516
  %v7457 = vunpack.c.l.b16 %v6517
  %v7458 = vunpack.c.h.b16 %v6517
  %v7459 = vunpack.c.l.b16 %v6518
  %v7460 = vunpack.c.h.b16 %v6518
  %v7461 = vunpack.c.l.b16 %v6519
  %v7462 = vunpack.c.h.b16 %v6519
  %v7463 = vunpack.c.l.b16 %v6520
  %v7464 = vunpack.c.h.b16 %v6520
  %v7465 = vunpack.c.l.b16 %v6521
  %v7466 = vunpack.c.h.b16 %v6521
  %v7467 = vunpack.c.l.b16 %v6522
  %v7468 = vunpack.c.h.b16 %v6522
  %v7469 = vunpack.c.l.b16 %v6523
  %v7470 = vunpack.c.h.b16 %v6523
  %v7471 = vunpack.c.l.b16 %v6524
  %v7472 = vunpack.c.h.b16 %v6524
  %v7473 = vunpack.c.l.b16 %v6525
  %v7474 = vunpack.c.h.b16 %v6525
  %v7475 = vunpack.c.l.b16 %v6526
  %v7476 = vunpack.c.h.b16 %v6526
  %v7477 = vunpack.c.l.b16 %v6527
  %v7478 = vunpack.c.h.b16 %v6527
  %v7479 = vunpack.c.l.b16 %v6528
  %v7480 = vunpack.c.h.b16 %v6528
  %v7481 = vunpack.c.l.b16 %v6529
  %v7482 = vunpack.c.h.b16 %v6529
  %v7483 = vunpack.c.l.b16 %v6530
  %v7484 = vunpack.c.h.b16 %v6530
  %v7485 = vunpack.c.l.b16 %v6531
  %v7486 = vunpack.c.h.b16 %v6531
  %v7487 = vunpack.c.l.b16 %v6532
  %v7488 = vunpack.c.h.b16 %v6532
  %v7489 = vunpack.c.l.b16 %v6533
  %v7490 = vunpack.c.h.b16 %v6533
  %v7491 = vunpack.c.l.b16 %v6534
  %v7492 = vunpack.c.h.b16 %v6534
  %v7493 = vunpack.c.l.b16 %v6535
  %v7494 = vunpack.c.h.b16 %v6535
  %v7495 = vunpack.c.l.b16 %v6536
  %v7496 = vunpack.c.h.b16 %v6536
  %v7497 = vunpack.c.l.b16 %v6537
  %v7498 = vunpack.c.h.b16 %v6537
  %v7499 = vunpack.c.l.b16 %v6538
  %v7500 = vunpack.c.h.b16 %v6538
  %v7501 = vunpack.c.l.b16 %v6539
  %v7502 = vunpack.c.h.b16 %v6539
  %v7503 = vunpack.c.l.b16 %v6540
  %v7504 = vunpack.c.h.b16 %v6540
  %v7505 = vunpack.c.l.b16 %v6541
  %v7506 = vunpack.c.h.b16 %v6541
  %v7507 = vunpack.c.l.b16 %v6542
  %v7508 = vunpack.c.h.b16 %v6542
  %v7509 = vunpack.c.l.b16 %v6543
  %v7510 = vunpack.c.h.b16 %v6543
  %v7511 = vunpack.c.l.b16 %v6544
  %v7512 = vunpack.c.h.b16 %v6544
  %v7513 = vunpack.c.l.b16 %v6545
  %v7514 = vunpack.c.h.b16 %v6545
  %v7515 = vunpack.c.l.b16 %v6546
  %v7516 = vunpack.c.h.b16 %v6546
  %v7517 = vunpack.c.l.b16 %v6547
  %v7518 = vunpack.c.h.b16 %v6547
  %v7519 = vunpack.c.l.b16 %v6548
  %v7520 = vunpack.c.h.b16 %v6548
  %v7521 = vunpack.c.l.b16 %v6549
  %v7522 = vunpack.c.h.b16 %v6549
  %v7523 = vunpack.c.l.b16 %v6550
  %v7524 = vunpack.c.h.b16 %v6550
  %v7525 = vunpack.c.l.b16 %v6551
  %v7526 = vunpack.c.h.b16 %v6551
  %v7527 = vunpack.c.l.b16 %v6552
  %v7528 = vunpack.c.h.b16 %v6552
  %v7529 = vunpack.c.l.b16 %v6553
  %v7530 = vunpack.c.h.b16 %v6553
  %v7531 = vunpack.c.l.b16 %v6554
  %v7532 = vunpack.c.h.b16 %v6554
  %v7533 = vunpack.c.l.b16 %v6555
  %v7534 = vunpack.c.h.b16 %v6555
  %v7535 = vunpack.c.l.b16 %v6556
  %v7536 = vunpack.c.h.b16 %v6556
  %v7537 = vunpack.c.l.b16 %v6557
  %v7538 = vunpack.c.h.b16 %v6557
  %v7539 = vunpack.c.l.b16 %v6558
  %v7540 = vunpack.c.h.b16 %v6558
  %v7541 = vunpack.c.l.b16 %v6559
  %v7542 = vunpack.c.h.b16 %v6559
  %v7543 = vunpack.c.l.b16 %v6560
  %v7544 = vunpack.c.h.b16 %v6560
  %v7545 = vunpack.c.l.b16 %v6561
  %v7546 = vunpack.c.h.b16 %v6561
  %v7547 = vunpack.c.l.b16 %v6562
  %v7548 = vunpack.c.h.b16 %v6562
  %v7549 = vunpack.c.l.b16 %v6563
  %v7550 = vunpack.c.h.b16 %v6563
  %v7551 = vunpack.c.l.b16 %v6564
  %v7552 = vunpack.c.h.b16 %v6564
  %v7553 = vunpack.c.l.b16 %v6565
  %v7554 = vunpack.c.h.b16 %v6565
  %v7555 = vunpack.c.l.b16 %v6566
  %v7556 = vunpack.c.h.b16 %v6566
  %v7557 = vunpack.c.l.b16 %v6567
  %v7558 = vunpack.c.h.b16 %v6567
  %v7559 = vunpack.c.l.b16 %v6568
  %v7560 = vunpack.c.h.b16 %v6568
  %v7561 = vunpack.c.l.b16 %v6569
  %v7562 = vunpack.c.h.b16 %v6569
  %v7563 = vunpack.c.l.b16 %v6570
  %v7564 = vunpack.c.h.b16 %v6570
  %v7565 = vunpack.c.l.b16 %v6571
  %v7566 = vunpack.c.h.b16 %v6571
  %v7567 = vunpack.c.l.b16 %v6572
  %v7568 = vunpack.c.h.b16 %v6572
  %v7569 = vunpack.c.l.b16 %v6573
  %v7570 = vunpack.c.h.b16 %v6573
  %v7571 = vunpack.c.l.b16 %v6574
  %v7572 = vunpack.c.h.b16 %v6574
  %v7573 = vunpack.c.l.b16 %v6575
  %v7574 = vunpack.c.h.b16 %v6575
  %v7575 = vunpack.c.l.b16 %v6576
  %v7576 = vunpack.c.h.b16 %v6576
  %v7577 = vunpack.c.l.b16 %v6577
  %v7578 = vunpack.c.h.b16 %v6577
  %v7579 = vunpack.c.l.b16 %v6578
  %v7580 = vunpack.c.h.b16 %v6578
  %v7581 = vunpack.c.l.b16 %v6579
  %v7582 = vunpack.c.h.b16 %v6579
  %v7583 = vunpack.c.l.b16 %v6580
  %v7584 = vunpack.c.h.b16 %v6580
  %v7585 = vunpack.c.l.b16 %v6581
  %v7586 = vunpack.c.h.b16 %v6581
  %v7587 = vunpack.c.l.b16 %v6582
  %v7588 = vunpack.c.h.b16 %v6582
  %v7589 = vunpack.c.l.b16 %v6583
  %v7590 = vunpack.c.h.b16 %v6583
  %v7591 = vunpack.c.l.b16 %v6584
  %v7592 = vunpack.c.h.b16 %v6584
  %v7593 = vunpack.c.l.b16 %v6585
  %v7594 = vunpack.c.h.b16 %v6585
  %v7595 = vunpack.c.l.b16 %v6586
  %v7596 = vunpack.c.h.b16 %v6586
  %v7597 = vunpack.c.l.b16 %v6587
  %v7598 = vunpack.c.h.b16 %v6587
  %v7599 = vunpack.c.l.b16 %v6588
  %v7600 = vunpack.c.h.b16 %v6588
  %v7601 = vunpack.c.l.b16 %v6589
  %v7602 = vunpack.c.h.b16 %v6589
  %v7603 = vunpack.c.l.b16 %v6590
  %v7604 = vunpack.c.h.b16 %v6590
  %v7605 = vunpack.c.l.b16 %v6591
  %v7606 = vunpack.c.h.b16 %v6591
  %v7607 = vunpack.c.l.b16 %v6592
  %v7608 = vunpack.c.h.b16 %v6592
  %v7609 = vunpack.c.l.b16 %v6593
  %v7610 = vunpack.c.h.b16 %v6593
  %v7611 = vunpack.c.l.b16 %v6594
  %v7612 = vunpack.c.h.b16 %v6594
  %v7613 = vunpack.c.l.b16 %v6595
  %v7614 = vunpack.c.h.b16 %v6595
  %v7615 = vunpack.c.l.b16 %v6596
  %v7616 = vunpack.c.h.b16 %v6596
  %v7617 = vunpack.c.l.b16 %v6597
  %v7618 = vunpack.c.h.b16 %v6597
  %v7619 = vunpack.c.l.b16 %v6598
  %v7620 = vunpack.c.h.b16 %v6598
  %v7621 = vunpack.c.l.b16 %v6599
  %v7622 = vunpack.c.h.b16 %v6599
  %v7623 = vunpack.c.l.b16 %v6600
  %v7624 = vunpack.c.h.b16 %v6600
  %v7625 = vunpack.c.l.b16 %v6601
  %v7626 = vunpack.c.h.b16 %v6601
  %v7627 = vunpack.c.l.b16 %v6602
  %v7628 = vunpack.c.h.b16 %v6602
  %v7629 = vunpack.c.l.b16 %v6603
  %v7630 = vunpack.c.h.b16 %v6603
  %v7631 = vunpack.c.l.b16 %v6604
  %v7632 = vunpack.c.h.b16 %v6604
  %v7633 = vunpack.c.l.b16 %v6605
  %v7634 = vunpack.c.h.b16 %v6605
  %v7635 = vunpack.c.l.b16 %v6606
  %v7636 = vunpack.c.h.b16 %v6606
  %v7637 = vunpack.c.l.b16 %v6607
  %v7638 = vunpack.c.h.b16 %v6607
  %v7639 = vunpack.c.l.b16 %v6608
  %v7640 = vunpack.c.h.b16 %v6608
  %v7641 = vunpack.c.l.b16 %v6609
  %v7642 = vunpack.c.h.b16 %v6609
  %v7643 = vunpack.c.l.b16 %v6610
  %v7644 = vunpack.c.h.b16 %v6610
  %v7645 = vunpack.c.l.b16 %v6611
  %v7646 = vunpack.c.h.b16 %v6611
  %v7647 = vunpack.c.l.b16 %v6612
  %v7648 = vunpack.c.h.b16 %v6612
  %v7649 = vunpack.c.l.b16 %v6613
  %v7650 = vunpack.c.h.b16 %v6613
  %v7651 = vunpack.c.l.b16 %v6614
  %v7652 = vunpack.c.h.b16 %v6614
  %v7653 = vunpack.c.l.b16 %v6615
  %v7654 = vunpack.c.h.b16 %v6615
  %v7655 = vunpack.c.l.b16 %v6616
  %v7656 = vunpack.c.h.b16 %v6616
  %v7657 = vunpack.c.l.b16 %v6617
  %v7658 = vunpack.c.h.b16 %v6617
  %v7659 = vunpack.c.l.b16 %v6618
  %v7660 = vunpack.c.h.b16 %v6618
  %v7661 = vunpack.c.l.b16 %v6619
  %v7662 = vunpack.c.h.b16 %v6619
  %v7663 = vunpack.c.l.b16 %v6620
  %v7664 = vunpack.c.h.b16 %v6620
  %v7665 = vunpack.c.l.b16 %v6621
  %v7666 = vunpack.c.h.b16 %v6621
  %v7667 = vunpack.c.l.b16 %v6622
  %v7668 = vunpack.c.h.b16 %v6622
  %v7669 = vunpack.c.l.b16 %v6623
  %v7670 = vunpack.c.h.b16 %v6623
  %v7671 = vunpack.c.l.b16 %v6624
  %v7672 = vunpack.c.h.b16 %v6624
  %v7673 = vunpack.c.l.b16 %v6625
  %v7674 = vunpack.c.h.b16 %v6625
  %v7675 = vunpack.c.l.b16 %v6626
  %v7676 = vunpack.c.h.b16 %v6626
  %v7677 = vunpack.c.l.b16 %v6627
  %v7678 = vunpack.c.h.b16 %v6627
  %v7679 = vunpack.c.l.b16 %v6628
  %v7680 = vunpack.c.h.b16 %v6628
  %v7681 = vunpack.c.l.b16 %v6629
  %v7682 = vunpack.c.h.b16 %v6629
  %v7683 = vunpack.c.l.b16 %v6630
  %v7684 = vunpack.c.h.b16 %v6630
  %v7685 = vunpack.c.l.b16 %v6631
  %v7686 = vunpack.c.h.b16 %v6631
  %v7687 = vunpack.c.l.b16 %v6632
  %v7688 = vunpack.c.h.b16 %v6632
  %v7689 = vunpack.c.l.b16 %v6633
  %v7690 = vunpack.c.h.b16 %v6633
  %v7691 = vunpack.c.l.b16 %v6634
  %v7692 = vunpack.c.h.b16 %v6634
  %v7693 = vunpack.c.l.b16 %v6635
  %v7694 = vunpack.c.h.b16 %v6635
  %v7695 = vunpack.c.l.b16 %v6636
  %v7696 = vunpack.c.h.b16 %v6636
  %v7697 = vunpack.c.l.b16 %v6637
  %v7698 = vunpack.c.h.b16 %v6637
  %v7699 = vunpack.c.l.b16 %v6638
  %v7700 = vunpack.c.h.b16 %v6638
  %v7701 = vunpack.c.l.b16 %v6639
  %v7702 = vunpack.c.h.b16 %v6639
  %v7703 = vunpack.c.l.b16 %v6640
  %v7704 = vunpack.c.h.b16 %v6640
  %v7705 = vunpack.c.l.b16 %v6641
  %v7706 = vunpack.c.h.b16 %v6641
  %v7707 = vunpack.c.l.b16 %v6642
  %v7708 = vunpack.c.h.b16 %v6642
  %v7709 = vunpack.c.l.b16 %v6643
  %v7710 = vunpack.c.h.b16 %v6643
  %v7711 = vunpack.c.l.b16 %v6644
  %v7712 = vunpack.c.h.b16 %v6644
  %v7713 = vunpack.c.l.b16 %v6645
  %v7714 = vunpack.c.h.b16 %v6645
  %v7715 = vunpack.c.l.b16 %v6646
  %v7716 = vunpack.c.h.b16 %v6646
  %v7717 = vunpack.c.l.b16 %v6647
  %v7718 = vunpack.c.h.b16 %v6647
  %v7719 = vunpack.c.l.b16 %v6648
  %v7720 = vunpack.c.h.b16 %v6648
  %v7721 = vunpack.c.l.b16 %v6649
  %v7722 = vunpack.c.h.b16 %v6649
  %v7723 = vunpack.c.l.b16 %v6650
  %v7724 = vunpack.c.h.b16 %v6650
  %v7725 = vunpack.c.l.b16 %v6651
  %v7726 = vunpack.c.h.b16 %v6651
  %v7727 = vunpack.c.l.b16 %v6652
  %v7728 = vunpack.c.h.b16 %v6652
  %v7729 = vunpack.c.l.b16 %v6653
  %v7730 = vunpack.c.h.b16 %v6653
  %v7731 = vunpack.c.l.b16 %v6654
  %v7732 = vunpack.c.h.b16 %v6654
  %v7733 = vunpack.c.l.b16 %v6655
  %v7734 = vunpack.c.h.b16 %v6655
  %v7735 = vunpack.c.l.b16 %v6656
  %v7736 = vunpack.c.h.b16 %v6656
  %v7737 = vunpack.c.l.b16 %v6657
  %v7738 = vunpack.c.h.b16 %v6657
  %v7739 = vunpack.c.l.b16 %v6658
  %v7740 = vunpack.c.h.b16 %v6658
  %v7741 = vunpack.c.l.b16 %v6659
  %v7742 = vunpack.c.h.b16 %v6659
  %v7743 = vunpack.c.l.b16 %v6660
  %v7744 = vunpack.c.h.b16 %v6660
  %v7745 = vunpack.c.l.b16 %v6661
  %v7746 = vunpack.c.h.b16 %v6661
  %v7747 = vunpack.c.l.b16 %v6662
  %v7748 = vunpack.c.h.b16 %v6662
  %v7749 = vunpack.c.l.b16 %v6663
  %v7750 = vunpack.c.h.b16 %v6663
  %v7751 = vunpack.c.l.b16 %v6664
  %v7752 = vunpack.c.h.b16 %v6664
  %v7753 = vpack.c.b16 %v7243, %v7241
  %v7754 = vpack.c.b16 %v7244, %v7242
  %v7755 = vpack.c.b16 %v7247, %v7245
  %v7756 = vpack.c.b16 %v7248, %v7246
  %v7757 = vpack.c.b16 %v7251, %v7249
  %v7758 = vpack.c.b16 %v7252, %v7250
  %v7759 = vpack.c.b16 %v7255, %v7253
  %v7760 = vpack.c.b16 %v7256, %v7254
  %v7761 = vpack.c.b16 %v7259, %v7257
  %v7762 = vpack.c.b16 %v7260, %v7258
  %v7763 = vpack.c.b16 %v7263, %v7261
  %v7764 = vpack.c.b16 %v7264, %v7262
  %v7765 = vpack.c.b16 %v7267, %v7265
  %v7766 = vpack.c.b16 %v7268, %v7266
  %v7767 = vpack.c.b16 %v7271, %v7269
  %v7768 = vpack.c.b16 %v7272, %v7270
  %v7769 = vpack.c.b16 %v7275, %v7273
  %v7770 = vpack.c.b16 %v7276, %v7274
  %v7771 = vpack.c.b16 %v7279, %v7277
  %v7772 = vpack.c.b16 %v7280, %v7278
  %v7773 = vpack.c.b16 %v7283, %v7281
  %v7774 = vpack.c.b16 %v7284, %v7282
  %v7775 = vpack.c.b16 %v7287, %v7285
  %v7776 = vpack.c.b16 %v7288, %v7286
  %v7777 = vpack.c.b16 %v7291, %v7289
  %v7778 = vpack.c.b16 %v7292, %v7290
  %v7779 = vpack.c.b16 %v7295, %v7293
  %v7780 = vpack.c.b16 %v7296, %v7294
  %v7781 = vpack.c.b16 %v7299, %v7297
  %v7782 = vpack.c.b16 %v7300, %v7298
  %v7783 = vpack.c.b16 %v7303, %v7301
  %v7784 = vpack.c.b16 %v7304, %v7302
  %v7785 = vpack.c.b16 %v7307, %v7305
  %v7786 = vpack.c.b16 %v7308, %v7306
  %v7787 = vpack.c.b16 %v7311, %v7309
  %v7788 = vpack.c.b16 %v7312, %v7310
  %v7789 = vpack.c.b16 %v7315, %v7313
  %v7790 = vpack.c.b16 %v7316, %v7314
  %v7791 = vpack.c.b16 %v7319, %v7317
  %v7792 = vpack.c.b16 %v7320, %v7318
  %v7793 = vpack.c.b16 %v7323, %v7321
  %v7794 = vpack.c.b16 %v7324, %v7322
  %v7795 = vpack.c.b16 %v7327, %v7325
  %v7796 = vpack.c.b16 %v7328, %v7326
  %v7797 = vpack.c.b16 %v7331, %v7329
  %v7798 = vpack.c.b16 %v7332, %v7330
  %v7799 = vpack.c.b16 %v7335, %v7333
  %v7800 = vpack.c.b16 %v7336, %v7334
  %v7801 = vpack.c.b16 %v7339, %v7337
  %v7802 = vpack.c.b16 %v7340, %v7338
  %v7803 = vpack.c.b16 %v7343, %v7341
  %v7804 = vpack.c.b16 %v7344, %v7342
  %v7805 = vpack.c.b16 %v7347, %v7345
  %v7806 = vpack.c.b16 %v7348, %v7346
  %v7807 = vpack.c.b16 %v7351, %v7349
  %v7808 = vpack.c.b16 %v7352, %v7350
  %v7809 = vpack.c.b16 %v7355, %v7353
  %v7810 = vpack.c.b16 %v7356, %v7354
  %v7811 = vpack.c.b16 %v7359, %v7357
  %v7812 = vpack.c.b16 %v7360, %v7358
  %v7813 = vpack.c.b16 %v7363, %v7361
  %v7814 = vpack.c.b16 %v7364, %v7362
  %v7815 = vpack.c.b16 %v7367, %v7365
  %v7816 = vpack.c.b16 %v7368, %v7366
  %v7817 = vpack.c.b16 %v7371, %v7369
  %v7818 = vpack.c.b16 %v7372, %v7370
  %v7819 = vpack.c.b16 %v7375, %v7373
  %v7820 = vpack.c.b16 %v7376, %v7374
  %v7821 = vpack.c.b16 %v7379, %v7377
  %v7822 = vpack.c.b16 %v7380, %v7378
  %v7823 = vpack.c.b16 %v7383, %v7381
  %v7824 = vpack.c.b16 %v7384, %v7382
  %v7825 = vpack.c.b16 %v7387, %v7385
  %v7826 = vpack.c.b16 %v7388, %v7386
  %v7827 = vpack.c.b16 %v7391, %v7389
  %v7828 = vpack.c.b16 %v7392, %v7390
  %v7829 = vpack.c.b16 %v7395, %v7393
  %v7830 = vpack.c.b16 %v7396, %v7394
  %v7831 = vpack.c.b16 %v7399, %v7397
  %v7832 = vpack.c.b16 %v7400, %v7398
  %v7833 = vpack.c.b16 %v7403, %v7401
  %v7834 = vpack.c.b16 %v7404, %v7402
  %v7835 = vpack.c.b16 %v7407, %v7405
  %v7836 = vpack.c.b16 %v7408, %v7406
  %v7837 = vpack.c.b16 %v7411, %v7409
  %v7838 = vpack.c.b16 %v7412, %v7410
  %v7839 = vpack.c.b16 %v7415, %v7413
  %v7840 = vpack.c.b16 %v7416, %v7414
  %v7841 = vpack.c.b16 %v7419, %v7417
  %v7842 = vpack.c.b16 %v7420, %v7418
  %v7843 = vpack.c.b16 %v7423, %v7421
  %v7844 = vpack.c.b16 %v7424, %v7422
  %v7845 = vpack.c.b16 %v7427, %v7425
  %v7846 = vpack.c.b16 %v7428, %v7426
  %v7847 = vpack.c.b16 %v7431, %v7429
  %v7848 = vpack.c.b16 %v7432, %v7430
  %v7849 = vpack.c.b16 %v7435, %v7433
  %v7850 = vpack.c.b16 %v7436, %v7434
  %v7851 = vpack.c.b16 %v7439, %v7437
  %v7852 = vpack.c.b16 %v7440, %v7438
  %v7853 = vpack.c.b16 %v7443, %v7441
  %v7854 = vpack.c.b16 %v7444, %v7442
  %v7855 = vpack.c.b16 %v7447, %v7445
  %v7856 = vpack.c.b16 %v7448, %v7446
  %v7857 = vpack.c.b16 %v7451, %v7449
  %v7858 = vpack.c.b16 %v7452, %v7450
  %v7859 = vpack.c.b16 %v7455, %v7453
  %v7860 = vpack.c.b16 %v7456, %v7454
  %v7861 = vpack.c.b16 %v7459, %v7457
  %v7862 = vpack.c.b16 %v7460, %v7458
  %v7863 = vpack.c.b16 %v7463, %v7461
  %v7864 = vpack.c.b16 %v7464, %v7462
  %v7865 = vpack.c.b16 %v7467, %v7465
  %v7866 = vpack.c.b16 %v7468, %v7466
  %v7867 = vpack.c.b16 %v7471, %v7469
  %v7868 = vpack.c.b16 %v7472, %v7470
  %v7869 = vpack.c.b16 %v7475, %v7473
  %v7870 = vpack.c.b16 %v7476, %v7474
  %v7871 = vpack.c.b16 %v7479, %v7477
  %v7872 = vpack.c.b16 %v7480, %v7478
  %v7873 = vpack.c.b16 %v7483, %v7481
  %v7874 = vpack.c.b16 %v7484, %v7482
  %v7875 = vpack.c.b16 %v7487, %v7485
  %v7876 = vpack.c.b16 %v7488, %v7486
  %v7877 = vpack.c.b16 %v7491, %v7489
  %v7878 = vpack.c.b16 %v7492, %v7490
  %v7879 = vpack.c.b16 %v7495, %v7493
  %v7880 = vpack.c.b16 %v7496, %v7494
  %v7881 = vpack.c.b16 %v7499, %v7497
  %v7882 = vpack.c.b16 %v7500, %v7498
  %v7883 = vpack.c.b16 %v7503, %v7501
  %v7884 = vpack.c.b16 %v7504, %v7502
  %v7885 = vpack.c.b16 %v7507, %v7505
  %v7886 = vpack.c.b16 %v7508, %v7506
  %v7887 = vpack.c.b16 %v7511, %v7509
  %v7888 = vpack.c.b16 %v7512, %v7510
  %v7889 = vpack.c.b16 %v7515, %v7513
  %v7890 = vpack.c.b16 %v7516, %v7514
  %v7891 = vpack.c.b16 %v7519, %v7517
  %v7892 = vpack.c.b16 %v7520, %v7518
  %v7893 = vpack.c.b16 %v7523, %v7521
  %v7894 = vpack.c.b16 %v7524, %v7522
  %v7895 = vpack.c.b16 %v7527, %v7525
  %v7896 = vpack.c.b16 %v7528, %v7526
  %v7897 = vpack.c.b16 %v7531, %v7529
  %v7898 = vpack.c.b16 %v7532, %v7530
  %v7899 = vpack.c.b16 %v7535, %v7533
  %v7900 = vpack.c.b16 %v7536, %v7534
  %v7901 = vpack.c.b16 %v7539, %v7537
  %v7902 = vpack.c.b16 %v7540, %v7538
  %v7903 = vpack.c.b16 %v7543, %v7541
  %v7904 = vpack.c.b16 %v7544, %v7542
  %v7905 = vpack.c.b16 %v7547, %v7545
  %v7906 = vpack.c.b16 %v7548, %v7546
  %v7907 = vpack.c.b16 %v7551, %v7549
  %v7908 = vpack.c.b16 %v7552, %v7550
  %v7909 = vpack.c.b16 %v7555, %v7553
  %v7910 = vpack.c.b16 %v7556, %v7554
  %v7911 = vpack.c.b16 %v7559, %v7557
  %v7912 = vpack.c.b16 %v7560, %v7558
  %v7913 = vpack.c.b16 %v7563, %v7561
  %v7914 = vpack.c.b16 %v7564, %v7562
  %v7915 = vpack.c.b16 %v7567, %v7565
  %v7916 = vpack.c.b16 %v7568, %v7566
  %v7917 = vpack.c.b16 %v7571, %v7569
  %v7918 = vpack.c.b16 %v7572, %v7570
  %v7919 = vpack.c.b16 %v7575, %v7573
  %v7920 = vpack.c.b16 %v7576, %v7574
  %v7921 = vpack.c.b16 %v7579, %v7577
  %v7922 = vpack.c.b16 %v7580, %v7578
  %v7923 = vpack.c.b16 %v7583, %v7581
  %v7924 = vpack.c.b16 %v7584, %v7582
  %v7925 = vpack.c.b16 %v7587, %v7585
  %v7926 = vpack.c.b16 %v7588, %v7586
  %v7927 = vpack.c.b16 %v7591, %v7589
  %v7928 = vpack.c.b16 %v7592, %v7590
  %v7929 = vpack.c.b16 %v7595, %v7593
  %v7930 = vpack.c.b16 %v7596, %v7594
  %v7931 = vpack.c.b16 %v7599, %v7597
  %v7932 = vpack.c.b16 %v7600, %v7598
  %v7933 = vpack.c.b16 %v7603, %v7601
  %v7934 = vpack.c.b16 %v7604, %v7602
  %v7935 = vpack.c.b16 %v7607, %v7605
  %v7936 = vpack.c.b16 %v7608, %v7606
  %v7937 = vpack.c.b16 %v7611, %v7609
  %v7938 = vpack.c.b16 %v7612, %v7610
  %v7939 = vpack.c.b16 %v7615, %v7613
  %v7940 = vpack.c.b16 %v7616, %v7614
  %v7941 = vpack.c.b16 %v7619, %v7617
  %v7942 = vpack.c.b16 %v7620, %v7618
  %v7943 = vpack.c.b16 %v7623, %v7621
  %v7944 = vpack.c.b16 %v7624, %v7622
  %v7945 = vpack.c.b16 %v7627, %v7625
  %v7946 = vpack.c.b16 %v7628, %v7626
  %v7947 = vpack.c.b16 %v7631, %v7629
  %v7948 = vpack.c.b16 %v7632, %v7630
  %v7949 = vpack.c.b16 %v7635, %v7633
  %v7950 = vpack.c.b16 %v7636, %v7634
  %v7951 = vpack.c.b16 %v7639, %v7637
  %v7952 = vpack.c.b16 %v7640, %v7638
  %v7953 = vpack.c.b16 %v7643, %v7641
  %v7954 = vpack.c.b16 %v7644, %v7642
  %v7955 = vpack.c.b16 %v7647, %v7645
  %v7956 = vpack.c.b16 %v7648, %v7646
  %v7957 = vpack.c.b16 %v7651, %v7649
  %v7958 = vpack.c.b16 %v7652, %v7650
  %v7959 = vpack.c.b16 %v7655, %v7653
  %v7960 = vpack.c.b16 %v7656, %v7654
  %v7961 = vpack.c.b16 %v7659, %v7657
  %v7962 = vpack.c.b16 %v7660, %v7658
  %v7963 = vpack.c.b16 %v7663, %v7661
  %v7964 = vpack.c.b16 %v7664, %v7662
  %v7965 = vpack.c.b16 %v7667, %v7665
  %v7966 = vpack.c.b16 %v7668, %v7666
  %v7967 = vpack.c.b16 %v7671, %v7669
  %v7968 = vpack.c.b16 %v7672, %v7670
  %v7969 = vpack.c.b16 %v7675, %v7673
  %v7970 = vpack.c.b16 %v7676, %v7674
  %v7971 = vpack.c.b16 %v7679, %v7677
  %v7972 = vpack.c.b16 %v7680, %v7678
  %v7973 = vpack.c.b16 %v7683, %v7681
  %v7974 = vpack.c.b16 %v7684, %v7682
  %v7975 = vpack.c.b16 %v7687, %v7685
  %v7976 = vpack.c.b16 %v7688, %v7686
  %v7977 = vpack.c.b16 %v7691, %v7689
  %v7978 = vpack.c.b16 %v7692, %v7690
  %v7979 = vpack.c.b16 %v7695, %v7693
  %v7980 = vpack.c.b16 %v7696, %v7694
  %v7981 = vpack.c.b16 %v7699, %v7697
  %v7982 = vpack.c.b16 %v7700, %v7698
  %v7983 = vpack.c.b16 %v7703, %v7701
  %v7984 = vpack.c.b16 %v7704, %v7702
  %v7985 = vpack.c.b16 %v7707, %v7705
  %v7986 = vpack.c.b16 %v7708, %v7706
  %v7987 = vpack.c.b16 %v7711, %v7709
  %v7988 = vpack.c.b16 %v7712, %v7710
  %v7989 = vpack.c.b16 %v7715, %v7713
  %v7990 = vpack.c.b16 %v7716, %v7714
  %v7991 = vpack.c.b16 %v7719, %v7717
  %v7992 = vpack.c.b16 %v7720, %v7718
  %v7993 = vpack.c.b16 %v7723, %v7721
  %v7994 = vpack.c.b16 %v7724, %v7722
  %v7995 = vpack.c.b16 %v7727, %v7725
  %v7996 = vpack.c.b16 %v7728, %v7726
  %v7997 = vpack.c.b16 %v7731, %v7729
  %v7998 = vpack.c.b16 %v7732, %v7730
  %v7999 = vpack.c.b16 %v7735, %v7733
  %v8000 = vpack.c.b16 %v7736, %v7734
  %v8001 = vpack.c.b16 %v7739, %v7737
  %v8002 = vpack.c.b16 %v7740, %v7738
  %v8003 = vpack.c.b16 %v7743, %v7741
  %v8004 = vpack.c.b16 %v7744, %v7742
  %v8005 = vpack.c.b16 %v7747, %v7745
  %v8006 = vpack.c.b16 %v7748, %v7746
  %v8007 = vpack.c.b16 %v7751, %v7749
  %v8008 = vpack.c.b16 %v7752, %v7750
  %8265 = vmatprep.subr.bf16.mxu0 %v7754
  %8266 = vmatpush1.bf16.msra.mxu0 %v7753
  %8267 = vmatprep.subr.bf16.mxu0 %v7756
  %8268 = vmatpush1.bf16.msra.mxu0 %v7755
  %8269 = vmatprep.subr.bf16.mxu0 %v7758
  %8270 = vmatpush1.bf16.msra.mxu0 %v7757
  %8271 = vmatprep.subr.bf16.mxu0 %v7760
  %8272 = vmatpush1.bf16.msra.mxu0 %v7759
  %8273 = vmatprep.subr.bf16.mxu0 %v7762
  %8274 = vmatpush1.bf16.msra.mxu0 %v7761
  %8275 = vmatprep.subr.bf16.mxu0 %v7764
  %8276 = vmatpush1.bf16.msra.mxu0 %v7763
  %8277 = vmatprep.subr.bf16.mxu0 %v7766
  %8278 = vmatpush1.bf16.msra.mxu0 %v7765
  %8279 = vmatprep.subr.bf16.mxu0 %v7768
  %8280 = vmatpush1.bf16.msra.mxu0 %v7767
  %8281 = vmatprep.subr.bf16.mxu0 %v7770
  %8282 = vmatpush1.bf16.msra.mxu0 %v7769
  %8283 = vmatprep.subr.bf16.mxu0 %v7772
  %8284 = vmatpush1.bf16.msra.mxu0 %v7771
  %8285 = vmatprep.subr.bf16.mxu0 %v7774
  %8286 = vmatpush1.bf16.msra.mxu0 %v7773
  %8287 = vmatprep.subr.bf16.mxu0 %v7776
  %8288 = vmatpush1.bf16.msra.mxu0 %v7775
  %8289 = vmatprep.subr.bf16.mxu0 %v7778
  %8290 = vmatpush1.bf16.msra.mxu0 %v7777
  %8291 = vmatprep.subr.bf16.mxu0 %v7780
  %8292 = vmatpush1.bf16.msra.mxu0 %v7779
  %8293 = vmatprep.subr.bf16.mxu0 %v7782
  %8294 = vmatpush1.bf16.msra.mxu0 %v7781
  %8295 = vmatprep.subr.bf16.mxu0 %v7784
  %8296 = vmatpush1.bf16.msra.mxu0 %v7783
  %8297 = vmatprep.mubr.bf16.mxu0 %v6698
  %8298 = vmatmul.mubr.bf16.gmra.mrb[0].mxu0 %v6697
  %v8299 = vpop.f32.mrb[0].mxu0
  %v8300 = vadd.f32 0.0, %v8299
  %v8301 = vpop.f32.mrb[0].mxu0
  %v8302 = vadd.f32 0.0, %v8301
  %v8303 = vpop.f32.mrb[0].mxu0
  %v8304 = vadd.f32 0.0, %v8303
  %v8305 = vpop.f32.mrb[0].mxu0
  %v8306 = vadd.f32 0.0, %v8305
  %8307 = vmatprep.mubr.bf16.mxu0 %v6842
  %8308 = vmatmul.mubr.bf16.gmra.mrb[0].mxu0 %v6841
  %v8309 = vpop.f32.mrb[0].mxu0
  %v8310 = vadd.f32 0.0, %v8309
  %v8311 = vpop.f32.mrb[0].mxu0
  %v8312 = vadd.f32 0.0, %v8311
  %v8313 = vpop.f32.mrb[0].mxu0
  %v8314 = vadd.f32 0.0, %v8313
  %v8315 = vpop.f32.mrb[0].mxu0
  %v8316 = vadd.f32 0.0, %v8315
  %8317 = vdwg.mxu0
  %8318 = vmatprep.subr.bf16.mxu0 %v7786
  %8319 = vmatpush1.bf16.msra.mxu0 %v7785
  %8320 = vmatprep.subr.bf16.mxu0 %v7788
  %8321 = vmatpush1.bf16.msra.mxu0 %v7787
  %8322 = vmatprep.subr.bf16.mxu0 %v7790
  %8323 = vmatpush1.bf16.msra.mxu0 %v7789
  %8324 = vmatprep.subr.bf16.mxu0 %v7792
  %8325 = vmatpush1.bf16.msra.mxu0 %v7791
  %8326 = vmatprep.subr.bf16.mxu0 %v7794
  %8327 = vmatpush1.bf16.msra.mxu0 %v7793
  %8328 = vmatprep.subr.bf16.mxu0 %v7796
  %8329 = vmatpush1.bf16.msra.mxu0 %v7795
  %8330 = vmatprep.subr.bf16.mxu0 %v7798
  %8331 = vmatpush1.bf16.msra.mxu0 %v7797
  %8332 = vmatprep.subr.bf16.mxu0 %v7800
  %8333 = vmatpush1.bf16.msra.mxu0 %v7799
  %8334 = vmatprep.subr.bf16.mxu0 %v7802
  %8335 = vmatpush1.bf16.msra.mxu0 %v7801
  %8336 = vmatprep.subr.bf16.mxu0 %v7804
  %8337 = vmatpush1.bf16.msra.mxu0 %v7803
  %8338 = vmatprep.subr.bf16.mxu0 %v7806
  %8339 = vmatpush1.bf16.msra.mxu0 %v7805
  %8340 = vmatprep.subr.bf16.mxu0 %v7808
  %8341 = vmatpush1.bf16.msra.mxu0 %v7807
  %8342 = vmatprep.subr.bf16.mxu0 %v7810
  %8343 = vmatpush1.bf16.msra.mxu0 %v7809
  %8344 = vmatprep.subr.bf16.mxu0 %v7812
  %8345 = vmatpush1.bf16.msra.mxu0 %v7811
  %8346 = vmatprep.subr.bf16.mxu0 %v7814
  %8347 = vmatpush1.bf16.msra.mxu0 %v7813
  %8348 = vmatprep.subr.bf16.mxu0 %v7816
  %8349 = vmatpush1.bf16.msra.mxu0 %v7815
  %8350 = vmatprep.mubr.bf16.mxu0 %v6700
  %8351 = vmatmul.mubr.bf16.gmra.mrb[0].mxu0 %v6699
  %v8352 = vpop.f32.mrb[0].mxu0
  %v8353 = vadd.f32 %v8300, %v8352
  %v8354 = vpop.f32.mrb[0].mxu0
  %v8355 = vadd.f32 %v8302, %v8354
  %v8356 = vpop.f32.mrb[0].mxu0
  %v8357 = vadd.f32 %v8304, %v8356
  %v8358 = vpop.f32.mrb[0].mxu0
  %v8359 = vadd.f32 %v8306, %v8358
  %8360 = vmatprep.mubr.bf16.mxu0 %v6844
  %8361 = vmatmul.mubr.bf16.gmra.mrb[0].mxu0 %v6843
  %v8362 = vpop.f32.mrb[0].mxu0
  %v8363 = vadd.f32 %v8310, %v8362
  %v8364 = vpop.f32.mrb[0].mxu0
  %v8365 = vadd.f32 %v8312, %v8364
  %v8366 = vpop.f32.mrb[0].mxu0
  %v8367 = vadd.f32 %v8314, %v8366
  %v8368 = vpop.f32.mrb[0].mxu0
  %v8369 = vadd.f32 %v8316, %v8368
  %8370 = vdwg.mxu0
  %8371 = vmatprep.subr.bf16.mxu0 %v7818
  %8372 = vmatpush1.bf16.msra.mxu0 %v7817
  %8373 = vmatprep.subr.bf16.mxu0 %v7820
  %8374 = vmatpush1.bf16.msra.mxu0 %v7819
  %8375 = vmatprep.subr.bf16.mxu0 %v7822
  %8376 = vmatpush1.bf16.msra.mxu0 %v7821
  %8377 = vmatprep.subr.bf16.mxu0 %v7824
  %8378 = vmatpush1.bf16.msra.mxu0 %v7823
  %8379 = vmatprep.subr.bf16.mxu0 %v7826
  %8380 = vmatpush1.bf16.msra.mxu0 %v7825
  %8381 = vmatprep.subr.bf16.mxu0 %v7828
  %8382 = vmatpush1.bf16.msra.mxu0 %v7827
  %8383 = vmatprep.subr.bf16.mxu0 %v7830
  %8384 = vmatpush1.bf16.msra.mxu0 %v7829
  %8385 = vmatprep.subr.bf16.mxu0 %v7832
  %8386 = vmatpush1.bf16.msra.mxu0 %v7831
  %8387 = vmatprep.subr.bf16.mxu0 %v7834
  %8388 = vmatpush1.bf16.msra.mxu0 %v7833
  %8389 = vmatprep.subr.bf16.mxu0 %v7836
  %8390 = vmatpush1.bf16.msra.mxu0 %v7835
  %8391 = vmatprep.subr.bf16.mxu0 %v7838
  %8392 = vmatpush1.bf16.msra.mxu0 %v7837
  %8393 = vmatprep.subr.bf16.mxu0 %v7840
  %8394 = vmatpush1.bf16.msra.mxu0 %v7839
  %8395 = vmatprep.subr.bf16.mxu0 %v7842
  %8396 = vmatpush1.bf16.msra.mxu0 %v7841
  %8397 = vmatprep.subr.bf16.mxu0 %v7844
  %8398 = vmatpush1.bf16.msra.mxu0 %v7843
  %8399 = vmatprep.subr.bf16.mxu0 %v7846
  %8400 = vmatpush1.bf16.msra.mxu0 %v7845
  %8401 = vmatprep.subr.bf16.mxu0 %v7848
  %8402 = vmatpush1.bf16.msra.mxu0 %v7847
  %8403 = vmatprep.mubr.bf16.mxu0 %v6734
  %8404 = vmatmul.mubr.bf16.gmra.mrb[0].mxu0 %v6733
  %v8405 = vpop.f32.mrb[0].mxu0
  %v8406 = vadd.f32 %v8353, %v8405
  %v8407 = vpop.f32.mrb[0].mxu0
  %v8408 = vadd.f32 %v8355, %v8407
  %v8409 = vpop.f32.mrb[0].mxu0
  %v8410 = vadd.f32 %v8357, %v8409
  %v8411 = vpop.f32.mrb[0].mxu0
  %v8412 = vadd.f32 %v8359, %v8411
  %8413 = vmatprep.mubr.bf16.mxu0 %v6878
  %8414 = vmatmul.mubr.bf16.gmra.mrb[0].mxu0 %v6877
  %v8415 = vpop.f32.mrb[0].mxu0
  %v8416 = vadd.f32 %v8363, %v8415
  %v8417 = vpop.f32.mrb[0].mxu0
  %v8418 = vadd.f32 %v8365, %v8417
  %v8419 = vpop.f32.mrb[0].mxu0
  %v8420 = vadd.f32 %v8367, %v8419
  %v8421 = vpop.f32.mrb[0].mxu0
  %v8422 = vadd.f32 %v8369, %v8421
  %8423 = vdwg.mxu0
  %8424 = vmatprep.subr.bf16.mxu0 %v7850
  %8425 = vmatpush1.bf16.msra.mxu0 %v7849
  %8426 = vmatprep.subr.bf16.mxu0 %v7852
  %8427 = vmatpush1.bf16.msra.mxu0 %v7851
  %8428 = vmatprep.subr.bf16.mxu0 %v7854
  %8429 = vmatpush1.bf16.msra.mxu0 %v7853
  %8430 = vmatprep.subr.bf16.mxu0 %v7856
  %8431 = vmatpush1.bf16.msra.mxu0 %v7855
  %8432 = vmatprep.subr.bf16.mxu0 %v7858
  %8433 = vmatpush1.bf16.msra.mxu0 %v7857
  %8434 = vmatprep.subr.bf16.mxu0 %v7860
  %8435 = vmatpush1.bf16.msra.mxu0 %v7859
  %8436 = vmatprep.subr.bf16.mxu0 %v7862
  %8437 = vmatpush1.bf16.msra.mxu0 %v7861
  %8438 = vmatprep.subr.bf16.mxu0 %v7864
  %8439 = vmatpush1.bf16.msra.mxu0 %v7863
  %8440 = vmatprep.subr.bf16.mxu0 %v7866
  %8441 = vmatpush1.bf16.msra.mxu0 %v7865
  %8442 = vmatprep.subr.bf16.mxu0 %v7868
  %8443 = vmatpush1.bf16.msra.mxu0 %v7867
  %8444 = vmatprep.subr.bf16.mxu0 %v7870
  %8445 = vmatpush1.bf16.msra.mxu0 %v7869
  %8446 = vmatprep.subr.bf16.mxu0 %v7872
  %8447 = vmatpush1.bf16.msra.mxu0 %v7871
  %8448 = vmatprep.subr.bf16.mxu0 %v7874
  %8449 = vmatpush1.bf16.msra.mxu0 %v7873
  %8450 = vmatprep.subr.bf16.mxu0 %v7876
  %8451 = vmatpush1.bf16.msra.mxu0 %v7875
  %8452 = vmatprep.subr.bf16.mxu0 %v7878
  %8453 = vmatpush1.bf16.msra.mxu0 %v7877
  %8454 = vmatprep.subr.bf16.mxu0 %v7880
  %8455 = vmatpush1.bf16.msra.mxu0 %v7879
  %8456 = vmatprep.mubr.bf16.mxu0 %v6736
  %8457 = vmatmul.mubr.bf16.gmra.mrb[0].mxu0 %v6735
  %v8458 = vpop.f32.mrb[0].mxu0
  %v8459 = vadd.f32 %v8406, %v8458
  %v8460 = vpop.f32.mrb[0].mxu0
  %v8461 = vadd.f32 %v8408, %v8460
  %v8462 = vpop.f32.mrb[0].mxu0
  %v8463 = vadd.f32 %v8410, %v8462
  %v8464 = vpop.f32.mrb[0].mxu0
  %v8465 = vadd.f32 %v8412, %v8464
  %8466 = vmatprep.mubr.bf16.mxu0 %v6880
  %8467 = vmatmul.mubr.bf16.gmra.mrb[0].mxu0 %v6879
  %v8468 = vpop.f32.mrb[0].mxu0
  %v8469 = vadd.f32 %v8416, %v8468
  %v8470 = vpop.f32.mrb[0].mxu0
  %v8471 = vadd.f32 %v8418, %v8470
  %v8472 = vpop.f32.mrb[0].mxu0
  %v8473 = vadd.f32 %v8420, %v8472
  %v8474 = vpop.f32.mrb[0].mxu0
  %v8475 = vadd.f32 %v8422, %v8474
  %8476 = vdwg.mxu0
  %8477 = vmatprep.subr.bf16.mxu0 %v7882
  %8478 = vmatpush1.bf16.msra.mxu0 %v7881
  %8479 = vmatprep.subr.bf16.mxu0 %v7884
  %8480 = vmatpush1.bf16.msra.mxu0 %v7883
  %8481 = vmatprep.subr.bf16.mxu0 %v7886
  %8482 = vmatpush1.bf16.msra.mxu0 %v7885
  %8483 = vmatprep.subr.bf16.mxu0 %v7888
  %8484 = vmatpush1.bf16.msra.mxu0 %v7887
  %8485 = vmatprep.subr.bf16.mxu0 %v7890
  %8486 = vmatpush1.bf16.msra.mxu0 %v7889
  %8487 = vmatprep.subr.bf16.mxu0 %v7892
  %8488 = vmatpush1.bf16.msra.mxu0 %v7891
  %8489 = vmatprep.subr.bf16.mxu0 %v7894
  %8490 = vmatpush1.bf16.msra.mxu0 %v7893
  %8491 = vmatprep.subr.bf16.mxu0 %v7896
  %8492 = vmatpush1.bf16.msra.mxu0 %v7895
  %8493 = vmatprep.subr.bf16.mxu0 %v7898
  %8494 = vmatpush1.bf16.msra.mxu0 %v7897
  %8495 = vmatprep.subr.bf16.mxu0 %v7900
  %8496 = vmatpush1.bf16.msra.mxu0 %v7899
  %8497 = vmatprep.subr.bf16.mxu0 %v7902
  %8498 = vmatpush1.bf16.msra.mxu0 %v7901
  %8499 = vmatprep.subr.bf16.mxu0 %v7904
  %8500 = vmatpush1.bf16.msra.mxu0 %v7903
  %8501 = vmatprep.subr.bf16.mxu0 %v7906
  %8502 = vmatpush1.bf16.msra.mxu0 %v7905
  %8503 = vmatprep.subr.bf16.mxu0 %v7908
  %8504 = vmatpush1.bf16.msra.mxu0 %v7907
  %8505 = vmatprep.subr.bf16.mxu0 %v7910
  %8506 = vmatpush1.bf16.msra.mxu0 %v7909
  %8507 = vmatprep.subr.bf16.mxu0 %v7912
  %8508 = vmatpush1.bf16.msra.mxu0 %v7911
  %8509 = vmatprep.mubr.bf16.mxu0 %v6770
  %8510 = vmatmul.mubr.bf16.gmra.mrb[0].mxu0 %v6769
  %v8511 = vpop.f32.mrb[0].mxu0
  %v8512 = vadd.f32 %v8459, %v8511
  %v8513 = vpop.f32.mrb[0].mxu0
  %v8514 = vadd.f32 %v8461, %v8513
  %v8515 = vpop.f32.mrb[0].mxu0
  %v8516 = vadd.f32 %v8463, %v8515
  %v8517 = vpop.f32.mrb[0].mxu0
  %v8518 = vadd.f32 %v8465, %v8517
  %8519 = vmatprep.mubr.bf16.mxu0 %v6914
  %8520 = vmatmul.mubr.bf16.gmra.mrb[0].mxu0 %v6913
  %v8521 = vpop.f32.mrb[0].mxu0
  %v8522 = vadd.f32 %v8469, %v8521
  %v8523 = vpop.f32.mrb[0].mxu0
  %v8524 = vadd.f32 %v8471, %v8523
  %v8525 = vpop.f32.mrb[0].mxu0
  %v8526 = vadd.f32 %v8473, %v8525
  %v8527 = vpop.f32.mrb[0].mxu0
  %v8528 = vadd.f32 %v8475, %v8527
  %8529 = vdwg.mxu0
  %8530 = vmatprep.subr.bf16.mxu0 %v7914
  %8531 = vmatpush1.bf16.msra.mxu0 %v7913
  %8532 = vmatprep.subr.bf16.mxu0 %v7916
  %8533 = vmatpush1.bf16.msra.mxu0 %v7915
  %8534 = vmatprep.subr.bf16.mxu0 %v7918
  %8535 = vmatpush1.bf16.msra.mxu0 %v7917
  %8536 = vmatprep.subr.bf16.mxu0 %v7920
  %8537 = vmatpush1.bf16.msra.mxu0 %v7919
  %8538 = vmatprep.subr.bf16.mxu0 %v7922
  %8539 = vmatpush1.bf16.msra.mxu0 %v7921
  %8540 = vmatprep.subr.bf16.mxu0 %v7924
  %8541 = vmatpush1.bf16.msra.mxu0 %v7923
  %8542 = vmatprep.subr.bf16.mxu0 %v7926
  %8543 = vmatpush1.bf16.msra.mxu0 %v7925
  %8544 = vmatprep.subr.bf16.mxu0 %v7928
  %8545 = vmatpush1.bf16.msra.mxu0 %v7927
  %8546 = vmatprep.subr.bf16.mxu0 %v7930
  %8547 = vmatpush1.bf16.msra.mxu0 %v7929
  %8548 = vmatprep.subr.bf16.mxu0 %v7932
  %8549 = vmatpush1.bf16.msra.mxu0 %v7931
  %8550 = vmatprep.subr.bf16.mxu0 %v7934
  %8551 = vmatpush1.bf16.msra.mxu0 %v7933
  %8552 = vmatprep.subr.bf16.mxu0 %v7936
  %8553 = vmatpush1.bf16.msra.mxu0 %v7935
  %8554 = vmatprep.subr.bf16.mxu0 %v7938
  %8555 = vmatpush1.bf16.msra.mxu0 %v7937
  %8556 = vmatprep.subr.bf16.mxu0 %v7940
  %8557 = vmatpush1.bf16.msra.mxu0 %v7939
  %8558 = vmatprep.subr.bf16.mxu0 %v7942
  %8559 = vmatpush1.bf16.msra.mxu0 %v7941
  %8560 = vmatprep.subr.bf16.mxu0 %v7944
  %8561 = vmatpush1.bf16.msra.mxu0 %v7943
  %8562 = vmatprep.mubr.bf16.mxu0 %v6772
  %8563 = vmatmul.mubr.bf16.gmra.mrb[0].mxu0 %v6771
  %v8564 = vpop.f32.mrb[0].mxu0
  %v8565 = vadd.f32 %v8512, %v8564
  %v8566 = vpop.f32.mrb[0].mxu0
  %v8567 = vadd.f32 %v8514, %v8566
  %v8568 = vpop.f32.mrb[0].mxu0
  %v8569 = vadd.f32 %v8516, %v8568
  %v8570 = vpop.f32.mrb[0].mxu0
  %v8571 = vadd.f32 %v8518, %v8570
  %8572 = vmatprep.mubr.bf16.mxu0 %v6916
  %8573 = vmatmul.mubr.bf16.gmra.mrb[0].mxu0 %v6915
  %v8574 = vpop.f32.mrb[0].mxu0
  %v8575 = vadd.f32 %v8522, %v8574
  %v8576 = vpop.f32.mrb[0].mxu0
  %v8577 = vadd.f32 %v8524, %v8576
  %v8578 = vpop.f32.mrb[0].mxu0
  %v8579 = vadd.f32 %v8526, %v8578
  %v8580 = vpop.f32.mrb[0].mxu0
  %v8581 = vadd.f32 %v8528, %v8580
  %8582 = vdwg.mxu0
  %8583 = vmatprep.subr.bf16.mxu0 %v7946
  %8584 = vmatpush1.bf16.msra.mxu0 %v7945
  %8585 = vmatprep.subr.bf16.mxu0 %v7948
  %8586 = vmatpush1.bf16.msra.mxu0 %v7947
  %8587 = vmatprep.subr.bf16.mxu0 %v7950
  %8588 = vmatpush1.bf16.msra.mxu0 %v7949
  %8589 = vmatprep.subr.bf16.mxu0 %v7952
  %8590 = vmatpush1.bf16.msra.mxu0 %v7951
  %8591 = vmatprep.subr.bf16.mxu0 %v7954
  %8592 = vmatpush1.bf16.msra.mxu0 %v7953
  %8593 = vmatprep.subr.bf16.mxu0 %v7956
  %8594 = vmatpush1.bf16.msra.mxu0 %v7955
  %8595 = vmatprep.subr.bf16.mxu0 %v7958
  %8596 = vmatpush1.bf16.msra.mxu0 %v7957
  %8597 = vmatprep.subr.bf16.mxu0 %v7960
  %8598 = vmatpush1.bf16.msra.mxu0 %v7959
  %8599 = vmatprep.subr.bf16.mxu0 %v7962
  %8600 = vmatpush1.bf16.msra.mxu0 %v7961
  %8601 = vmatprep.subr.bf16.mxu0 %v7964
  %8602 = vmatpush1.bf16.msra.mxu0 %v7963
  %8603 = vmatprep.subr.bf16.mxu0 %v7966
  %8604 = vmatpush1.bf16.msra.mxu0 %v7965
  %8605 = vmatprep.subr.bf16.mxu0 %v7968
  %8606 = vmatpush1.bf16.msra.mxu0 %v7967
  %8607 = vmatprep.subr.bf16.mxu0 %v7970
  %8608 = vmatpush1.bf16.msra.mxu0 %v7969
  %8609 = vmatprep.subr.bf16.mxu0 %v7972
  %8610 = vmatpush1.bf16.msra.mxu0 %v7971
  %8611 = vmatprep.subr.bf16.mxu0 %v7974
  %8612 = vmatpush1.bf16.msra.mxu0 %v7973
  %8613 = vmatprep.subr.bf16.mxu0 %v7976
  %8614 = vmatpush1.bf16.msra.mxu0 %v7975
  %8615 = vmatprep.mubr.bf16.mxu0 %v6806
  %8616 = vmatmul.mubr.bf16.gmra.mrb[0].mxu0 %v6805
  %v8617 = vpop.f32.mrb[0].mxu0
  %v8618 = vadd.f32 %v8565, %v8617
  %v8619 = vpop.f32.mrb[0].mxu0
  %v8620 = vadd.f32 %v8567, %v8619
  %v8621 = vpop.f32.mrb[0].mxu0
  %v8622 = vadd.f32 %v8569, %v8621
  %v8623 = vpop.f32.mrb[0].mxu0
  %v8624 = vadd.f32 %v8571, %v8623
  %8625 = vmatprep.mubr.bf16.mxu0 %v6950
  %8626 = vmatmul.mubr.bf16.gmra.mrb[0].mxu0 %v6949
  %v8627 = vpop.f32.mrb[0].mxu0
  %v8628 = vadd.f32 %v8575, %v8627
  %v8629 = vpop.f32.mrb[0].mxu0
  %v8630 = vadd.f32 %v8577, %v8629
  %v8631 = vpop.f32.mrb[0].mxu0
  %v8632 = vadd.f32 %v8579, %v8631
  %v8633 = vpop.f32.mrb[0].mxu0
  %v8634 = vadd.f32 %v8581, %v8633
  %8635 = vdwg.mxu0
  %8636 = vmatprep.subr.bf16.mxu0 %v7978
  %8637 = vmatpush1.bf16.msra.mxu0 %v7977
  %8638 = vmatprep.subr.bf16.mxu0 %v7980
  %8639 = vmatpush1.bf16.msra.mxu0 %v7979
  %8640 = vmatprep.subr.bf16.mxu0 %v7982
  %8641 = vmatpush1.bf16.msra.mxu0 %v7981
  %8642 = vmatprep.subr.bf16.mxu0 %v7984
  %8643 = vmatpush1.bf16.msra.mxu0 %v7983
  %8644 = vmatprep.subr.bf16.mxu0 %v7986
  %8645 = vmatpush1.bf16.msra.mxu0 %v7985
  %8646 = vmatprep.subr.bf16.mxu0 %v7988
  %8647 = vmatpush1.bf16.msra.mxu0 %v7987
  %8648 = vmatprep.subr.bf16.mxu0 %v7990
  %8649 = vmatpush1.bf16.msra.mxu0 %v7989
  %8650 = vmatprep.subr.bf16.mxu0 %v7992
  %8651 = vmatpush1.bf16.msra.mxu0 %v7991
  %8652 = vmatprep.subr.bf16.mxu0 %v7994
  %8653 = vmatpush1.bf16.msra.mxu0 %v7993
  %8654 = vmatprep.subr.bf16.mxu0 %v7996
  %8655 = vmatpush1.bf16.msra.mxu0 %v7995
  %8656 = vmatprep.subr.bf16.mxu0 %v7998
  %8657 = vmatpush1.bf16.msra.mxu0 %v7997
  %8658 = vmatprep.subr.bf16.mxu0 %v8000
  %8659 = vmatpush1.bf16.msra.mxu0 %v7999
  %8660 = vmatprep.subr.bf16.mxu0 %v8002
  %8661 = vmatpush1.bf16.msra.mxu0 %v8001
  %8662 = vmatprep.subr.bf16.mxu0 %v8004
  %8663 = vmatpush1.bf16.msra.mxu0 %v8003
  %8664 = vmatprep.subr.bf16.mxu0 %v8006
  %8665 = vmatpush1.bf16.msra.mxu0 %v8005
  %8666 = vmatprep.subr.bf16.mxu0 %v8008
  %8667 = vmatpush1.bf16.msra.mxu0 %v8007
  %8668 = vmatprep.mubr.bf16.mxu0 %v6808
  %8669 = vmatmul.mubr.bf16.gmra.mrb[0].mxu0 %v6807
  %v8670 = vpop.f32.mrb[0].mxu0
  %v8671 = vadd.f32 %v8618, %v8670
  %v8672 = vpop.f32.mrb[0].mxu0
  %v8673 = vadd.f32 %v8620, %v8672
  %v8674 = vpop.f32.mrb[0].mxu0
  %v8675 = vadd.f32 %v8622, %v8674
  %v8676 = vpop.f32.mrb[0].mxu0
  %v8677 = vadd.f32 %v8624, %v8676
  %8678 = vmatprep.mubr.bf16.mxu0 %v6952
  %8679 = vmatmul.mubr.bf16.gmra.mrb[0].mxu0 %v6951
  %v8680 = vpop.f32.mrb[0].mxu0
  %v8681 = vadd.f32 %v8628, %v8680
  %v8682 = vpop.f32.mrb[0].mxu0
  %v8683 = vadd.f32 %v8630, %v8682
  %v8684 = vpop.f32.mrb[0].mxu0
  %v8685 = vadd.f32 %v8632, %v8684
  %v8686 = vpop.f32.mrb[0].mxu0
  %v8687 = vadd.f32 %v8634, %v8686
  %8688 = vdwg.mxu0
  %v8689 = vadd.f32 %v8671, %v8675
  %v8690 = vadd.f32 %v8689, %v8681
  %v8691 = vadd.f32 %v8690, %v8685
  %v8692 = vrot.slane %v8691, 4
  %v8693 = vadd.f32 %v8691, %v8692
  %v8694 = vrot.slane %v8693, 2
  %v8695 = vadd.f32 %v8693, %v8694
  %v8696 = vrot.slane %v8695, 1
  %v8697 = vadd.f32 %v8695, %v8696
  %v8698 = vadd.f32 %v8673, %v8677
  %v8699 = vadd.f32 %v8698, %v8683
  %v8700 = vadd.f32 %v8699, %v8687
  %v8701 = vrot.slane %v8700, 4
  %v8702 = vadd.f32 %v8700, %v8701
  %v8703 = vrot.slane %v8702, 2
  %v8704 = vadd.f32 %v8702, %v8703
  %v8705 = vrot.slane %v8704, 1
  %v8706 = vadd.f32 %v8704, %v8705
  %v8707 = vrcp.pop 32.0
  %v8708 = vmul.f32 %v8697, %v8707
  %v8709 = vmul.f32 %v8706, %v8707
  %v8710 = vsub.f32 %v8671, %v8708
  %v8711 = vsub.f32 %v8673, %v8709
  %v8712 = vsub.f32 %v8675, %v8708
  %v8713 = vsub.f32 %v8677, %v8709
  %v8714 = vsub.f32 %v8681, %v8708
  %v8715 = vsub.f32 %v8683, %v8709
  %v8716 = vsub.f32 %v8685, %v8708
  %v8717 = vsub.f32 %v8687, %v8709
  %v8718 = vmul.f32 %v8710, %v8710
  %v8719 = vmul.f32 %v8711, %v8711
  %v8720 = vmul.f32 %v8712, %v8712
  %v8721 = vmul.f32 %v8713, %v8713
  %v8722 = vmul.f32 %v8714, %v8714
  %v8723 = vmul.f32 %v8715, %v8715
  %v8724 = vmul.f32 %v8716, %v8716
  %v8725 = vmul.f32 %v8717, %v8717
  %v8726 = vadd.f32 %v8718, %v8720
  %v8727 = vadd.f32 %v8726, %v8722
  %v8728 = vadd.f32 %v8727, %v8724
  %v8729 = vrot.slane %v8728, 4
  %v8730 = vadd.f32 %v8728, %v8729
  %v8731 = vrot.slane %v8730, 2
  %v8732 = vadd.f32 %v8730, %v8731
  %v8733 = vrot.slane %v8732, 1
  %v8734 = vadd.f32 %v8732, %v8733
  %v8735 = vadd.f32 %v8719, %v8721
  %v8736 = vadd.f32 %v8735, %v8723
  %v8737 = vadd.f32 %v8736, %v8725
  %v8738 = vrot.slane %v8737, 4
  %v8739 = vadd.f32 %v8737, %v8738
  %v8740 = vrot.slane %v8739, 2
  %v8741 = vadd.f32 %v8739, %v8740
  %v8742 = vrot.slane %v8741, 1
  %v8743 = vadd.f32 %v8741, %v8742
  %v8744 = vmul.f32 %v8734, %v8707
  %v8745 = vmul.f32 %v8743, %v8707
  %v8746 = vadd.f32 %v8744, 1e-05
  %v8747 = vadd.f32 %v8745, 1e-05
  %v8748 = vrsqrt.pop %v8746
  %v8749 = vrsqrt.pop %v8747
  %v8750 = vmul.f32 %v8710, %v8748
  %v8751 = vmul.f32 %v8711, %v8749
  %v8752 = vmul.f32 %v8712, %v8748
  %v8753 = vmul.f32 %v8713, %v8749
  %v8754 = vmul.f32 %v8714, %v8748
  %v8755 = vmul.f32 %v8715, %v8749
  %v8756 = vmul.f32 %v8716, %v8748
  %v8757 = vmul.f32 %v8717, %v8749
  %v8758 = vld [vmem:[%s6] sm:$0x3]
  %v8760 = vlaneseq
  %v8761 = vshrl.u32 %v8760, 7
  %v8762 = vsub.s32 0, %v8761
  %v8763 = vrot.slane %v8758, %v8762
  %v8764 = vlaneseq
  %v8765 = vshrl.u32 %v8764, 7
  %v8766 = vsub.s32 1, %v8765
  %v8767 = vrot.slane %v8758, %v8766
  %v8770 = vmul.f32 %v8750, %v8763
  %v8771 = vmul.f32 %v8751, %v8767
  %v8772 = vmul.f32 %v8752, %v8763
  %v8773 = vmul.f32 %v8753, %v8767
  %v8774 = vmul.f32 %v8754, %v8763
  %v8775 = vmul.f32 %v8755, %v8767
  %v8776 = vmul.f32 %v8756, %v8763
  %v8777 = vmul.f32 %v8757, %v8767
  %v8778 = vld [vmem:[%s7] sm:$0x3]
  %v8780 = vlaneseq
  %v8781 = vshrl.u32 %v8780, 7
  %v8782 = vsub.s32 0, %v8781
  %v8783 = vrot.slane %v8778, %v8782
  %v8784 = vlaneseq
  %v8785 = vshrl.u32 %v8784, 7
  %v8786 = vsub.s32 1, %v8785
  %v8787 = vrot.slane %v8778, %v8786
  %v8790 = vadd.f32 %v8770, %v8783
  %v8791 = vadd.f32 %v8771, %v8787
  %v8792 = vadd.f32 %v8772, %v8783
  %v8793 = vadd.f32 %v8773, %v8787
  %v8794 = vadd.f32 %v8774, %v8783
  %v8795 = vadd.f32 %v8775, %v8787
  %v8796 = vadd.f32 %v8776, %v8783
  %v8797 = vadd.f32 %v8777, %v8787
  %vm8798 = vcmp.ge.f32.partialorder %v8790, 0.0
  %vm8799 = vcmp.ge.f32.partialorder %v8791, 0.0
  %vm8800 = vcmp.ge.f32.partialorder %v8792, 0.0
  %vm8801 = vcmp.ge.f32.partialorder %v8793, 0.0
  %vm8802 = vcmp.ge.f32.partialorder %v8794, 0.0
  %vm8803 = vcmp.ge.f32.partialorder %v8795, 0.0
  %vm8804 = vcmp.ge.f32.partialorder %v8796, 0.0
  %vm8805 = vcmp.ge.f32.partialorder %v8797, 0.0
  %v8806 = vmul.f32 %v8790, 0.2
  %v8807 = vmul.f32 %v8791, 0.2
  %v8808 = vmul.f32 %v8792, 0.2
  %v8809 = vmul.f32 %v8793, 0.2
  %v8810 = vmul.f32 %v8794, 0.2
  %v8811 = vmul.f32 %v8795, 0.2
  %v8812 = vmul.f32 %v8796, 0.2
  %v8813 = vmul.f32 %v8797, 0.2
  %v8814 = vsel %vm8798, %v8790, %v8806
  %v8815 = vsel %vm8799, %v8791, %v8807
  %v8816 = vsel %vm8800, %v8792, %v8808
  %v8817 = vsel %vm8801, %v8793, %v8809
  %v8818 = vsel %vm8802, %v8794, %v8810
  %v8819 = vsel %vm8803, %v8795, %v8811
  %v8820 = vsel %vm8804, %v8796, %v8812
  %v8821 = vsel %vm8805, %v8797, %v8813
  %v8822 = vld [vmem:[%s8] sm:$0xff]
  %v8823 = vld [vmem:[%s8 + $0x8] sm:$0xff]
  %v8824 = vld [vmem:[%s8 + $0x10] sm:$0xff]
  %v8825 = vld [vmem:[%s8 + $0x18] sm:$0xff]
  %v8826 = vmul.f32 %v8814, %v8822
  %v8827 = vmul.f32 %v8815, %v8823
  %v8828 = vmul.f32 %v8816, %v8824
  %v8829 = vmul.f32 %v8817, %v8825
  %v8830 = vmul.f32 %v8818, %v8822
  %v8831 = vmul.f32 %v8819, %v8823
  %v8832 = vmul.f32 %v8820, %v8824
  %v8833 = vmul.f32 %v8821, %v8825
  %v8834 = vadd.f32 %v8826, %v8827
  %8835 = vadd.xlane.f32.xlu0 %v8834
  %v8836 = vpop.xlane.xlu0 %8835
  %v8837 = vadd.f32 %v8828, %v8829
  %8838 = vadd.xlane.f32.xlu0 %v8837
  %v8839 = vpop.xlane.xlu0 %8838
  %v8840 = vadd.f32 %v8830, %v8831
  %8841 = vadd.xlane.f32.xlu0 %v8840
  %v8842 = vpop.xlane.xlu0 %8841
  %v8843 = vadd.f32 %v8832, %v8833
  %8844 = vadd.xlane.f32.xlu0 %v8843
  %v8845 = vpop.xlane.xlu0 %8844
  %v8846 = vadd.f32 %v8836, %v8839
  %v8847 = vrot.slane %v8846, 4
  %v8848 = vadd.f32 %v8846, %v8847
  %v8849 = vrot.slane %v8848, 2
  %v8850 = vadd.f32 %v8848, %v8849
  %v8851 = vrot.slane %v8850, 1
  %v8852 = vadd.f32 %v8850, %v8851
  %v8853 = vadd.f32 %v8842, %v8845
  %v8854 = vrot.slane %v8853, 4
  %v8855 = vadd.f32 %v8853, %v8854
  %v8856 = vrot.slane %v8855, 2
  %v8857 = vadd.f32 %v8855, %v8856
  %v8858 = vrot.slane %v8857, 1
  %v8859 = vadd.f32 %v8857, %v8858
  %v8860 = vxor.u32 %v8852, 2147483648
  %v8861 = vxor.u32 %v8859, 2147483648
  %v8862 = vmul.f32 %v8860, 1.442695
  %v8863 = vpow.pop %v8862
  %v8864 = vmul.f32 %v8861, 1.442695
  %v8865 = vpow.pop %v8864
  %v8866 = vadd.f32 %v8863, 1.0
  %v8867 = vadd.f32 %v8865, 1.0
  %v8868 = vrcp.pop %v8866
  %v8869 = vmul.f32 1.0, %v8868
  %v8870 = vrcp.pop %v8867
  %v8871 = vmul.f32 1.0, %v8870
  %vm8874 = vcmask 1041409
  %v8875 = vsel %vm8874, %v8871, %v8869
  %vm8877 = vcmask 1024
  %8878 = vst.msk [vmem:[%s9] sm:$0x3] %vm8877, %v8875
  // Predicated region
  $region38: #{discriminator_forward.1} parent=0 // pred_check
    _
  $region39: #{discriminator_forward.1} parent=0 // pred_check_branch
    %8880 = sbr.rel (0) target = $region41
  $region40: #{discriminator_forward.1} parent=0 // pred_region
    _
  $region41: #{discriminator_forward.1} parent=0 // pred_fallthru
    _
  // Predicated region
  $region42: #{discriminator_forward.1} parent=0 // pred_check
    _
  $region43: #{discriminator_forward.1} parent=0 // pred_check_branch
    %8882 = sbr.rel (0) target = $region45
  $region44: #{discriminator_forward.1} parent=0 // pred_region
    _
  $region45: #{discriminator_forward.1} parent=0 // pred_fallthru
    _

</llo_original>
